<compile_context>
chip_gen: v7x
topology: tpu7x:2x2x1
jax: 0.10.0
libtpu: 0.0.40
codegen_flags: <defaults>
</compile_context>

<pallas_src>
import functools

import jax
import jax.numpy as jnp
import numpy as np
from jax.experimental import pallas as pl
from jax.experimental.pallas import tpu as pltpu


# ----------------------------------------------------------------------------
# Pallas kernel.  Layout: landmarks on sublanes, points on lanes (lane-dense).
# ----------------------------------------------------------------------------
def _gs_lmk_kernel(xT_ref, coef_ref, out_ref, *, n_lmk, degree, chunk_w, n_chunks):
    # xT_ref  : (4, TN)              VMEM  rows = [x0, x1, x2, x.col2]
    # coef_ref: (L, 10)              VMEM  per-landmark:
    #            [l0, l1, l2, lmk.col2, -0.5*P00, -0.5*P11, -0.5*P22, -P01, -P02, -P12]
    # out_ref : ((1+2*degree)*L, TN) VMEM  feature-block major, landmark minor (= out^T)
    L = n_lmk
    od = out_ref.dtype

    # Per-landmark columns, read once (small, reused by every chunk).
    # NOTE: the (L, 1) -> (L, chunk_w) lane-broadcasts are deliberately NOT hoisted to
    # full planes above the loop: 10 hoisted (L, chunk_w) f32 planes would be ~80 vregs
    # and force spills; the per-use splat is cheap relative to the store-bound body.
    coef = coef_ref[...]
    l0 = coef[:, 0:1]
    l1 = coef[:, 1:2]
    l2 = coef[:, 2:3]
    lz = coef[:, 3:4]
    a00 = coef[:, 4:5]
    a11 = coef[:, 5:6]
    a22 = coef[:, 6:7]
    a01 = coef[:, 7:8]
    a02 = coef[:, 8:9]
    a12 = coef[:, 9:10]

    # Static unroll over lane chunks: keeps each (L, chunk_w) plane small enough that
    # the ~6-7 live planes fit the 64-vreg budget while the grid step stays large.
    for ci in range(n_chunks):
        c0 = ci * chunk_w
        c1 = c0 + chunk_w

        x0 = xT_ref[0:1, c0:c1]                   # (1, CW)
        x1 = xT_ref[1:2, c0:c1]
        x2 = xT_ref[2:3, c0:c1]
        xz = xT_ref[3:4, c0:c1]

        d0 = x0 - l0                              # (L, CW)
        d1 = x1 - l1
        d2 = x2 - l2
        dz = xz - lz

        # exponent = -0.5 * wdxyz^T P wdxyz  (the -0.5 / cross-term 2x are folded into a*)
        e = (a00 * (d0 * d0) + a11 * (d1 * d1) + a22 * (d2 * d2)
             + a01 * (d0 * d1) + a02 * (d0 * d2) + a12 * (d1 * d2))
        w = jnp.exp(e)                            # trunc_exp forward == exp

        out_ref[0:L, c0:c1] = (dz * w).astype(od)
        if degree >= 1:
            s = jnp.sin(dz)                       # EUP, once per chunk
            c = jnp.cos(dz)
            out_ref[L:2 * L, c0:c1] = (s * w).astype(od)
            out_ref[2 * L:3 * L, c0:c1] = (c * w).astype(od)
            for k in range(1, degree):
                if k % 4 == 0:
                    # re-seed against compounding f32 error at large degree
                    s = jnp.sin(dz * float(2 ** k))
                    c = jnp.cos(dz * float(2 ** k))
                else:
                    s, c = 2.0 * s * c, 1.0 - 2.0 * s * s   # double-angle, VPU only
                out_ref[(1 + 2 * k) * L:(2 + 2 * k) * L, c0:c1] = (s * w).astype(od)
                out_ref[(2 + 2 * k) * L:(3 + 2 * k) * L, c0:c1] = (c * w).astype(od)


# ----------------------------------------------------------------------------
# Parameter-side glue: quaternion -> R, M = R diag(1/s), P = M M^T (precision).
# ----------------------------------------------------------------------------
def build_precision(scaling, rotation):
    q = rotation / jnp.linalg.norm(rotation, axis=1, keepdims=True)
    r, i, j, k = q[:, 0], q[:, 1], q[:, 2], q[:, 3]
    R = jnp.stack([
        jnp.stack([1 - 2 * (j * j + k * k), 2 * (i * j - r * k), 2 * (i * k + r * j)], -1),
        jnp.stack([2 * (i * j + r * k), 1 - 2 * (i * i + k * k), 2 * (j * k - r * i)], -1),
        jnp.stack([2 * (i * k - r * j), 2 * (j * k + r * i), 1 - 2 * (i * i + j * j)], -1),
    ], axis=-2)                                            # (L, 3, 3)
    M = R * (1.0 / scaling)[:, None, :]                    # R @ diag(1/s)
    P = M @ jnp.swapaxes(M, 1, 2)                          # (L, 3, 3) symmetric
    return P


def gs_lmk_encoder_t(x, lmk, r, scaling, rotation, *, degree=2, tile_n=8192,
                     out_dtype=None, slice_to_n=True):
    """Hot path: returns out^T of shape (out_dim, N) — no output transpose."""
    N = x.shape[0]
    L = lmk.shape[0]
    n_feat = 1 + 2 * degree
    out_dim = n_feat * L
    out_dtype = x.dtype if out_dtype is None else out_dtype
    out_bytes = jnp.dtype(out_dtype).itemsize

    # Inner chunk width: L * chunk_w <= ~8K f32 elements per plane (vreg budget).
    chunk_w = max(128, min(512, (8192 // max(L, 1)) // 128 * 128))

    # Tile sizing: multiple of chunk_w, large bytes-per-step, but
    #   - >= 2 grid steps when the data allows it (v7x has 2 TensorCores),
    #   - within a conservative VMEM budget (double-buffered blocks).
    tile_n = max(chunk_w, (int(tile_n) // chunk_w) * chunk_w)
    n_cover = pl.cdiv(N, chunk_w) * chunk_w
    tile_n = min(tile_n, n_cover)
    if tile_n == n_cover and n_cover >= 2 * chunk_w:
        tile_n = pl.cdiv(n_cover // 2, chunk_w) * chunk_w

    def _vmem_bytes(tn):
        return 2 * (out_dim * tn * out_bytes + 4 * tn * 4) + 2 * L * 10 * 4

    vmem_budget = 24 << 20                       # headroom under 32 MiB scoped limit
    while tile_n > chunk_w and _vmem_bytes(tile_n) > vmem_budget:
        tile_n -= chunk_w

    n_pad = pl.cdiv(N, tile_n) * tile_n
    n_chunks = tile_n // chunk_w

    # Inputs.  x^T with the r[:,2] projection appended as a 4th row (single fused
    # wrapper pass; keep x in (3/4, N) layout upstream to remove it entirely).
    col2 = r[:3, 2].astype(jnp.float32)
    xf = x.astype(jnp.float32)
    xT = jnp.concatenate([jnp.transpose(xf), (xf @ col2)[None, :]], axis=0)   # (4, N)
    if n_pad != N:
        xT = jnp.pad(xT, ((0, 0), (0, n_pad - N)))

    P = build_precision(scaling.astype(jnp.float32), rotation.astype(jnp.float32))
    lmk_f = lmk.astype(jnp.float32)
    lz = lmk_f @ col2                                      # (L,)
    coef = jnp.concatenate([
        lmk_f,                                             # l0, l1, l2
        lz[:, None],                                       # lmk . col2
        (-0.5 * P[:, 0, 0])[:, None],                      # -0.5 folded in
        (-0.5 * P[:, 1, 1])[:, None],
        (-0.5 * P[:, 2, 2])[:, None],
        (-1.0 * P[:, 0, 1])[:, None],                      # -0.5 * 2 * P_ij
        (-1.0 * P[:, 0, 2])[:, None],
        (-1.0 * P[:, 1, 2])[:, None],
    ], axis=1).astype(jnp.float32)                         # (L, 10)

    kernel = functools.partial(_gs_lmk_kernel, n_lmk=L, degree=degree,
                               chunk_w=chunk_w, n_chunks=n_chunks)
    cost = pl.CostEstimate(
        flops=int(25 * L * N),
        transcendentals=int(3 * L * N),
        bytes_accessed=int((16 + out_bytes * out_dim) * N),
    )

    outT = pl.pallas_call(
        kernel,
        out_shape=jax.ShapeDtypeStruct((out_dim, n_pad), out_dtype),
        grid=(n_pad // tile_n,),
        in_specs=[
            pl.BlockSpec((4, tile_n), lambda i: (0, i)),   # x^T tile (points on lanes)
            pl.BlockSpec((L, 10), lambda i: (0, 0)),       # per-landmark coefficients
        ],
        out_specs=pl.BlockSpec((out_dim, tile_n), lambda i: (0, i)),
        compiler_params=pltpu.CompilerParams(
            dimension_semantics=("parallel",),
            vmem_limit_bytes=32 << 20,                     # fits v5e/v6e/v7x physical VMEM
        ),
        cost_estimate=cost,
    )(xT, coef)

    if slice_to_n and n_pad != N:
        outT = outT[:, :N]
    return outT


def gs_lmk_encoder(x, lmk, r, scaling, rotation, *, degree=2, tile_n=8192, out_dtype=None):
    """Module-layout compatibility wrapper: (N, out_dim).

    The transpose below is pure layout plumbing over the largest tensor; prefer
    gs_lmk_encoder_t() and consume out^T directly (or fuse the transpose into the
    downstream matmul)."""
    outT = gs_lmk_encoder_t(x, lmk, r, scaling, rotation, degree=degree,
                            tile_n=tile_n, out_dtype=out_dtype)
    return jnp.transpose(outT)


# ----------------------------------------------------------------------------
# Pure-JAX reference (mirrors the PyTorch forward).
# ----------------------------------------------------------------------------
def reference(x, lmk, r, scaling, rotation, degree=2):
    wdxyz = x[None, :, :] - lmk[:, None, :]                # (L, N, 3)
    col2 = r[:3, 2]
    dz = (wdxyz * col2).sum(-1)                            # (L, N)
    P = build_precision(scaling, rotation)
    maha = jnp.einsum('lna,lab,lnb->ln', wdxyz, P, wdxyz)
    w = jnp.exp(-0.5 * maha)                               # (L, N)
    z = dz.T                                               # (N, L)
    feats = [z]
    for k in range(degree):
        feats += [jnp.sin(z * 2 ** k), jnp.cos(z * 2 ** k)]
    out = jnp.concatenate(feats, axis=-1)                  # (N, (1+2d)*L)
    F = 1 + 2 * degree
    out = out.reshape(-1, F, lmk.shape[0]) * w.T[:, None, :]
    return out.reshape(-1, F * lmk.shape[0])


if __name__ == "__main__":
    key = jax.random.PRNGKey(0)
    k_x, k_l = jax.random.split(key)

    # Small shapes consistent with the module: N points, n_lmk landmarks, degree=2.
    # N chosen so the grid has >1 step, the inner chunk loop has >1 chunk, and the
    # last tile is zero-padded (all code paths exercised).
    N, n_lmk, degree, sigma = 2500, 16, 2, 0.05

    # Deterministic parameter init per GsLmkEncoder.__init__
    scaling = jnp.ones((n_lmk, 3), jnp.float32) * sigma
    rotation = jnp.zeros((n_lmk, 4), jnp.float32).at[:, 0].set(1.0)

    x = 0.05 * jax.random.normal(k_x, (N, 3), jnp.float32)
    lmk = 0.05 * jax.random.normal(k_l, (n_lmk, 3), jnp.float32)
    theta = 0.3
    r = jnp.array([[jnp.cos(theta), -jnp.sin(theta), 0.0],
                   [jnp.sin(theta), jnp.cos(theta), 0.0],
                   [0.0, 0.0, 1.0]], jnp.float32)

    out_dim = (1 + 2 * degree) * n_lmk
    ref = jax.block_until_ready(reference(x, lmk, r, scaling, rotation, degree=degree))

    # Hot path: transposed output (out_dim, N), f32.
    outT = jax.block_until_ready(
        gs_lmk_encoder_t(x, lmk, r, scaling, rotation, degree=degree))
    assert outT.shape == (out_dim, N)
    np.testing.assert_allclose(np.asarray(outT), np.asarray(ref).T, rtol=1e-5, atol=1e-5)

    # Hot path with bf16 output (halves HBM write bytes); math stays f32 in-kernel.
    outT_bf16 = jax.block_until_ready(
        gs_lmk_encoder_t(x, lmk, r, scaling, rotation, degree=degree,
                         out_dtype=jnp.bfloat16))
    assert outT_bf16.dtype == jnp.bfloat16 and outT_bf16.shape == (out_dim, N)
    np.testing.assert_allclose(np.asarray(outT_bf16.astype(jnp.float32)),
                               np.asarray(ref).T, rtol=2e-2, atol=2e-3)

    # Module-layout compatibility wrapper (N, out_dim).
    out = jax.block_until_ready(
        gs_lmk_encoder(x, lmk, r, scaling, rotation, degree=degree))
    assert out.shape == (N, out_dim)
    np.testing.assert_allclose(np.asarray(out), np.asarray(ref), rtol=1e-5, atol=1e-5)

    print("KERNEL_OK")
</pallas_src>

<mosaic_0001>
module attributes {stable_mosaic.version = 11 : i64} {
  func.func @_gs_lmk_kernel(%arg0: i32, %arg1: memref<4x1536xf32, #tpu.memory_space<vmem>>, %arg2: memref<16x10xf32, #tpu.memory_space<vmem>>, %arg3: memref<80x1536xf32, #tpu.memory_space<vmem>>) attributes {dimension_semantics = [#tpu.dimension_semantics<parallel>], iteration_bounds = array<i64: 2>, scalar_prefetch = 0 : i64, scratch_operands = 0 : i64, tpu.core_type = #tpu.core_type<tc>, window_params = [{transform_indices = @transform_0, window_bounds = array<i64: 4, 1536>}, {pipeline_mode = #tpu.pipeline_mode<synchronous>, transform_indices = @transform_1, window_bounds = array<i64: 16, 10>}, {transform_indices = @transform_2, window_bounds = array<i64: 80, 1536>}]} {
    %c0 = arith.constant 0 : index
    %c0_0 = arith.constant 0 : index
    %0 = vector.load %arg2[%c0, %c0_0] : memref<16x10xf32, #tpu.memory_space<vmem>>, vector<16x10xf32>
    %1 = vector.extract_strided_slice %0 {offsets = [0, 0], sizes = [16, 1], strides = [1, 1]} : vector<16x10xf32> to vector<16x1xf32>
    %2 = vector.extract_strided_slice %0 {offsets = [0, 1], sizes = [16, 1], strides = [1, 1]} : vector<16x10xf32> to vector<16x1xf32>
    %3 = vector.extract_strided_slice %0 {offsets = [0, 2], sizes = [16, 1], strides = [1, 1]} : vector<16x10xf32> to vector<16x1xf32>
    %4 = vector.extract_strided_slice %0 {offsets = [0, 3], sizes = [16, 1], strides = [1, 1]} : vector<16x10xf32> to vector<16x1xf32>
    %5 = vector.extract_strided_slice %0 {offsets = [0, 4], sizes = [16, 1], strides = [1, 1]} : vector<16x10xf32> to vector<16x1xf32>
    %6 = vector.extract_strided_slice %0 {offsets = [0, 5], sizes = [16, 1], strides = [1, 1]} : vector<16x10xf32> to vector<16x1xf32>
    %7 = vector.extract_strided_slice %0 {offsets = [0, 6], sizes = [16, 1], strides = [1, 1]} : vector<16x10xf32> to vector<16x1xf32>
    %8 = vector.extract_strided_slice %0 {offsets = [0, 7], sizes = [16, 1], strides = [1, 1]} : vector<16x10xf32> to vector<16x1xf32>
    %9 = vector.extract_strided_slice %0 {offsets = [0, 8], sizes = [16, 1], strides = [1, 1]} : vector<16x10xf32> to vector<16x1xf32>
    %10 = vector.extract_strided_slice %0 {offsets = [0, 9], sizes = [16, 1], strides = [1, 1]} : vector<16x10xf32> to vector<16x1xf32>
    %c0_1 = arith.constant 0 : index
    %c0_2 = arith.constant 0 : index
    %11 = vector.load %arg1[%c0_1, %c0_2] : memref<4x1536xf32, #tpu.memory_space<vmem>>, vector<1x512xf32>
    %c1 = arith.constant 1 : index
    %c0_3 = arith.constant 0 : index
    %12 = vector.load %arg1[%c1, %c0_3] : memref<4x1536xf32, #tpu.memory_space<vmem>>, vector<1x512xf32>
    %c2 = arith.constant 2 : index
    %c0_4 = arith.constant 0 : index
    %13 = vector.load %arg1[%c2, %c0_4] : memref<4x1536xf32, #tpu.memory_space<vmem>>, vector<1x512xf32>
    %c3 = arith.constant 3 : index
    %c0_5 = arith.constant 0 : index
    %14 = vector.load %arg1[%c3, %c0_5] : memref<4x1536xf32, #tpu.memory_space<vmem>>, vector<1x512xf32>
    %15 = vector.broadcast %11 : vector<1x512xf32> to vector<16x512xf32>
    %16 = vector.broadcast %1 : vector<16x1xf32> to vector<16x512xf32>
    %17 = arith.subf %15, %16 : vector<16x512xf32>
    %18 = vector.broadcast %12 : vector<1x512xf32> to vector<16x512xf32>
    %19 = vector.broadcast %2 : vector<16x1xf32> to vector<16x512xf32>
    %20 = arith.subf %18, %19 : vector<16x512xf32>
    %21 = vector.broadcast %13 : vector<1x512xf32> to vector<16x512xf32>
    %22 = vector.broadcast %3 : vector<16x1xf32> to vector<16x512xf32>
    %23 = arith.subf %21, %22 : vector<16x512xf32>
    %24 = vector.broadcast %14 : vector<1x512xf32> to vector<16x512xf32>
    %25 = vector.broadcast %4 : vector<16x1xf32> to vector<16x512xf32>
    %26 = arith.subf %24, %25 : vector<16x512xf32>
    %27 = arith.mulf %17, %17 : vector<16x512xf32>
    %28 = vector.broadcast %5 : vector<16x1xf32> to vector<16x512xf32>
    %29 = arith.mulf %28, %27 : vector<16x512xf32>
    %30 = arith.mulf %20, %20 : vector<16x512xf32>
    %31 = vector.broadcast %6 : vector<16x1xf32> to vector<16x512xf32>
    %32 = arith.mulf %31, %30 : vector<16x512xf32>
    %33 = arith.addf %29, %32 : vector<16x512xf32>
    %34 = arith.mulf %23, %23 : vector<16x512xf32>
    %35 = vector.broadcast %7 : vector<16x1xf32> to vector<16x512xf32>
    %36 = arith.mulf %35, %34 : vector<16x512xf32>
    %37 = arith.addf %33, %36 : vector<16x512xf32>
    %38 = arith.mulf %17, %20 : vector<16x512xf32>
    %39 = vector.broadcast %8 : vector<16x1xf32> to vector<16x512xf32>
    %40 = arith.mulf %39, %38 : vector<16x512xf32>
    %41 = arith.addf %37, %40 : vector<16x512xf32>
    %42 = arith.mulf %17, %23 : vector<16x512xf32>
    %43 = vector.broadcast %9 : vector<16x1xf32> to vector<16x512xf32>
    %44 = arith.mulf %43, %42 : vector<16x512xf32>
    %45 = arith.addf %41, %44 : vector<16x512xf32>
    %46 = arith.mulf %20, %23 : vector<16x512xf32>
    %47 = vector.broadcast %10 : vector<16x1xf32> to vector<16x512xf32>
    %48 = arith.mulf %47, %46 : vector<16x512xf32>
    %49 = arith.addf %45, %48 : vector<16x512xf32>
    %50 = math.exp %49 : vector<16x512xf32>
    %51 = arith.mulf %26, %50 : vector<16x512xf32>
    %c0_6 = arith.constant 0 : index
    %c0_7 = arith.constant 0 : index
    %52 = vector.load %arg3[%c0_6, %c0_7] : memref<80x1536xf32, #tpu.memory_space<vmem>>, vector<16x512xf32>
    tpu.vector_store %arg3[%c0_6, %c0_7], %51 {strides = array<i32>} : memref<80x1536xf32, #tpu.memory_space<vmem>>, vector<16x512xf32>,
    %53 = math.sin %26 : vector<16x512xf32>
    %54 = math.cos %26 : vector<16x512xf32>
    %55 = arith.mulf %53, %50 : vector<16x512xf32>
    %c16 = arith.constant 16 : index
    %c0_8 = arith.constant 0 : index
    %56 = vector.load %arg3[%c16, %c0_8] : memref<80x1536xf32, #tpu.memory_space<vmem>>, vector<16x512xf32>
    tpu.vector_store %arg3[%c16, %c0_8], %55 {strides = array<i32>} : memref<80x1536xf32, #tpu.memory_space<vmem>>, vector<16x512xf32>,
    %57 = arith.mulf %54, %50 : vector<16x512xf32>
    %c32 = arith.constant 32 : index
    %c0_9 = arith.constant 0 : index
    %58 = vector.load %arg3[%c32, %c0_9] : memref<80x1536xf32, #tpu.memory_space<vmem>>, vector<16x512xf32>
    tpu.vector_store %arg3[%c32, %c0_9], %57 {strides = array<i32>} : memref<80x1536xf32, #tpu.memory_space<vmem>>, vector<16x512xf32>,
    %cst = arith.constant 2.000000e+00 : f32
    %59 = vector.broadcast %cst : f32 to vector<16x512xf32>
    %60 = arith.mulf %59, %53 : vector<16x512xf32>
    %61 = arith.mulf %60, %54 : vector<16x512xf32>
    %cst_10 = arith.constant 2.000000e+00 : f32
    %62 = vector.broadcast %cst_10 : f32 to vector<16x512xf32>
    %63 = arith.mulf %62, %53 : vector<16x512xf32>
    %64 = arith.mulf %63, %53 : vector<16x512xf32>
    %cst_11 = arith.constant 1.000000e+00 : f32
    %65 = vector.broadcast %cst_11 : f32 to vector<16x512xf32>
    %66 = arith.subf %65, %64 : vector<16x512xf32>
    %67 = arith.mulf %61, %50 : vector<16x512xf32>
    %c48 = arith.constant 48 : index
    %c0_12 = arith.constant 0 : index
    %68 = vector.load %arg3[%c48, %c0_12] : memref<80x1536xf32, #tpu.memory_space<vmem>>, vector<16x512xf32>
    tpu.vector_store %arg3[%c48, %c0_12], %67 {strides = array<i32>} : memref<80x1536xf32, #tpu.memory_space<vmem>>, vector<16x512xf32>,
    %69 = arith.mulf %66, %50 : vector<16x512xf32>
    %c64 = arith.constant 64 : index
    %c0_13 = arith.constant 0 : index
    %70 = vector.load %arg3[%c64, %c0_13] : memref<80x1536xf32, #tpu.memory_space<vmem>>, vector<16x512xf32>
    tpu.vector_store %arg3[%c64, %c0_13], %69 {strides = array<i32>} : memref<80x1536xf32, #tpu.memory_space<vmem>>, vector<16x512xf32>,
    %c0_14 = arith.constant 0 : index
    %c512 = arith.constant 512 : index
    %71 = vector.load %arg1[%c0_14, %c512] : memref<4x1536xf32, #tpu.memory_space<vmem>>, vector<1x512xf32>
    %c1_15 = arith.constant 1 : index
    %c512_16 = arith.constant 512 : index
    %72 = vector.load %arg1[%c1_15, %c512_16] : memref<4x1536xf32, #tpu.memory_space<vmem>>, vector<1x512xf32>
    %c2_17 = arith.constant 2 : index
    %c512_18 = arith.constant 512 : index
    %73 = vector.load %arg1[%c2_17, %c512_18] : memref<4x1536xf32, #tpu.memory_space<vmem>>, vector<1x512xf32>
    %c3_19 = arith.constant 3 : index
    %c512_20 = arith.constant 512 : index
    %74 = vector.load %arg1[%c3_19, %c512_20] : memref<4x1536xf32, #tpu.memory_space<vmem>>, vector<1x512xf32>
    %75 = vector.broadcast %71 : vector<1x512xf32> to vector<16x512xf32>
    %76 = vector.broadcast %1 : vector<16x1xf32> to vector<16x512xf32>
    %77 = arith.subf %75, %76 : vector<16x512xf32>
    %78 = vector.broadcast %72 : vector<1x512xf32> to vector<16x512xf32>
    %79 = vector.broadcast %2 : vector<16x1xf32> to vector<16x512xf32>
    %80 = arith.subf %78, %79 : vector<16x512xf32>
    %81 = vector.broadcast %73 : vector<1x512xf32> to vector<16x512xf32>
    %82 = vector.broadcast %3 : vector<16x1xf32> to vector<16x512xf32>
    %83 = arith.subf %81, %82 : vector<16x512xf32>
    %84 = vector.broadcast %74 : vector<1x512xf32> to vector<16x512xf32>
    %85 = vector.broadcast %4 : vector<16x1xf32> to vector<16x512xf32>
    %86 = arith.subf %84, %85 : vector<16x512xf32>
    %87 = arith.mulf %77, %77 : vector<16x512xf32>
    %88 = vector.broadcast %5 : vector<16x1xf32> to vector<16x512xf32>
    %89 = arith.mulf %88, %87 : vector<16x512xf32>
    %90 = arith.mulf %80, %80 : vector<16x512xf32>
    %91 = vector.broadcast %6 : vector<16x1xf32> to vector<16x512xf32>
    %92 = arith.mulf %91, %90 : vector<16x512xf32>
    %93 = arith.addf %89, %92 : vector<16x512xf32>
    %94 = arith.mulf %83, %83 : vector<16x512xf32>
    %95 = vector.broadcast %7 : vector<16x1xf32> to vector<16x512xf32>
    %96 = arith.mulf %95, %94 : vector<16x512xf32>
    %97 = arith.addf %93, %96 : vector<16x512xf32>
    %98 = arith.mulf %77, %80 : vector<16x512xf32>
    %99 = vector.broadcast %8 : vector<16x1xf32> to vector<16x512xf32>
    %100 = arith.mulf %99, %98 : vector<16x512xf32>
    %101 = arith.addf %97, %100 : vector<16x512xf32>
    %102 = arith.mulf %77, %83 : vector<16x512xf32>
    %103 = vector.broadcast %9 : vector<16x1xf32> to vector<16x512xf32>
    %104 = arith.mulf %103, %102 : vector<16x512xf32>
    %105 = arith.addf %101, %104 : vector<16x512xf32>
    %106 = arith.mulf %80, %83 : vector<16x512xf32>
    %107 = vector.broadcast %10 : vector<16x1xf32> to vector<16x512xf32>
    %108 = arith.mulf %107, %106 : vector<16x512xf32>
    %109 = arith.addf %105, %108 : vector<16x512xf32>
    %110 = math.exp %109 : vector<16x512xf32>
    %111 = arith.mulf %86, %110 : vector<16x512xf32>
    %c0_21 = arith.constant 0 : index
    %c512_22 = arith.constant 512 : index
    %112 = vector.load %arg3[%c0_21, %c512_22] : memref<80x1536xf32, #tpu.memory_space<vmem>>, vector<16x512xf32>
    tpu.vector_store %arg3[%c0_21, %c512_22], %111 {strides = array<i32>} : memref<80x1536xf32, #tpu.memory_space<vmem>>, vector<16x512xf32>,
    %113 = math.sin %86 : vector<16x512xf32>
    %114 = math.cos %86 : vector<16x512xf32>
    %115 = arith.mulf %113, %110 : vector<16x512xf32>
    %c16_23 = arith.constant 16 : index
    %c512_24 = arith.constant 512 : index
    %116 = vector.load %arg3[%c16_23, %c512_24] : memref<80x1536xf32, #tpu.memory_space<vmem>>, vector<16x512xf32>
    tpu.vector_store %arg3[%c16_23, %c512_24], %115 {strides = array<i32>} : memref<80x1536xf32, #tpu.memory_space<vmem>>, vector<16x512xf32>,
    %117 = arith.mulf %114, %110 : vector<16x512xf32>
    %c32_25 = arith.constant 32 : index
    %c512_26 = arith.constant 512 : index
    %118 = vector.load %arg3[%c32_25, %c512_26] : memref<80x1536xf32, #tpu.memory_space<vmem>>, vector<16x512xf32>
    tpu.vector_store %arg3[%c32_25, %c512_26], %117 {strides = array<i32>} : memref<80x1536xf32, #tpu.memory_space<vmem>>, vector<16x512xf32>,
    %cst_27 = arith.constant 2.000000e+00 : f32
    %119 = vector.broadcast %cst_27 : f32 to vector<16x512xf32>
    %120 = arith.mulf %119, %113 : vector<16x512xf32>
    %121 = arith.mulf %120, %114 : vector<16x512xf32>
    %cst_28 = arith.constant 2.000000e+00 : f32
    %122 = vector.broadcast %cst_28 : f32 to vector<16x512xf32>
    %123 = arith.mulf %122, %113 : vector<16x512xf32>
    %124 = arith.mulf %123, %113 : vector<16x512xf32>
    %cst_29 = arith.constant 1.000000e+00 : f32
    %125 = vector.broadcast %cst_29 : f32 to vector<16x512xf32>
    %126 = arith.subf %125, %124 : vector<16x512xf32>
    %127 = arith.mulf %121, %110 : vector<16x512xf32>
    %c48_30 = arith.constant 48 : index
    %c512_31 = arith.constant 512 : index
    %128 = vector.load %arg3[%c48_30, %c512_31] : memref<80x1536xf32, #tpu.memory_space<vmem>>, vector<16x512xf32>
    tpu.vector_store %arg3[%c48_30, %c512_31], %127 {strides = array<i32>} : memref<80x1536xf32, #tpu.memory_space<vmem>>, vector<16x512xf32>,
    %129 = arith.mulf %126, %110 : vector<16x512xf32>
    %c64_32 = arith.constant 64 : index
    %c512_33 = arith.constant 512 : index
    %130 = vector.load %arg3[%c64_32, %c512_33] : memref<80x1536xf32, #tpu.memory_space<vmem>>, vector<16x512xf32>
    tpu.vector_store %arg3[%c64_32, %c512_33], %129 {strides = array<i32>} : memref<80x1536xf32, #tpu.memory_space<vmem>>, vector<16x512xf32>,
    %c0_34 = arith.constant 0 : index
    %c1024 = arith.constant 1024 : index
    %131 = vector.load %arg1[%c0_34, %c1024] : memref<4x1536xf32, #tpu.memory_space<vmem>>, vector<1x512xf32>
    %c1_35 = arith.constant 1 : index
    %c1024_36 = arith.constant 1024 : index
    %132 = vector.load %arg1[%c1_35, %c1024_36] : memref<4x1536xf32, #tpu.memory_space<vmem>>, vector<1x512xf32>
    %c2_37 = arith.constant 2 : index
    %c1024_38 = arith.constant 1024 : index
    %133 = vector.load %arg1[%c2_37, %c1024_38] : memref<4x1536xf32, #tpu.memory_space<vmem>>, vector<1x512xf32>
    %c3_39 = arith.constant 3 : index
    %c1024_40 = arith.constant 1024 : index
    %134 = vector.load %arg1[%c3_39, %c1024_40] : memref<4x1536xf32, #tpu.memory_space<vmem>>, vector<1x512xf32>
    %135 = vector.broadcast %131 : vector<1x512xf32> to vector<16x512xf32>
    %136 = vector.broadcast %1 : vector<16x1xf32> to vector<16x512xf32>
    %137 = arith.subf %135, %136 : vector<16x512xf32>
    %138 = vector.broadcast %132 : vector<1x512xf32> to vector<16x512xf32>
    %139 = vector.broadcast %2 : vector<16x1xf32> to vector<16x512xf32>
    %140 = arith.subf %138, %139 : vector<16x512xf32>
    %141 = vector.broadcast %133 : vector<1x512xf32> to vector<16x512xf32>
    %142 = vector.broadcast %3 : vector<16x1xf32> to vector<16x512xf32>
    %143 = arith.subf %141, %142 : vector<16x512xf32>
    %144 = vector.broadcast %134 : vector<1x512xf32> to vector<16x512xf32>
    %145 = vector.broadcast %4 : vector<16x1xf32> to vector<16x512xf32>
    %146 = arith.subf %144, %145 : vector<16x512xf32>
    %147 = arith.mulf %137, %137 : vector<16x512xf32>
    %148 = vector.broadcast %5 : vector<16x1xf32> to vector<16x512xf32>
    %149 = arith.mulf %148, %147 : vector<16x512xf32>
    %150 = arith.mulf %140, %140 : vector<16x512xf32>
    %151 = vector.broadcast %6 : vector<16x1xf32> to vector<16x512xf32>
    %152 = arith.mulf %151, %150 : vector<16x512xf32>
    %153 = arith.addf %149, %152 : vector<16x512xf32>
    %154 = arith.mulf %143, %143 : vector<16x512xf32>
    %155 = vector.broadcast %7 : vector<16x1xf32> to vector<16x512xf32>
    %156 = arith.mulf %155, %154 : vector<16x512xf32>
    %157 = arith.addf %153, %156 : vector<16x512xf32>
    %158 = arith.mulf %137, %140 : vector<16x512xf32>
    %159 = vector.broadcast %8 : vector<16x1xf32> to vector<16x512xf32>
    %160 = arith.mulf %159, %158 : vector<16x512xf32>
    %161 = arith.addf %157, %160 : vector<16x512xf32>
    %162 = arith.mulf %137, %143 : vector<16x512xf32>
    %163 = vector.broadcast %9 : vector<16x1xf32> to vector<16x512xf32>
    %164 = arith.mulf %163, %162 : vector<16x512xf32>
    %165 = arith.addf %161, %164 : vector<16x512xf32>
    %166 = arith.mulf %140, %143 : vector<16x512xf32>
    %167 = vector.broadcast %10 : vector<16x1xf32> to vector<16x512xf32>
    %168 = arith.mulf %167, %166 : vector<16x512xf32>
    %169 = arith.addf %165, %168 : vector<16x512xf32>
    %170 = math.exp %169 : vector<16x512xf32>
    %171 = arith.mulf %146, %170 : vector<16x512xf32>
    %c0_41 = arith.constant 0 : index
    %c1024_42 = arith.constant 1024 : index
    %172 = vector.load %arg3[%c0_41, %c1024_42] : memref<80x1536xf32, #tpu.memory_space<vmem>>, vector<16x512xf32>
    tpu.vector_store %arg3[%c0_41, %c1024_42], %171 {strides = array<i32>} : memref<80x1536xf32, #tpu.memory_space<vmem>>, vector<16x512xf32>,
    %173 = math.sin %146 : vector<16x512xf32>
    %174 = math.cos %146 : vector<16x512xf32>
    %175 = arith.mulf %173, %170 : vector<16x512xf32>
    %c16_43 = arith.constant 16 : index
    %c1024_44 = arith.constant 1024 : index
    %176 = vector.load %arg3[%c16_43, %c1024_44] : memref<80x1536xf32, #tpu.memory_space<vmem>>, vector<16x512xf32>
    tpu.vector_store %arg3[%c16_43, %c1024_44], %175 {strides = array<i32>} : memref<80x1536xf32, #tpu.memory_space<vmem>>, vector<16x512xf32>,
    %177 = arith.mulf %174, %170 : vector<16x512xf32>
    %c32_45 = arith.constant 32 : index
    %c1024_46 = arith.constant 1024 : index
    %178 = vector.load %arg3[%c32_45, %c1024_46] : memref<80x1536xf32, #tpu.memory_space<vmem>>, vector<16x512xf32>
    tpu.vector_store %arg3[%c32_45, %c1024_46], %177 {strides = array<i32>} : memref<80x1536xf32, #tpu.memory_space<vmem>>, vector<16x512xf32>,
    %cst_47 = arith.constant 2.000000e+00 : f32
    %179 = vector.broadcast %cst_47 : f32 to vector<16x512xf32>
    %180 = arith.mulf %179, %173 : vector<16x512xf32>
    %181 = arith.mulf %180, %174 : vector<16x512xf32>
    %cst_48 = arith.constant 2.000000e+00 : f32
    %182 = vector.broadcast %cst_48 : f32 to vector<16x512xf32>
    %183 = arith.mulf %182, %173 : vector<16x512xf32>
    %184 = arith.mulf %183, %173 : vector<16x512xf32>
    %cst_49 = arith.constant 1.000000e+00 : f32
    %185 = vector.broadcast %cst_49 : f32 to vector<16x512xf32>
    %186 = arith.subf %185, %184 : vector<16x512xf32>
    %187 = arith.mulf %181, %170 : vector<16x512xf32>
    %c48_50 = arith.constant 48 : index
    %c1024_51 = arith.constant 1024 : index
    %188 = vector.load %arg3[%c48_50, %c1024_51] : memref<80x1536xf32, #tpu.memory_space<vmem>>, vector<16x512xf32>
    tpu.vector_store %arg3[%c48_50, %c1024_51], %187 {strides = array<i32>} : memref<80x1536xf32, #tpu.memory_space<vmem>>, vector<16x512xf32>,
    %189 = arith.mulf %186, %170 : vector<16x512xf32>
    %c64_52 = arith.constant 64 : index
    %c1024_53 = arith.constant 1024 : index
    %190 = vector.load %arg3[%c64_52, %c1024_53] : memref<80x1536xf32, #tpu.memory_space<vmem>>, vector<16x512xf32>
    tpu.vector_store %arg3[%c64_52, %c1024_53], %189 {strides = array<i32>} : memref<80x1536xf32, #tpu.memory_space<vmem>>, vector<16x512xf32>,
    return
  }
  func.func @transform_0(%arg0: i32) -> (i32, i32) {
    %c0_i32 = arith.constant 0 : i32
    %c0_i32_0 = arith.constant 0 : i32
    return %c0_i32, %arg0 : i32, i32
  }
  func.func @transform_1(%arg0: i32) -> (i32, i32) {
    %c0_i32 = arith.constant 0 : i32
    %c0_i32_0 = arith.constant 0 : i32
    %c0_i32_1 = arith.constant 0 : i32
    return %c0_i32, %c0_i32_0 : i32, i32
  }
  func.func @transform_2(%arg0: i32) -> (i32, i32) {
    %c0_i32 = arith.constant 0 : i32
    %c0_i32_0 = arith.constant 0 : i32
    return %c0_i32, %arg0 : i32, i32
  }
}

</mosaic_0001>

<llo_original>
// kernel: tpu_custom_call.1
$region0: #{tpu_custom_call.1}
  #allocation0 [shape = 'u32[]', space=smem, size = 0x4, offset = 0x4, fixed_abs, tag = 'smem constant byte address 0x4 - core index']
  #allocation1 [shape = 'u32[144,128]{1,0:T(1,128)}', space=vmem, size = 0x12000, scoped, tag = 'internal scratch']
  %s0 = inlined_call_operand.hbm [shape: f32[4,3072], index: 0, kind: input, shape index: {}]
  %s1 = inlined_call_operand.hbm [shape: f32[16,10], index: 1, kind: input, shape index: {}]
  %s2 = inlined_call_operand.hbm [shape: f32[80,3072], index: 2, kind: output, shape index: {}]
  %s3 = sld [smem:[#allocation0]]
  $region49: #{tpu_custom_call.1} parent=0
    _
  %s5 = ssub.s32 1, %s3
  %s6 = scalar_select 0, %s5, %s3
  $region1: #{tpu_custom_call.1} parent=0
    #allocation2 [shape = 'u8[49152]{0}', space=vmem, size = 0xc000, scoped, tag = 'input window, operand 0']
    #allocation3 [shape = 's32[2]{0}', space=sflag, size = 0x8, scoped, tag = 'scoped memory for tpu_custom_call.1']
    #allocation4 [shape = 's32[2]{0}', space=sflag, size = 0x8, scoped, tag = 'scoped memory for tpu_custom_call.1']
    #allocation5 [shape = 'u8[8192]{0}', space=vmem, size = 0x2000, scoped, tag = 'input window, operand 1, single buffered']
    #allocation6 [shape = 's32[1]{0}', space=sflag, size = 0x4, scoped, tag = 'scoped memory for tpu_custom_call.1']
    #allocation7 [shape = 'u8[983040]{0}', space=vmem, size = 0xf0000, scoped, tag = 'output window, operand 0']
    %7 = vsyncpa [#allocation3], 0
    %s8 = scalar_lea.sflag [#allocation3], 1
    %9 = vsyncpa %s8, 0
    %10 = vsyncpa [#allocation6], 0
    %11 = vsyncpa [#allocation4], 0
    %s12 = scalar_lea.sflag [#allocation4], 1
    %13 = vsyncpa %s12, 0
    loop: start=0, step=1, limit=4
    $region2: #{tpu_custom_call.1} parent=1 // loop_pre_header
      _
    $region3: #{tpu_custom_call.1} parent=1 // loop_header
      %s15 = sphi 0, %s19
      %p16 = scmp.ge.s32.totalorder %s15, 4
      %s25 = sphi 0, %s27
      %s28 = sphi 0, %s25
      %s29 = sphi 0, %s28
      %s45 = sphi 0, %s29
      %s49 = sphi 0, %s49
      %s51 = sphi 0, %s49
      %s52 = sphi 0, %s51
      %s66 = sphi 0, %s52
      %s72 = sphi 0, %s74
      %s75 = sphi 0, %s72
      %s76 = sphi 0, %s75
      %s92 = sphi 0, %s76
    $region4: #{tpu_custom_call.1} parent=1 // loop_header_branch
      %18 = sbr.rel (%p16) target = $region8
    $region5: #{tpu_custom_call.1} parent=1 // loop_body
      %s20 = ssub.s32 %s15, 1
      %s21 = ssub.s32 %s15, 2
      %s22 = sadd.s32 %s15, 1
      %s23 = ssub.s32 %s15, %s22
      %p24 = scmp.eq.s32.totalorder %s23, 0
      %s26 = sadd.s32 %s25, 1
      %s27 = scalar_select %p24, %s25, %s26
      %p30 = pneg %p24
      %p31 = scmp.eq.s32.totalorder %s15, 1
      %p32 = por %p30, %p31
      %p33 = scmp.ne.s32.totalorder %s25, %s28
      %p34 = scmp.eq.s32.totalorder %s15, 0
      %p35 = por %p33, %p34
      %p36 = scmp.ne.s32.totalorder %s25, %s28
      %p37 = scmp.eq.s32.totalorder %s20, 1
      %p38 = por %p36, %p37
      %p39 = scmp.ne.s32.totalorder %s28, %s29
      %p40 = scmp.eq.s32.totalorder %s20, 0
      %p41 = por %p39, %p40
      %p42 = scmp.ne.s32.totalorder %s28, %s29
      %p43 = scmp.eq.s32.totalorder %s21, 1
      %p44 = por %p42, %p43
      %p46 = scmp.ne.s32.totalorder %s29, %s45
      %p47 = scmp.eq.s32.totalorder %s21, 0
      %p48 = por %p46, %p47
      %s50 = sadd.s32 %s49, 1
      %p53 = scmp.eq.s32.totalorder %s15, 1
      %p54 = scmp.ne.s32.totalorder %s49, %s51
      %p55 = scmp.eq.s32.totalorder %s15, 0
      %p56 = por %p54, %p55
      %p57 = scmp.ne.s32.totalorder %s49, %s51
      %p58 = scmp.eq.s32.totalorder %s20, 1
      %p59 = por %p57, %p58
      %p60 = scmp.ne.s32.totalorder %s51, %s52
      %p61 = scmp.eq.s32.totalorder %s20, 0
      %p62 = por %p60, %p61
      %p63 = scmp.ne.s32.totalorder %s51, %s52
      %p64 = scmp.eq.s32.totalorder %s21, 1
      %p65 = por %p63, %p64
      %p67 = scmp.ne.s32.totalorder %s52, %s66
      %p68 = scmp.eq.s32.totalorder %s21, 0
      %p69 = por %p67, %p68
      %s70 = ssub.s32 %s15, %s22
      %p71 = scmp.eq.s32.totalorder %s70, 0
      %s73 = sadd.s32 %s72, 1
      %s74 = scalar_select %p71, %s72, %s73
      %p77 = pneg %p71
      %p78 = scmp.eq.s32.totalorder %s15, 1
      %p79 = por %p77, %p78
      %p80 = scmp.ne.s32.totalorder %s72, %s75
      %p81 = scmp.eq.s32.totalorder %s15, 0
      %p82 = por %p80, %p81
      %p83 = scmp.ne.s32.totalorder %s72, %s75
      %p84 = scmp.eq.s32.totalorder %s20, 1
      %p85 = por %p83, %p84
      %p86 = scmp.ne.s32.totalorder %s75, %s76
      %p87 = scmp.eq.s32.totalorder %s20, 0
      %p88 = por %p86, %p87
      %p89 = scmp.ne.s32.totalorder %s75, %s76
      %p90 = scmp.eq.s32.totalorder %s21, 1
      %p91 = por %p89, %p90
      %p93 = scmp.ne.s32.totalorder %s76, %s92
      %p94 = scmp.eq.s32.totalorder %s21, 0
      %p95 = por %p93, %p94
      %p96 = scmp.le.s32.totalorder 1, %s15
      %p97 = scmp.lt.s32.totalorder %s15, 3
      %p98 = pnand %p96, %p97
      %p99 = pneg %p98
      // Predicated region
      $region9: #{tpu_custom_call.1} parent=5 // pred_check
        _
      $region10: #{tpu_custom_call.1} parent=5 // pred_check_branch
        %101 = sbr.rel (%p98) target = $region12
      $region11: #{tpu_custom_call.1} parent=5 // pred_region
        %s102 = ssub.s32 %s15, 1
        // Predicated region
        $region13: #{tpu_custom_call.1} parent=11 // pred_check
          %p103 = pneg %p62
        $region14: #{tpu_custom_call.1} parent=11 // pred_check_branch
          %105 = sbr.rel (%p103) target = $region16
        $region15: #{tpu_custom_call.1} parent=11 // pred_region
          %s107 = ssub.s32 256, 256
          %108 = vsyncadd [#allocation6], %s107
          %s109 = sshll.u32 [#allocation5], 4
          %s110 = int_to_ptr.vmem [resolvable:$true] %s109
          %115 = dma.hbm_to_vmem [thread:$0]  %s1, 256, %s110, [#allocation6], 128, 128, 8
        $region16: #{tpu_custom_call.1} parent=11 // pred_fallthru
          _
      $region12: #{tpu_custom_call.1} parent=5 // pred_fallthru
        _
      %p116 = scmp.lt.s32.totalorder %s15, 2
      // Predicated region
      $region17: #{tpu_custom_call.1} parent=5 // pred_check
        %p117 = pneg %p116
      $region18: #{tpu_custom_call.1} parent=5 // pred_check_branch
        %119 = sbr.rel (%p117) target = $region20
      $region19: #{tpu_custom_call.1} parent=5 // pred_region
        // Predicated region
        $region21: #{tpu_custom_call.1} parent=19 // pred_check
          %p120 = pneg %p35
        $region22: #{tpu_custom_call.1} parent=19 // pred_check_branch
          %122 = sbr.rel (%p120) target = $region24
        $region23: #{tpu_custom_call.1} parent=19 // pred_region
          %s123 = sand.u32 %s25, 1
          %s124 = scalar_lea.sflag [#allocation3], %s123
          %s125 = sand.u32 %s25, 1
          %s126 = smul.addr %s125, 48
          %s127 = scalar_lea.vmem [#allocation2], %s126
          %s128 = smul.u32 12, %s15
          %s130 = ssub.s32 768, 768
          %131 = vsyncadd %s124, %s130
          %s132 = smul.addr %s128, 64
          %s133 = scalar_lea.hbm %s0, %s132
          %s135 = sshll.u32 %s127, 4
          %s136 = int_to_ptr.vmem [resolvable:$true] %s135
          %138 = dma.hbm_to_vmem [thread:$0]  %s133, 768, %s136, %s124
        $region24: #{tpu_custom_call.1} parent=19 // pred_fallthru
          _
      $region20: #{tpu_custom_call.1} parent=5 // pred_fallthru
        _
      %p139 = scmp.le.s32.totalorder 1, %s15
      %p140 = scmp.lt.s32.totalorder %s15, 3
      %p141 = pnand %p139, %p140
      %p142 = pneg %p141
      // Predicated region
      $region25: #{tpu_custom_call.1} parent=5 // pred_check
        _
      $region26: #{tpu_custom_call.1} parent=5 // pred_check_branch
        %144 = sbr.rel (%p141) target = $region28
      $region27: #{tpu_custom_call.1} parent=5 // pred_region
        %s145 = ssub.s32 %s15, 1
        %s146 = sand.u32 %s28, 1
        %s147 = scalar_lea.sflag [#allocation3], %s146
        %s148 = sand.u32 %s28, 1
        %s149 = smul.addr %s148, 48
        %s150 = scalar_lea.vmem [#allocation2], %s149
        // Predicated region
        $region29: #{tpu_custom_call.1} parent=27 // pred_check
          %p151 = pneg %p41
        $region30: #{tpu_custom_call.1} parent=27 // pred_check_branch
          %153 = sbr.rel (%p151) target = $region32
        $region31: #{tpu_custom_call.1} parent=27 // pred_region
          %154 = dma.done %s147, 768
        $region32: #{tpu_custom_call.1} parent=27 // pred_fallthru
          _
        // Predicated region
        $region33: #{tpu_custom_call.1} parent=27 // pred_check
          %p155 = pneg %p62
        $region34: #{tpu_custom_call.1} parent=27 // pred_check_branch
          %157 = sbr.rel (%p155) target = $region36
        $region35: #{tpu_custom_call.1} parent=27 // pred_region
          %158 = dma.done [#allocation6], 256
        $region36: #{tpu_custom_call.1} parent=27 // pred_fallthru
          _
        %s159 = sand.u32 %s28, 1
        %s160 = scalar_lea.sflag [#allocation3], %s159
        %s161 = sand.u32 %s28, 1
        %s162 = smul.addr %s161, 48
        %s163 = scalar_lea.vmem [#allocation2], %s162
        %p164 = pneg %p41
        %p165 = pneg %p38
        %p166 = pneg %p62
        %p167 = pneg %p59
        %p168 = pneg %p88
        %p169 = pneg %p85
        %s170 = sand.u32 %s75, 1
        %s171 = scalar_lea.sflag [#allocation4], %s170
        %s172 = sand.u32 %s75, 1
        %s173 = smul.addr %s172, 960
        %s174 = scalar_lea.vmem [#allocation7], %s173
        %s175 = smul.u32 12, %s20
        %s176 = smul.u32 12, %s20
        %v177 = vld [vmem:[#allocation5] sm:$0xff]
        %v178 = vld [vmem:[#allocation5 + $0x8] sm:$0xff]
        %v179 = vld [vmem:[%s150] ss:$4 sm:$0xf]
        %s180 = scalar_lea.vmem %s150, 1 [#allocation2]
        %v181 = vld [vmem:[%s180] ss:$4 sm:$0xf]
        %s182 = scalar_lea.vmem %s150, 2 [#allocation2]
        %v183 = vld [vmem:[%s182] ss:$4 sm:$0xf]
        %s184 = scalar_lea.vmem %s150, 3 [#allocation2]
        %v185 = vld [vmem:[%s184] ss:$4 sm:$0xf]
        %v187 = vlaneseq
        %v188 = vshrl.u32 %v187, 7
        %v189 = vsub.s32 0, %v188
        %v190 = vrot.slane %v179, %v189
        %v191 = vlaneseq
        %v192 = vshrl.u32 %v191, 7
        %v193 = vsub.s32 1, %v192
        %v194 = vrot.slane %v179, %v193
        %v195 = vlaneseq
        %v196 = vshrl.u32 %v195, 7
        %v197 = vsub.s32 2, %v196
        %v198 = vrot.slane %v179, %v197
        %v199 = vlaneseq
        %v200 = vshrl.u32 %v199, 7
        %v201 = vsub.s32 3, %v200
        %v202 = vrot.slane %v179, %v201
        %208 = vset.pattern.permute.xlu0 0
        %209 = vperm.xlu0 %208, %v177
        %v210 = vpop.permute.xlu0 %209
        %213 = vset.pattern.permute.xlu0 0
        %214 = vperm.xlu0 %213, %v178
        %v215 = vpop.permute.xlu0 %214
        %v217 = vsub.f32 %v190, %v210
        %v218 = vsub.f32 %v194, %v210
        %v219 = vsub.f32 %v198, %v210
        %v220 = vsub.f32 %v202, %v210
        %v221 = vsub.f32 %v190, %v215
        %v222 = vsub.f32 %v194, %v215
        %v223 = vsub.f32 %v198, %v215
        %v224 = vsub.f32 %v202, %v215
        %v226 = vlaneseq
        %v227 = vshrl.u32 %v226, 7
        %v228 = vsub.s32 0, %v227
        %v229 = vrot.slane %v181, %v228
        %v230 = vlaneseq
        %v231 = vshrl.u32 %v230, 7
        %v232 = vsub.s32 1, %v231
        %v233 = vrot.slane %v181, %v232
        %v234 = vlaneseq
        %v235 = vshrl.u32 %v234, 7
        %v236 = vsub.s32 2, %v235
        %v237 = vrot.slane %v181, %v236
        %v238 = vlaneseq
        %v239 = vshrl.u32 %v238, 7
        %v240 = vsub.s32 3, %v239
        %v241 = vrot.slane %v181, %v240
        %246 = vset.pattern.permute.xlu0 1
        %247 = vperm.xlu0 %246, %v177
        %v248 = vpop.permute.xlu0 %247
        %250 = vset.pattern.permute.xlu0 1
        %251 = vperm.xlu0 %250, %v178
        %v252 = vpop.permute.xlu0 %251
        %v254 = vsub.f32 %v229, %v248
        %v255 = vsub.f32 %v233, %v248
        %v256 = vsub.f32 %v237, %v248
        %v257 = vsub.f32 %v241, %v248
        %v258 = vsub.f32 %v229, %v252
        %v259 = vsub.f32 %v233, %v252
        %v260 = vsub.f32 %v237, %v252
        %v261 = vsub.f32 %v241, %v252
        %v263 = vlaneseq
        %v264 = vshrl.u32 %v263, 7
        %v265 = vsub.s32 0, %v264
        %v266 = vrot.slane %v183, %v265
        %v267 = vlaneseq
        %v268 = vshrl.u32 %v267, 7
        %v269 = vsub.s32 1, %v268
        %v270 = vrot.slane %v183, %v269
        %v271 = vlaneseq
        %v272 = vshrl.u32 %v271, 7
        %v273 = vsub.s32 2, %v272
        %v274 = vrot.slane %v183, %v273
        %v275 = vlaneseq
        %v276 = vshrl.u32 %v275, 7
        %v277 = vsub.s32 3, %v276
        %v278 = vrot.slane %v183, %v277
        %283 = vset.pattern.permute.xlu0 2
        %284 = vperm.xlu0 %283, %v177
        %v285 = vpop.permute.xlu0 %284
        %287 = vset.pattern.permute.xlu0 2
        %288 = vperm.xlu0 %287, %v178
        %v289 = vpop.permute.xlu0 %288
        %v291 = vsub.f32 %v266, %v285
        %v292 = vsub.f32 %v270, %v285
        %v293 = vsub.f32 %v274, %v285
        %v294 = vsub.f32 %v278, %v285
        %v295 = vsub.f32 %v266, %v289
        %v296 = vsub.f32 %v270, %v289
        %v297 = vsub.f32 %v274, %v289
        %v298 = vsub.f32 %v278, %v289
        %v300 = vlaneseq
        %v301 = vshrl.u32 %v300, 7
        %v302 = vsub.s32 0, %v301
        %v303 = vrot.slane %v185, %v302
        %v304 = vlaneseq
        %v305 = vshrl.u32 %v304, 7
        %v306 = vsub.s32 1, %v305
        %v307 = vrot.slane %v185, %v306
        %v308 = vlaneseq
        %v309 = vshrl.u32 %v308, 7
        %v310 = vsub.s32 2, %v309
        %v311 = vrot.slane %v185, %v310
        %v312 = vlaneseq
        %v313 = vshrl.u32 %v312, 7
        %v314 = vsub.s32 3, %v313
        %v315 = vrot.slane %v185, %v314
        %320 = vset.pattern.permute.xlu0 3
        %321 = vperm.xlu0 %320, %v177
        %v322 = vpop.permute.xlu0 %321
        %324 = vset.pattern.permute.xlu0 3
        %325 = vperm.xlu0 %324, %v178
        %v326 = vpop.permute.xlu0 %325
        %v328 = vsub.f32 %v303, %v322
        %v329 = vsub.f32 %v307, %v322
        %v330 = vsub.f32 %v311, %v322
        %v331 = vsub.f32 %v315, %v322
        %v332 = vsub.f32 %v303, %v326
        %v333 = vsub.f32 %v307, %v326
        %v334 = vsub.f32 %v311, %v326
        %v335 = vsub.f32 %v315, %v326
        %v336 = vmul.f32 %v217, %v217
        %v337 = vmul.f32 %v218, %v218
        %v338 = vmul.f32 %v219, %v219
        %v339 = vmul.f32 %v220, %v220
        %v340 = vmul.f32 %v221, %v221
        %v341 = vmul.f32 %v222, %v222
        %v342 = vmul.f32 %v223, %v223
        %v343 = vmul.f32 %v224, %v224
        %344 = vset.pattern.permute.xlu0 4
        %345 = vperm.xlu0 %344, %v177
        %v346 = vpop.permute.xlu0 %345
        %348 = vset.pattern.permute.xlu0 4
        %349 = vperm.xlu0 %348, %v178
        %v350 = vpop.permute.xlu0 %349
        %v352 = vmul.f32 %v346, %v336
        %v353 = vmul.f32 %v346, %v337
        %v354 = vmul.f32 %v346, %v338
        %v355 = vmul.f32 %v346, %v339
        %v356 = vmul.f32 %v350, %v340
        %v357 = vmul.f32 %v350, %v341
        %v358 = vmul.f32 %v350, %v342
        %v359 = vmul.f32 %v350, %v343
        %v360 = vmul.f32 %v254, %v254
        %v361 = vmul.f32 %v255, %v255
        %v362 = vmul.f32 %v256, %v256
        %v363 = vmul.f32 %v257, %v257
        %v364 = vmul.f32 %v258, %v258
        %v365 = vmul.f32 %v259, %v259
        %v366 = vmul.f32 %v260, %v260
        %v367 = vmul.f32 %v261, %v261
        %368 = vset.pattern.permute.xlu0 5
        %369 = vperm.xlu0 %368, %v177
        %v370 = vpop.permute.xlu0 %369
        %372 = vset.pattern.permute.xlu0 5
        %373 = vperm.xlu0 %372, %v178
        %v374 = vpop.permute.xlu0 %373
        %v376 = vmul.f32 %v370, %v360
        %v377 = vmul.f32 %v370, %v361
        %v378 = vmul.f32 %v370, %v362
        %v379 = vmul.f32 %v370, %v363
        %v380 = vmul.f32 %v374, %v364
        %v381 = vmul.f32 %v374, %v365
        %v382 = vmul.f32 %v374, %v366
        %v383 = vmul.f32 %v374, %v367
        %v384 = vadd.f32 %v352, %v376
        %v385 = vadd.f32 %v353, %v377
        %v386 = vadd.f32 %v354, %v378
        %v387 = vadd.f32 %v355, %v379
        %v388 = vadd.f32 %v356, %v380
        %v389 = vadd.f32 %v357, %v381
        %v390 = vadd.f32 %v358, %v382
        %v391 = vadd.f32 %v359, %v383
        %v392 = vmul.f32 %v291, %v291
        %v393 = vmul.f32 %v292, %v292
        %v394 = vmul.f32 %v293, %v293
        %v395 = vmul.f32 %v294, %v294
        %v396 = vmul.f32 %v295, %v295
        %v397 = vmul.f32 %v296, %v296
        %v398 = vmul.f32 %v297, %v297
        %v399 = vmul.f32 %v298, %v298
        %400 = vset.pattern.permute.xlu0 6
        %401 = vperm.xlu0 %400, %v177
        %v402 = vpop.permute.xlu0 %401
        %404 = vset.pattern.permute.xlu0 6
        %405 = vperm.xlu0 %404, %v178
        %v406 = vpop.permute.xlu0 %405
        %v408 = vmul.f32 %v402, %v392
        %v409 = vmul.f32 %v402, %v393
        %v410 = vmul.f32 %v402, %v394
        %v411 = vmul.f32 %v402, %v395
        %v412 = vmul.f32 %v406, %v396
        %v413 = vmul.f32 %v406, %v397
        %v414 = vmul.f32 %v406, %v398
        %v415 = vmul.f32 %v406, %v399
        %v416 = vadd.f32 %v384, %v408
        %v417 = vadd.f32 %v385, %v409
        %v418 = vadd.f32 %v386, %v410
        %v419 = vadd.f32 %v387, %v411
        %v420 = vadd.f32 %v388, %v412
        %v421 = vadd.f32 %v389, %v413
        %v422 = vadd.f32 %v390, %v414
        %v423 = vadd.f32 %v391, %v415
        %v424 = vmul.f32 %v217, %v254
        %v425 = vmul.f32 %v218, %v255
        %v426 = vmul.f32 %v219, %v256
        %v427 = vmul.f32 %v220, %v257
        %v428 = vmul.f32 %v221, %v258
        %v429 = vmul.f32 %v222, %v259
        %v430 = vmul.f32 %v223, %v260
        %v431 = vmul.f32 %v224, %v261
        %432 = vset.pattern.permute.xlu0 7
        %433 = vperm.xlu0 %432, %v177
        %v434 = vpop.permute.xlu0 %433
        %436 = vset.pattern.permute.xlu0 7
        %437 = vperm.xlu0 %436, %v178
        %v438 = vpop.permute.xlu0 %437
        %v440 = vmul.f32 %v434, %v424
        %v441 = vmul.f32 %v434, %v425
        %v442 = vmul.f32 %v434, %v426
        %v443 = vmul.f32 %v434, %v427
        %v444 = vmul.f32 %v438, %v428
        %v445 = vmul.f32 %v438, %v429
        %v446 = vmul.f32 %v438, %v430
        %v447 = vmul.f32 %v438, %v431
        %v448 = vadd.f32 %v416, %v440
        %v449 = vadd.f32 %v417, %v441
        %v450 = vadd.f32 %v418, %v442
        %v451 = vadd.f32 %v419, %v443
        %v452 = vadd.f32 %v420, %v444
        %v453 = vadd.f32 %v421, %v445
        %v454 = vadd.f32 %v422, %v446
        %v455 = vadd.f32 %v423, %v447
        %v456 = vmul.f32 %v217, %v291
        %v457 = vmul.f32 %v218, %v292
        %v458 = vmul.f32 %v219, %v293
        %v459 = vmul.f32 %v220, %v294
        %v460 = vmul.f32 %v221, %v295
        %v461 = vmul.f32 %v222, %v296
        %v462 = vmul.f32 %v223, %v297
        %v463 = vmul.f32 %v224, %v298
        %464 = vset.pattern.permute.xlu0 8
        %465 = vperm.xlu0 %464, %v177
        %v466 = vpop.permute.xlu0 %465
        %468 = vset.pattern.permute.xlu0 8
        %469 = vperm.xlu0 %468, %v178
        %v470 = vpop.permute.xlu0 %469
        %v472 = vmul.f32 %v466, %v456
        %v473 = vmul.f32 %v466, %v457
        %v474 = vmul.f32 %v466, %v458
        %v475 = vmul.f32 %v466, %v459
        %v476 = vmul.f32 %v470, %v460
        %v477 = vmul.f32 %v470, %v461
        %v478 = vmul.f32 %v470, %v462
        %v479 = vmul.f32 %v470, %v463
        %v480 = vadd.f32 %v448, %v472
        %v481 = vadd.f32 %v449, %v473
        %v482 = vadd.f32 %v450, %v474
        %v483 = vadd.f32 %v451, %v475
        %v484 = vadd.f32 %v452, %v476
        %v485 = vadd.f32 %v453, %v477
        %v486 = vadd.f32 %v454, %v478
        %v487 = vadd.f32 %v455, %v479
        %v488 = vmul.f32 %v254, %v291
        %v489 = vmul.f32 %v255, %v292
        %v490 = vmul.f32 %v256, %v293
        %v491 = vmul.f32 %v257, %v294
        %v492 = vmul.f32 %v258, %v295
        %v493 = vmul.f32 %v259, %v296
        %v494 = vmul.f32 %v260, %v297
        %v495 = vmul.f32 %v261, %v298
        %496 = vset.pattern.permute.xlu0 9
        %497 = vperm.xlu0 %496, %v177
        %v498 = vpop.permute.xlu0 %497
        %500 = vset.pattern.permute.xlu0 9
        %501 = vperm.xlu0 %500, %v178
        %v502 = vpop.permute.xlu0 %501
        %v504 = vmul.f32 %v498, %v488
        %v505 = vmul.f32 %v498, %v489
        %v506 = vmul.f32 %v498, %v490
        %v507 = vmul.f32 %v498, %v491
        %v508 = vmul.f32 %v502, %v492
        %v509 = vmul.f32 %v502, %v493
        %v510 = vmul.f32 %v502, %v494
        %v511 = vmul.f32 %v502, %v495
        %v512 = vadd.f32 %v480, %v504
        %v513 = vadd.f32 %v481, %v505
        %v514 = vadd.f32 %v482, %v506
        %v515 = vadd.f32 %v483, %v507
        %v516 = vadd.f32 %v484, %v508
        %v517 = vadd.f32 %v485, %v509
        %v518 = vadd.f32 %v486, %v510
        %v519 = vadd.f32 %v487, %v511
        %v520 = vmul.f32 %v512, 1.442695
        %v521 = vpow.pop %v520
        %v522 = vmul.f32 %v513, 1.442695
        %v523 = vpow.pop %v522
        %v524 = vmul.f32 %v514, 1.442695
        %v525 = vpow.pop %v524
        %v526 = vmul.f32 %v515, 1.442695
        %v527 = vpow.pop %v526
        %v528 = vmul.f32 %v516, 1.442695
        %v529 = vpow.pop %v528
        %v530 = vmul.f32 %v517, 1.442695
        %v531 = vpow.pop %v530
        %v532 = vmul.f32 %v518, 1.442695
        %v533 = vpow.pop %v532
        %v534 = vmul.f32 %v519, 1.442695
        %v535 = vpow.pop %v534
        %v536 = vmul.f32 %v328, %v521
        %v537 = vmul.f32 %v329, %v523
        %v538 = vmul.f32 %v330, %v525
        %v539 = vmul.f32 %v331, %v527
        %v540 = vmul.f32 %v332, %v529
        %v541 = vmul.f32 %v333, %v531
        %v542 = vmul.f32 %v334, %v533
        %v543 = vmul.f32 %v335, %v535
        %544 = vst [vmem:[%s174] sm:$0xff] %v536
        %545 = vst [vmem:[%s174 + $0x8] sm:$0xff] %v537
        %546 = vst [vmem:[%s174 + $0x10] sm:$0xff] %v538
        %547 = vst [vmem:[%s174 + $0x18] sm:$0xff] %v539
        %548 = vst [vmem:[%s174 + $0x60] sm:$0xff] %v540
        %549 = vst [vmem:[%s174 + $0x68] sm:$0xff] %v541
        %550 = vst [vmem:[%s174 + $0x70] sm:$0xff] %v542
        %551 = vst [vmem:[%s174 + $0x78] sm:$0xff] %v543
        %v552 = vand.u32 2147483647, %v328
        %vm553 = vcmp.le.f32.partialorder %v552, 0.7853982
        %vm554 = vcmp.lt.s32.totalorder %v328, 0
        %v555 = vand.u32 %v328, 2139095040
        %v556 = vshrl.u32 %v555, 23
        %v557 = vsub.s32 %v556, 127
        %v558 = vand.u32 2147483647, %v328
        %v559 = vand.u32 %v558, 8388607
        %v560 = vor.u32 %v559, 8388608
        %v561 = vsub.s32 0, %v560
        %v562 = vadd.s32 %v557, 1
        %vm563 = vcmp.gt.s32.totalorder %v562, 0
        %v564 = vsel %vm563, %v562, 0
        %v565 = vshrl.u32 %v564, 5
        %v566 = vand.u32 %v564, 31
        %v567 = vsub.s32 32, %v566
        %v568 = vshrl.u32 683565275, %v567
        %v569 = vshll.u32 683565275, %v566
        %v570 = vshrl.u32 2475754826, %v567
        %v571 = vor.u32 %v569, %v570
        %v572 = vshll.u32 2475754826, %v566
        %v573 = vshrl.u32 2131351028, %v567
        %v574 = vor.u32 %v572, %v573
        %v575 = vshll.u32 2131351028, %v566
        %v576 = vshrl.u32 2102212464, %v567
        %v577 = vor.u32 %v575, %v576
        %v578 = vshll.u32 2102212464, %v566
        %v579 = vshrl.u32 920167782, %v567
        %v580 = vor.u32 %v578, %v579
        %v581 = vshll.u32 920167782, %v566
        %v582 = vshrl.u32 1326507024, %v567
        %v583 = vor.u32 %v581, %v582
        %vm584 = vcmp.lt.s32.totalorder %v565, 1
        %vm585 = vcmp.lt.s32.totalorder %v565, 2
        %vm586 = vcmp.lt.s32.totalorder %v565, 3
        %vm587 = vcmp.lt.s32.totalorder %v565, 4
        %v588 = vsel %vm584, %v568, %v571
        %v589 = vsel %vm587, %v577, 2102212464
        %v590 = vsel %vm586, %v574, %v589
        %v591 = vsel %vm585, %v588, %v590
        %v592 = vsel %vm584, %v571, %v574
        %v593 = vsel %vm587, %v580, 920167782
        %v594 = vsel %vm586, %v577, %v593
        %v595 = vsel %vm585, %v592, %v594
        %v596 = vsel %vm584, %v574, %v577
        %v597 = vsel %vm587, %v583, 1326507024
        %v598 = vsel %vm586, %v580, %v597
        %v599 = vsel %vm585, %v596, %v598
        %v600 = vshll.u32 %v560, 8
        %v601 = vmul.u32.u64.compose %v600, %v599
        %v602 = vextract.low.u32 %v601
        %v603 = vextract.high.u32 %v601
        %v604 = vmul.u32.u64.compose %v600, %v595
        %v605 = vextract.low.u32 %v604
        %v606 = vextract.high.u32 %v604
        %v607 = vmul.u32 %v600, %v591
        %v608 = vadd.s32 %v603, %v605
        %vm609 = vc.u32 %v603, %v605
        %v610 = vadd.s32 %v606, 1
        %v611 = vsel %vm609, %v610, %v606
        %v612 = vadd.s32 %v607, %v611
        %v613 = vadd.s32 %v612, 536870912
        %v614 = vshrl.u32 %v613, 30
        %v615 = vshll.u32 %v614, 30
        %v616 = vsub.s32 %v612, %v615
        %vm617 = vcmp.lt.s32.totalorder %v616, 0
        %v618 = vsub.s32 0, %v616
        %v619 = vsel %vm617, %v618, %v616
        %v620 = vclz %v619
        %v621 = vsub.s32 %v620, 2
        %vm622 = vcmp.gt.s32.totalorder 0, %v621
        %v623 = vsel %vm622, 0, %v621
        %v624 = vsub.s32 32, %v623
        %v625 = vshll.u32 %v616, %v623
        %v626 = vshrl.u32 %v608, %v624
        %v627 = vor.u32 %v625, %v626
        %v628 = vsub.s32 4294967266, %v623
        %v629 = vadd.s32 %v628, 127
        %v630 = vshll.u32 %v629, 23
        %v631 = vor.u32 4788187, %v630
        %v632 = vand.u32 2147483647, %v631
        %v634 = vcvt.s32.f32 %v627
        %v635 = vmul.f32 %v634, %v632
        %v636 = vxor.u32 %v635, 2147483648
        %v637 = vsel %vm554, %v636, %v635
        %v638 = vsub.s32 4, %v614
        %v639 = vsel %vm554, %v638, %v614
        %v640 = vsel %vm553, %v328, %v637
        %v641 = vsel %vm553, 0, %v639
        %v642 = vcosq.f32.pop %v640
        %v643 = vsinq.f32.pop %v640
        %vm644 = vweird.f32 %v328
        %v645 = vadd.s32 %v641, 3
        %v646 = vand.u32 %v645, 3
        %vm647 = vcmp.lt.s32.totalorder %v646, 2
        %vm648 = vcmp.eq.s32.totalorder %v646, 0
        %v649 = vxor.u32 %v643, 2147483648
        %v650 = vsel %vm648, %v642, %v649
        %vm651 = vcmp.eq.s32.totalorder %v646, 2
        %v652 = vxor.u32 %v642, 2147483648
        %v653 = vsel %vm651, %v652, %v643
        %v654 = vsel %vm647, %v650, %v653
        %v655 = vsel %vm644, nan, %v654
        %v656 = vand.u32 2147483647, %v329
        %vm657 = vcmp.le.f32.partialorder %v656, 0.7853982
        %vm658 = vcmp.lt.s32.totalorder %v329, 0
        %v659 = vand.u32 %v329, 2139095040
        %v660 = vshrl.u32 %v659, 23
        %v661 = vsub.s32 %v660, 127
        %v662 = vand.u32 2147483647, %v329
        %v663 = vand.u32 %v662, 8388607
        %v664 = vor.u32 %v663, 8388608
        %v665 = vsub.s32 0, %v664
        %v666 = vadd.s32 %v661, 1
        %vm667 = vcmp.gt.s32.totalorder %v666, 0
        %v668 = vsel %vm667, %v666, 0
        %v669 = vshrl.u32 %v668, 5
        %v670 = vand.u32 %v668, 31
        %v671 = vsub.s32 32, %v670
        %v672 = vshrl.u32 683565275, %v671
        %v673 = vshll.u32 683565275, %v670
        %v674 = vshrl.u32 2475754826, %v671
        %v675 = vor.u32 %v673, %v674
        %v676 = vshll.u32 2475754826, %v670
        %v677 = vshrl.u32 2131351028, %v671
        %v678 = vor.u32 %v676, %v677
        %v679 = vshll.u32 2131351028, %v670
        %v680 = vshrl.u32 2102212464, %v671
        %v681 = vor.u32 %v679, %v680
        %v682 = vshll.u32 2102212464, %v670
        %v683 = vshrl.u32 920167782, %v671
        %v684 = vor.u32 %v682, %v683
        %v685 = vshll.u32 920167782, %v670
        %v686 = vshrl.u32 1326507024, %v671
        %v687 = vor.u32 %v685, %v686
        %vm688 = vcmp.lt.s32.totalorder %v669, 1
        %vm689 = vcmp.lt.s32.totalorder %v669, 2
        %vm690 = vcmp.lt.s32.totalorder %v669, 3
        %vm691 = vcmp.lt.s32.totalorder %v669, 4
        %v692 = vsel %vm688, %v672, %v675
        %v693 = vsel %vm691, %v681, 2102212464
        %v694 = vsel %vm690, %v678, %v693
        %v695 = vsel %vm689, %v692, %v694
        %v696 = vsel %vm688, %v675, %v678
        %v697 = vsel %vm691, %v684, 920167782
        %v698 = vsel %vm690, %v681, %v697
        %v699 = vsel %vm689, %v696, %v698
        %v700 = vsel %vm688, %v678, %v681
        %v701 = vsel %vm691, %v687, 1326507024
        %v702 = vsel %vm690, %v684, %v701
        %v703 = vsel %vm689, %v700, %v702
        %v704 = vshll.u32 %v664, 8
        %v705 = vmul.u32.u64.compose %v704, %v703
        %v706 = vextract.low.u32 %v705
        %v707 = vextract.high.u32 %v705
        %v708 = vmul.u32.u64.compose %v704, %v699
        %v709 = vextract.low.u32 %v708
        %v710 = vextract.high.u32 %v708
        %v711 = vmul.u32 %v704, %v695
        %v712 = vadd.s32 %v707, %v709
        %vm713 = vc.u32 %v707, %v709
        %v714 = vadd.s32 %v710, 1
        %v715 = vsel %vm713, %v714, %v710
        %v716 = vadd.s32 %v711, %v715
        %v717 = vadd.s32 %v716, 536870912
        %v718 = vshrl.u32 %v717, 30
        %v719 = vshll.u32 %v718, 30
        %v720 = vsub.s32 %v716, %v719
        %vm721 = vcmp.lt.s32.totalorder %v720, 0
        %v722 = vsub.s32 0, %v720
        %v723 = vsel %vm721, %v722, %v720
        %v724 = vclz %v723
        %v725 = vsub.s32 %v724, 2
        %vm726 = vcmp.gt.s32.totalorder 0, %v725
        %v727 = vsel %vm726, 0, %v725
        %v728 = vsub.s32 32, %v727
        %v729 = vshll.u32 %v720, %v727
        %v730 = vshrl.u32 %v712, %v728
        %v731 = vor.u32 %v729, %v730
        %v732 = vsub.s32 4294967266, %v727
        %v733 = vadd.s32 %v732, 127
        %v734 = vshll.u32 %v733, 23
        %v735 = vor.u32 4788187, %v734
        %v736 = vand.u32 2147483647, %v735
        %v738 = vcvt.s32.f32 %v731
        %v739 = vmul.f32 %v738, %v736
        %v740 = vxor.u32 %v739, 2147483648
        %v741 = vsel %vm658, %v740, %v739
        %v742 = vsub.s32 4, %v718
        %v743 = vsel %vm658, %v742, %v718
        %v744 = vsel %vm657, %v329, %v741
        %v745 = vsel %vm657, 0, %v743
        %v746 = vcosq.f32.pop %v744
        %v747 = vsinq.f32.pop %v744
        %vm748 = vweird.f32 %v329
        %v749 = vadd.s32 %v745, 3
        %v750 = vand.u32 %v749, 3
        %vm751 = vcmp.lt.s32.totalorder %v750, 2
        %vm752 = vcmp.eq.s32.totalorder %v750, 0
        %v753 = vxor.u32 %v747, 2147483648
        %v754 = vsel %vm752, %v746, %v753
        %vm755 = vcmp.eq.s32.totalorder %v750, 2
        %v756 = vxor.u32 %v746, 2147483648
        %v757 = vsel %vm755, %v756, %v747
        %v758 = vsel %vm751, %v754, %v757
        %v759 = vsel %vm748, nan, %v758
        %v760 = vand.u32 2147483647, %v330
        %vm761 = vcmp.le.f32.partialorder %v760, 0.7853982
        %vm762 = vcmp.lt.s32.totalorder %v330, 0
        %v763 = vand.u32 %v330, 2139095040
        %v764 = vshrl.u32 %v763, 23
        %v765 = vsub.s32 %v764, 127
        %v766 = vand.u32 2147483647, %v330
        %v767 = vand.u32 %v766, 8388607
        %v768 = vor.u32 %v767, 8388608
        %v769 = vsub.s32 0, %v768
        %v770 = vadd.s32 %v765, 1
        %vm771 = vcmp.gt.s32.totalorder %v770, 0
        %v772 = vsel %vm771, %v770, 0
        %v773 = vshrl.u32 %v772, 5
        %v774 = vand.u32 %v772, 31
        %v775 = vsub.s32 32, %v774
        %v776 = vshrl.u32 683565275, %v775
        %v777 = vshll.u32 683565275, %v774
        %v778 = vshrl.u32 2475754826, %v775
        %v779 = vor.u32 %v777, %v778
        %v780 = vshll.u32 2475754826, %v774
        %v781 = vshrl.u32 2131351028, %v775
        %v782 = vor.u32 %v780, %v781
        %v783 = vshll.u32 2131351028, %v774
        %v784 = vshrl.u32 2102212464, %v775
        %v785 = vor.u32 %v783, %v784
        %v786 = vshll.u32 2102212464, %v774
        %v787 = vshrl.u32 920167782, %v775
        %v788 = vor.u32 %v786, %v787
        %v789 = vshll.u32 920167782, %v774
        %v790 = vshrl.u32 1326507024, %v775
        %v791 = vor.u32 %v789, %v790
        %vm792 = vcmp.lt.s32.totalorder %v773, 1
        %vm793 = vcmp.lt.s32.totalorder %v773, 2
        %vm794 = vcmp.lt.s32.totalorder %v773, 3
        %vm795 = vcmp.lt.s32.totalorder %v773, 4
        %v796 = vsel %vm792, %v776, %v779
        %v797 = vsel %vm795, %v785, 2102212464
        %v798 = vsel %vm794, %v782, %v797
        %v799 = vsel %vm793, %v796, %v798
        %v800 = vsel %vm792, %v779, %v782
        %v801 = vsel %vm795, %v788, 920167782
        %v802 = vsel %vm794, %v785, %v801
        %v803 = vsel %vm793, %v800, %v802
        %v804 = vsel %vm792, %v782, %v785
        %v805 = vsel %vm795, %v791, 1326507024
        %v806 = vsel %vm794, %v788, %v805
        %v807 = vsel %vm793, %v804, %v806
        %v808 = vshll.u32 %v768, 8
        %v809 = vmul.u32.u64.compose %v808, %v807
        %v810 = vextract.low.u32 %v809
        %v811 = vextract.high.u32 %v809
        %v812 = vmul.u32.u64.compose %v808, %v803
        %v813 = vextract.low.u32 %v812
        %v814 = vextract.high.u32 %v812
        %v815 = vmul.u32 %v808, %v799
        %v816 = vadd.s32 %v811, %v813
        %vm817 = vc.u32 %v811, %v813
        %v818 = vadd.s32 %v814, 1
        %v819 = vsel %vm817, %v818, %v814
        %v820 = vadd.s32 %v815, %v819
        %v821 = vadd.s32 %v820, 536870912
        %v822 = vshrl.u32 %v821, 30
        %v823 = vshll.u32 %v822, 30
        %v824 = vsub.s32 %v820, %v823
        %vm825 = vcmp.lt.s32.totalorder %v824, 0
        %v826 = vsub.s32 0, %v824
        %v827 = vsel %vm825, %v826, %v824
        %v828 = vclz %v827
        %v829 = vsub.s32 %v828, 2
        %vm830 = vcmp.gt.s32.totalorder 0, %v829
        %v831 = vsel %vm830, 0, %v829
        %v832 = vsub.s32 32, %v831
        %v833 = vshll.u32 %v824, %v831
        %v834 = vshrl.u32 %v816, %v832
        %v835 = vor.u32 %v833, %v834
        %v836 = vsub.s32 4294967266, %v831
        %v837 = vadd.s32 %v836, 127
        %v838 = vshll.u32 %v837, 23
        %v839 = vor.u32 4788187, %v838
        %v840 = vand.u32 2147483647, %v839
        %v842 = vcvt.s32.f32 %v835
        %v843 = vmul.f32 %v842, %v840
        %v844 = vxor.u32 %v843, 2147483648
        %v845 = vsel %vm762, %v844, %v843
        %v846 = vsub.s32 4, %v822
        %v847 = vsel %vm762, %v846, %v822
        %v848 = vsel %vm761, %v330, %v845
        %v849 = vsel %vm761, 0, %v847
        %v850 = vcosq.f32.pop %v848
        %v851 = vsinq.f32.pop %v848
        %vm852 = vweird.f32 %v330
        %v853 = vadd.s32 %v849, 3
        %v854 = vand.u32 %v853, 3
        %vm855 = vcmp.lt.s32.totalorder %v854, 2
        %vm856 = vcmp.eq.s32.totalorder %v854, 0
        %v857 = vxor.u32 %v851, 2147483648
        %v858 = vsel %vm856, %v850, %v857
        %vm859 = vcmp.eq.s32.totalorder %v854, 2
        %v860 = vxor.u32 %v850, 2147483648
        %v861 = vsel %vm859, %v860, %v851
        %v862 = vsel %vm855, %v858, %v861
        %v863 = vsel %vm852, nan, %v862
        %v864 = vand.u32 2147483647, %v331
        %vm865 = vcmp.le.f32.partialorder %v864, 0.7853982
        %vm866 = vcmp.lt.s32.totalorder %v331, 0
        %v867 = vand.u32 %v331, 2139095040
        %v868 = vshrl.u32 %v867, 23
        %v869 = vsub.s32 %v868, 127
        %v870 = vand.u32 2147483647, %v331
        %v871 = vand.u32 %v870, 8388607
        %v872 = vor.u32 %v871, 8388608
        %v873 = vsub.s32 0, %v872
        %v874 = vadd.s32 %v869, 1
        %vm875 = vcmp.gt.s32.totalorder %v874, 0
        %v876 = vsel %vm875, %v874, 0
        %v877 = vshrl.u32 %v876, 5
        %v878 = vand.u32 %v876, 31
        %v879 = vsub.s32 32, %v878
        %v880 = vshrl.u32 683565275, %v879
        %v881 = vshll.u32 683565275, %v878
        %v882 = vshrl.u32 2475754826, %v879
        %v883 = vor.u32 %v881, %v882
        %v884 = vshll.u32 2475754826, %v878
        %v885 = vshrl.u32 2131351028, %v879
        %v886 = vor.u32 %v884, %v885
        %v887 = vshll.u32 2131351028, %v878
        %v888 = vshrl.u32 2102212464, %v879
        %v889 = vor.u32 %v887, %v888
        %v890 = vshll.u32 2102212464, %v878
        %v891 = vshrl.u32 920167782, %v879
        %v892 = vor.u32 %v890, %v891
        %v893 = vshll.u32 920167782, %v878
        %v894 = vshrl.u32 1326507024, %v879
        %v895 = vor.u32 %v893, %v894
        %vm896 = vcmp.lt.s32.totalorder %v877, 1
        %vm897 = vcmp.lt.s32.totalorder %v877, 2
        %vm898 = vcmp.lt.s32.totalorder %v877, 3
        %vm899 = vcmp.lt.s32.totalorder %v877, 4
        %v900 = vsel %vm896, %v880, %v883
        %v901 = vsel %vm899, %v889, 2102212464
        %v902 = vsel %vm898, %v886, %v901
        %v903 = vsel %vm897, %v900, %v902
        %v904 = vsel %vm896, %v883, %v886
        %v905 = vsel %vm899, %v892, 920167782
        %v906 = vsel %vm898, %v889, %v905
        %v907 = vsel %vm897, %v904, %v906
        %v908 = vsel %vm896, %v886, %v889
        %v909 = vsel %vm899, %v895, 1326507024
        %v910 = vsel %vm898, %v892, %v909
        %v911 = vsel %vm897, %v908, %v910
        %v912 = vshll.u32 %v872, 8
        %v913 = vmul.u32.u64.compose %v912, %v911
        %v914 = vextract.low.u32 %v913
        %v915 = vextract.high.u32 %v913
        %v916 = vmul.u32.u64.compose %v912, %v907
        %v917 = vextract.low.u32 %v916
        %v918 = vextract.high.u32 %v916
        %v919 = vmul.u32 %v912, %v903
        %v920 = vadd.s32 %v915, %v917
        %vm921 = vc.u32 %v915, %v917
        %v922 = vadd.s32 %v918, 1
        %v923 = vsel %vm921, %v922, %v918
        %v924 = vadd.s32 %v919, %v923
        %v925 = vadd.s32 %v924, 536870912
        %v926 = vshrl.u32 %v925, 30
        %v927 = vshll.u32 %v926, 30
        %v928 = vsub.s32 %v924, %v927
        %vm929 = vcmp.lt.s32.totalorder %v928, 0
        %v930 = vsub.s32 0, %v928
        %v931 = vsel %vm929, %v930, %v928
        %v932 = vclz %v931
        %v933 = vsub.s32 %v932, 2
        %vm934 = vcmp.gt.s32.totalorder 0, %v933
        %v935 = vsel %vm934, 0, %v933
        %v936 = vsub.s32 32, %v935
        %v937 = vshll.u32 %v928, %v935
        %v938 = vshrl.u32 %v920, %v936
        %v939 = vor.u32 %v937, %v938
        %v940 = vsub.s32 4294967266, %v935
        %v941 = vadd.s32 %v940, 127
        %v942 = vshll.u32 %v941, 23
        %v943 = vor.u32 4788187, %v942
        %v944 = vand.u32 2147483647, %v943
        %v946 = vcvt.s32.f32 %v939
        %v947 = vmul.f32 %v946, %v944
        %v948 = vxor.u32 %v947, 2147483648
        %v949 = vsel %vm866, %v948, %v947
        %v950 = vsub.s32 4, %v926
        %v951 = vsel %vm866, %v950, %v926
        %v952 = vsel %vm865, %v331, %v949
        %v953 = vsel %vm865, 0, %v951
        %v954 = vcosq.f32.pop %v952
        %v955 = vsinq.f32.pop %v952
        %vm956 = vweird.f32 %v331
        %v957 = vadd.s32 %v953, 3
        %v958 = vand.u32 %v957, 3
        %vm959 = vcmp.lt.s32.totalorder %v958, 2
        %vm960 = vcmp.eq.s32.totalorder %v958, 0
        %v961 = vxor.u32 %v955, 2147483648
        %v962 = vsel %vm960, %v954, %v961
        %vm963 = vcmp.eq.s32.totalorder %v958, 2
        %v964 = vxor.u32 %v954, 2147483648
        %v965 = vsel %vm963, %v964, %v955
        %v966 = vsel %vm959, %v962, %v965
        %v967 = vsel %vm956, nan, %v966
        %v968 = vand.u32 2147483647, %v332
        %vm969 = vcmp.le.f32.partialorder %v968, 0.7853982
        %vm970 = vcmp.lt.s32.totalorder %v332, 0
        %v971 = vand.u32 %v332, 2139095040
        %v972 = vshrl.u32 %v971, 23
        %v973 = vsub.s32 %v972, 127
        %v974 = vand.u32 2147483647, %v332
        %v975 = vand.u32 %v974, 8388607
        %v976 = vor.u32 %v975, 8388608
        %v977 = vsub.s32 0, %v976
        %v978 = vadd.s32 %v973, 1
        %vm979 = vcmp.gt.s32.totalorder %v978, 0
        %v980 = vsel %vm979, %v978, 0
        %v981 = vshrl.u32 %v980, 5
        %v982 = vand.u32 %v980, 31
        %v983 = vsub.s32 32, %v982
        %v984 = vshrl.u32 683565275, %v983
        %v985 = vshll.u32 683565275, %v982
        %v986 = vshrl.u32 2475754826, %v983
        %v987 = vor.u32 %v985, %v986
        %v988 = vshll.u32 2475754826, %v982
        %v989 = vshrl.u32 2131351028, %v983
        %v990 = vor.u32 %v988, %v989
        %v991 = vshll.u32 2131351028, %v982
        %v992 = vshrl.u32 2102212464, %v983
        %v993 = vor.u32 %v991, %v992
        %v994 = vshll.u32 2102212464, %v982
        %v995 = vshrl.u32 920167782, %v983
        %v996 = vor.u32 %v994, %v995
        %v997 = vshll.u32 920167782, %v982
        %v998 = vshrl.u32 1326507024, %v983
        %v999 = vor.u32 %v997, %v998
        %vm1000 = vcmp.lt.s32.totalorder %v981, 1
        %vm1001 = vcmp.lt.s32.totalorder %v981, 2
        %vm1002 = vcmp.lt.s32.totalorder %v981, 3
        %vm1003 = vcmp.lt.s32.totalorder %v981, 4
        %v1004 = vsel %vm1000, %v984, %v987
        %v1005 = vsel %vm1003, %v993, 2102212464
        %v1006 = vsel %vm1002, %v990, %v1005
        %v1007 = vsel %vm1001, %v1004, %v1006
        %v1008 = vsel %vm1000, %v987, %v990
        %v1009 = vsel %vm1003, %v996, 920167782
        %v1010 = vsel %vm1002, %v993, %v1009
        %v1011 = vsel %vm1001, %v1008, %v1010
        %v1012 = vsel %vm1000, %v990, %v993
        %v1013 = vsel %vm1003, %v999, 1326507024
        %v1014 = vsel %vm1002, %v996, %v1013
        %v1015 = vsel %vm1001, %v1012, %v1014
        %v1016 = vshll.u32 %v976, 8
        %v1017 = vmul.u32.u64.compose %v1016, %v1015
        %v1018 = vextract.low.u32 %v1017
        %v1019 = vextract.high.u32 %v1017
        %v1020 = vmul.u32.u64.compose %v1016, %v1011
        %v1021 = vextract.low.u32 %v1020
        %v1022 = vextract.high.u32 %v1020
        %v1023 = vmul.u32 %v1016, %v1007
        %v1024 = vadd.s32 %v1019, %v1021
        %vm1025 = vc.u32 %v1019, %v1021
        %v1026 = vadd.s32 %v1022, 1
        %v1027 = vsel %vm1025, %v1026, %v1022
        %v1028 = vadd.s32 %v1023, %v1027
        %v1029 = vadd.s32 %v1028, 536870912
        %v1030 = vshrl.u32 %v1029, 30
        %v1031 = vshll.u32 %v1030, 30
        %v1032 = vsub.s32 %v1028, %v1031
        %vm1033 = vcmp.lt.s32.totalorder %v1032, 0
        %v1034 = vsub.s32 0, %v1032
        %v1035 = vsel %vm1033, %v1034, %v1032
        %v1036 = vclz %v1035
        %v1037 = vsub.s32 %v1036, 2
        %vm1038 = vcmp.gt.s32.totalorder 0, %v1037
        %v1039 = vsel %vm1038, 0, %v1037
        %v1040 = vsub.s32 32, %v1039
        %v1041 = vshll.u32 %v1032, %v1039
        %v1042 = vshrl.u32 %v1024, %v1040
        %v1043 = vor.u32 %v1041, %v1042
        %v1044 = vsub.s32 4294967266, %v1039
        %v1045 = vadd.s32 %v1044, 127
        %v1046 = vshll.u32 %v1045, 23
        %v1047 = vor.u32 4788187, %v1046
        %v1048 = vand.u32 2147483647, %v1047
        %v1050 = vcvt.s32.f32 %v1043
        %v1051 = vmul.f32 %v1050, %v1048
        %v1052 = vxor.u32 %v1051, 2147483648
        %v1053 = vsel %vm970, %v1052, %v1051
        %v1054 = vsub.s32 4, %v1030
        %v1055 = vsel %vm970, %v1054, %v1030
        %v1056 = vsel %vm969, %v332, %v1053
        %v1057 = vsel %vm969, 0, %v1055
        %v1058 = vcosq.f32.pop %v1056
        %v1059 = vsinq.f32.pop %v1056
        %vm1060 = vweird.f32 %v332
        %v1061 = vadd.s32 %v1057, 3
        %v1062 = vand.u32 %v1061, 3
        %vm1063 = vcmp.lt.s32.totalorder %v1062, 2
        %vm1064 = vcmp.eq.s32.totalorder %v1062, 0
        %v1065 = vxor.u32 %v1059, 2147483648
        %v1066 = vsel %vm1064, %v1058, %v1065
        %vm1067 = vcmp.eq.s32.totalorder %v1062, 2
        %v1068 = vxor.u32 %v1058, 2147483648
        %v1069 = vsel %vm1067, %v1068, %v1059
        %v1070 = vsel %vm1063, %v1066, %v1069
        %v1071 = vsel %vm1060, nan, %v1070
        %v1072 = vand.u32 2147483647, %v333
        %vm1073 = vcmp.le.f32.partialorder %v1072, 0.7853982
        %vm1074 = vcmp.lt.s32.totalorder %v333, 0
        %v1075 = vand.u32 %v333, 2139095040
        %v1076 = vshrl.u32 %v1075, 23
        %v1077 = vsub.s32 %v1076, 127
        %v1078 = vand.u32 2147483647, %v333
        %v1079 = vand.u32 %v1078, 8388607
        %v1080 = vor.u32 %v1079, 8388608
        %v1081 = vsub.s32 0, %v1080
        %v1082 = vadd.s32 %v1077, 1
        %vm1083 = vcmp.gt.s32.totalorder %v1082, 0
        %v1084 = vsel %vm1083, %v1082, 0
        %v1085 = vshrl.u32 %v1084, 5
        %v1086 = vand.u32 %v1084, 31
        %v1087 = vsub.s32 32, %v1086
        %v1088 = vshrl.u32 683565275, %v1087
        %v1089 = vshll.u32 683565275, %v1086
        %v1090 = vshrl.u32 2475754826, %v1087
        %v1091 = vor.u32 %v1089, %v1090
        %v1092 = vshll.u32 2475754826, %v1086
        %v1093 = vshrl.u32 2131351028, %v1087
        %v1094 = vor.u32 %v1092, %v1093
        %v1095 = vshll.u32 2131351028, %v1086
        %v1096 = vshrl.u32 2102212464, %v1087
        %v1097 = vor.u32 %v1095, %v1096
        %v1098 = vshll.u32 2102212464, %v1086
        %v1099 = vshrl.u32 920167782, %v1087
        %v1100 = vor.u32 %v1098, %v1099
        %v1101 = vshll.u32 920167782, %v1086
        %v1102 = vshrl.u32 1326507024, %v1087
        %v1103 = vor.u32 %v1101, %v1102
        %vm1104 = vcmp.lt.s32.totalorder %v1085, 1
        %vm1105 = vcmp.lt.s32.totalorder %v1085, 2
        %vm1106 = vcmp.lt.s32.totalorder %v1085, 3
        %vm1107 = vcmp.lt.s32.totalorder %v1085, 4
        %v1108 = vsel %vm1104, %v1088, %v1091
        %v1109 = vsel %vm1107, %v1097, 2102212464
        %v1110 = vsel %vm1106, %v1094, %v1109
        %v1111 = vsel %vm1105, %v1108, %v1110
        %v1112 = vsel %vm1104, %v1091, %v1094
        %v1113 = vsel %vm1107, %v1100, 920167782
        %v1114 = vsel %vm1106, %v1097, %v1113
        %v1115 = vsel %vm1105, %v1112, %v1114
        %v1116 = vsel %vm1104, %v1094, %v1097
        %v1117 = vsel %vm1107, %v1103, 1326507024
        %v1118 = vsel %vm1106, %v1100, %v1117
        %v1119 = vsel %vm1105, %v1116, %v1118
        %v1120 = vshll.u32 %v1080, 8
        %v1121 = vmul.u32.u64.compose %v1120, %v1119
        %v1122 = vextract.low.u32 %v1121
        %v1123 = vextract.high.u32 %v1121
        %v1124 = vmul.u32.u64.compose %v1120, %v1115
        %v1125 = vextract.low.u32 %v1124
        %v1126 = vextract.high.u32 %v1124
        %v1127 = vmul.u32 %v1120, %v1111
        %v1128 = vadd.s32 %v1123, %v1125
        %vm1129 = vc.u32 %v1123, %v1125
        %v1130 = vadd.s32 %v1126, 1
        %v1131 = vsel %vm1129, %v1130, %v1126
        %v1132 = vadd.s32 %v1127, %v1131
        %v1133 = vadd.s32 %v1132, 536870912
        %v1134 = vshrl.u32 %v1133, 30
        %v1135 = vshll.u32 %v1134, 30
        %v1136 = vsub.s32 %v1132, %v1135
        %vm1137 = vcmp.lt.s32.totalorder %v1136, 0
        %v1138 = vsub.s32 0, %v1136
        %v1139 = vsel %vm1137, %v1138, %v1136
        %v1140 = vclz %v1139
        %v1141 = vsub.s32 %v1140, 2
        %vm1142 = vcmp.gt.s32.totalorder 0, %v1141
        %v1143 = vsel %vm1142, 0, %v1141
        %v1144 = vsub.s32 32, %v1143
        %v1145 = vshll.u32 %v1136, %v1143
        %v1146 = vshrl.u32 %v1128, %v1144
        %v1147 = vor.u32 %v1145, %v1146
        %v1148 = vsub.s32 4294967266, %v1143
        %v1149 = vadd.s32 %v1148, 127
        %v1150 = vshll.u32 %v1149, 23
        %v1151 = vor.u32 4788187, %v1150
        %v1152 = vand.u32 2147483647, %v1151
        %v1154 = vcvt.s32.f32 %v1147
        %v1155 = vmul.f32 %v1154, %v1152
        %v1156 = vxor.u32 %v1155, 2147483648
        %v1157 = vsel %vm1074, %v1156, %v1155
        %v1158 = vsub.s32 4, %v1134
        %v1159 = vsel %vm1074, %v1158, %v1134
        %v1160 = vsel %vm1073, %v333, %v1157
        %v1161 = vsel %vm1073, 0, %v1159
        %v1162 = vcosq.f32.pop %v1160
        %v1163 = vsinq.f32.pop %v1160
        %vm1164 = vweird.f32 %v333
        %v1165 = vadd.s32 %v1161, 3
        %v1166 = vand.u32 %v1165, 3
        %vm1167 = vcmp.lt.s32.totalorder %v1166, 2
        %vm1168 = vcmp.eq.s32.totalorder %v1166, 0
        %v1169 = vxor.u32 %v1163, 2147483648
        %v1170 = vsel %vm1168, %v1162, %v1169
        %vm1171 = vcmp.eq.s32.totalorder %v1166, 2
        %v1172 = vxor.u32 %v1162, 2147483648
        %v1173 = vsel %vm1171, %v1172, %v1163
        %v1174 = vsel %vm1167, %v1170, %v1173
        %v1175 = vsel %vm1164, nan, %v1174
        %v1176 = vand.u32 2147483647, %v334
        %vm1177 = vcmp.le.f32.partialorder %v1176, 0.7853982
        %vm1178 = vcmp.lt.s32.totalorder %v334, 0
        %v1179 = vand.u32 %v334, 2139095040
        %v1180 = vshrl.u32 %v1179, 23
        %v1181 = vsub.s32 %v1180, 127
        %v1182 = vand.u32 2147483647, %v334
        %v1183 = vand.u32 %v1182, 8388607
        %v1184 = vor.u32 %v1183, 8388608
        %v1185 = vsub.s32 0, %v1184
        %v1186 = vadd.s32 %v1181, 1
        %vm1187 = vcmp.gt.s32.totalorder %v1186, 0
        %v1188 = vsel %vm1187, %v1186, 0
        %v1189 = vshrl.u32 %v1188, 5
        %v1190 = vand.u32 %v1188, 31
        %v1191 = vsub.s32 32, %v1190
        %v1192 = vshrl.u32 683565275, %v1191
        %v1193 = vshll.u32 683565275, %v1190
        %v1194 = vshrl.u32 2475754826, %v1191
        %v1195 = vor.u32 %v1193, %v1194
        %v1196 = vshll.u32 2475754826, %v1190
        %v1197 = vshrl.u32 2131351028, %v1191
        %v1198 = vor.u32 %v1196, %v1197
        %v1199 = vshll.u32 2131351028, %v1190
        %v1200 = vshrl.u32 2102212464, %v1191
        %v1201 = vor.u32 %v1199, %v1200
        %v1202 = vshll.u32 2102212464, %v1190
        %v1203 = vshrl.u32 920167782, %v1191
        %v1204 = vor.u32 %v1202, %v1203
        %v1205 = vshll.u32 920167782, %v1190
        %v1206 = vshrl.u32 1326507024, %v1191
        %v1207 = vor.u32 %v1205, %v1206
        %vm1208 = vcmp.lt.s32.totalorder %v1189, 1
        %vm1209 = vcmp.lt.s32.totalorder %v1189, 2
        %vm1210 = vcmp.lt.s32.totalorder %v1189, 3
        %vm1211 = vcmp.lt.s32.totalorder %v1189, 4
        %v1212 = vsel %vm1208, %v1192, %v1195
        %v1213 = vsel %vm1211, %v1201, 2102212464
        %v1214 = vsel %vm1210, %v1198, %v1213
        %v1215 = vsel %vm1209, %v1212, %v1214
        %v1216 = vsel %vm1208, %v1195, %v1198
        %v1217 = vsel %vm1211, %v1204, 920167782
        %v1218 = vsel %vm1210, %v1201, %v1217
        %v1219 = vsel %vm1209, %v1216, %v1218
        %v1220 = vsel %vm1208, %v1198, %v1201
        %v1221 = vsel %vm1211, %v1207, 1326507024
        %v1222 = vsel %vm1210, %v1204, %v1221
        %v1223 = vsel %vm1209, %v1220, %v1222
        %v1224 = vshll.u32 %v1184, 8
        %v1225 = vmul.u32.u64.compose %v1224, %v1223
        %v1226 = vextract.low.u32 %v1225
        %v1227 = vextract.high.u32 %v1225
        %v1228 = vmul.u32.u64.compose %v1224, %v1219
        %v1229 = vextract.low.u32 %v1228
        %v1230 = vextract.high.u32 %v1228
        %v1231 = vmul.u32 %v1224, %v1215
        %v1232 = vadd.s32 %v1227, %v1229
        %vm1233 = vc.u32 %v1227, %v1229
        %v1234 = vadd.s32 %v1230, 1
        %v1235 = vsel %vm1233, %v1234, %v1230
        %v1236 = vadd.s32 %v1231, %v1235
        %v1237 = vadd.s32 %v1236, 536870912
        %v1238 = vshrl.u32 %v1237, 30
        %v1239 = vshll.u32 %v1238, 30
        %v1240 = vsub.s32 %v1236, %v1239
        %vm1241 = vcmp.lt.s32.totalorder %v1240, 0
        %v1242 = vsub.s32 0, %v1240
        %v1243 = vsel %vm1241, %v1242, %v1240
        %v1244 = vclz %v1243
        %v1245 = vsub.s32 %v1244, 2
        %vm1246 = vcmp.gt.s32.totalorder 0, %v1245
        %v1247 = vsel %vm1246, 0, %v1245
        %v1248 = vsub.s32 32, %v1247
        %v1249 = vshll.u32 %v1240, %v1247
        %v1250 = vshrl.u32 %v1232, %v1248
        %v1251 = vor.u32 %v1249, %v1250
        %v1252 = vsub.s32 4294967266, %v1247
        %v1253 = vadd.s32 %v1252, 127
        %v1254 = vshll.u32 %v1253, 23
        %v1255 = vor.u32 4788187, %v1254
        %v1256 = vand.u32 2147483647, %v1255
        %v1258 = vcvt.s32.f32 %v1251
        %v1259 = vmul.f32 %v1258, %v1256
        %v1260 = vxor.u32 %v1259, 2147483648
        %v1261 = vsel %vm1178, %v1260, %v1259
        %v1262 = vsub.s32 4, %v1238
        %v1263 = vsel %vm1178, %v1262, %v1238
        %v1264 = vsel %vm1177, %v334, %v1261
        %v1265 = vsel %vm1177, 0, %v1263
        %v1266 = vcosq.f32.pop %v1264
        %v1267 = vsinq.f32.pop %v1264
        %vm1268 = vweird.f32 %v334
        %v1269 = vadd.s32 %v1265, 3
        %v1270 = vand.u32 %v1269, 3
        %vm1271 = vcmp.lt.s32.totalorder %v1270, 2
        %vm1272 = vcmp.eq.s32.totalorder %v1270, 0
        %v1273 = vxor.u32 %v1267, 2147483648
        %v1274 = vsel %vm1272, %v1266, %v1273
        %vm1275 = vcmp.eq.s32.totalorder %v1270, 2
        %v1276 = vxor.u32 %v1266, 2147483648
        %v1277 = vsel %vm1275, %v1276, %v1267
        %v1278 = vsel %vm1271, %v1274, %v1277
        %v1279 = vsel %vm1268, nan, %v1278
        %v1280 = vand.u32 2147483647, %v335
        %vm1281 = vcmp.le.f32.partialorder %v1280, 0.7853982
        %vm1282 = vcmp.lt.s32.totalorder %v335, 0
        %v1283 = vand.u32 %v335, 2139095040
        %v1284 = vshrl.u32 %v1283, 23
        %v1285 = vsub.s32 %v1284, 127
        %v1286 = vand.u32 2147483647, %v335
        %v1287 = vand.u32 %v1286, 8388607
        %v1288 = vor.u32 %v1287, 8388608
        %v1289 = vsub.s32 0, %v1288
        %v1290 = vadd.s32 %v1285, 1
        %vm1291 = vcmp.gt.s32.totalorder %v1290, 0
        %v1292 = vsel %vm1291, %v1290, 0
        %v1293 = vshrl.u32 %v1292, 5
        %v1294 = vand.u32 %v1292, 31
        %v1295 = vsub.s32 32, %v1294
        %v1296 = vshrl.u32 683565275, %v1295
        %v1297 = vshll.u32 683565275, %v1294
        %v1298 = vshrl.u32 2475754826, %v1295
        %v1299 = vor.u32 %v1297, %v1298
        %v1300 = vshll.u32 2475754826, %v1294
        %v1301 = vshrl.u32 2131351028, %v1295
        %v1302 = vor.u32 %v1300, %v1301
        %v1303 = vshll.u32 2131351028, %v1294
        %v1304 = vshrl.u32 2102212464, %v1295
        %v1305 = vor.u32 %v1303, %v1304
        %v1306 = vshll.u32 2102212464, %v1294
        %v1307 = vshrl.u32 920167782, %v1295
        %v1308 = vor.u32 %v1306, %v1307
        %v1309 = vshll.u32 920167782, %v1294
        %v1310 = vshrl.u32 1326507024, %v1295
        %v1311 = vor.u32 %v1309, %v1310
        %vm1312 = vcmp.lt.s32.totalorder %v1293, 1
        %vm1313 = vcmp.lt.s32.totalorder %v1293, 2
        %vm1314 = vcmp.lt.s32.totalorder %v1293, 3
        %vm1315 = vcmp.lt.s32.totalorder %v1293, 4
        %v1316 = vsel %vm1312, %v1296, %v1299
        %v1317 = vsel %vm1315, %v1305, 2102212464
        %v1318 = vsel %vm1314, %v1302, %v1317
        %v1319 = vsel %vm1313, %v1316, %v1318
        %v1320 = vsel %vm1312, %v1299, %v1302
        %v1321 = vsel %vm1315, %v1308, 920167782
        %v1322 = vsel %vm1314, %v1305, %v1321
        %v1323 = vsel %vm1313, %v1320, %v1322
        %v1324 = vsel %vm1312, %v1302, %v1305
        %v1325 = vsel %vm1315, %v1311, 1326507024
        %v1326 = vsel %vm1314, %v1308, %v1325
        %v1327 = vsel %vm1313, %v1324, %v1326
        %v1328 = vshll.u32 %v1288, 8
        %v1329 = vmul.u32.u64.compose %v1328, %v1327
        %v1330 = vextract.low.u32 %v1329
        %v1331 = vextract.high.u32 %v1329
        %v1332 = vmul.u32.u64.compose %v1328, %v1323
        %v1333 = vextract.low.u32 %v1332
        %v1334 = vextract.high.u32 %v1332
        %v1335 = vmul.u32 %v1328, %v1319
        %v1336 = vadd.s32 %v1331, %v1333
        %vm1337 = vc.u32 %v1331, %v1333
        %v1338 = vadd.s32 %v1334, 1
        %v1339 = vsel %vm1337, %v1338, %v1334
        %v1340 = vadd.s32 %v1335, %v1339
        %v1341 = vadd.s32 %v1340, 536870912
        %v1342 = vshrl.u32 %v1341, 30
        %v1343 = vshll.u32 %v1342, 30
        %v1344 = vsub.s32 %v1340, %v1343
        %vm1345 = vcmp.lt.s32.totalorder %v1344, 0
        %v1346 = vsub.s32 0, %v1344
        %v1347 = vsel %vm1345, %v1346, %v1344
        %v1348 = vclz %v1347
        %v1349 = vsub.s32 %v1348, 2
        %vm1350 = vcmp.gt.s32.totalorder 0, %v1349
        %v1351 = vsel %vm1350, 0, %v1349
        %v1352 = vsub.s32 32, %v1351
        %v1353 = vshll.u32 %v1344, %v1351
        %v1354 = vshrl.u32 %v1336, %v1352
        %v1355 = vor.u32 %v1353, %v1354
        %v1356 = vsub.s32 4294967266, %v1351
        %v1357 = vadd.s32 %v1356, 127
        %v1358 = vshll.u32 %v1357, 23
        %v1359 = vor.u32 4788187, %v1358
        %v1360 = vand.u32 2147483647, %v1359
        %v1362 = vcvt.s32.f32 %v1355
        %v1363 = vmul.f32 %v1362, %v1360
        %v1364 = vxor.u32 %v1363, 2147483648
        %v1365 = vsel %vm1282, %v1364, %v1363
        %v1366 = vsub.s32 4, %v1342
        %v1367 = vsel %vm1282, %v1366, %v1342
        %v1368 = vsel %vm1281, %v335, %v1365
        %v1369 = vsel %vm1281, 0, %v1367
        %v1370 = vcosq.f32.pop %v1368
        %v1371 = vsinq.f32.pop %v1368
        %vm1372 = vweird.f32 %v335
        %v1373 = vadd.s32 %v1369, 3
        %v1374 = vand.u32 %v1373, 3
        %vm1375 = vcmp.lt.s32.totalorder %v1374, 2
        %vm1376 = vcmp.eq.s32.totalorder %v1374, 0
        %v1377 = vxor.u32 %v1371, 2147483648
        %v1378 = vsel %vm1376, %v1370, %v1377
        %vm1379 = vcmp.eq.s32.totalorder %v1374, 2
        %v1380 = vxor.u32 %v1370, 2147483648
        %v1381 = vsel %vm1379, %v1380, %v1371
        %v1382 = vsel %vm1375, %v1378, %v1381
        %v1383 = vsel %vm1372, nan, %v1382
        %v1384 = vand.u32 2147483647, %v328
        %vm1385 = vcmp.le.f32.partialorder %v1384, 0.7853982
        %vm1386 = vcmp.lt.s32.totalorder %v328, 0
        %v1387 = vand.u32 %v328, 2139095040
        %v1388 = vshrl.u32 %v1387, 23
        %v1389 = vsub.s32 %v1388, 127
        %v1390 = vand.u32 2147483647, %v328
        %v1391 = vand.u32 %v1390, 8388607
        %v1392 = vor.u32 %v1391, 8388608
        %v1393 = vsub.s32 0, %v1392
        %v1394 = vadd.s32 %v1389, 1
        %vm1395 = vcmp.gt.s32.totalorder %v1394, 0
        %v1396 = vsel %vm1395, %v1394, 0
        %v1397 = vshrl.u32 %v1396, 5
        %v1398 = vand.u32 %v1396, 31
        %v1399 = vsub.s32 32, %v1398
        %v1400 = vshrl.u32 683565275, %v1399
        %v1401 = vshll.u32 683565275, %v1398
        %v1402 = vshrl.u32 2475754826, %v1399
        %v1403 = vor.u32 %v1401, %v1402
        %v1404 = vshll.u32 2475754826, %v1398
        %v1405 = vshrl.u32 2131351028, %v1399
        %v1406 = vor.u32 %v1404, %v1405
        %v1407 = vshll.u32 2131351028, %v1398
        %v1408 = vshrl.u32 2102212464, %v1399
        %v1409 = vor.u32 %v1407, %v1408
        %v1410 = vshll.u32 2102212464, %v1398
        %v1411 = vshrl.u32 920167782, %v1399
        %v1412 = vor.u32 %v1410, %v1411
        %v1413 = vshll.u32 920167782, %v1398
        %v1414 = vshrl.u32 1326507024, %v1399
        %v1415 = vor.u32 %v1413, %v1414
        %vm1416 = vcmp.lt.s32.totalorder %v1397, 1
        %vm1417 = vcmp.lt.s32.totalorder %v1397, 2
        %vm1418 = vcmp.lt.s32.totalorder %v1397, 3
        %vm1419 = vcmp.lt.s32.totalorder %v1397, 4
        %v1420 = vsel %vm1416, %v1400, %v1403
        %v1421 = vsel %vm1419, %v1409, 2102212464
        %v1422 = vsel %vm1418, %v1406, %v1421
        %v1423 = vsel %vm1417, %v1420, %v1422
        %v1424 = vsel %vm1416, %v1403, %v1406
        %v1425 = vsel %vm1419, %v1412, 920167782
        %v1426 = vsel %vm1418, %v1409, %v1425
        %v1427 = vsel %vm1417, %v1424, %v1426
        %v1428 = vsel %vm1416, %v1406, %v1409
        %v1429 = vsel %vm1419, %v1415, 1326507024
        %v1430 = vsel %vm1418, %v1412, %v1429
        %v1431 = vsel %vm1417, %v1428, %v1430
        %v1432 = vshll.u32 %v1392, 8
        %v1433 = vmul.u32.u64.compose %v1432, %v1431
        %v1434 = vextract.low.u32 %v1433
        %v1435 = vextract.high.u32 %v1433
        %v1436 = vmul.u32.u64.compose %v1432, %v1427
        %v1437 = vextract.low.u32 %v1436
        %v1438 = vextract.high.u32 %v1436
        %v1439 = vmul.u32 %v1432, %v1423
        %v1440 = vadd.s32 %v1435, %v1437
        %vm1441 = vc.u32 %v1435, %v1437
        %v1442 = vadd.s32 %v1438, 1
        %v1443 = vsel %vm1441, %v1442, %v1438
        %v1444 = vadd.s32 %v1439, %v1443
        %v1445 = vadd.s32 %v1444, 536870912
        %v1446 = vshrl.u32 %v1445, 30
        %v1447 = vshll.u32 %v1446, 30
        %v1448 = vsub.s32 %v1444, %v1447
        %vm1449 = vcmp.lt.s32.totalorder %v1448, 0
        %v1450 = vsub.s32 0, %v1448
        %v1451 = vsel %vm1449, %v1450, %v1448
        %v1452 = vclz %v1451
        %v1453 = vsub.s32 %v1452, 2
        %vm1454 = vcmp.gt.s32.totalorder 0, %v1453
        %v1455 = vsel %vm1454, 0, %v1453
        %v1456 = vsub.s32 32, %v1455
        %v1457 = vshll.u32 %v1448, %v1455
        %v1458 = vshrl.u32 %v1440, %v1456
        %v1459 = vor.u32 %v1457, %v1458
        %v1460 = vsub.s32 4294967266, %v1455
        %v1461 = vadd.s32 %v1460, 127
        %v1462 = vshll.u32 %v1461, 23
        %v1463 = vor.u32 4788187, %v1462
        %v1464 = vand.u32 2147483647, %v1463
        %v1466 = vcvt.s32.f32 %v1459
        %v1467 = vmul.f32 %v1466, %v1464
        %v1468 = vxor.u32 %v1467, 2147483648
        %v1469 = vsel %vm1386, %v1468, %v1467
        %v1470 = vsub.s32 4, %v1446
        %v1471 = vsel %vm1386, %v1470, %v1446
        %v1472 = vsel %vm1385, %v328, %v1469
        %v1473 = vsel %vm1385, 0, %v1471
        %v1474 = vcosq.f32.pop %v1472
        %v1475 = vsinq.f32.pop %v1472
        %vm1476 = vweird.f32 %v328
        %v1477 = vand.u32 %v1473, 3
        %vm1478 = vcmp.lt.s32.totalorder %v1477, 2
        %vm1479 = vcmp.eq.s32.totalorder %v1477, 0
        %v1480 = vxor.u32 %v1475, 2147483648
        %v1481 = vsel %vm1479, %v1474, %v1480
        %vm1482 = vcmp.eq.s32.totalorder %v1477, 2
        %v1483 = vxor.u32 %v1474, 2147483648
        %v1484 = vsel %vm1482, %v1483, %v1475
        %v1485 = vsel %vm1478, %v1481, %v1484
        %v1486 = vsel %vm1476, nan, %v1485
        %v1487 = vand.u32 2147483647, %v329
        %vm1488 = vcmp.le.f32.partialorder %v1487, 0.7853982
        %vm1489 = vcmp.lt.s32.totalorder %v329, 0
        %v1490 = vand.u32 %v329, 2139095040
        %v1491 = vshrl.u32 %v1490, 23
        %v1492 = vsub.s32 %v1491, 127
        %v1493 = vand.u32 2147483647, %v329
        %v1494 = vand.u32 %v1493, 8388607
        %v1495 = vor.u32 %v1494, 8388608
        %v1496 = vsub.s32 0, %v1495
        %v1497 = vadd.s32 %v1492, 1
        %vm1498 = vcmp.gt.s32.totalorder %v1497, 0
        %v1499 = vsel %vm1498, %v1497, 0
        %v1500 = vshrl.u32 %v1499, 5
        %v1501 = vand.u32 %v1499, 31
        %v1502 = vsub.s32 32, %v1501
        %v1503 = vshrl.u32 683565275, %v1502
        %v1504 = vshll.u32 683565275, %v1501
        %v1505 = vshrl.u32 2475754826, %v1502
        %v1506 = vor.u32 %v1504, %v1505
        %v1507 = vshll.u32 2475754826, %v1501
        %v1508 = vshrl.u32 2131351028, %v1502
        %v1509 = vor.u32 %v1507, %v1508
        %v1510 = vshll.u32 2131351028, %v1501
        %v1511 = vshrl.u32 2102212464, %v1502
        %v1512 = vor.u32 %v1510, %v1511
        %v1513 = vshll.u32 2102212464, %v1501
        %v1514 = vshrl.u32 920167782, %v1502
        %v1515 = vor.u32 %v1513, %v1514
        %v1516 = vshll.u32 920167782, %v1501
        %v1517 = vshrl.u32 1326507024, %v1502
        %v1518 = vor.u32 %v1516, %v1517
        %vm1519 = vcmp.lt.s32.totalorder %v1500, 1
        %vm1520 = vcmp.lt.s32.totalorder %v1500, 2
        %vm1521 = vcmp.lt.s32.totalorder %v1500, 3
        %vm1522 = vcmp.lt.s32.totalorder %v1500, 4
        %v1523 = vsel %vm1519, %v1503, %v1506
        %v1524 = vsel %vm1522, %v1512, 2102212464
        %v1525 = vsel %vm1521, %v1509, %v1524
        %v1526 = vsel %vm1520, %v1523, %v1525
        %v1527 = vsel %vm1519, %v1506, %v1509
        %v1528 = vsel %vm1522, %v1515, 920167782
        %v1529 = vsel %vm1521, %v1512, %v1528
        %v1530 = vsel %vm1520, %v1527, %v1529
        %v1531 = vsel %vm1519, %v1509, %v1512
        %v1532 = vsel %vm1522, %v1518, 1326507024
        %v1533 = vsel %vm1521, %v1515, %v1532
        %v1534 = vsel %vm1520, %v1531, %v1533
        %v1535 = vshll.u32 %v1495, 8
        %v1536 = vmul.u32.u64.compose %v1535, %v1534
        %v1537 = vextract.low.u32 %v1536
        %v1538 = vextract.high.u32 %v1536
        %v1539 = vmul.u32.u64.compose %v1535, %v1530
        %v1540 = vextract.low.u32 %v1539
        %v1541 = vextract.high.u32 %v1539
        %v1542 = vmul.u32 %v1535, %v1526
        %v1543 = vadd.s32 %v1538, %v1540
        %vm1544 = vc.u32 %v1538, %v1540
        %v1545 = vadd.s32 %v1541, 1
        %v1546 = vsel %vm1544, %v1545, %v1541
        %v1547 = vadd.s32 %v1542, %v1546
        %v1548 = vadd.s32 %v1547, 536870912
        %v1549 = vshrl.u32 %v1548, 30
        %v1550 = vshll.u32 %v1549, 30
        %v1551 = vsub.s32 %v1547, %v1550
        %vm1552 = vcmp.lt.s32.totalorder %v1551, 0
        %v1553 = vsub.s32 0, %v1551
        %v1554 = vsel %vm1552, %v1553, %v1551
        %v1555 = vclz %v1554
        %v1556 = vsub.s32 %v1555, 2
        %vm1557 = vcmp.gt.s32.totalorder 0, %v1556
        %v1558 = vsel %vm1557, 0, %v1556
        %v1559 = vsub.s32 32, %v1558
        %v1560 = vshll.u32 %v1551, %v1558
        %v1561 = vshrl.u32 %v1543, %v1559
        %v1562 = vor.u32 %v1560, %v1561
        %v1563 = vsub.s32 4294967266, %v1558
        %v1564 = vadd.s32 %v1563, 127
        %v1565 = vshll.u32 %v1564, 23
        %v1566 = vor.u32 4788187, %v1565
        %v1567 = vand.u32 2147483647, %v1566
        %v1569 = vcvt.s32.f32 %v1562
        %v1570 = vmul.f32 %v1569, %v1567
        %v1571 = vxor.u32 %v1570, 2147483648
        %v1572 = vsel %vm1489, %v1571, %v1570
        %v1573 = vsub.s32 4, %v1549
        %v1574 = vsel %vm1489, %v1573, %v1549
        %v1575 = vsel %vm1488, %v329, %v1572
        %v1576 = vsel %vm1488, 0, %v1574
        %v1577 = vcosq.f32.pop %v1575
        %v1578 = vsinq.f32.pop %v1575
        %vm1579 = vweird.f32 %v329
        %v1580 = vand.u32 %v1576, 3
        %vm1581 = vcmp.lt.s32.totalorder %v1580, 2
        %vm1582 = vcmp.eq.s32.totalorder %v1580, 0
        %v1583 = vxor.u32 %v1578, 2147483648
        %v1584 = vsel %vm1582, %v1577, %v1583
        %vm1585 = vcmp.eq.s32.totalorder %v1580, 2
        %v1586 = vxor.u32 %v1577, 2147483648
        %v1587 = vsel %vm1585, %v1586, %v1578
        %v1588 = vsel %vm1581, %v1584, %v1587
        %v1589 = vsel %vm1579, nan, %v1588
        %v1590 = vand.u32 2147483647, %v330
        %vm1591 = vcmp.le.f32.partialorder %v1590, 0.7853982
        %vm1592 = vcmp.lt.s32.totalorder %v330, 0
        %v1593 = vand.u32 %v330, 2139095040
        %v1594 = vshrl.u32 %v1593, 23
        %v1595 = vsub.s32 %v1594, 127
        %v1596 = vand.u32 2147483647, %v330
        %v1597 = vand.u32 %v1596, 8388607
        %v1598 = vor.u32 %v1597, 8388608
        %v1599 = vsub.s32 0, %v1598
        %v1600 = vadd.s32 %v1595, 1
        %vm1601 = vcmp.gt.s32.totalorder %v1600, 0
        %v1602 = vsel %vm1601, %v1600, 0
        %v1603 = vshrl.u32 %v1602, 5
        %v1604 = vand.u32 %v1602, 31
        %v1605 = vsub.s32 32, %v1604
        %v1606 = vshrl.u32 683565275, %v1605
        %v1607 = vshll.u32 683565275, %v1604
        %v1608 = vshrl.u32 2475754826, %v1605
        %v1609 = vor.u32 %v1607, %v1608
        %v1610 = vshll.u32 2475754826, %v1604
        %v1611 = vshrl.u32 2131351028, %v1605
        %v1612 = vor.u32 %v1610, %v1611
        %v1613 = vshll.u32 2131351028, %v1604
        %v1614 = vshrl.u32 2102212464, %v1605
        %v1615 = vor.u32 %v1613, %v1614
        %v1616 = vshll.u32 2102212464, %v1604
        %v1617 = vshrl.u32 920167782, %v1605
        %v1618 = vor.u32 %v1616, %v1617
        %v1619 = vshll.u32 920167782, %v1604
        %v1620 = vshrl.u32 1326507024, %v1605
        %v1621 = vor.u32 %v1619, %v1620
        %vm1622 = vcmp.lt.s32.totalorder %v1603, 1
        %vm1623 = vcmp.lt.s32.totalorder %v1603, 2
        %vm1624 = vcmp.lt.s32.totalorder %v1603, 3
        %vm1625 = vcmp.lt.s32.totalorder %v1603, 4
        %v1626 = vsel %vm1622, %v1606, %v1609
        %v1627 = vsel %vm1625, %v1615, 2102212464
        %v1628 = vsel %vm1624, %v1612, %v1627
        %v1629 = vsel %vm1623, %v1626, %v1628
        %v1630 = vsel %vm1622, %v1609, %v1612
        %v1631 = vsel %vm1625, %v1618, 920167782
        %v1632 = vsel %vm1624, %v1615, %v1631
        %v1633 = vsel %vm1623, %v1630, %v1632
        %v1634 = vsel %vm1622, %v1612, %v1615
        %v1635 = vsel %vm1625, %v1621, 1326507024
        %v1636 = vsel %vm1624, %v1618, %v1635
        %v1637 = vsel %vm1623, %v1634, %v1636
        %v1638 = vshll.u32 %v1598, 8
        %v1639 = vmul.u32.u64.compose %v1638, %v1637
        %v1640 = vextract.low.u32 %v1639
        %v1641 = vextract.high.u32 %v1639
        %v1642 = vmul.u32.u64.compose %v1638, %v1633
        %v1643 = vextract.low.u32 %v1642
        %v1644 = vextract.high.u32 %v1642
        %v1645 = vmul.u32 %v1638, %v1629
        %v1646 = vadd.s32 %v1641, %v1643
        %vm1647 = vc.u32 %v1641, %v1643
        %v1648 = vadd.s32 %v1644, 1
        %v1649 = vsel %vm1647, %v1648, %v1644
        %v1650 = vadd.s32 %v1645, %v1649
        %v1651 = vadd.s32 %v1650, 536870912
        %v1652 = vshrl.u32 %v1651, 30
        %v1653 = vshll.u32 %v1652, 30
        %v1654 = vsub.s32 %v1650, %v1653
        %vm1655 = vcmp.lt.s32.totalorder %v1654, 0
        %v1656 = vsub.s32 0, %v1654
        %v1657 = vsel %vm1655, %v1656, %v1654
        %v1658 = vclz %v1657
        %v1659 = vsub.s32 %v1658, 2
        %vm1660 = vcmp.gt.s32.totalorder 0, %v1659
        %v1661 = vsel %vm1660, 0, %v1659
        %v1662 = vsub.s32 32, %v1661
        %v1663 = vshll.u32 %v1654, %v1661
        %v1664 = vshrl.u32 %v1646, %v1662
        %v1665 = vor.u32 %v1663, %v1664
        %v1666 = vsub.s32 4294967266, %v1661
        %v1667 = vadd.s32 %v1666, 127
        %v1668 = vshll.u32 %v1667, 23
        %v1669 = vor.u32 4788187, %v1668
        %v1670 = vand.u32 2147483647, %v1669
        %v1672 = vcvt.s32.f32 %v1665
        %v1673 = vmul.f32 %v1672, %v1670
        %v1674 = vxor.u32 %v1673, 2147483648
        %v1675 = vsel %vm1592, %v1674, %v1673
        %v1676 = vsub.s32 4, %v1652
        %v1677 = vsel %vm1592, %v1676, %v1652
        %v1678 = vsel %vm1591, %v330, %v1675
        %v1679 = vsel %vm1591, 0, %v1677
        %v1680 = vcosq.f32.pop %v1678
        %v1681 = vsinq.f32.pop %v1678
        %vm1682 = vweird.f32 %v330
        %v1683 = vand.u32 %v1679, 3
        %vm1684 = vcmp.lt.s32.totalorder %v1683, 2
        %vm1685 = vcmp.eq.s32.totalorder %v1683, 0
        %v1686 = vxor.u32 %v1681, 2147483648
        %v1687 = vsel %vm1685, %v1680, %v1686
        %vm1688 = vcmp.eq.s32.totalorder %v1683, 2
        %v1689 = vxor.u32 %v1680, 2147483648
        %v1690 = vsel %vm1688, %v1689, %v1681
        %v1691 = vsel %vm1684, %v1687, %v1690
        %v1692 = vsel %vm1682, nan, %v1691
        %v1693 = vand.u32 2147483647, %v331
        %vm1694 = vcmp.le.f32.partialorder %v1693, 0.7853982
        %vm1695 = vcmp.lt.s32.totalorder %v331, 0
        %v1696 = vand.u32 %v331, 2139095040
        %v1697 = vshrl.u32 %v1696, 23
        %v1698 = vsub.s32 %v1697, 127
        %v1699 = vand.u32 2147483647, %v331
        %v1700 = vand.u32 %v1699, 8388607
        %v1701 = vor.u32 %v1700, 8388608
        %v1702 = vsub.s32 0, %v1701
        %v1703 = vadd.s32 %v1698, 1
        %vm1704 = vcmp.gt.s32.totalorder %v1703, 0
        %v1705 = vsel %vm1704, %v1703, 0
        %v1706 = vshrl.u32 %v1705, 5
        %v1707 = vand.u32 %v1705, 31
        %v1708 = vsub.s32 32, %v1707
        %v1709 = vshrl.u32 683565275, %v1708
        %v1710 = vshll.u32 683565275, %v1707
        %v1711 = vshrl.u32 2475754826, %v1708
        %v1712 = vor.u32 %v1710, %v1711
        %v1713 = vshll.u32 2475754826, %v1707
        %v1714 = vshrl.u32 2131351028, %v1708
        %v1715 = vor.u32 %v1713, %v1714
        %v1716 = vshll.u32 2131351028, %v1707
        %v1717 = vshrl.u32 2102212464, %v1708
        %v1718 = vor.u32 %v1716, %v1717
        %v1719 = vshll.u32 2102212464, %v1707
        %v1720 = vshrl.u32 920167782, %v1708
        %v1721 = vor.u32 %v1719, %v1720
        %v1722 = vshll.u32 920167782, %v1707
        %v1723 = vshrl.u32 1326507024, %v1708
        %v1724 = vor.u32 %v1722, %v1723
        %vm1725 = vcmp.lt.s32.totalorder %v1706, 1
        %vm1726 = vcmp.lt.s32.totalorder %v1706, 2
        %vm1727 = vcmp.lt.s32.totalorder %v1706, 3
        %vm1728 = vcmp.lt.s32.totalorder %v1706, 4
        %v1729 = vsel %vm1725, %v1709, %v1712
        %v1730 = vsel %vm1728, %v1718, 2102212464
        %v1731 = vsel %vm1727, %v1715, %v1730
        %v1732 = vsel %vm1726, %v1729, %v1731
        %v1733 = vsel %vm1725, %v1712, %v1715
        %v1734 = vsel %vm1728, %v1721, 920167782
        %v1735 = vsel %vm1727, %v1718, %v1734
        %v1736 = vsel %vm1726, %v1733, %v1735
        %v1737 = vsel %vm1725, %v1715, %v1718
        %v1738 = vsel %vm1728, %v1724, 1326507024
        %v1739 = vsel %vm1727, %v1721, %v1738
        %v1740 = vsel %vm1726, %v1737, %v1739
        %v1741 = vshll.u32 %v1701, 8
        %v1742 = vmul.u32.u64.compose %v1741, %v1740
        %v1743 = vextract.low.u32 %v1742
        %v1744 = vextract.high.u32 %v1742
        %v1745 = vmul.u32.u64.compose %v1741, %v1736
        %v1746 = vextract.low.u32 %v1745
        %v1747 = vextract.high.u32 %v1745
        %v1748 = vmul.u32 %v1741, %v1732
        %v1749 = vadd.s32 %v1744, %v1746
        %vm1750 = vc.u32 %v1744, %v1746
        %v1751 = vadd.s32 %v1747, 1
        %v1752 = vsel %vm1750, %v1751, %v1747
        %v1753 = vadd.s32 %v1748, %v1752
        %v1754 = vadd.s32 %v1753, 536870912
        %v1755 = vshrl.u32 %v1754, 30
        %v1756 = vshll.u32 %v1755, 30
        %v1757 = vsub.s32 %v1753, %v1756
        %vm1758 = vcmp.lt.s32.totalorder %v1757, 0
        %v1759 = vsub.s32 0, %v1757
        %v1760 = vsel %vm1758, %v1759, %v1757
        %v1761 = vclz %v1760
        %v1762 = vsub.s32 %v1761, 2
        %vm1763 = vcmp.gt.s32.totalorder 0, %v1762
        %v1764 = vsel %vm1763, 0, %v1762
        %v1765 = vsub.s32 32, %v1764
        %v1766 = vshll.u32 %v1757, %v1764
        %v1767 = vshrl.u32 %v1749, %v1765
        %v1768 = vor.u32 %v1766, %v1767
        %v1769 = vsub.s32 4294967266, %v1764
        %v1770 = vadd.s32 %v1769, 127
        %v1771 = vshll.u32 %v1770, 23
        %v1772 = vor.u32 4788187, %v1771
        %v1773 = vand.u32 2147483647, %v1772
        %v1775 = vcvt.s32.f32 %v1768
        %v1776 = vmul.f32 %v1775, %v1773
        %v1777 = vxor.u32 %v1776, 2147483648
        %v1778 = vsel %vm1695, %v1777, %v1776
        %v1779 = vsub.s32 4, %v1755
        %v1780 = vsel %vm1695, %v1779, %v1755
        %v1781 = vsel %vm1694, %v331, %v1778
        %v1782 = vsel %vm1694, 0, %v1780
        %v1783 = vcosq.f32.pop %v1781
        %v1784 = vsinq.f32.pop %v1781
        %vm1785 = vweird.f32 %v331
        %v1786 = vand.u32 %v1782, 3
        %vm1787 = vcmp.lt.s32.totalorder %v1786, 2
        %vm1788 = vcmp.eq.s32.totalorder %v1786, 0
        %v1789 = vxor.u32 %v1784, 2147483648
        %v1790 = vsel %vm1788, %v1783, %v1789
        %vm1791 = vcmp.eq.s32.totalorder %v1786, 2
        %v1792 = vxor.u32 %v1783, 2147483648
        %v1793 = vsel %vm1791, %v1792, %v1784
        %v1794 = vsel %vm1787, %v1790, %v1793
        %v1795 = vsel %vm1785, nan, %v1794
        %v1796 = vand.u32 2147483647, %v332
        %vm1797 = vcmp.le.f32.partialorder %v1796, 0.7853982
        %vm1798 = vcmp.lt.s32.totalorder %v332, 0
        %v1799 = vand.u32 %v332, 2139095040
        %v1800 = vshrl.u32 %v1799, 23
        %v1801 = vsub.s32 %v1800, 127
        %v1802 = vand.u32 2147483647, %v332
        %v1803 = vand.u32 %v1802, 8388607
        %v1804 = vor.u32 %v1803, 8388608
        %v1805 = vsub.s32 0, %v1804
        %v1806 = vadd.s32 %v1801, 1
        %vm1807 = vcmp.gt.s32.totalorder %v1806, 0
        %v1808 = vsel %vm1807, %v1806, 0
        %v1809 = vshrl.u32 %v1808, 5
        %v1810 = vand.u32 %v1808, 31
        %v1811 = vsub.s32 32, %v1810
        %v1812 = vshrl.u32 683565275, %v1811
        %v1813 = vshll.u32 683565275, %v1810
        %v1814 = vshrl.u32 2475754826, %v1811
        %v1815 = vor.u32 %v1813, %v1814
        %v1816 = vshll.u32 2475754826, %v1810
        %v1817 = vshrl.u32 2131351028, %v1811
        %v1818 = vor.u32 %v1816, %v1817
        %v1819 = vshll.u32 2131351028, %v1810
        %v1820 = vshrl.u32 2102212464, %v1811
        %v1821 = vor.u32 %v1819, %v1820
        %v1822 = vshll.u32 2102212464, %v1810
        %v1823 = vshrl.u32 920167782, %v1811
        %v1824 = vor.u32 %v1822, %v1823
        %v1825 = vshll.u32 920167782, %v1810
        %v1826 = vshrl.u32 1326507024, %v1811
        %v1827 = vor.u32 %v1825, %v1826
        %vm1828 = vcmp.lt.s32.totalorder %v1809, 1
        %vm1829 = vcmp.lt.s32.totalorder %v1809, 2
        %vm1830 = vcmp.lt.s32.totalorder %v1809, 3
        %vm1831 = vcmp.lt.s32.totalorder %v1809, 4
        %v1832 = vsel %vm1828, %v1812, %v1815
        %v1833 = vsel %vm1831, %v1821, 2102212464
        %v1834 = vsel %vm1830, %v1818, %v1833
        %v1835 = vsel %vm1829, %v1832, %v1834
        %v1836 = vsel %vm1828, %v1815, %v1818
        %v1837 = vsel %vm1831, %v1824, 920167782
        %v1838 = vsel %vm1830, %v1821, %v1837
        %v1839 = vsel %vm1829, %v1836, %v1838
        %v1840 = vsel %vm1828, %v1818, %v1821
        %v1841 = vsel %vm1831, %v1827, 1326507024
        %v1842 = vsel %vm1830, %v1824, %v1841
        %v1843 = vsel %vm1829, %v1840, %v1842
        %v1844 = vshll.u32 %v1804, 8
        %v1845 = vmul.u32.u64.compose %v1844, %v1843
        %v1846 = vextract.low.u32 %v1845
        %v1847 = vextract.high.u32 %v1845
        %v1848 = vmul.u32.u64.compose %v1844, %v1839
        %v1849 = vextract.low.u32 %v1848
        %v1850 = vextract.high.u32 %v1848
        %v1851 = vmul.u32 %v1844, %v1835
        %v1852 = vadd.s32 %v1847, %v1849
        %vm1853 = vc.u32 %v1847, %v1849
        %v1854 = vadd.s32 %v1850, 1
        %v1855 = vsel %vm1853, %v1854, %v1850
        %v1856 = vadd.s32 %v1851, %v1855
        %v1857 = vadd.s32 %v1856, 536870912
        %v1858 = vshrl.u32 %v1857, 30
        %v1859 = vshll.u32 %v1858, 30
        %v1860 = vsub.s32 %v1856, %v1859
        %vm1861 = vcmp.lt.s32.totalorder %v1860, 0
        %v1862 = vsub.s32 0, %v1860
        %v1863 = vsel %vm1861, %v1862, %v1860
        %v1864 = vclz %v1863
        %v1865 = vsub.s32 %v1864, 2
        %vm1866 = vcmp.gt.s32.totalorder 0, %v1865
        %v1867 = vsel %vm1866, 0, %v1865
        %v1868 = vsub.s32 32, %v1867
        %v1869 = vshll.u32 %v1860, %v1867
        %v1870 = vshrl.u32 %v1852, %v1868
        %v1871 = vor.u32 %v1869, %v1870
        %v1872 = vsub.s32 4294967266, %v1867
        %v1873 = vadd.s32 %v1872, 127
        %v1874 = vshll.u32 %v1873, 23
        %v1875 = vor.u32 4788187, %v1874
        %v1876 = vand.u32 2147483647, %v1875
        %v1878 = vcvt.s32.f32 %v1871
        %v1879 = vmul.f32 %v1878, %v1876
        %v1880 = vxor.u32 %v1879, 2147483648
        %v1881 = vsel %vm1798, %v1880, %v1879
        %v1882 = vsub.s32 4, %v1858
        %v1883 = vsel %vm1798, %v1882, %v1858
        %v1884 = vsel %vm1797, %v332, %v1881
        %v1885 = vsel %vm1797, 0, %v1883
        %v1886 = vcosq.f32.pop %v1884
        %v1887 = vsinq.f32.pop %v1884
        %vm1888 = vweird.f32 %v332
        %v1889 = vand.u32 %v1885, 3
        %vm1890 = vcmp.lt.s32.totalorder %v1889, 2
        %vm1891 = vcmp.eq.s32.totalorder %v1889, 0
        %v1892 = vxor.u32 %v1887, 2147483648
        %v1893 = vsel %vm1891, %v1886, %v1892
        %vm1894 = vcmp.eq.s32.totalorder %v1889, 2
        %v1895 = vxor.u32 %v1886, 2147483648
        %v1896 = vsel %vm1894, %v1895, %v1887
        %v1897 = vsel %vm1890, %v1893, %v1896
        %v1898 = vsel %vm1888, nan, %v1897
        %v1899 = vand.u32 2147483647, %v333
        %vm1900 = vcmp.le.f32.partialorder %v1899, 0.7853982
        %vm1901 = vcmp.lt.s32.totalorder %v333, 0
        %v1902 = vand.u32 %v333, 2139095040
        %v1903 = vshrl.u32 %v1902, 23
        %v1904 = vsub.s32 %v1903, 127
        %v1905 = vand.u32 2147483647, %v333
        %v1906 = vand.u32 %v1905, 8388607
        %v1907 = vor.u32 %v1906, 8388608
        %v1908 = vsub.s32 0, %v1907
        %v1909 = vadd.s32 %v1904, 1
        %vm1910 = vcmp.gt.s32.totalorder %v1909, 0
        %v1911 = vsel %vm1910, %v1909, 0
        %v1912 = vshrl.u32 %v1911, 5
        %v1913 = vand.u32 %v1911, 31
        %v1914 = vsub.s32 32, %v1913
        %v1915 = vshrl.u32 683565275, %v1914
        %v1916 = vshll.u32 683565275, %v1913
        %v1917 = vshrl.u32 2475754826, %v1914
        %v1918 = vor.u32 %v1916, %v1917
        %v1919 = vshll.u32 2475754826, %v1913
        %v1920 = vshrl.u32 2131351028, %v1914
        %v1921 = vor.u32 %v1919, %v1920
        %v1922 = vshll.u32 2131351028, %v1913
        %v1923 = vshrl.u32 2102212464, %v1914
        %v1924 = vor.u32 %v1922, %v1923
        %v1925 = vshll.u32 2102212464, %v1913
        %v1926 = vshrl.u32 920167782, %v1914
        %v1927 = vor.u32 %v1925, %v1926
        %v1928 = vshll.u32 920167782, %v1913
        %v1929 = vshrl.u32 1326507024, %v1914
        %v1930 = vor.u32 %v1928, %v1929
        %vm1931 = vcmp.lt.s32.totalorder %v1912, 1
        %vm1932 = vcmp.lt.s32.totalorder %v1912, 2
        %vm1933 = vcmp.lt.s32.totalorder %v1912, 3
        %vm1934 = vcmp.lt.s32.totalorder %v1912, 4
        %v1935 = vsel %vm1931, %v1915, %v1918
        %v1936 = vsel %vm1934, %v1924, 2102212464
        %v1937 = vsel %vm1933, %v1921, %v1936
        %v1938 = vsel %vm1932, %v1935, %v1937
        %v1939 = vsel %vm1931, %v1918, %v1921
        %v1940 = vsel %vm1934, %v1927, 920167782
        %v1941 = vsel %vm1933, %v1924, %v1940
        %v1942 = vsel %vm1932, %v1939, %v1941
        %v1943 = vsel %vm1931, %v1921, %v1924
        %v1944 = vsel %vm1934, %v1930, 1326507024
        %v1945 = vsel %vm1933, %v1927, %v1944
        %v1946 = vsel %vm1932, %v1943, %v1945
        %v1947 = vshll.u32 %v1907, 8
        %v1948 = vmul.u32.u64.compose %v1947, %v1946
        %v1949 = vextract.low.u32 %v1948
        %v1950 = vextract.high.u32 %v1948
        %v1951 = vmul.u32.u64.compose %v1947, %v1942
        %v1952 = vextract.low.u32 %v1951
        %v1953 = vextract.high.u32 %v1951
        %v1954 = vmul.u32 %v1947, %v1938
        %v1955 = vadd.s32 %v1950, %v1952
        %vm1956 = vc.u32 %v1950, %v1952
        %v1957 = vadd.s32 %v1953, 1
        %v1958 = vsel %vm1956, %v1957, %v1953
        %v1959 = vadd.s32 %v1954, %v1958
        %v1960 = vadd.s32 %v1959, 536870912
        %v1961 = vshrl.u32 %v1960, 30
        %v1962 = vshll.u32 %v1961, 30
        %v1963 = vsub.s32 %v1959, %v1962
        %vm1964 = vcmp.lt.s32.totalorder %v1963, 0
        %v1965 = vsub.s32 0, %v1963
        %v1966 = vsel %vm1964, %v1965, %v1963
        %v1967 = vclz %v1966
        %v1968 = vsub.s32 %v1967, 2
        %vm1969 = vcmp.gt.s32.totalorder 0, %v1968
        %v1970 = vsel %vm1969, 0, %v1968
        %v1971 = vsub.s32 32, %v1970
        %v1972 = vshll.u32 %v1963, %v1970
        %v1973 = vshrl.u32 %v1955, %v1971
        %v1974 = vor.u32 %v1972, %v1973
        %v1975 = vsub.s32 4294967266, %v1970
        %v1976 = vadd.s32 %v1975, 127
        %v1977 = vshll.u32 %v1976, 23
        %v1978 = vor.u32 4788187, %v1977
        %v1979 = vand.u32 2147483647, %v1978
        %v1981 = vcvt.s32.f32 %v1974
        %v1982 = vmul.f32 %v1981, %v1979
        %v1983 = vxor.u32 %v1982, 2147483648
        %v1984 = vsel %vm1901, %v1983, %v1982
        %v1985 = vsub.s32 4, %v1961
        %v1986 = vsel %vm1901, %v1985, %v1961
        %v1987 = vsel %vm1900, %v333, %v1984
        %v1988 = vsel %vm1900, 0, %v1986
        %v1989 = vcosq.f32.pop %v1987
        %v1990 = vsinq.f32.pop %v1987
        %vm1991 = vweird.f32 %v333
        %v1992 = vand.u32 %v1988, 3
        %vm1993 = vcmp.lt.s32.totalorder %v1992, 2
        %vm1994 = vcmp.eq.s32.totalorder %v1992, 0
        %v1995 = vxor.u32 %v1990, 2147483648
        %v1996 = vsel %vm1994, %v1989, %v1995
        %vm1997 = vcmp.eq.s32.totalorder %v1992, 2
        %v1998 = vxor.u32 %v1989, 2147483648
        %v1999 = vsel %vm1997, %v1998, %v1990
        %v2000 = vsel %vm1993, %v1996, %v1999
        %v2001 = vsel %vm1991, nan, %v2000
        %v2002 = vand.u32 2147483647, %v334
        %vm2003 = vcmp.le.f32.partialorder %v2002, 0.7853982
        %vm2004 = vcmp.lt.s32.totalorder %v334, 0
        %v2005 = vand.u32 %v334, 2139095040
        %v2006 = vshrl.u32 %v2005, 23
        %v2007 = vsub.s32 %v2006, 127
        %v2008 = vand.u32 2147483647, %v334
        %v2009 = vand.u32 %v2008, 8388607
        %v2010 = vor.u32 %v2009, 8388608
        %v2011 = vsub.s32 0, %v2010
        %v2012 = vadd.s32 %v2007, 1
        %vm2013 = vcmp.gt.s32.totalorder %v2012, 0
        %v2014 = vsel %vm2013, %v2012, 0
        %v2015 = vshrl.u32 %v2014, 5
        %v2016 = vand.u32 %v2014, 31
        %v2017 = vsub.s32 32, %v2016
        %v2018 = vshrl.u32 683565275, %v2017
        %v2019 = vshll.u32 683565275, %v2016
        %v2020 = vshrl.u32 2475754826, %v2017
        %v2021 = vor.u32 %v2019, %v2020
        %v2022 = vshll.u32 2475754826, %v2016
        %v2023 = vshrl.u32 2131351028, %v2017
        %v2024 = vor.u32 %v2022, %v2023
        %v2025 = vshll.u32 2131351028, %v2016
        %v2026 = vshrl.u32 2102212464, %v2017
        %v2027 = vor.u32 %v2025, %v2026
        %v2028 = vshll.u32 2102212464, %v2016
        %v2029 = vshrl.u32 920167782, %v2017
        %v2030 = vor.u32 %v2028, %v2029
        %v2031 = vshll.u32 920167782, %v2016
        %v2032 = vshrl.u32 1326507024, %v2017
        %v2033 = vor.u32 %v2031, %v2032
        %vm2034 = vcmp.lt.s32.totalorder %v2015, 1
        %vm2035 = vcmp.lt.s32.totalorder %v2015, 2
        %vm2036 = vcmp.lt.s32.totalorder %v2015, 3
        %vm2037 = vcmp.lt.s32.totalorder %v2015, 4
        %v2038 = vsel %vm2034, %v2018, %v2021
        %v2039 = vsel %vm2037, %v2027, 2102212464
        %v2040 = vsel %vm2036, %v2024, %v2039
        %v2041 = vsel %vm2035, %v2038, %v2040
        %v2042 = vsel %vm2034, %v2021, %v2024
        %v2043 = vsel %vm2037, %v2030, 920167782
        %v2044 = vsel %vm2036, %v2027, %v2043
        %v2045 = vsel %vm2035, %v2042, %v2044
        %v2046 = vsel %vm2034, %v2024, %v2027
        %v2047 = vsel %vm2037, %v2033, 1326507024
        %v2048 = vsel %vm2036, %v2030, %v2047
        %v2049 = vsel %vm2035, %v2046, %v2048
        %v2050 = vshll.u32 %v2010, 8
        %v2051 = vmul.u32.u64.compose %v2050, %v2049
        %v2052 = vextract.low.u32 %v2051
        %v2053 = vextract.high.u32 %v2051
        %v2054 = vmul.u32.u64.compose %v2050, %v2045
        %v2055 = vextract.low.u32 %v2054
        %v2056 = vextract.high.u32 %v2054
        %v2057 = vmul.u32 %v2050, %v2041
        %v2058 = vadd.s32 %v2053, %v2055
        %vm2059 = vc.u32 %v2053, %v2055
        %v2060 = vadd.s32 %v2056, 1
        %v2061 = vsel %vm2059, %v2060, %v2056
        %v2062 = vadd.s32 %v2057, %v2061
        %v2063 = vadd.s32 %v2062, 536870912
        %v2064 = vshrl.u32 %v2063, 30
        %v2065 = vshll.u32 %v2064, 30
        %v2066 = vsub.s32 %v2062, %v2065
        %vm2067 = vcmp.lt.s32.totalorder %v2066, 0
        %v2068 = vsub.s32 0, %v2066
        %v2069 = vsel %vm2067, %v2068, %v2066
        %v2070 = vclz %v2069
        %v2071 = vsub.s32 %v2070, 2
        %vm2072 = vcmp.gt.s32.totalorder 0, %v2071
        %v2073 = vsel %vm2072, 0, %v2071
        %v2074 = vsub.s32 32, %v2073
        %v2075 = vshll.u32 %v2066, %v2073
        %v2076 = vshrl.u32 %v2058, %v2074
        %v2077 = vor.u32 %v2075, %v2076
        %v2078 = vsub.s32 4294967266, %v2073
        %v2079 = vadd.s32 %v2078, 127
        %v2080 = vshll.u32 %v2079, 23
        %v2081 = vor.u32 4788187, %v2080
        %v2082 = vand.u32 2147483647, %v2081
        %v2084 = vcvt.s32.f32 %v2077
        %v2085 = vmul.f32 %v2084, %v2082
        %v2086 = vxor.u32 %v2085, 2147483648
        %v2087 = vsel %vm2004, %v2086, %v2085
        %v2088 = vsub.s32 4, %v2064
        %v2089 = vsel %vm2004, %v2088, %v2064
        %v2090 = vsel %vm2003, %v334, %v2087
        %v2091 = vsel %vm2003, 0, %v2089
        %v2092 = vcosq.f32.pop %v2090
        %v2093 = vsinq.f32.pop %v2090
        %vm2094 = vweird.f32 %v334
        %v2095 = vand.u32 %v2091, 3
        %vm2096 = vcmp.lt.s32.totalorder %v2095, 2
        %vm2097 = vcmp.eq.s32.totalorder %v2095, 0
        %v2098 = vxor.u32 %v2093, 2147483648
        %v2099 = vsel %vm2097, %v2092, %v2098
        %vm2100 = vcmp.eq.s32.totalorder %v2095, 2
        %v2101 = vxor.u32 %v2092, 2147483648
        %v2102 = vsel %vm2100, %v2101, %v2093
        %v2103 = vsel %vm2096, %v2099, %v2102
        %v2104 = vsel %vm2094, nan, %v2103
        %v2105 = vand.u32 2147483647, %v335
        %vm2106 = vcmp.le.f32.partialorder %v2105, 0.7853982
        %vm2107 = vcmp.lt.s32.totalorder %v335, 0
        %v2108 = vand.u32 %v335, 2139095040
        %v2109 = vshrl.u32 %v2108, 23
        %v2110 = vsub.s32 %v2109, 127
        %v2111 = vand.u32 2147483647, %v335
        %v2112 = vand.u32 %v2111, 8388607
        %v2113 = vor.u32 %v2112, 8388608
        %v2114 = vsub.s32 0, %v2113
        %v2115 = vadd.s32 %v2110, 1
        %vm2116 = vcmp.gt.s32.totalorder %v2115, 0
        %v2117 = vsel %vm2116, %v2115, 0
        %v2118 = vshrl.u32 %v2117, 5
        %v2119 = vand.u32 %v2117, 31
        %v2120 = vsub.s32 32, %v2119
        %v2121 = vshrl.u32 683565275, %v2120
        %v2122 = vshll.u32 683565275, %v2119
        %v2123 = vshrl.u32 2475754826, %v2120
        %v2124 = vor.u32 %v2122, %v2123
        %v2125 = vshll.u32 2475754826, %v2119
        %v2126 = vshrl.u32 2131351028, %v2120
        %v2127 = vor.u32 %v2125, %v2126
        %v2128 = vshll.u32 2131351028, %v2119
        %v2129 = vshrl.u32 2102212464, %v2120
        %v2130 = vor.u32 %v2128, %v2129
        %v2131 = vshll.u32 2102212464, %v2119
        %v2132 = vshrl.u32 920167782, %v2120
        %v2133 = vor.u32 %v2131, %v2132
        %v2134 = vshll.u32 920167782, %v2119
        %v2135 = vshrl.u32 1326507024, %v2120
        %v2136 = vor.u32 %v2134, %v2135
        %vm2137 = vcmp.lt.s32.totalorder %v2118, 1
        %vm2138 = vcmp.lt.s32.totalorder %v2118, 2
        %vm2139 = vcmp.lt.s32.totalorder %v2118, 3
        %vm2140 = vcmp.lt.s32.totalorder %v2118, 4
        %v2141 = vsel %vm2137, %v2121, %v2124
        %v2142 = vsel %vm2140, %v2130, 2102212464
        %v2143 = vsel %vm2139, %v2127, %v2142
        %v2144 = vsel %vm2138, %v2141, %v2143
        %v2145 = vsel %vm2137, %v2124, %v2127
        %v2146 = vsel %vm2140, %v2133, 920167782
        %v2147 = vsel %vm2139, %v2130, %v2146
        %v2148 = vsel %vm2138, %v2145, %v2147
        %v2149 = vsel %vm2137, %v2127, %v2130
        %v2150 = vsel %vm2140, %v2136, 1326507024
        %v2151 = vsel %vm2139, %v2133, %v2150
        %v2152 = vsel %vm2138, %v2149, %v2151
        %v2153 = vshll.u32 %v2113, 8
        %v2154 = vmul.u32.u64.compose %v2153, %v2152
        %v2155 = vextract.low.u32 %v2154
        %v2156 = vextract.high.u32 %v2154
        %v2157 = vmul.u32.u64.compose %v2153, %v2148
        %v2158 = vextract.low.u32 %v2157
        %v2159 = vextract.high.u32 %v2157
        %v2160 = vmul.u32 %v2153, %v2144
        %v2161 = vadd.s32 %v2156, %v2158
        %vm2162 = vc.u32 %v2156, %v2158
        %v2163 = vadd.s32 %v2159, 1
        %v2164 = vsel %vm2162, %v2163, %v2159
        %v2165 = vadd.s32 %v2160, %v2164
        %v2166 = vadd.s32 %v2165, 536870912
        %v2167 = vshrl.u32 %v2166, 30
        %v2168 = vshll.u32 %v2167, 30
        %v2169 = vsub.s32 %v2165, %v2168
        %vm2170 = vcmp.lt.s32.totalorder %v2169, 0
        %v2171 = vsub.s32 0, %v2169
        %v2172 = vsel %vm2170, %v2171, %v2169
        %v2173 = vclz %v2172
        %v2174 = vsub.s32 %v2173, 2
        %vm2175 = vcmp.gt.s32.totalorder 0, %v2174
        %v2176 = vsel %vm2175, 0, %v2174
        %v2177 = vsub.s32 32, %v2176
        %v2178 = vshll.u32 %v2169, %v2176
        %v2179 = vshrl.u32 %v2161, %v2177
        %v2180 = vor.u32 %v2178, %v2179
        %v2181 = vsub.s32 4294967266, %v2176
        %v2182 = vadd.s32 %v2181, 127
        %v2183 = vshll.u32 %v2182, 23
        %v2184 = vor.u32 4788187, %v2183
        %v2185 = vand.u32 2147483647, %v2184
        %v2187 = vcvt.s32.f32 %v2180
        %v2188 = vmul.f32 %v2187, %v2185
        %v2189 = vxor.u32 %v2188, 2147483648
        %v2190 = vsel %vm2107, %v2189, %v2188
        %v2191 = vsub.s32 4, %v2167
        %v2192 = vsel %vm2107, %v2191, %v2167
        %v2193 = vsel %vm2106, %v335, %v2190
        %v2194 = vsel %vm2106, 0, %v2192
        %v2195 = vcosq.f32.pop %v2193
        %v2196 = vsinq.f32.pop %v2193
        %vm2197 = vweird.f32 %v335
        %v2198 = vand.u32 %v2194, 3
        %vm2199 = vcmp.lt.s32.totalorder %v2198, 2
        %vm2200 = vcmp.eq.s32.totalorder %v2198, 0
        %v2201 = vxor.u32 %v2196, 2147483648
        %v2202 = vsel %vm2200, %v2195, %v2201
        %vm2203 = vcmp.eq.s32.totalorder %v2198, 2
        %v2204 = vxor.u32 %v2195, 2147483648
        %v2205 = vsel %vm2203, %v2204, %v2196
        %v2206 = vsel %vm2199, %v2202, %v2205
        %v2207 = vsel %vm2197, nan, %v2206
        %v2208 = vmul.f32 %v655, %v521
        %v2209 = vmul.f32 %v759, %v523
        %v2210 = vmul.f32 %v863, %v525
        %v2211 = vmul.f32 %v967, %v527
        %v2212 = vmul.f32 %v1071, %v529
        %v2213 = vmul.f32 %v1175, %v531
        %v2214 = vmul.f32 %v1279, %v533
        %v2215 = vmul.f32 %v1383, %v535
        %2216 = vst [vmem:[%s174 + $0xc0] sm:$0xff] %v2208
        %2217 = vst [vmem:[%s174 + $0xc8] sm:$0xff] %v2209
        %2218 = vst [vmem:[%s174 + $0xd0] sm:$0xff] %v2210
        %2219 = vst [vmem:[%s174 + $0xd8] sm:$0xff] %v2211
        %2220 = vst [vmem:[%s174 + $0x120] sm:$0xff] %v2212
        %2221 = vst [vmem:[%s174 + $0x128] sm:$0xff] %v2213
        %2222 = vst [vmem:[%s174 + $0x130] sm:$0xff] %v2214
        %2223 = vst [vmem:[%s174 + $0x138] sm:$0xff] %v2215
        %v2224 = vmul.f32 %v1486, %v521
        %v2225 = vmul.f32 %v1589, %v523
        %v2226 = vmul.f32 %v1692, %v525
        %v2227 = vmul.f32 %v1795, %v527
        %v2228 = vmul.f32 %v1898, %v529
        %v2229 = vmul.f32 %v2001, %v531
        %v2230 = vmul.f32 %v2104, %v533
        %v2231 = vmul.f32 %v2207, %v535
        %2232 = vst [vmem:[%s174 + $0x180] sm:$0xff] %v2224
        %2233 = vst [vmem:[%s174 + $0x188] sm:$0xff] %v2225
        %2234 = vst [vmem:[%s174 + $0x190] sm:$0xff] %v2226
        %2235 = vst [vmem:[%s174 + $0x198] sm:$0xff] %v2227
        %2236 = vst [vmem:[%s174 + $0x1e0] sm:$0xff] %v2228
        %2237 = vst [vmem:[%s174 + $0x1e8] sm:$0xff] %v2229
        %2238 = vst [vmem:[%s174 + $0x1f0] sm:$0xff] %v2230
        %2239 = vst [vmem:[%s174 + $0x1f8] sm:$0xff] %v2231
        %v2240 = vmul.f32 %v655, 2.0
        %v2241 = vmul.f32 %v759, 2.0
        %v2242 = vmul.f32 %v863, 2.0
        %v2243 = vmul.f32 %v967, 2.0
        %v2244 = vmul.f32 %v1071, 2.0
        %v2245 = vmul.f32 %v1175, 2.0
        %v2246 = vmul.f32 %v1279, 2.0
        %v2247 = vmul.f32 %v1383, 2.0
        %v2248 = vmul.f32 %v2240, %v1486
        %v2249 = vmul.f32 %v2241, %v1589
        %v2250 = vmul.f32 %v2242, %v1692
        %v2251 = vmul.f32 %v2243, %v1795
        %v2252 = vmul.f32 %v2244, %v1898
        %v2253 = vmul.f32 %v2245, %v2001
        %v2254 = vmul.f32 %v2246, %v2104
        %v2255 = vmul.f32 %v2247, %v2207
        %v2256 = vmul.f32 %v2240, %v655
        %v2257 = vmul.f32 %v2241, %v759
        %v2258 = vmul.f32 %v2242, %v863
        %v2259 = vmul.f32 %v2243, %v967
        %v2260 = vmul.f32 %v2244, %v1071
        %v2261 = vmul.f32 %v2245, %v1175
        %v2262 = vmul.f32 %v2246, %v1279
        %v2263 = vmul.f32 %v2247, %v1383
        %v2264 = vsub.f32 1.0, %v2256
        %v2265 = vsub.f32 1.0, %v2257
        %v2266 = vsub.f32 1.0, %v2258
        %v2267 = vsub.f32 1.0, %v2259
        %v2268 = vsub.f32 1.0, %v2260
        %v2269 = vsub.f32 1.0, %v2261
        %v2270 = vsub.f32 1.0, %v2262
        %v2271 = vsub.f32 1.0, %v2263
        %v2272 = vmul.f32 %v2248, %v521
        %v2273 = vmul.f32 %v2249, %v523
        %v2274 = vmul.f32 %v2250, %v525
        %v2275 = vmul.f32 %v2251, %v527
        %v2276 = vmul.f32 %v2252, %v529
        %v2277 = vmul.f32 %v2253, %v531
        %v2278 = vmul.f32 %v2254, %v533
        %v2279 = vmul.f32 %v2255, %v535
        %2280 = vst [vmem:[%s174 + $0x240] sm:$0xff] %v2272
        %2281 = vst [vmem:[%s174 + $0x248] sm:$0xff] %v2273
        %2282 = vst [vmem:[%s174 + $0x250] sm:$0xff] %v2274
        %2283 = vst [vmem:[%s174 + $0x258] sm:$0xff] %v2275
        %2284 = vst [vmem:[%s174 + $0x2a0] sm:$0xff] %v2276
        %2285 = vst [vmem:[%s174 + $0x2a8] sm:$0xff] %v2277
        %2286 = vst [vmem:[%s174 + $0x2b0] sm:$0xff] %v2278
        %2287 = vst [vmem:[%s174 + $0x2b8] sm:$0xff] %v2279
        %v2288 = vmul.f32 %v2264, %v521
        %v2289 = vmul.f32 %v2265, %v523
        %v2290 = vmul.f32 %v2266, %v525
        %v2291 = vmul.f32 %v2267, %v527
        %v2292 = vmul.f32 %v2268, %v529
        %v2293 = vmul.f32 %v2269, %v531
        %v2294 = vmul.f32 %v2270, %v533
        %v2295 = vmul.f32 %v2271, %v535
        %2296 = vst [vmem:[%s174 + $0x300] sm:$0xff] %v2288
        %2297 = vst [vmem:[%s174 + $0x308] sm:$0xff] %v2289
        %2298 = vst [vmem:[%s174 + $0x310] sm:$0xff] %v2290
        %2299 = vst [vmem:[%s174 + $0x318] sm:$0xff] %v2291
        %2300 = vst [vmem:[%s174 + $0x360] sm:$0xff] %v2292
        %2301 = vst [vmem:[%s174 + $0x368] sm:$0xff] %v2293
        %2302 = vst [vmem:[%s174 + $0x370] sm:$0xff] %v2294
        %2303 = vst [vmem:[%s174 + $0x378] sm:$0xff] %v2295
        %s2304 = scalar_lea.vmem %s150, 16 [#allocation2]
        %v2305 = vld [vmem:[%s2304] ss:$4 sm:$0xf]
        %s2306 = scalar_lea.vmem %s150, 17 [#allocation2]
        %v2307 = vld [vmem:[%s2306] ss:$4 sm:$0xf]
        %s2308 = scalar_lea.vmem %s150, 18 [#allocation2]
        %v2309 = vld [vmem:[%s2308] ss:$4 sm:$0xf]
        %s2310 = scalar_lea.vmem %s150, 19 [#allocation2]
        %v2311 = vld [vmem:[%s2310] ss:$4 sm:$0xf]
        %v2313 = vlaneseq
        %v2314 = vshrl.u32 %v2313, 7
        %v2315 = vsub.s32 0, %v2314
        %v2316 = vrot.slane %v2305, %v2315
        %v2317 = vlaneseq
        %v2318 = vshrl.u32 %v2317, 7
        %v2319 = vsub.s32 1, %v2318
        %v2320 = vrot.slane %v2305, %v2319
        %v2321 = vlaneseq
        %v2322 = vshrl.u32 %v2321, 7
        %v2323 = vsub.s32 2, %v2322
        %v2324 = vrot.slane %v2305, %v2323
        %v2325 = vlaneseq
        %v2326 = vshrl.u32 %v2325, 7
        %v2327 = vsub.s32 3, %v2326
        %v2328 = vrot.slane %v2305, %v2327
        %v2333 = vsub.f32 %v2316, %v210
        %v2334 = vsub.f32 %v2320, %v210
        %v2335 = vsub.f32 %v2324, %v210
        %v2336 = vsub.f32 %v2328, %v210
        %v2337 = vsub.f32 %v2316, %v215
        %v2338 = vsub.f32 %v2320, %v215
        %v2339 = vsub.f32 %v2324, %v215
        %v2340 = vsub.f32 %v2328, %v215
        %v2342 = vlaneseq
        %v2343 = vshrl.u32 %v2342, 7
        %v2344 = vsub.s32 0, %v2343
        %v2345 = vrot.slane %v2307, %v2344
        %v2346 = vlaneseq
        %v2347 = vshrl.u32 %v2346, 7
        %v2348 = vsub.s32 1, %v2347
        %v2349 = vrot.slane %v2307, %v2348
        %v2350 = vlaneseq
        %v2351 = vshrl.u32 %v2350, 7
        %v2352 = vsub.s32 2, %v2351
        %v2353 = vrot.slane %v2307, %v2352
        %v2354 = vlaneseq
        %v2355 = vshrl.u32 %v2354, 7
        %v2356 = vsub.s32 3, %v2355
        %v2357 = vrot.slane %v2307, %v2356
        %v2362 = vsub.f32 %v2345, %v248
        %v2363 = vsub.f32 %v2349, %v248
        %v2364 = vsub.f32 %v2353, %v248
        %v2365 = vsub.f32 %v2357, %v248
        %v2366 = vsub.f32 %v2345, %v252
        %v2367 = vsub.f32 %v2349, %v252
        %v2368 = vsub.f32 %v2353, %v252
        %v2369 = vsub.f32 %v2357, %v252
        %v2371 = vlaneseq
        %v2372 = vshrl.u32 %v2371, 7
        %v2373 = vsub.s32 0, %v2372
        %v2374 = vrot.slane %v2309, %v2373
        %v2375 = vlaneseq
        %v2376 = vshrl.u32 %v2375, 7
        %v2377 = vsub.s32 1, %v2376
        %v2378 = vrot.slane %v2309, %v2377
        %v2379 = vlaneseq
        %v2380 = vshrl.u32 %v2379, 7
        %v2381 = vsub.s32 2, %v2380
        %v2382 = vrot.slane %v2309, %v2381
        %v2383 = vlaneseq
        %v2384 = vshrl.u32 %v2383, 7
        %v2385 = vsub.s32 3, %v2384
        %v2386 = vrot.slane %v2309, %v2385
        %v2391 = vsub.f32 %v2374, %v285
        %v2392 = vsub.f32 %v2378, %v285
        %v2393 = vsub.f32 %v2382, %v285
        %v2394 = vsub.f32 %v2386, %v285
        %v2395 = vsub.f32 %v2374, %v289
        %v2396 = vsub.f32 %v2378, %v289
        %v2397 = vsub.f32 %v2382, %v289
        %v2398 = vsub.f32 %v2386, %v289
        %v2400 = vlaneseq
        %v2401 = vshrl.u32 %v2400, 7
        %v2402 = vsub.s32 0, %v2401
        %v2403 = vrot.slane %v2311, %v2402
        %v2404 = vlaneseq
        %v2405 = vshrl.u32 %v2404, 7
        %v2406 = vsub.s32 1, %v2405
        %v2407 = vrot.slane %v2311, %v2406
        %v2408 = vlaneseq
        %v2409 = vshrl.u32 %v2408, 7
        %v2410 = vsub.s32 2, %v2409
        %v2411 = vrot.slane %v2311, %v2410
        %v2412 = vlaneseq
        %v2413 = vshrl.u32 %v2412, 7
        %v2414 = vsub.s32 3, %v2413
        %v2415 = vrot.slane %v2311, %v2414
        %v2420 = vsub.f32 %v2403, %v322
        %v2421 = vsub.f32 %v2407, %v322
        %v2422 = vsub.f32 %v2411, %v322
        %v2423 = vsub.f32 %v2415, %v322
        %v2424 = vsub.f32 %v2403, %v326
        %v2425 = vsub.f32 %v2407, %v326
        %v2426 = vsub.f32 %v2411, %v326
        %v2427 = vsub.f32 %v2415, %v326
        %v2428 = vmul.f32 %v2333, %v2333
        %v2429 = vmul.f32 %v2334, %v2334
        %v2430 = vmul.f32 %v2335, %v2335
        %v2431 = vmul.f32 %v2336, %v2336
        %v2432 = vmul.f32 %v2337, %v2337
        %v2433 = vmul.f32 %v2338, %v2338
        %v2434 = vmul.f32 %v2339, %v2339
        %v2435 = vmul.f32 %v2340, %v2340
        %v2436 = vmul.f32 %v346, %v2428
        %v2437 = vmul.f32 %v346, %v2429
        %v2438 = vmul.f32 %v346, %v2430
        %v2439 = vmul.f32 %v346, %v2431
        %v2440 = vmul.f32 %v350, %v2432
        %v2441 = vmul.f32 %v350, %v2433
        %v2442 = vmul.f32 %v350, %v2434
        %v2443 = vmul.f32 %v350, %v2435
        %v2444 = vmul.f32 %v2362, %v2362
        %v2445 = vmul.f32 %v2363, %v2363
        %v2446 = vmul.f32 %v2364, %v2364
        %v2447 = vmul.f32 %v2365, %v2365
        %v2448 = vmul.f32 %v2366, %v2366
        %v2449 = vmul.f32 %v2367, %v2367
        %v2450 = vmul.f32 %v2368, %v2368
        %v2451 = vmul.f32 %v2369, %v2369
        %v2452 = vmul.f32 %v370, %v2444
        %v2453 = vmul.f32 %v370, %v2445
        %v2454 = vmul.f32 %v370, %v2446
        %v2455 = vmul.f32 %v370, %v2447
        %v2456 = vmul.f32 %v374, %v2448
        %v2457 = vmul.f32 %v374, %v2449
        %v2458 = vmul.f32 %v374, %v2450
        %v2459 = vmul.f32 %v374, %v2451
        %v2460 = vadd.f32 %v2436, %v2452
        %v2461 = vadd.f32 %v2437, %v2453
        %v2462 = vadd.f32 %v2438, %v2454
        %v2463 = vadd.f32 %v2439, %v2455
        %v2464 = vadd.f32 %v2440, %v2456
        %v2465 = vadd.f32 %v2441, %v2457
        %v2466 = vadd.f32 %v2442, %v2458
        %v2467 = vadd.f32 %v2443, %v2459
        %v2468 = vmul.f32 %v2391, %v2391
        %v2469 = vmul.f32 %v2392, %v2392
        %v2470 = vmul.f32 %v2393, %v2393
        %v2471 = vmul.f32 %v2394, %v2394
        %v2472 = vmul.f32 %v2395, %v2395
        %v2473 = vmul.f32 %v2396, %v2396
        %v2474 = vmul.f32 %v2397, %v2397
        %v2475 = vmul.f32 %v2398, %v2398
        %v2476 = vmul.f32 %v402, %v2468
        %v2477 = vmul.f32 %v402, %v2469
        %v2478 = vmul.f32 %v402, %v2470
        %v2479 = vmul.f32 %v402, %v2471
        %v2480 = vmul.f32 %v406, %v2472
        %v2481 = vmul.f32 %v406, %v2473
        %v2482 = vmul.f32 %v406, %v2474
        %v2483 = vmul.f32 %v406, %v2475
        %v2484 = vadd.f32 %v2460, %v2476
        %v2485 = vadd.f32 %v2461, %v2477
        %v2486 = vadd.f32 %v2462, %v2478
        %v2487 = vadd.f32 %v2463, %v2479
        %v2488 = vadd.f32 %v2464, %v2480
        %v2489 = vadd.f32 %v2465, %v2481
        %v2490 = vadd.f32 %v2466, %v2482
        %v2491 = vadd.f32 %v2467, %v2483
        %v2492 = vmul.f32 %v2333, %v2362
        %v2493 = vmul.f32 %v2334, %v2363
        %v2494 = vmul.f32 %v2335, %v2364
        %v2495 = vmul.f32 %v2336, %v2365
        %v2496 = vmul.f32 %v2337, %v2366
        %v2497 = vmul.f32 %v2338, %v2367
        %v2498 = vmul.f32 %v2339, %v2368
        %v2499 = vmul.f32 %v2340, %v2369
        %v2500 = vmul.f32 %v434, %v2492
        %v2501 = vmul.f32 %v434, %v2493
        %v2502 = vmul.f32 %v434, %v2494
        %v2503 = vmul.f32 %v434, %v2495
        %v2504 = vmul.f32 %v438, %v2496
        %v2505 = vmul.f32 %v438, %v2497
        %v2506 = vmul.f32 %v438, %v2498
        %v2507 = vmul.f32 %v438, %v2499
        %v2508 = vadd.f32 %v2484, %v2500
        %v2509 = vadd.f32 %v2485, %v2501
        %v2510 = vadd.f32 %v2486, %v2502
        %v2511 = vadd.f32 %v2487, %v2503
        %v2512 = vadd.f32 %v2488, %v2504
        %v2513 = vadd.f32 %v2489, %v2505
        %v2514 = vadd.f32 %v2490, %v2506
        %v2515 = vadd.f32 %v2491, %v2507
        %v2516 = vmul.f32 %v2333, %v2391
        %v2517 = vmul.f32 %v2334, %v2392
        %v2518 = vmul.f32 %v2335, %v2393
        %v2519 = vmul.f32 %v2336, %v2394
        %v2520 = vmul.f32 %v2337, %v2395
        %v2521 = vmul.f32 %v2338, %v2396
        %v2522 = vmul.f32 %v2339, %v2397
        %v2523 = vmul.f32 %v2340, %v2398
        %v2524 = vmul.f32 %v466, %v2516
        %v2525 = vmul.f32 %v466, %v2517
        %v2526 = vmul.f32 %v466, %v2518
        %v2527 = vmul.f32 %v466, %v2519
        %v2528 = vmul.f32 %v470, %v2520
        %v2529 = vmul.f32 %v470, %v2521
        %v2530 = vmul.f32 %v470, %v2522
        %v2531 = vmul.f32 %v470, %v2523
        %v2532 = vadd.f32 %v2508, %v2524
        %v2533 = vadd.f32 %v2509, %v2525
        %v2534 = vadd.f32 %v2510, %v2526
        %v2535 = vadd.f32 %v2511, %v2527
        %v2536 = vadd.f32 %v2512, %v2528
        %v2537 = vadd.f32 %v2513, %v2529
        %v2538 = vadd.f32 %v2514, %v2530
        %v2539 = vadd.f32 %v2515, %v2531
        %v2540 = vmul.f32 %v2362, %v2391
        %v2541 = vmul.f32 %v2363, %v2392
        %v2542 = vmul.f32 %v2364, %v2393
        %v2543 = vmul.f32 %v2365, %v2394
        %v2544 = vmul.f32 %v2366, %v2395
        %v2545 = vmul.f32 %v2367, %v2396
        %v2546 = vmul.f32 %v2368, %v2397
        %v2547 = vmul.f32 %v2369, %v2398
        %v2548 = vmul.f32 %v498, %v2540
        %v2549 = vmul.f32 %v498, %v2541
        %v2550 = vmul.f32 %v498, %v2542
        %v2551 = vmul.f32 %v498, %v2543
        %v2552 = vmul.f32 %v502, %v2544
        %v2553 = vmul.f32 %v502, %v2545
        %v2554 = vmul.f32 %v502, %v2546
        %v2555 = vmul.f32 %v502, %v2547
        %v2556 = vadd.f32 %v2532, %v2548
        %v2557 = vadd.f32 %v2533, %v2549
        %v2558 = vadd.f32 %v2534, %v2550
        %v2559 = vadd.f32 %v2535, %v2551
        %v2560 = vadd.f32 %v2536, %v2552
        %v2561 = vadd.f32 %v2537, %v2553
        %v2562 = vadd.f32 %v2538, %v2554
        %v2563 = vadd.f32 %v2539, %v2555
        %v2564 = vmul.f32 %v2556, 1.442695
        %v2565 = vpow.pop %v2564
        %v2566 = vmul.f32 %v2557, 1.442695
        %v2567 = vpow.pop %v2566
        %v2568 = vmul.f32 %v2558, 1.442695
        %v2569 = vpow.pop %v2568
        %v2570 = vmul.f32 %v2559, 1.442695
        %v2571 = vpow.pop %v2570
        %v2572 = vmul.f32 %v2560, 1.442695
        %v2573 = vpow.pop %v2572
        %v2574 = vmul.f32 %v2561, 1.442695
        %v2575 = vpow.pop %v2574
        %v2576 = vmul.f32 %v2562, 1.442695
        %v2577 = vpow.pop %v2576
        %v2578 = vmul.f32 %v2563, 1.442695
        %v2579 = vpow.pop %v2578
        %v2580 = vmul.f32 %v2420, %v2565
        %v2581 = vmul.f32 %v2421, %v2567
        %v2582 = vmul.f32 %v2422, %v2569
        %v2583 = vmul.f32 %v2423, %v2571
        %v2584 = vmul.f32 %v2424, %v2573
        %v2585 = vmul.f32 %v2425, %v2575
        %v2586 = vmul.f32 %v2426, %v2577
        %v2587 = vmul.f32 %v2427, %v2579
        %2588 = vst [vmem:[%s174 + $0x20] sm:$0xff] %v2580
        %2589 = vst [vmem:[%s174 + $0x28] sm:$0xff] %v2581
        %2590 = vst [vmem:[%s174 + $0x30] sm:$0xff] %v2582
        %2591 = vst [vmem:[%s174 + $0x38] sm:$0xff] %v2583
        %2592 = vst [vmem:[%s174 + $0x80] sm:$0xff] %v2584
        %2593 = vst [vmem:[%s174 + $0x88] sm:$0xff] %v2585
        %2594 = vst [vmem:[%s174 + $0x90] sm:$0xff] %v2586
        %2595 = vst [vmem:[%s174 + $0x98] sm:$0xff] %v2587
        %v2596 = vand.u32 2147483647, %v2420
        %vm2597 = vcmp.le.f32.partialorder %v2596, 0.7853982
        %vm2598 = vcmp.lt.s32.totalorder %v2420, 0
        %v2599 = vand.u32 %v2420, 2139095040
        %v2600 = vshrl.u32 %v2599, 23
        %v2601 = vsub.s32 %v2600, 127
        %v2602 = vand.u32 2147483647, %v2420
        %v2603 = vand.u32 %v2602, 8388607
        %v2604 = vor.u32 %v2603, 8388608
        %v2605 = vsub.s32 0, %v2604
        %v2606 = vadd.s32 %v2601, 1
        %vm2607 = vcmp.gt.s32.totalorder %v2606, 0
        %v2608 = vsel %vm2607, %v2606, 0
        %v2609 = vshrl.u32 %v2608, 5
        %v2610 = vand.u32 %v2608, 31
        %v2611 = vsub.s32 32, %v2610
        %v2612 = vshrl.u32 683565275, %v2611
        %v2613 = vshll.u32 683565275, %v2610
        %v2614 = vshrl.u32 2475754826, %v2611
        %v2615 = vor.u32 %v2613, %v2614
        %v2616 = vshll.u32 2475754826, %v2610
        %v2617 = vshrl.u32 2131351028, %v2611
        %v2618 = vor.u32 %v2616, %v2617
        %v2619 = vshll.u32 2131351028, %v2610
        %v2620 = vshrl.u32 2102212464, %v2611
        %v2621 = vor.u32 %v2619, %v2620
        %v2622 = vshll.u32 2102212464, %v2610
        %v2623 = vshrl.u32 920167782, %v2611
        %v2624 = vor.u32 %v2622, %v2623
        %v2625 = vshll.u32 920167782, %v2610
        %v2626 = vshrl.u32 1326507024, %v2611
        %v2627 = vor.u32 %v2625, %v2626
        %vm2628 = vcmp.lt.s32.totalorder %v2609, 1
        %vm2629 = vcmp.lt.s32.totalorder %v2609, 2
        %vm2630 = vcmp.lt.s32.totalorder %v2609, 3
        %vm2631 = vcmp.lt.s32.totalorder %v2609, 4
        %v2632 = vsel %vm2628, %v2612, %v2615
        %v2633 = vsel %vm2631, %v2621, 2102212464
        %v2634 = vsel %vm2630, %v2618, %v2633
        %v2635 = vsel %vm2629, %v2632, %v2634
        %v2636 = vsel %vm2628, %v2615, %v2618
        %v2637 = vsel %vm2631, %v2624, 920167782
        %v2638 = vsel %vm2630, %v2621, %v2637
        %v2639 = vsel %vm2629, %v2636, %v2638
        %v2640 = vsel %vm2628, %v2618, %v2621
        %v2641 = vsel %vm2631, %v2627, 1326507024
        %v2642 = vsel %vm2630, %v2624, %v2641
        %v2643 = vsel %vm2629, %v2640, %v2642
        %v2644 = vshll.u32 %v2604, 8
        %v2645 = vmul.u32.u64.compose %v2644, %v2643
        %v2646 = vextract.low.u32 %v2645
        %v2647 = vextract.high.u32 %v2645
        %v2648 = vmul.u32.u64.compose %v2644, %v2639
        %v2649 = vextract.low.u32 %v2648
        %v2650 = vextract.high.u32 %v2648
        %v2651 = vmul.u32 %v2644, %v2635
        %v2652 = vadd.s32 %v2647, %v2649
        %vm2653 = vc.u32 %v2647, %v2649
        %v2654 = vadd.s32 %v2650, 1
        %v2655 = vsel %vm2653, %v2654, %v2650
        %v2656 = vadd.s32 %v2651, %v2655
        %v2657 = vadd.s32 %v2656, 536870912
        %v2658 = vshrl.u32 %v2657, 30
        %v2659 = vshll.u32 %v2658, 30
        %v2660 = vsub.s32 %v2656, %v2659
        %vm2661 = vcmp.lt.s32.totalorder %v2660, 0
        %v2662 = vsub.s32 0, %v2660
        %v2663 = vsel %vm2661, %v2662, %v2660
        %v2664 = vclz %v2663
        %v2665 = vsub.s32 %v2664, 2
        %vm2666 = vcmp.gt.s32.totalorder 0, %v2665
        %v2667 = vsel %vm2666, 0, %v2665
        %v2668 = vsub.s32 32, %v2667
        %v2669 = vshll.u32 %v2660, %v2667
        %v2670 = vshrl.u32 %v2652, %v2668
        %v2671 = vor.u32 %v2669, %v2670
        %v2672 = vsub.s32 4294967266, %v2667
        %v2673 = vadd.s32 %v2672, 127
        %v2674 = vshll.u32 %v2673, 23
        %v2675 = vor.u32 4788187, %v2674
        %v2676 = vand.u32 2147483647, %v2675
        %v2678 = vcvt.s32.f32 %v2671
        %v2679 = vmul.f32 %v2678, %v2676
        %v2680 = vxor.u32 %v2679, 2147483648
        %v2681 = vsel %vm2598, %v2680, %v2679
        %v2682 = vsub.s32 4, %v2658
        %v2683 = vsel %vm2598, %v2682, %v2658
        %v2684 = vsel %vm2597, %v2420, %v2681
        %v2685 = vsel %vm2597, 0, %v2683
        %v2686 = vcosq.f32.pop %v2684
        %v2687 = vsinq.f32.pop %v2684
        %vm2688 = vweird.f32 %v2420
        %v2689 = vadd.s32 %v2685, 3
        %v2690 = vand.u32 %v2689, 3
        %vm2691 = vcmp.lt.s32.totalorder %v2690, 2
        %vm2692 = vcmp.eq.s32.totalorder %v2690, 0
        %v2693 = vxor.u32 %v2687, 2147483648
        %v2694 = vsel %vm2692, %v2686, %v2693
        %vm2695 = vcmp.eq.s32.totalorder %v2690, 2
        %v2696 = vxor.u32 %v2686, 2147483648
        %v2697 = vsel %vm2695, %v2696, %v2687
        %v2698 = vsel %vm2691, %v2694, %v2697
        %v2699 = vsel %vm2688, nan, %v2698
        %v2700 = vand.u32 2147483647, %v2421
        %vm2701 = vcmp.le.f32.partialorder %v2700, 0.7853982
        %vm2702 = vcmp.lt.s32.totalorder %v2421, 0
        %v2703 = vand.u32 %v2421, 2139095040
        %v2704 = vshrl.u32 %v2703, 23
        %v2705 = vsub.s32 %v2704, 127
        %v2706 = vand.u32 2147483647, %v2421
        %v2707 = vand.u32 %v2706, 8388607
        %v2708 = vor.u32 %v2707, 8388608
        %v2709 = vsub.s32 0, %v2708
        %v2710 = vadd.s32 %v2705, 1
        %vm2711 = vcmp.gt.s32.totalorder %v2710, 0
        %v2712 = vsel %vm2711, %v2710, 0
        %v2713 = vshrl.u32 %v2712, 5
        %v2714 = vand.u32 %v2712, 31
        %v2715 = vsub.s32 32, %v2714
        %v2716 = vshrl.u32 683565275, %v2715
        %v2717 = vshll.u32 683565275, %v2714
        %v2718 = vshrl.u32 2475754826, %v2715
        %v2719 = vor.u32 %v2717, %v2718
        %v2720 = vshll.u32 2475754826, %v2714
        %v2721 = vshrl.u32 2131351028, %v2715
        %v2722 = vor.u32 %v2720, %v2721
        %v2723 = vshll.u32 2131351028, %v2714
        %v2724 = vshrl.u32 2102212464, %v2715
        %v2725 = vor.u32 %v2723, %v2724
        %v2726 = vshll.u32 2102212464, %v2714
        %v2727 = vshrl.u32 920167782, %v2715
        %v2728 = vor.u32 %v2726, %v2727
        %v2729 = vshll.u32 920167782, %v2714
        %v2730 = vshrl.u32 1326507024, %v2715
        %v2731 = vor.u32 %v2729, %v2730
        %vm2732 = vcmp.lt.s32.totalorder %v2713, 1
        %vm2733 = vcmp.lt.s32.totalorder %v2713, 2
        %vm2734 = vcmp.lt.s32.totalorder %v2713, 3
        %vm2735 = vcmp.lt.s32.totalorder %v2713, 4
        %v2736 = vsel %vm2732, %v2716, %v2719
        %v2737 = vsel %vm2735, %v2725, 2102212464
        %v2738 = vsel %vm2734, %v2722, %v2737
        %v2739 = vsel %vm2733, %v2736, %v2738
        %v2740 = vsel %vm2732, %v2719, %v2722
        %v2741 = vsel %vm2735, %v2728, 920167782
        %v2742 = vsel %vm2734, %v2725, %v2741
        %v2743 = vsel %vm2733, %v2740, %v2742
        %v2744 = vsel %vm2732, %v2722, %v2725
        %v2745 = vsel %vm2735, %v2731, 1326507024
        %v2746 = vsel %vm2734, %v2728, %v2745
        %v2747 = vsel %vm2733, %v2744, %v2746
        %v2748 = vshll.u32 %v2708, 8
        %v2749 = vmul.u32.u64.compose %v2748, %v2747
        %v2750 = vextract.low.u32 %v2749
        %v2751 = vextract.high.u32 %v2749
        %v2752 = vmul.u32.u64.compose %v2748, %v2743
        %v2753 = vextract.low.u32 %v2752
        %v2754 = vextract.high.u32 %v2752
        %v2755 = vmul.u32 %v2748, %v2739
        %v2756 = vadd.s32 %v2751, %v2753
        %vm2757 = vc.u32 %v2751, %v2753
        %v2758 = vadd.s32 %v2754, 1
        %v2759 = vsel %vm2757, %v2758, %v2754
        %v2760 = vadd.s32 %v2755, %v2759
        %v2761 = vadd.s32 %v2760, 536870912
        %v2762 = vshrl.u32 %v2761, 30
        %v2763 = vshll.u32 %v2762, 30
        %v2764 = vsub.s32 %v2760, %v2763
        %vm2765 = vcmp.lt.s32.totalorder %v2764, 0
        %v2766 = vsub.s32 0, %v2764
        %v2767 = vsel %vm2765, %v2766, %v2764
        %v2768 = vclz %v2767
        %v2769 = vsub.s32 %v2768, 2
        %vm2770 = vcmp.gt.s32.totalorder 0, %v2769
        %v2771 = vsel %vm2770, 0, %v2769
        %v2772 = vsub.s32 32, %v2771
        %v2773 = vshll.u32 %v2764, %v2771
        %v2774 = vshrl.u32 %v2756, %v2772
        %v2775 = vor.u32 %v2773, %v2774
        %v2776 = vsub.s32 4294967266, %v2771
        %v2777 = vadd.s32 %v2776, 127
        %v2778 = vshll.u32 %v2777, 23
        %v2779 = vor.u32 4788187, %v2778
        %v2780 = vand.u32 2147483647, %v2779
        %v2782 = vcvt.s32.f32 %v2775
        %v2783 = vmul.f32 %v2782, %v2780
        %v2784 = vxor.u32 %v2783, 2147483648
        %v2785 = vsel %vm2702, %v2784, %v2783
        %v2786 = vsub.s32 4, %v2762
        %v2787 = vsel %vm2702, %v2786, %v2762
        %v2788 = vsel %vm2701, %v2421, %v2785
        %v2789 = vsel %vm2701, 0, %v2787
        %v2790 = vcosq.f32.pop %v2788
        %v2791 = vsinq.f32.pop %v2788
        %vm2792 = vweird.f32 %v2421
        %v2793 = vadd.s32 %v2789, 3
        %v2794 = vand.u32 %v2793, 3
        %vm2795 = vcmp.lt.s32.totalorder %v2794, 2
        %vm2796 = vcmp.eq.s32.totalorder %v2794, 0
        %v2797 = vxor.u32 %v2791, 2147483648
        %v2798 = vsel %vm2796, %v2790, %v2797
        %vm2799 = vcmp.eq.s32.totalorder %v2794, 2
        %v2800 = vxor.u32 %v2790, 2147483648
        %v2801 = vsel %vm2799, %v2800, %v2791
        %v2802 = vsel %vm2795, %v2798, %v2801
        %v2803 = vsel %vm2792, nan, %v2802
        %v2804 = vand.u32 2147483647, %v2422
        %vm2805 = vcmp.le.f32.partialorder %v2804, 0.7853982
        %vm2806 = vcmp.lt.s32.totalorder %v2422, 0
        %v2807 = vand.u32 %v2422, 2139095040
        %v2808 = vshrl.u32 %v2807, 23
        %v2809 = vsub.s32 %v2808, 127
        %v2810 = vand.u32 2147483647, %v2422
        %v2811 = vand.u32 %v2810, 8388607
        %v2812 = vor.u32 %v2811, 8388608
        %v2813 = vsub.s32 0, %v2812
        %v2814 = vadd.s32 %v2809, 1
        %vm2815 = vcmp.gt.s32.totalorder %v2814, 0
        %v2816 = vsel %vm2815, %v2814, 0
        %v2817 = vshrl.u32 %v2816, 5
        %v2818 = vand.u32 %v2816, 31
        %v2819 = vsub.s32 32, %v2818
        %v2820 = vshrl.u32 683565275, %v2819
        %v2821 = vshll.u32 683565275, %v2818
        %v2822 = vshrl.u32 2475754826, %v2819
        %v2823 = vor.u32 %v2821, %v2822
        %v2824 = vshll.u32 2475754826, %v2818
        %v2825 = vshrl.u32 2131351028, %v2819
        %v2826 = vor.u32 %v2824, %v2825
        %v2827 = vshll.u32 2131351028, %v2818
        %v2828 = vshrl.u32 2102212464, %v2819
        %v2829 = vor.u32 %v2827, %v2828
        %v2830 = vshll.u32 2102212464, %v2818
        %v2831 = vshrl.u32 920167782, %v2819
        %v2832 = vor.u32 %v2830, %v2831
        %v2833 = vshll.u32 920167782, %v2818
        %v2834 = vshrl.u32 1326507024, %v2819
        %v2835 = vor.u32 %v2833, %v2834
        %vm2836 = vcmp.lt.s32.totalorder %v2817, 1
        %vm2837 = vcmp.lt.s32.totalorder %v2817, 2
        %vm2838 = vcmp.lt.s32.totalorder %v2817, 3
        %vm2839 = vcmp.lt.s32.totalorder %v2817, 4
        %v2840 = vsel %vm2836, %v2820, %v2823
        %v2841 = vsel %vm2839, %v2829, 2102212464
        %v2842 = vsel %vm2838, %v2826, %v2841
        %v2843 = vsel %vm2837, %v2840, %v2842
        %v2844 = vsel %vm2836, %v2823, %v2826
        %v2845 = vsel %vm2839, %v2832, 920167782
        %v2846 = vsel %vm2838, %v2829, %v2845
        %v2847 = vsel %vm2837, %v2844, %v2846
        %v2848 = vsel %vm2836, %v2826, %v2829
        %v2849 = vsel %vm2839, %v2835, 1326507024
        %v2850 = vsel %vm2838, %v2832, %v2849
        %v2851 = vsel %vm2837, %v2848, %v2850
        %v2852 = vshll.u32 %v2812, 8
        %v2853 = vmul.u32.u64.compose %v2852, %v2851
        %v2854 = vextract.low.u32 %v2853
        %v2855 = vextract.high.u32 %v2853
        %v2856 = vmul.u32.u64.compose %v2852, %v2847
        %v2857 = vextract.low.u32 %v2856
        %v2858 = vextract.high.u32 %v2856
        %v2859 = vmul.u32 %v2852, %v2843
        %v2860 = vadd.s32 %v2855, %v2857
        %vm2861 = vc.u32 %v2855, %v2857
        %v2862 = vadd.s32 %v2858, 1
        %v2863 = vsel %vm2861, %v2862, %v2858
        %v2864 = vadd.s32 %v2859, %v2863
        %v2865 = vadd.s32 %v2864, 536870912
        %v2866 = vshrl.u32 %v2865, 30
        %v2867 = vshll.u32 %v2866, 30
        %v2868 = vsub.s32 %v2864, %v2867
        %vm2869 = vcmp.lt.s32.totalorder %v2868, 0
        %v2870 = vsub.s32 0, %v2868
        %v2871 = vsel %vm2869, %v2870, %v2868
        %v2872 = vclz %v2871
        %v2873 = vsub.s32 %v2872, 2
        %vm2874 = vcmp.gt.s32.totalorder 0, %v2873
        %v2875 = vsel %vm2874, 0, %v2873
        %v2876 = vsub.s32 32, %v2875
        %v2877 = vshll.u32 %v2868, %v2875
        %v2878 = vshrl.u32 %v2860, %v2876
        %v2879 = vor.u32 %v2877, %v2878
        %v2880 = vsub.s32 4294967266, %v2875
        %v2881 = vadd.s32 %v2880, 127
        %v2882 = vshll.u32 %v2881, 23
        %v2883 = vor.u32 4788187, %v2882
        %v2884 = vand.u32 2147483647, %v2883
        %v2886 = vcvt.s32.f32 %v2879
        %v2887 = vmul.f32 %v2886, %v2884
        %v2888 = vxor.u32 %v2887, 2147483648
        %v2889 = vsel %vm2806, %v2888, %v2887
        %v2890 = vsub.s32 4, %v2866
        %v2891 = vsel %vm2806, %v2890, %v2866
        %v2892 = vsel %vm2805, %v2422, %v2889
        %v2893 = vsel %vm2805, 0, %v2891
        %v2894 = vcosq.f32.pop %v2892
        %v2895 = vsinq.f32.pop %v2892
        %vm2896 = vweird.f32 %v2422
        %v2897 = vadd.s32 %v2893, 3
        %v2898 = vand.u32 %v2897, 3
        %vm2899 = vcmp.lt.s32.totalorder %v2898, 2
        %vm2900 = vcmp.eq.s32.totalorder %v2898, 0
        %v2901 = vxor.u32 %v2895, 2147483648
        %v2902 = vsel %vm2900, %v2894, %v2901
        %vm2903 = vcmp.eq.s32.totalorder %v2898, 2
        %v2904 = vxor.u32 %v2894, 2147483648
        %v2905 = vsel %vm2903, %v2904, %v2895
        %v2906 = vsel %vm2899, %v2902, %v2905
        %v2907 = vsel %vm2896, nan, %v2906
        %v2908 = vand.u32 2147483647, %v2423
        %vm2909 = vcmp.le.f32.partialorder %v2908, 0.7853982
        %vm2910 = vcmp.lt.s32.totalorder %v2423, 0
        %v2911 = vand.u32 %v2423, 2139095040
        %v2912 = vshrl.u32 %v2911, 23
        %v2913 = vsub.s32 %v2912, 127
        %v2914 = vand.u32 2147483647, %v2423
        %v2915 = vand.u32 %v2914, 8388607
        %v2916 = vor.u32 %v2915, 8388608
        %v2917 = vsub.s32 0, %v2916
        %v2918 = vadd.s32 %v2913, 1
        %vm2919 = vcmp.gt.s32.totalorder %v2918, 0
        %v2920 = vsel %vm2919, %v2918, 0
        %v2921 = vshrl.u32 %v2920, 5
        %v2922 = vand.u32 %v2920, 31
        %v2923 = vsub.s32 32, %v2922
        %v2924 = vshrl.u32 683565275, %v2923
        %v2925 = vshll.u32 683565275, %v2922
        %v2926 = vshrl.u32 2475754826, %v2923
        %v2927 = vor.u32 %v2925, %v2926
        %v2928 = vshll.u32 2475754826, %v2922
        %v2929 = vshrl.u32 2131351028, %v2923
        %v2930 = vor.u32 %v2928, %v2929
        %v2931 = vshll.u32 2131351028, %v2922
        %v2932 = vshrl.u32 2102212464, %v2923
        %v2933 = vor.u32 %v2931, %v2932
        %v2934 = vshll.u32 2102212464, %v2922
        %v2935 = vshrl.u32 920167782, %v2923
        %v2936 = vor.u32 %v2934, %v2935
        %v2937 = vshll.u32 920167782, %v2922
        %v2938 = vshrl.u32 1326507024, %v2923
        %v2939 = vor.u32 %v2937, %v2938
        %vm2940 = vcmp.lt.s32.totalorder %v2921, 1
        %vm2941 = vcmp.lt.s32.totalorder %v2921, 2
        %vm2942 = vcmp.lt.s32.totalorder %v2921, 3
        %vm2943 = vcmp.lt.s32.totalorder %v2921, 4
        %v2944 = vsel %vm2940, %v2924, %v2927
        %v2945 = vsel %vm2943, %v2933, 2102212464
        %v2946 = vsel %vm2942, %v2930, %v2945
        %v2947 = vsel %vm2941, %v2944, %v2946
        %v2948 = vsel %vm2940, %v2927, %v2930
        %v2949 = vsel %vm2943, %v2936, 920167782
        %v2950 = vsel %vm2942, %v2933, %v2949
        %v2951 = vsel %vm2941, %v2948, %v2950
        %v2952 = vsel %vm2940, %v2930, %v2933
        %v2953 = vsel %vm2943, %v2939, 1326507024
        %v2954 = vsel %vm2942, %v2936, %v2953
        %v2955 = vsel %vm2941, %v2952, %v2954
        %v2956 = vshll.u32 %v2916, 8
        %v2957 = vmul.u32.u64.compose %v2956, %v2955
        %v2958 = vextract.low.u32 %v2957
        %v2959 = vextract.high.u32 %v2957
        %v2960 = vmul.u32.u64.compose %v2956, %v2951
        %v2961 = vextract.low.u32 %v2960
        %v2962 = vextract.high.u32 %v2960
        %v2963 = vmul.u32 %v2956, %v2947
        %v2964 = vadd.s32 %v2959, %v2961
        %vm2965 = vc.u32 %v2959, %v2961
        %v2966 = vadd.s32 %v2962, 1
        %v2967 = vsel %vm2965, %v2966, %v2962
        %v2968 = vadd.s32 %v2963, %v2967
        %v2969 = vadd.s32 %v2968, 536870912
        %v2970 = vshrl.u32 %v2969, 30
        %v2971 = vshll.u32 %v2970, 30
        %v2972 = vsub.s32 %v2968, %v2971
        %vm2973 = vcmp.lt.s32.totalorder %v2972, 0
        %v2974 = vsub.s32 0, %v2972
        %v2975 = vsel %vm2973, %v2974, %v2972
        %v2976 = vclz %v2975
        %v2977 = vsub.s32 %v2976, 2
        %vm2978 = vcmp.gt.s32.totalorder 0, %v2977
        %v2979 = vsel %vm2978, 0, %v2977
        %v2980 = vsub.s32 32, %v2979
        %v2981 = vshll.u32 %v2972, %v2979
        %v2982 = vshrl.u32 %v2964, %v2980
        %v2983 = vor.u32 %v2981, %v2982
        %v2984 = vsub.s32 4294967266, %v2979
        %v2985 = vadd.s32 %v2984, 127
        %v2986 = vshll.u32 %v2985, 23
        %v2987 = vor.u32 4788187, %v2986
        %v2988 = vand.u32 2147483647, %v2987
        %v2990 = vcvt.s32.f32 %v2983
        %v2991 = vmul.f32 %v2990, %v2988
        %v2992 = vxor.u32 %v2991, 2147483648
        %v2993 = vsel %vm2910, %v2992, %v2991
        %v2994 = vsub.s32 4, %v2970
        %v2995 = vsel %vm2910, %v2994, %v2970
        %v2996 = vsel %vm2909, %v2423, %v2993
        %v2997 = vsel %vm2909, 0, %v2995
        %v2998 = vcosq.f32.pop %v2996
        %v2999 = vsinq.f32.pop %v2996
        %vm3000 = vweird.f32 %v2423
        %v3001 = vadd.s32 %v2997, 3
        %v3002 = vand.u32 %v3001, 3
        %vm3003 = vcmp.lt.s32.totalorder %v3002, 2
        %vm3004 = vcmp.eq.s32.totalorder %v3002, 0
        %v3005 = vxor.u32 %v2999, 2147483648
        %v3006 = vsel %vm3004, %v2998, %v3005
        %vm3007 = vcmp.eq.s32.totalorder %v3002, 2
        %v3008 = vxor.u32 %v2998, 2147483648
        %v3009 = vsel %vm3007, %v3008, %v2999
        %v3010 = vsel %vm3003, %v3006, %v3009
        %v3011 = vsel %vm3000, nan, %v3010
        %v3012 = vand.u32 2147483647, %v2424
        %vm3013 = vcmp.le.f32.partialorder %v3012, 0.7853982
        %vm3014 = vcmp.lt.s32.totalorder %v2424, 0
        %v3015 = vand.u32 %v2424, 2139095040
        %v3016 = vshrl.u32 %v3015, 23
        %v3017 = vsub.s32 %v3016, 127
        %v3018 = vand.u32 2147483647, %v2424
        %v3019 = vand.u32 %v3018, 8388607
        %v3020 = vor.u32 %v3019, 8388608
        %v3021 = vsub.s32 0, %v3020
        %v3022 = vadd.s32 %v3017, 1
        %vm3023 = vcmp.gt.s32.totalorder %v3022, 0
        %v3024 = vsel %vm3023, %v3022, 0
        %v3025 = vshrl.u32 %v3024, 5
        %v3026 = vand.u32 %v3024, 31
        %v3027 = vsub.s32 32, %v3026
        %v3028 = vshrl.u32 683565275, %v3027
        %v3029 = vshll.u32 683565275, %v3026
        %v3030 = vshrl.u32 2475754826, %v3027
        %v3031 = vor.u32 %v3029, %v3030
        %v3032 = vshll.u32 2475754826, %v3026
        %v3033 = vshrl.u32 2131351028, %v3027
        %v3034 = vor.u32 %v3032, %v3033
        %v3035 = vshll.u32 2131351028, %v3026
        %v3036 = vshrl.u32 2102212464, %v3027
        %v3037 = vor.u32 %v3035, %v3036
        %v3038 = vshll.u32 2102212464, %v3026
        %v3039 = vshrl.u32 920167782, %v3027
        %v3040 = vor.u32 %v3038, %v3039
        %v3041 = vshll.u32 920167782, %v3026
        %v3042 = vshrl.u32 1326507024, %v3027
        %v3043 = vor.u32 %v3041, %v3042
        %vm3044 = vcmp.lt.s32.totalorder %v3025, 1
        %vm3045 = vcmp.lt.s32.totalorder %v3025, 2
        %vm3046 = vcmp.lt.s32.totalorder %v3025, 3
        %vm3047 = vcmp.lt.s32.totalorder %v3025, 4
        %v3048 = vsel %vm3044, %v3028, %v3031
        %v3049 = vsel %vm3047, %v3037, 2102212464
        %v3050 = vsel %vm3046, %v3034, %v3049
        %v3051 = vsel %vm3045, %v3048, %v3050
        %v3052 = vsel %vm3044, %v3031, %v3034
        %v3053 = vsel %vm3047, %v3040, 920167782
        %v3054 = vsel %vm3046, %v3037, %v3053
        %v3055 = vsel %vm3045, %v3052, %v3054
        %v3056 = vsel %vm3044, %v3034, %v3037
        %v3057 = vsel %vm3047, %v3043, 1326507024
        %v3058 = vsel %vm3046, %v3040, %v3057
        %v3059 = vsel %vm3045, %v3056, %v3058
        %v3060 = vshll.u32 %v3020, 8
        %v3061 = vmul.u32.u64.compose %v3060, %v3059
        %v3062 = vextract.low.u32 %v3061
        %v3063 = vextract.high.u32 %v3061
        %v3064 = vmul.u32.u64.compose %v3060, %v3055
        %v3065 = vextract.low.u32 %v3064
        %v3066 = vextract.high.u32 %v3064
        %v3067 = vmul.u32 %v3060, %v3051
        %v3068 = vadd.s32 %v3063, %v3065
        %vm3069 = vc.u32 %v3063, %v3065
        %v3070 = vadd.s32 %v3066, 1
        %v3071 = vsel %vm3069, %v3070, %v3066
        %v3072 = vadd.s32 %v3067, %v3071
        %v3073 = vadd.s32 %v3072, 536870912
        %v3074 = vshrl.u32 %v3073, 30
        %v3075 = vshll.u32 %v3074, 30
        %v3076 = vsub.s32 %v3072, %v3075
        %vm3077 = vcmp.lt.s32.totalorder %v3076, 0
        %v3078 = vsub.s32 0, %v3076
        %v3079 = vsel %vm3077, %v3078, %v3076
        %v3080 = vclz %v3079
        %v3081 = vsub.s32 %v3080, 2
        %vm3082 = vcmp.gt.s32.totalorder 0, %v3081
        %v3083 = vsel %vm3082, 0, %v3081
        %v3084 = vsub.s32 32, %v3083
        %v3085 = vshll.u32 %v3076, %v3083
        %v3086 = vshrl.u32 %v3068, %v3084
        %v3087 = vor.u32 %v3085, %v3086
        %v3088 = vsub.s32 4294967266, %v3083
        %v3089 = vadd.s32 %v3088, 127
        %v3090 = vshll.u32 %v3089, 23
        %v3091 = vor.u32 4788187, %v3090
        %v3092 = vand.u32 2147483647, %v3091
        %v3094 = vcvt.s32.f32 %v3087
        %v3095 = vmul.f32 %v3094, %v3092
        %v3096 = vxor.u32 %v3095, 2147483648
        %v3097 = vsel %vm3014, %v3096, %v3095
        %v3098 = vsub.s32 4, %v3074
        %v3099 = vsel %vm3014, %v3098, %v3074
        %v3100 = vsel %vm3013, %v2424, %v3097
        %v3101 = vsel %vm3013, 0, %v3099
        %v3102 = vcosq.f32.pop %v3100
        %v3103 = vsinq.f32.pop %v3100
        %vm3104 = vweird.f32 %v2424
        %v3105 = vadd.s32 %v3101, 3
        %v3106 = vand.u32 %v3105, 3
        %vm3107 = vcmp.lt.s32.totalorder %v3106, 2
        %vm3108 = vcmp.eq.s32.totalorder %v3106, 0
        %v3109 = vxor.u32 %v3103, 2147483648
        %v3110 = vsel %vm3108, %v3102, %v3109
        %vm3111 = vcmp.eq.s32.totalorder %v3106, 2
        %v3112 = vxor.u32 %v3102, 2147483648
        %v3113 = vsel %vm3111, %v3112, %v3103
        %v3114 = vsel %vm3107, %v3110, %v3113
        %v3115 = vsel %vm3104, nan, %v3114
        %v3116 = vand.u32 2147483647, %v2425
        %vm3117 = vcmp.le.f32.partialorder %v3116, 0.7853982
        %vm3118 = vcmp.lt.s32.totalorder %v2425, 0
        %v3119 = vand.u32 %v2425, 2139095040
        %v3120 = vshrl.u32 %v3119, 23
        %v3121 = vsub.s32 %v3120, 127
        %v3122 = vand.u32 2147483647, %v2425
        %v3123 = vand.u32 %v3122, 8388607
        %v3124 = vor.u32 %v3123, 8388608
        %v3125 = vsub.s32 0, %v3124
        %v3126 = vadd.s32 %v3121, 1
        %vm3127 = vcmp.gt.s32.totalorder %v3126, 0
        %v3128 = vsel %vm3127, %v3126, 0
        %v3129 = vshrl.u32 %v3128, 5
        %v3130 = vand.u32 %v3128, 31
        %v3131 = vsub.s32 32, %v3130
        %v3132 = vshrl.u32 683565275, %v3131
        %v3133 = vshll.u32 683565275, %v3130
        %v3134 = vshrl.u32 2475754826, %v3131
        %v3135 = vor.u32 %v3133, %v3134
        %v3136 = vshll.u32 2475754826, %v3130
        %v3137 = vshrl.u32 2131351028, %v3131
        %v3138 = vor.u32 %v3136, %v3137
        %v3139 = vshll.u32 2131351028, %v3130
        %v3140 = vshrl.u32 2102212464, %v3131
        %v3141 = vor.u32 %v3139, %v3140
        %v3142 = vshll.u32 2102212464, %v3130
        %v3143 = vshrl.u32 920167782, %v3131
        %v3144 = vor.u32 %v3142, %v3143
        %v3145 = vshll.u32 920167782, %v3130
        %v3146 = vshrl.u32 1326507024, %v3131
        %v3147 = vor.u32 %v3145, %v3146
        %vm3148 = vcmp.lt.s32.totalorder %v3129, 1
        %vm3149 = vcmp.lt.s32.totalorder %v3129, 2
        %vm3150 = vcmp.lt.s32.totalorder %v3129, 3
        %vm3151 = vcmp.lt.s32.totalorder %v3129, 4
        %v3152 = vsel %vm3148, %v3132, %v3135
        %v3153 = vsel %vm3151, %v3141, 2102212464
        %v3154 = vsel %vm3150, %v3138, %v3153
        %v3155 = vsel %vm3149, %v3152, %v3154
        %v3156 = vsel %vm3148, %v3135, %v3138
        %v3157 = vsel %vm3151, %v3144, 920167782
        %v3158 = vsel %vm3150, %v3141, %v3157
        %v3159 = vsel %vm3149, %v3156, %v3158
        %v3160 = vsel %vm3148, %v3138, %v3141
        %v3161 = vsel %vm3151, %v3147, 1326507024
        %v3162 = vsel %vm3150, %v3144, %v3161
        %v3163 = vsel %vm3149, %v3160, %v3162
        %v3164 = vshll.u32 %v3124, 8
        %v3165 = vmul.u32.u64.compose %v3164, %v3163
        %v3166 = vextract.low.u32 %v3165
        %v3167 = vextract.high.u32 %v3165
        %v3168 = vmul.u32.u64.compose %v3164, %v3159
        %v3169 = vextract.low.u32 %v3168
        %v3170 = vextract.high.u32 %v3168
        %v3171 = vmul.u32 %v3164, %v3155
        %v3172 = vadd.s32 %v3167, %v3169
        %vm3173 = vc.u32 %v3167, %v3169
        %v3174 = vadd.s32 %v3170, 1
        %v3175 = vsel %vm3173, %v3174, %v3170
        %v3176 = vadd.s32 %v3171, %v3175
        %v3177 = vadd.s32 %v3176, 536870912
        %v3178 = vshrl.u32 %v3177, 30
        %v3179 = vshll.u32 %v3178, 30
        %v3180 = vsub.s32 %v3176, %v3179
        %vm3181 = vcmp.lt.s32.totalorder %v3180, 0
        %v3182 = vsub.s32 0, %v3180
        %v3183 = vsel %vm3181, %v3182, %v3180
        %v3184 = vclz %v3183
        %v3185 = vsub.s32 %v3184, 2
        %vm3186 = vcmp.gt.s32.totalorder 0, %v3185
        %v3187 = vsel %vm3186, 0, %v3185
        %v3188 = vsub.s32 32, %v3187
        %v3189 = vshll.u32 %v3180, %v3187
        %v3190 = vshrl.u32 %v3172, %v3188
        %v3191 = vor.u32 %v3189, %v3190
        %v3192 = vsub.s32 4294967266, %v3187
        %v3193 = vadd.s32 %v3192, 127
        %v3194 = vshll.u32 %v3193, 23
        %v3195 = vor.u32 4788187, %v3194
        %v3196 = vand.u32 2147483647, %v3195
        %v3198 = vcvt.s32.f32 %v3191
        %v3199 = vmul.f32 %v3198, %v3196
        %v3200 = vxor.u32 %v3199, 2147483648
        %v3201 = vsel %vm3118, %v3200, %v3199
        %v3202 = vsub.s32 4, %v3178
        %v3203 = vsel %vm3118, %v3202, %v3178
        %v3204 = vsel %vm3117, %v2425, %v3201
        %v3205 = vsel %vm3117, 0, %v3203
        %v3206 = vcosq.f32.pop %v3204
        %v3207 = vsinq.f32.pop %v3204
        %vm3208 = vweird.f32 %v2425
        %v3209 = vadd.s32 %v3205, 3
        %v3210 = vand.u32 %v3209, 3
        %vm3211 = vcmp.lt.s32.totalorder %v3210, 2
        %vm3212 = vcmp.eq.s32.totalorder %v3210, 0
        %v3213 = vxor.u32 %v3207, 2147483648
        %v3214 = vsel %vm3212, %v3206, %v3213
        %vm3215 = vcmp.eq.s32.totalorder %v3210, 2
        %v3216 = vxor.u32 %v3206, 2147483648
        %v3217 = vsel %vm3215, %v3216, %v3207
        %v3218 = vsel %vm3211, %v3214, %v3217
        %v3219 = vsel %vm3208, nan, %v3218
        %v3220 = vand.u32 2147483647, %v2426
        %vm3221 = vcmp.le.f32.partialorder %v3220, 0.7853982
        %vm3222 = vcmp.lt.s32.totalorder %v2426, 0
        %v3223 = vand.u32 %v2426, 2139095040
        %v3224 = vshrl.u32 %v3223, 23
        %v3225 = vsub.s32 %v3224, 127
        %v3226 = vand.u32 2147483647, %v2426
        %v3227 = vand.u32 %v3226, 8388607
        %v3228 = vor.u32 %v3227, 8388608
        %v3229 = vsub.s32 0, %v3228
        %v3230 = vadd.s32 %v3225, 1
        %vm3231 = vcmp.gt.s32.totalorder %v3230, 0
        %v3232 = vsel %vm3231, %v3230, 0
        %v3233 = vshrl.u32 %v3232, 5
        %v3234 = vand.u32 %v3232, 31
        %v3235 = vsub.s32 32, %v3234
        %v3236 = vshrl.u32 683565275, %v3235
        %v3237 = vshll.u32 683565275, %v3234
        %v3238 = vshrl.u32 2475754826, %v3235
        %v3239 = vor.u32 %v3237, %v3238
        %v3240 = vshll.u32 2475754826, %v3234
        %v3241 = vshrl.u32 2131351028, %v3235
        %v3242 = vor.u32 %v3240, %v3241
        %v3243 = vshll.u32 2131351028, %v3234
        %v3244 = vshrl.u32 2102212464, %v3235
        %v3245 = vor.u32 %v3243, %v3244
        %v3246 = vshll.u32 2102212464, %v3234
        %v3247 = vshrl.u32 920167782, %v3235
        %v3248 = vor.u32 %v3246, %v3247
        %v3249 = vshll.u32 920167782, %v3234
        %v3250 = vshrl.u32 1326507024, %v3235
        %v3251 = vor.u32 %v3249, %v3250
        %vm3252 = vcmp.lt.s32.totalorder %v3233, 1
        %vm3253 = vcmp.lt.s32.totalorder %v3233, 2
        %vm3254 = vcmp.lt.s32.totalorder %v3233, 3
        %vm3255 = vcmp.lt.s32.totalorder %v3233, 4
        %v3256 = vsel %vm3252, %v3236, %v3239
        %v3257 = vsel %vm3255, %v3245, 2102212464
        %v3258 = vsel %vm3254, %v3242, %v3257
        %v3259 = vsel %vm3253, %v3256, %v3258
        %v3260 = vsel %vm3252, %v3239, %v3242
        %v3261 = vsel %vm3255, %v3248, 920167782
        %v3262 = vsel %vm3254, %v3245, %v3261
        %v3263 = vsel %vm3253, %v3260, %v3262
        %v3264 = vsel %vm3252, %v3242, %v3245
        %v3265 = vsel %vm3255, %v3251, 1326507024
        %v3266 = vsel %vm3254, %v3248, %v3265
        %v3267 = vsel %vm3253, %v3264, %v3266
        %v3268 = vshll.u32 %v3228, 8
        %v3269 = vmul.u32.u64.compose %v3268, %v3267
        %v3270 = vextract.low.u32 %v3269
        %v3271 = vextract.high.u32 %v3269
        %v3272 = vmul.u32.u64.compose %v3268, %v3263
        %v3273 = vextract.low.u32 %v3272
        %v3274 = vextract.high.u32 %v3272
        %v3275 = vmul.u32 %v3268, %v3259
        %v3276 = vadd.s32 %v3271, %v3273
        %vm3277 = vc.u32 %v3271, %v3273
        %v3278 = vadd.s32 %v3274, 1
        %v3279 = vsel %vm3277, %v3278, %v3274
        %v3280 = vadd.s32 %v3275, %v3279
        %v3281 = vadd.s32 %v3280, 536870912
        %v3282 = vshrl.u32 %v3281, 30
        %v3283 = vshll.u32 %v3282, 30
        %v3284 = vsub.s32 %v3280, %v3283
        %vm3285 = vcmp.lt.s32.totalorder %v3284, 0
        %v3286 = vsub.s32 0, %v3284
        %v3287 = vsel %vm3285, %v3286, %v3284
        %v3288 = vclz %v3287
        %v3289 = vsub.s32 %v3288, 2
        %vm3290 = vcmp.gt.s32.totalorder 0, %v3289
        %v3291 = vsel %vm3290, 0, %v3289
        %v3292 = vsub.s32 32, %v3291
        %v3293 = vshll.u32 %v3284, %v3291
        %v3294 = vshrl.u32 %v3276, %v3292
        %v3295 = vor.u32 %v3293, %v3294
        %v3296 = vsub.s32 4294967266, %v3291
        %v3297 = vadd.s32 %v3296, 127
        %v3298 = vshll.u32 %v3297, 23
        %v3299 = vor.u32 4788187, %v3298
        %v3300 = vand.u32 2147483647, %v3299
        %v3302 = vcvt.s32.f32 %v3295
        %v3303 = vmul.f32 %v3302, %v3300
        %v3304 = vxor.u32 %v3303, 2147483648
        %v3305 = vsel %vm3222, %v3304, %v3303
        %v3306 = vsub.s32 4, %v3282
        %v3307 = vsel %vm3222, %v3306, %v3282
        %v3308 = vsel %vm3221, %v2426, %v3305
        %v3309 = vsel %vm3221, 0, %v3307
        %v3310 = vcosq.f32.pop %v3308
        %v3311 = vsinq.f32.pop %v3308
        %vm3312 = vweird.f32 %v2426
        %v3313 = vadd.s32 %v3309, 3
        %v3314 = vand.u32 %v3313, 3
        %vm3315 = vcmp.lt.s32.totalorder %v3314, 2
        %vm3316 = vcmp.eq.s32.totalorder %v3314, 0
        %v3317 = vxor.u32 %v3311, 2147483648
        %v3318 = vsel %vm3316, %v3310, %v3317
        %vm3319 = vcmp.eq.s32.totalorder %v3314, 2
        %v3320 = vxor.u32 %v3310, 2147483648
        %v3321 = vsel %vm3319, %v3320, %v3311
        %v3322 = vsel %vm3315, %v3318, %v3321
        %v3323 = vsel %vm3312, nan, %v3322
        %v3324 = vand.u32 2147483647, %v2427
        %vm3325 = vcmp.le.f32.partialorder %v3324, 0.7853982
        %vm3326 = vcmp.lt.s32.totalorder %v2427, 0
        %v3327 = vand.u32 %v2427, 2139095040
        %v3328 = vshrl.u32 %v3327, 23
        %v3329 = vsub.s32 %v3328, 127
        %v3330 = vand.u32 2147483647, %v2427
        %v3331 = vand.u32 %v3330, 8388607
        %v3332 = vor.u32 %v3331, 8388608
        %v3333 = vsub.s32 0, %v3332
        %v3334 = vadd.s32 %v3329, 1
        %vm3335 = vcmp.gt.s32.totalorder %v3334, 0
        %v3336 = vsel %vm3335, %v3334, 0
        %v3337 = vshrl.u32 %v3336, 5
        %v3338 = vand.u32 %v3336, 31
        %v3339 = vsub.s32 32, %v3338
        %v3340 = vshrl.u32 683565275, %v3339
        %v3341 = vshll.u32 683565275, %v3338
        %v3342 = vshrl.u32 2475754826, %v3339
        %v3343 = vor.u32 %v3341, %v3342
        %v3344 = vshll.u32 2475754826, %v3338
        %v3345 = vshrl.u32 2131351028, %v3339
        %v3346 = vor.u32 %v3344, %v3345
        %v3347 = vshll.u32 2131351028, %v3338
        %v3348 = vshrl.u32 2102212464, %v3339
        %v3349 = vor.u32 %v3347, %v3348
        %v3350 = vshll.u32 2102212464, %v3338
        %v3351 = vshrl.u32 920167782, %v3339
        %v3352 = vor.u32 %v3350, %v3351
        %v3353 = vshll.u32 920167782, %v3338
        %v3354 = vshrl.u32 1326507024, %v3339
        %v3355 = vor.u32 %v3353, %v3354
        %vm3356 = vcmp.lt.s32.totalorder %v3337, 1
        %vm3357 = vcmp.lt.s32.totalorder %v3337, 2
        %vm3358 = vcmp.lt.s32.totalorder %v3337, 3
        %vm3359 = vcmp.lt.s32.totalorder %v3337, 4
        %v3360 = vsel %vm3356, %v3340, %v3343
        %v3361 = vsel %vm3359, %v3349, 2102212464
        %v3362 = vsel %vm3358, %v3346, %v3361
        %v3363 = vsel %vm3357, %v3360, %v3362
        %v3364 = vsel %vm3356, %v3343, %v3346
        %v3365 = vsel %vm3359, %v3352, 920167782
        %v3366 = vsel %vm3358, %v3349, %v3365
        %v3367 = vsel %vm3357, %v3364, %v3366
        %v3368 = vsel %vm3356, %v3346, %v3349
        %v3369 = vsel %vm3359, %v3355, 1326507024
        %v3370 = vsel %vm3358, %v3352, %v3369
        %v3371 = vsel %vm3357, %v3368, %v3370
        %v3372 = vshll.u32 %v3332, 8
        %v3373 = vmul.u32.u64.compose %v3372, %v3371
        %v3374 = vextract.low.u32 %v3373
        %v3375 = vextract.high.u32 %v3373
        %v3376 = vmul.u32.u64.compose %v3372, %v3367
        %v3377 = vextract.low.u32 %v3376
        %v3378 = vextract.high.u32 %v3376
        %v3379 = vmul.u32 %v3372, %v3363
        %v3380 = vadd.s32 %v3375, %v3377
        %vm3381 = vc.u32 %v3375, %v3377
        %v3382 = vadd.s32 %v3378, 1
        %v3383 = vsel %vm3381, %v3382, %v3378
        %v3384 = vadd.s32 %v3379, %v3383
        %v3385 = vadd.s32 %v3384, 536870912
        %v3386 = vshrl.u32 %v3385, 30
        %v3387 = vshll.u32 %v3386, 30
        %v3388 = vsub.s32 %v3384, %v3387
        %vm3389 = vcmp.lt.s32.totalorder %v3388, 0
        %v3390 = vsub.s32 0, %v3388
        %v3391 = vsel %vm3389, %v3390, %v3388
        %v3392 = vclz %v3391
        %v3393 = vsub.s32 %v3392, 2
        %vm3394 = vcmp.gt.s32.totalorder 0, %v3393
        %v3395 = vsel %vm3394, 0, %v3393
        %v3396 = vsub.s32 32, %v3395
        %v3397 = vshll.u32 %v3388, %v3395
        %v3398 = vshrl.u32 %v3380, %v3396
        %v3399 = vor.u32 %v3397, %v3398
        %v3400 = vsub.s32 4294967266, %v3395
        %v3401 = vadd.s32 %v3400, 127
        %v3402 = vshll.u32 %v3401, 23
        %v3403 = vor.u32 4788187, %v3402
        %v3404 = vand.u32 2147483647, %v3403
        %v3406 = vcvt.s32.f32 %v3399
        %v3407 = vmul.f32 %v3406, %v3404
        %v3408 = vxor.u32 %v3407, 2147483648
        %v3409 = vsel %vm3326, %v3408, %v3407
        %v3410 = vsub.s32 4, %v3386
        %v3411 = vsel %vm3326, %v3410, %v3386
        %v3412 = vsel %vm3325, %v2427, %v3409
        %v3413 = vsel %vm3325, 0, %v3411
        %v3414 = vcosq.f32.pop %v3412
        %v3415 = vsinq.f32.pop %v3412
        %vm3416 = vweird.f32 %v2427
        %v3417 = vadd.s32 %v3413, 3
        %v3418 = vand.u32 %v3417, 3
        %vm3419 = vcmp.lt.s32.totalorder %v3418, 2
        %vm3420 = vcmp.eq.s32.totalorder %v3418, 0
        %v3421 = vxor.u32 %v3415, 2147483648
        %v3422 = vsel %vm3420, %v3414, %v3421
        %vm3423 = vcmp.eq.s32.totalorder %v3418, 2
        %v3424 = vxor.u32 %v3414, 2147483648
        %v3425 = vsel %vm3423, %v3424, %v3415
        %v3426 = vsel %vm3419, %v3422, %v3425
        %v3427 = vsel %vm3416, nan, %v3426
        %v3428 = vand.u32 2147483647, %v2420
        %vm3429 = vcmp.le.f32.partialorder %v3428, 0.7853982
        %vm3430 = vcmp.lt.s32.totalorder %v2420, 0
        %v3431 = vand.u32 %v2420, 2139095040
        %v3432 = vshrl.u32 %v3431, 23
        %v3433 = vsub.s32 %v3432, 127
        %v3434 = vand.u32 2147483647, %v2420
        %v3435 = vand.u32 %v3434, 8388607
        %v3436 = vor.u32 %v3435, 8388608
        %v3437 = vsub.s32 0, %v3436
        %v3438 = vadd.s32 %v3433, 1
        %vm3439 = vcmp.gt.s32.totalorder %v3438, 0
        %v3440 = vsel %vm3439, %v3438, 0
        %v3441 = vshrl.u32 %v3440, 5
        %v3442 = vand.u32 %v3440, 31
        %v3443 = vsub.s32 32, %v3442
        %v3444 = vshrl.u32 683565275, %v3443
        %v3445 = vshll.u32 683565275, %v3442
        %v3446 = vshrl.u32 2475754826, %v3443
        %v3447 = vor.u32 %v3445, %v3446
        %v3448 = vshll.u32 2475754826, %v3442
        %v3449 = vshrl.u32 2131351028, %v3443
        %v3450 = vor.u32 %v3448, %v3449
        %v3451 = vshll.u32 2131351028, %v3442
        %v3452 = vshrl.u32 2102212464, %v3443
        %v3453 = vor.u32 %v3451, %v3452
        %v3454 = vshll.u32 2102212464, %v3442
        %v3455 = vshrl.u32 920167782, %v3443
        %v3456 = vor.u32 %v3454, %v3455
        %v3457 = vshll.u32 920167782, %v3442
        %v3458 = vshrl.u32 1326507024, %v3443
        %v3459 = vor.u32 %v3457, %v3458
        %vm3460 = vcmp.lt.s32.totalorder %v3441, 1
        %vm3461 = vcmp.lt.s32.totalorder %v3441, 2
        %vm3462 = vcmp.lt.s32.totalorder %v3441, 3
        %vm3463 = vcmp.lt.s32.totalorder %v3441, 4
        %v3464 = vsel %vm3460, %v3444, %v3447
        %v3465 = vsel %vm3463, %v3453, 2102212464
        %v3466 = vsel %vm3462, %v3450, %v3465
        %v3467 = vsel %vm3461, %v3464, %v3466
        %v3468 = vsel %vm3460, %v3447, %v3450
        %v3469 = vsel %vm3463, %v3456, 920167782
        %v3470 = vsel %vm3462, %v3453, %v3469
        %v3471 = vsel %vm3461, %v3468, %v3470
        %v3472 = vsel %vm3460, %v3450, %v3453
        %v3473 = vsel %vm3463, %v3459, 1326507024
        %v3474 = vsel %vm3462, %v3456, %v3473
        %v3475 = vsel %vm3461, %v3472, %v3474
        %v3476 = vshll.u32 %v3436, 8
        %v3477 = vmul.u32.u64.compose %v3476, %v3475
        %v3478 = vextract.low.u32 %v3477
        %v3479 = vextract.high.u32 %v3477
        %v3480 = vmul.u32.u64.compose %v3476, %v3471
        %v3481 = vextract.low.u32 %v3480
        %v3482 = vextract.high.u32 %v3480
        %v3483 = vmul.u32 %v3476, %v3467
        %v3484 = vadd.s32 %v3479, %v3481
        %vm3485 = vc.u32 %v3479, %v3481
        %v3486 = vadd.s32 %v3482, 1
        %v3487 = vsel %vm3485, %v3486, %v3482
        %v3488 = vadd.s32 %v3483, %v3487
        %v3489 = vadd.s32 %v3488, 536870912
        %v3490 = vshrl.u32 %v3489, 30
        %v3491 = vshll.u32 %v3490, 30
        %v3492 = vsub.s32 %v3488, %v3491
        %vm3493 = vcmp.lt.s32.totalorder %v3492, 0
        %v3494 = vsub.s32 0, %v3492
        %v3495 = vsel %vm3493, %v3494, %v3492
        %v3496 = vclz %v3495
        %v3497 = vsub.s32 %v3496, 2
        %vm3498 = vcmp.gt.s32.totalorder 0, %v3497
        %v3499 = vsel %vm3498, 0, %v3497
        %v3500 = vsub.s32 32, %v3499
        %v3501 = vshll.u32 %v3492, %v3499
        %v3502 = vshrl.u32 %v3484, %v3500
        %v3503 = vor.u32 %v3501, %v3502
        %v3504 = vsub.s32 4294967266, %v3499
        %v3505 = vadd.s32 %v3504, 127
        %v3506 = vshll.u32 %v3505, 23
        %v3507 = vor.u32 4788187, %v3506
        %v3508 = vand.u32 2147483647, %v3507
        %v3510 = vcvt.s32.f32 %v3503
        %v3511 = vmul.f32 %v3510, %v3508
        %v3512 = vxor.u32 %v3511, 2147483648
        %v3513 = vsel %vm3430, %v3512, %v3511
        %v3514 = vsub.s32 4, %v3490
        %v3515 = vsel %vm3430, %v3514, %v3490
        %v3516 = vsel %vm3429, %v2420, %v3513
        %v3517 = vsel %vm3429, 0, %v3515
        %v3518 = vcosq.f32.pop %v3516
        %v3519 = vsinq.f32.pop %v3516
        %vm3520 = vweird.f32 %v2420
        %v3521 = vand.u32 %v3517, 3
        %vm3522 = vcmp.lt.s32.totalorder %v3521, 2
        %vm3523 = vcmp.eq.s32.totalorder %v3521, 0
        %v3524 = vxor.u32 %v3519, 2147483648
        %v3525 = vsel %vm3523, %v3518, %v3524
        %vm3526 = vcmp.eq.s32.totalorder %v3521, 2
        %v3527 = vxor.u32 %v3518, 2147483648
        %v3528 = vsel %vm3526, %v3527, %v3519
        %v3529 = vsel %vm3522, %v3525, %v3528
        %v3530 = vsel %vm3520, nan, %v3529
        %v3531 = vand.u32 2147483647, %v2421
        %vm3532 = vcmp.le.f32.partialorder %v3531, 0.7853982
        %vm3533 = vcmp.lt.s32.totalorder %v2421, 0
        %v3534 = vand.u32 %v2421, 2139095040
        %v3535 = vshrl.u32 %v3534, 23
        %v3536 = vsub.s32 %v3535, 127
        %v3537 = vand.u32 2147483647, %v2421
        %v3538 = vand.u32 %v3537, 8388607
        %v3539 = vor.u32 %v3538, 8388608
        %v3540 = vsub.s32 0, %v3539
        %v3541 = vadd.s32 %v3536, 1
        %vm3542 = vcmp.gt.s32.totalorder %v3541, 0
        %v3543 = vsel %vm3542, %v3541, 0
        %v3544 = vshrl.u32 %v3543, 5
        %v3545 = vand.u32 %v3543, 31
        %v3546 = vsub.s32 32, %v3545
        %v3547 = vshrl.u32 683565275, %v3546
        %v3548 = vshll.u32 683565275, %v3545
        %v3549 = vshrl.u32 2475754826, %v3546
        %v3550 = vor.u32 %v3548, %v3549
        %v3551 = vshll.u32 2475754826, %v3545
        %v3552 = vshrl.u32 2131351028, %v3546
        %v3553 = vor.u32 %v3551, %v3552
        %v3554 = vshll.u32 2131351028, %v3545
        %v3555 = vshrl.u32 2102212464, %v3546
        %v3556 = vor.u32 %v3554, %v3555
        %v3557 = vshll.u32 2102212464, %v3545
        %v3558 = vshrl.u32 920167782, %v3546
        %v3559 = vor.u32 %v3557, %v3558
        %v3560 = vshll.u32 920167782, %v3545
        %v3561 = vshrl.u32 1326507024, %v3546
        %v3562 = vor.u32 %v3560, %v3561
        %vm3563 = vcmp.lt.s32.totalorder %v3544, 1
        %vm3564 = vcmp.lt.s32.totalorder %v3544, 2
        %vm3565 = vcmp.lt.s32.totalorder %v3544, 3
        %vm3566 = vcmp.lt.s32.totalorder %v3544, 4
        %v3567 = vsel %vm3563, %v3547, %v3550
        %v3568 = vsel %vm3566, %v3556, 2102212464
        %v3569 = vsel %vm3565, %v3553, %v3568
        %v3570 = vsel %vm3564, %v3567, %v3569
        %v3571 = vsel %vm3563, %v3550, %v3553
        %v3572 = vsel %vm3566, %v3559, 920167782
        %v3573 = vsel %vm3565, %v3556, %v3572
        %v3574 = vsel %vm3564, %v3571, %v3573
        %v3575 = vsel %vm3563, %v3553, %v3556
        %v3576 = vsel %vm3566, %v3562, 1326507024
        %v3577 = vsel %vm3565, %v3559, %v3576
        %v3578 = vsel %vm3564, %v3575, %v3577
        %v3579 = vshll.u32 %v3539, 8
        %v3580 = vmul.u32.u64.compose %v3579, %v3578
        %v3581 = vextract.low.u32 %v3580
        %v3582 = vextract.high.u32 %v3580
        %v3583 = vmul.u32.u64.compose %v3579, %v3574
        %v3584 = vextract.low.u32 %v3583
        %v3585 = vextract.high.u32 %v3583
        %v3586 = vmul.u32 %v3579, %v3570
        %v3587 = vadd.s32 %v3582, %v3584
        %vm3588 = vc.u32 %v3582, %v3584
        %v3589 = vadd.s32 %v3585, 1
        %v3590 = vsel %vm3588, %v3589, %v3585
        %v3591 = vadd.s32 %v3586, %v3590
        %v3592 = vadd.s32 %v3591, 536870912
        %v3593 = vshrl.u32 %v3592, 30
        %v3594 = vshll.u32 %v3593, 30
        %v3595 = vsub.s32 %v3591, %v3594
        %vm3596 = vcmp.lt.s32.totalorder %v3595, 0
        %v3597 = vsub.s32 0, %v3595
        %v3598 = vsel %vm3596, %v3597, %v3595
        %v3599 = vclz %v3598
        %v3600 = vsub.s32 %v3599, 2
        %vm3601 = vcmp.gt.s32.totalorder 0, %v3600
        %v3602 = vsel %vm3601, 0, %v3600
        %v3603 = vsub.s32 32, %v3602
        %v3604 = vshll.u32 %v3595, %v3602
        %v3605 = vshrl.u32 %v3587, %v3603
        %v3606 = vor.u32 %v3604, %v3605
        %v3607 = vsub.s32 4294967266, %v3602
        %v3608 = vadd.s32 %v3607, 127
        %v3609 = vshll.u32 %v3608, 23
        %v3610 = vor.u32 4788187, %v3609
        %v3611 = vand.u32 2147483647, %v3610
        %v3613 = vcvt.s32.f32 %v3606
        %v3614 = vmul.f32 %v3613, %v3611
        %v3615 = vxor.u32 %v3614, 2147483648
        %v3616 = vsel %vm3533, %v3615, %v3614
        %v3617 = vsub.s32 4, %v3593
        %v3618 = vsel %vm3533, %v3617, %v3593
        %v3619 = vsel %vm3532, %v2421, %v3616
        %v3620 = vsel %vm3532, 0, %v3618
        %v3621 = vcosq.f32.pop %v3619
        %v3622 = vsinq.f32.pop %v3619
        %vm3623 = vweird.f32 %v2421
        %v3624 = vand.u32 %v3620, 3
        %vm3625 = vcmp.lt.s32.totalorder %v3624, 2
        %vm3626 = vcmp.eq.s32.totalorder %v3624, 0
        %v3627 = vxor.u32 %v3622, 2147483648
        %v3628 = vsel %vm3626, %v3621, %v3627
        %vm3629 = vcmp.eq.s32.totalorder %v3624, 2
        %v3630 = vxor.u32 %v3621, 2147483648
        %v3631 = vsel %vm3629, %v3630, %v3622
        %v3632 = vsel %vm3625, %v3628, %v3631
        %v3633 = vsel %vm3623, nan, %v3632
        %v3634 = vand.u32 2147483647, %v2422
        %vm3635 = vcmp.le.f32.partialorder %v3634, 0.7853982
        %vm3636 = vcmp.lt.s32.totalorder %v2422, 0
        %v3637 = vand.u32 %v2422, 2139095040
        %v3638 = vshrl.u32 %v3637, 23
        %v3639 = vsub.s32 %v3638, 127
        %v3640 = vand.u32 2147483647, %v2422
        %v3641 = vand.u32 %v3640, 8388607
        %v3642 = vor.u32 %v3641, 8388608
        %v3643 = vsub.s32 0, %v3642
        %v3644 = vadd.s32 %v3639, 1
        %vm3645 = vcmp.gt.s32.totalorder %v3644, 0
        %v3646 = vsel %vm3645, %v3644, 0
        %v3647 = vshrl.u32 %v3646, 5
        %v3648 = vand.u32 %v3646, 31
        %v3649 = vsub.s32 32, %v3648
        %v3650 = vshrl.u32 683565275, %v3649
        %v3651 = vshll.u32 683565275, %v3648
        %v3652 = vshrl.u32 2475754826, %v3649
        %v3653 = vor.u32 %v3651, %v3652
        %v3654 = vshll.u32 2475754826, %v3648
        %v3655 = vshrl.u32 2131351028, %v3649
        %v3656 = vor.u32 %v3654, %v3655
        %v3657 = vshll.u32 2131351028, %v3648
        %v3658 = vshrl.u32 2102212464, %v3649
        %v3659 = vor.u32 %v3657, %v3658
        %v3660 = vshll.u32 2102212464, %v3648
        %v3661 = vshrl.u32 920167782, %v3649
        %v3662 = vor.u32 %v3660, %v3661
        %v3663 = vshll.u32 920167782, %v3648
        %v3664 = vshrl.u32 1326507024, %v3649
        %v3665 = vor.u32 %v3663, %v3664
        %vm3666 = vcmp.lt.s32.totalorder %v3647, 1
        %vm3667 = vcmp.lt.s32.totalorder %v3647, 2
        %vm3668 = vcmp.lt.s32.totalorder %v3647, 3
        %vm3669 = vcmp.lt.s32.totalorder %v3647, 4
        %v3670 = vsel %vm3666, %v3650, %v3653
        %v3671 = vsel %vm3669, %v3659, 2102212464
        %v3672 = vsel %vm3668, %v3656, %v3671
        %v3673 = vsel %vm3667, %v3670, %v3672
        %v3674 = vsel %vm3666, %v3653, %v3656
        %v3675 = vsel %vm3669, %v3662, 920167782
        %v3676 = vsel %vm3668, %v3659, %v3675
        %v3677 = vsel %vm3667, %v3674, %v3676
        %v3678 = vsel %vm3666, %v3656, %v3659
        %v3679 = vsel %vm3669, %v3665, 1326507024
        %v3680 = vsel %vm3668, %v3662, %v3679
        %v3681 = vsel %vm3667, %v3678, %v3680
        %v3682 = vshll.u32 %v3642, 8
        %v3683 = vmul.u32.u64.compose %v3682, %v3681
        %v3684 = vextract.low.u32 %v3683
        %v3685 = vextract.high.u32 %v3683
        %v3686 = vmul.u32.u64.compose %v3682, %v3677
        %v3687 = vextract.low.u32 %v3686
        %v3688 = vextract.high.u32 %v3686
        %v3689 = vmul.u32 %v3682, %v3673
        %v3690 = vadd.s32 %v3685, %v3687
        %vm3691 = vc.u32 %v3685, %v3687
        %v3692 = vadd.s32 %v3688, 1
        %v3693 = vsel %vm3691, %v3692, %v3688
        %v3694 = vadd.s32 %v3689, %v3693
        %v3695 = vadd.s32 %v3694, 536870912
        %v3696 = vshrl.u32 %v3695, 30
        %v3697 = vshll.u32 %v3696, 30
        %v3698 = vsub.s32 %v3694, %v3697
        %vm3699 = vcmp.lt.s32.totalorder %v3698, 0
        %v3700 = vsub.s32 0, %v3698
        %v3701 = vsel %vm3699, %v3700, %v3698
        %v3702 = vclz %v3701
        %v3703 = vsub.s32 %v3702, 2
        %vm3704 = vcmp.gt.s32.totalorder 0, %v3703
        %v3705 = vsel %vm3704, 0, %v3703
        %v3706 = vsub.s32 32, %v3705
        %v3707 = vshll.u32 %v3698, %v3705
        %v3708 = vshrl.u32 %v3690, %v3706
        %v3709 = vor.u32 %v3707, %v3708
        %v3710 = vsub.s32 4294967266, %v3705
        %v3711 = vadd.s32 %v3710, 127
        %v3712 = vshll.u32 %v3711, 23
        %v3713 = vor.u32 4788187, %v3712
        %v3714 = vand.u32 2147483647, %v3713
        %v3716 = vcvt.s32.f32 %v3709
        %v3717 = vmul.f32 %v3716, %v3714
        %v3718 = vxor.u32 %v3717, 2147483648
        %v3719 = vsel %vm3636, %v3718, %v3717
        %v3720 = vsub.s32 4, %v3696
        %v3721 = vsel %vm3636, %v3720, %v3696
        %v3722 = vsel %vm3635, %v2422, %v3719
        %v3723 = vsel %vm3635, 0, %v3721
        %v3724 = vcosq.f32.pop %v3722
        %v3725 = vsinq.f32.pop %v3722
        %vm3726 = vweird.f32 %v2422
        %v3727 = vand.u32 %v3723, 3
        %vm3728 = vcmp.lt.s32.totalorder %v3727, 2
        %vm3729 = vcmp.eq.s32.totalorder %v3727, 0
        %v3730 = vxor.u32 %v3725, 2147483648
        %v3731 = vsel %vm3729, %v3724, %v3730
        %vm3732 = vcmp.eq.s32.totalorder %v3727, 2
        %v3733 = vxor.u32 %v3724, 2147483648
        %v3734 = vsel %vm3732, %v3733, %v3725
        %v3735 = vsel %vm3728, %v3731, %v3734
        %v3736 = vsel %vm3726, nan, %v3735
        %v3737 = vand.u32 2147483647, %v2423
        %vm3738 = vcmp.le.f32.partialorder %v3737, 0.7853982
        %vm3739 = vcmp.lt.s32.totalorder %v2423, 0
        %v3740 = vand.u32 %v2423, 2139095040
        %v3741 = vshrl.u32 %v3740, 23
        %v3742 = vsub.s32 %v3741, 127
        %v3743 = vand.u32 2147483647, %v2423
        %v3744 = vand.u32 %v3743, 8388607
        %v3745 = vor.u32 %v3744, 8388608
        %v3746 = vsub.s32 0, %v3745
        %v3747 = vadd.s32 %v3742, 1
        %vm3748 = vcmp.gt.s32.totalorder %v3747, 0
        %v3749 = vsel %vm3748, %v3747, 0
        %v3750 = vshrl.u32 %v3749, 5
        %v3751 = vand.u32 %v3749, 31
        %v3752 = vsub.s32 32, %v3751
        %v3753 = vshrl.u32 683565275, %v3752
        %v3754 = vshll.u32 683565275, %v3751
        %v3755 = vshrl.u32 2475754826, %v3752
        %v3756 = vor.u32 %v3754, %v3755
        %v3757 = vshll.u32 2475754826, %v3751
        %v3758 = vshrl.u32 2131351028, %v3752
        %v3759 = vor.u32 %v3757, %v3758
        %v3760 = vshll.u32 2131351028, %v3751
        %v3761 = vshrl.u32 2102212464, %v3752
        %v3762 = vor.u32 %v3760, %v3761
        %v3763 = vshll.u32 2102212464, %v3751
        %v3764 = vshrl.u32 920167782, %v3752
        %v3765 = vor.u32 %v3763, %v3764
        %v3766 = vshll.u32 920167782, %v3751
        %v3767 = vshrl.u32 1326507024, %v3752
        %v3768 = vor.u32 %v3766, %v3767
        %vm3769 = vcmp.lt.s32.totalorder %v3750, 1
        %vm3770 = vcmp.lt.s32.totalorder %v3750, 2
        %vm3771 = vcmp.lt.s32.totalorder %v3750, 3
        %vm3772 = vcmp.lt.s32.totalorder %v3750, 4
        %v3773 = vsel %vm3769, %v3753, %v3756
        %v3774 = vsel %vm3772, %v3762, 2102212464
        %v3775 = vsel %vm3771, %v3759, %v3774
        %v3776 = vsel %vm3770, %v3773, %v3775
        %v3777 = vsel %vm3769, %v3756, %v3759
        %v3778 = vsel %vm3772, %v3765, 920167782
        %v3779 = vsel %vm3771, %v3762, %v3778
        %v3780 = vsel %vm3770, %v3777, %v3779
        %v3781 = vsel %vm3769, %v3759, %v3762
        %v3782 = vsel %vm3772, %v3768, 1326507024
        %v3783 = vsel %vm3771, %v3765, %v3782
        %v3784 = vsel %vm3770, %v3781, %v3783
        %v3785 = vshll.u32 %v3745, 8
        %v3786 = vmul.u32.u64.compose %v3785, %v3784
        %v3787 = vextract.low.u32 %v3786
        %v3788 = vextract.high.u32 %v3786
        %v3789 = vmul.u32.u64.compose %v3785, %v3780
        %v3790 = vextract.low.u32 %v3789
        %v3791 = vextract.high.u32 %v3789
        %v3792 = vmul.u32 %v3785, %v3776
        %v3793 = vadd.s32 %v3788, %v3790
        %vm3794 = vc.u32 %v3788, %v3790
        %v3795 = vadd.s32 %v3791, 1
        %v3796 = vsel %vm3794, %v3795, %v3791
        %v3797 = vadd.s32 %v3792, %v3796
        %v3798 = vadd.s32 %v3797, 536870912
        %v3799 = vshrl.u32 %v3798, 30
        %v3800 = vshll.u32 %v3799, 30
        %v3801 = vsub.s32 %v3797, %v3800
        %vm3802 = vcmp.lt.s32.totalorder %v3801, 0
        %v3803 = vsub.s32 0, %v3801
        %v3804 = vsel %vm3802, %v3803, %v3801
        %v3805 = vclz %v3804
        %v3806 = vsub.s32 %v3805, 2
        %vm3807 = vcmp.gt.s32.totalorder 0, %v3806
        %v3808 = vsel %vm3807, 0, %v3806
        %v3809 = vsub.s32 32, %v3808
        %v3810 = vshll.u32 %v3801, %v3808
        %v3811 = vshrl.u32 %v3793, %v3809
        %v3812 = vor.u32 %v3810, %v3811
        %v3813 = vsub.s32 4294967266, %v3808
        %v3814 = vadd.s32 %v3813, 127
        %v3815 = vshll.u32 %v3814, 23
        %v3816 = vor.u32 4788187, %v3815
        %v3817 = vand.u32 2147483647, %v3816
        %v3819 = vcvt.s32.f32 %v3812
        %v3820 = vmul.f32 %v3819, %v3817
        %v3821 = vxor.u32 %v3820, 2147483648
        %v3822 = vsel %vm3739, %v3821, %v3820
        %v3823 = vsub.s32 4, %v3799
        %v3824 = vsel %vm3739, %v3823, %v3799
        %v3825 = vsel %vm3738, %v2423, %v3822
        %v3826 = vsel %vm3738, 0, %v3824
        %v3827 = vcosq.f32.pop %v3825
        %v3828 = vsinq.f32.pop %v3825
        %vm3829 = vweird.f32 %v2423
        %v3830 = vand.u32 %v3826, 3
        %vm3831 = vcmp.lt.s32.totalorder %v3830, 2
        %vm3832 = vcmp.eq.s32.totalorder %v3830, 0
        %v3833 = vxor.u32 %v3828, 2147483648
        %v3834 = vsel %vm3832, %v3827, %v3833
        %vm3835 = vcmp.eq.s32.totalorder %v3830, 2
        %v3836 = vxor.u32 %v3827, 2147483648
        %v3837 = vsel %vm3835, %v3836, %v3828
        %v3838 = vsel %vm3831, %v3834, %v3837
        %v3839 = vsel %vm3829, nan, %v3838
        %v3840 = vand.u32 2147483647, %v2424
        %vm3841 = vcmp.le.f32.partialorder %v3840, 0.7853982
        %vm3842 = vcmp.lt.s32.totalorder %v2424, 0
        %v3843 = vand.u32 %v2424, 2139095040
        %v3844 = vshrl.u32 %v3843, 23
        %v3845 = vsub.s32 %v3844, 127
        %v3846 = vand.u32 2147483647, %v2424
        %v3847 = vand.u32 %v3846, 8388607
        %v3848 = vor.u32 %v3847, 8388608
        %v3849 = vsub.s32 0, %v3848
        %v3850 = vadd.s32 %v3845, 1
        %vm3851 = vcmp.gt.s32.totalorder %v3850, 0
        %v3852 = vsel %vm3851, %v3850, 0
        %v3853 = vshrl.u32 %v3852, 5
        %v3854 = vand.u32 %v3852, 31
        %v3855 = vsub.s32 32, %v3854
        %v3856 = vshrl.u32 683565275, %v3855
        %v3857 = vshll.u32 683565275, %v3854
        %v3858 = vshrl.u32 2475754826, %v3855
        %v3859 = vor.u32 %v3857, %v3858
        %v3860 = vshll.u32 2475754826, %v3854
        %v3861 = vshrl.u32 2131351028, %v3855
        %v3862 = vor.u32 %v3860, %v3861
        %v3863 = vshll.u32 2131351028, %v3854
        %v3864 = vshrl.u32 2102212464, %v3855
        %v3865 = vor.u32 %v3863, %v3864
        %v3866 = vshll.u32 2102212464, %v3854
        %v3867 = vshrl.u32 920167782, %v3855
        %v3868 = vor.u32 %v3866, %v3867
        %v3869 = vshll.u32 920167782, %v3854
        %v3870 = vshrl.u32 1326507024, %v3855
        %v3871 = vor.u32 %v3869, %v3870
        %vm3872 = vcmp.lt.s32.totalorder %v3853, 1
        %vm3873 = vcmp.lt.s32.totalorder %v3853, 2
        %vm3874 = vcmp.lt.s32.totalorder %v3853, 3
        %vm3875 = vcmp.lt.s32.totalorder %v3853, 4
        %v3876 = vsel %vm3872, %v3856, %v3859
        %v3877 = vsel %vm3875, %v3865, 2102212464
        %v3878 = vsel %vm3874, %v3862, %v3877
        %v3879 = vsel %vm3873, %v3876, %v3878
        %v3880 = vsel %vm3872, %v3859, %v3862
        %v3881 = vsel %vm3875, %v3868, 920167782
        %v3882 = vsel %vm3874, %v3865, %v3881
        %v3883 = vsel %vm3873, %v3880, %v3882
        %v3884 = vsel %vm3872, %v3862, %v3865
        %v3885 = vsel %vm3875, %v3871, 1326507024
        %v3886 = vsel %vm3874, %v3868, %v3885
        %v3887 = vsel %vm3873, %v3884, %v3886
        %v3888 = vshll.u32 %v3848, 8
        %v3889 = vmul.u32.u64.compose %v3888, %v3887
        %v3890 = vextract.low.u32 %v3889
        %v3891 = vextract.high.u32 %v3889
        %v3892 = vmul.u32.u64.compose %v3888, %v3883
        %v3893 = vextract.low.u32 %v3892
        %v3894 = vextract.high.u32 %v3892
        %v3895 = vmul.u32 %v3888, %v3879
        %v3896 = vadd.s32 %v3891, %v3893
        %vm3897 = vc.u32 %v3891, %v3893
        %v3898 = vadd.s32 %v3894, 1
        %v3899 = vsel %vm3897, %v3898, %v3894
        %v3900 = vadd.s32 %v3895, %v3899
        %v3901 = vadd.s32 %v3900, 536870912
        %v3902 = vshrl.u32 %v3901, 30
        %v3903 = vshll.u32 %v3902, 30
        %v3904 = vsub.s32 %v3900, %v3903
        %vm3905 = vcmp.lt.s32.totalorder %v3904, 0
        %v3906 = vsub.s32 0, %v3904
        %v3907 = vsel %vm3905, %v3906, %v3904
        %v3908 = vclz %v3907
        %v3909 = vsub.s32 %v3908, 2
        %vm3910 = vcmp.gt.s32.totalorder 0, %v3909
        %v3911 = vsel %vm3910, 0, %v3909
        %v3912 = vsub.s32 32, %v3911
        %v3913 = vshll.u32 %v3904, %v3911
        %v3914 = vshrl.u32 %v3896, %v3912
        %v3915 = vor.u32 %v3913, %v3914
        %v3916 = vsub.s32 4294967266, %v3911
        %v3917 = vadd.s32 %v3916, 127
        %v3918 = vshll.u32 %v3917, 23
        %v3919 = vor.u32 4788187, %v3918
        %v3920 = vand.u32 2147483647, %v3919
        %v3922 = vcvt.s32.f32 %v3915
        %v3923 = vmul.f32 %v3922, %v3920
        %v3924 = vxor.u32 %v3923, 2147483648
        %v3925 = vsel %vm3842, %v3924, %v3923
        %v3926 = vsub.s32 4, %v3902
        %v3927 = vsel %vm3842, %v3926, %v3902
        %v3928 = vsel %vm3841, %v2424, %v3925
        %v3929 = vsel %vm3841, 0, %v3927
        %v3930 = vcosq.f32.pop %v3928
        %v3931 = vsinq.f32.pop %v3928
        %vm3932 = vweird.f32 %v2424
        %v3933 = vand.u32 %v3929, 3
        %vm3934 = vcmp.lt.s32.totalorder %v3933, 2
        %vm3935 = vcmp.eq.s32.totalorder %v3933, 0
        %v3936 = vxor.u32 %v3931, 2147483648
        %v3937 = vsel %vm3935, %v3930, %v3936
        %vm3938 = vcmp.eq.s32.totalorder %v3933, 2
        %v3939 = vxor.u32 %v3930, 2147483648
        %v3940 = vsel %vm3938, %v3939, %v3931
        %v3941 = vsel %vm3934, %v3937, %v3940
        %v3942 = vsel %vm3932, nan, %v3941
        %v3943 = vand.u32 2147483647, %v2425
        %vm3944 = vcmp.le.f32.partialorder %v3943, 0.7853982
        %vm3945 = vcmp.lt.s32.totalorder %v2425, 0
        %v3946 = vand.u32 %v2425, 2139095040
        %v3947 = vshrl.u32 %v3946, 23
        %v3948 = vsub.s32 %v3947, 127
        %v3949 = vand.u32 2147483647, %v2425
        %v3950 = vand.u32 %v3949, 8388607
        %v3951 = vor.u32 %v3950, 8388608
        %v3952 = vsub.s32 0, %v3951
        %v3953 = vadd.s32 %v3948, 1
        %vm3954 = vcmp.gt.s32.totalorder %v3953, 0
        %v3955 = vsel %vm3954, %v3953, 0
        %v3956 = vshrl.u32 %v3955, 5
        %v3957 = vand.u32 %v3955, 31
        %v3958 = vsub.s32 32, %v3957
        %v3959 = vshrl.u32 683565275, %v3958
        %v3960 = vshll.u32 683565275, %v3957
        %v3961 = vshrl.u32 2475754826, %v3958
        %v3962 = vor.u32 %v3960, %v3961
        %v3963 = vshll.u32 2475754826, %v3957
        %v3964 = vshrl.u32 2131351028, %v3958
        %v3965 = vor.u32 %v3963, %v3964
        %v3966 = vshll.u32 2131351028, %v3957
        %v3967 = vshrl.u32 2102212464, %v3958
        %v3968 = vor.u32 %v3966, %v3967
        %v3969 = vshll.u32 2102212464, %v3957
        %v3970 = vshrl.u32 920167782, %v3958
        %v3971 = vor.u32 %v3969, %v3970
        %v3972 = vshll.u32 920167782, %v3957
        %v3973 = vshrl.u32 1326507024, %v3958
        %v3974 = vor.u32 %v3972, %v3973
        %vm3975 = vcmp.lt.s32.totalorder %v3956, 1
        %vm3976 = vcmp.lt.s32.totalorder %v3956, 2
        %vm3977 = vcmp.lt.s32.totalorder %v3956, 3
        %vm3978 = vcmp.lt.s32.totalorder %v3956, 4
        %v3979 = vsel %vm3975, %v3959, %v3962
        %v3980 = vsel %vm3978, %v3968, 2102212464
        %v3981 = vsel %vm3977, %v3965, %v3980
        %v3982 = vsel %vm3976, %v3979, %v3981
        %v3983 = vsel %vm3975, %v3962, %v3965
        %v3984 = vsel %vm3978, %v3971, 920167782
        %v3985 = vsel %vm3977, %v3968, %v3984
        %v3986 = vsel %vm3976, %v3983, %v3985
        %v3987 = vsel %vm3975, %v3965, %v3968
        %v3988 = vsel %vm3978, %v3974, 1326507024
        %v3989 = vsel %vm3977, %v3971, %v3988
        %v3990 = vsel %vm3976, %v3987, %v3989
        %v3991 = vshll.u32 %v3951, 8
        %v3992 = vmul.u32.u64.compose %v3991, %v3990
        %v3993 = vextract.low.u32 %v3992
        %v3994 = vextract.high.u32 %v3992
        %v3995 = vmul.u32.u64.compose %v3991, %v3986
        %v3996 = vextract.low.u32 %v3995
        %v3997 = vextract.high.u32 %v3995
        %v3998 = vmul.u32 %v3991, %v3982
        %v3999 = vadd.s32 %v3994, %v3996
        %vm4000 = vc.u32 %v3994, %v3996
        %v4001 = vadd.s32 %v3997, 1
        %v4002 = vsel %vm4000, %v4001, %v3997
        %v4003 = vadd.s32 %v3998, %v4002
        %v4004 = vadd.s32 %v4003, 536870912
        %v4005 = vshrl.u32 %v4004, 30
        %v4006 = vshll.u32 %v4005, 30
        %v4007 = vsub.s32 %v4003, %v4006
        %vm4008 = vcmp.lt.s32.totalorder %v4007, 0
        %v4009 = vsub.s32 0, %v4007
        %v4010 = vsel %vm4008, %v4009, %v4007
        %v4011 = vclz %v4010
        %v4012 = vsub.s32 %v4011, 2
        %vm4013 = vcmp.gt.s32.totalorder 0, %v4012
        %v4014 = vsel %vm4013, 0, %v4012
        %v4015 = vsub.s32 32, %v4014
        %v4016 = vshll.u32 %v4007, %v4014
        %v4017 = vshrl.u32 %v3999, %v4015
        %v4018 = vor.u32 %v4016, %v4017
        %v4019 = vsub.s32 4294967266, %v4014
        %v4020 = vadd.s32 %v4019, 127
        %v4021 = vshll.u32 %v4020, 23
        %v4022 = vor.u32 4788187, %v4021
        %v4023 = vand.u32 2147483647, %v4022
        %v4025 = vcvt.s32.f32 %v4018
        %v4026 = vmul.f32 %v4025, %v4023
        %v4027 = vxor.u32 %v4026, 2147483648
        %v4028 = vsel %vm3945, %v4027, %v4026
        %v4029 = vsub.s32 4, %v4005
        %v4030 = vsel %vm3945, %v4029, %v4005
        %v4031 = vsel %vm3944, %v2425, %v4028
        %v4032 = vsel %vm3944, 0, %v4030
        %v4033 = vcosq.f32.pop %v4031
        %v4034 = vsinq.f32.pop %v4031
        %vm4035 = vweird.f32 %v2425
        %v4036 = vand.u32 %v4032, 3
        %vm4037 = vcmp.lt.s32.totalorder %v4036, 2
        %vm4038 = vcmp.eq.s32.totalorder %v4036, 0
        %v4039 = vxor.u32 %v4034, 2147483648
        %v4040 = vsel %vm4038, %v4033, %v4039
        %vm4041 = vcmp.eq.s32.totalorder %v4036, 2
        %v4042 = vxor.u32 %v4033, 2147483648
        %v4043 = vsel %vm4041, %v4042, %v4034
        %v4044 = vsel %vm4037, %v4040, %v4043
        %v4045 = vsel %vm4035, nan, %v4044
        %v4046 = vand.u32 2147483647, %v2426
        %vm4047 = vcmp.le.f32.partialorder %v4046, 0.7853982
        %vm4048 = vcmp.lt.s32.totalorder %v2426, 0
        %v4049 = vand.u32 %v2426, 2139095040
        %v4050 = vshrl.u32 %v4049, 23
        %v4051 = vsub.s32 %v4050, 127
        %v4052 = vand.u32 2147483647, %v2426
        %v4053 = vand.u32 %v4052, 8388607
        %v4054 = vor.u32 %v4053, 8388608
        %v4055 = vsub.s32 0, %v4054
        %v4056 = vadd.s32 %v4051, 1
        %vm4057 = vcmp.gt.s32.totalorder %v4056, 0
        %v4058 = vsel %vm4057, %v4056, 0
        %v4059 = vshrl.u32 %v4058, 5
        %v4060 = vand.u32 %v4058, 31
        %v4061 = vsub.s32 32, %v4060
        %v4062 = vshrl.u32 683565275, %v4061
        %v4063 = vshll.u32 683565275, %v4060
        %v4064 = vshrl.u32 2475754826, %v4061
        %v4065 = vor.u32 %v4063, %v4064
        %v4066 = vshll.u32 2475754826, %v4060
        %v4067 = vshrl.u32 2131351028, %v4061
        %v4068 = vor.u32 %v4066, %v4067
        %v4069 = vshll.u32 2131351028, %v4060
        %v4070 = vshrl.u32 2102212464, %v4061
        %v4071 = vor.u32 %v4069, %v4070
        %v4072 = vshll.u32 2102212464, %v4060
        %v4073 = vshrl.u32 920167782, %v4061
        %v4074 = vor.u32 %v4072, %v4073
        %v4075 = vshll.u32 920167782, %v4060
        %v4076 = vshrl.u32 1326507024, %v4061
        %v4077 = vor.u32 %v4075, %v4076
        %vm4078 = vcmp.lt.s32.totalorder %v4059, 1
        %vm4079 = vcmp.lt.s32.totalorder %v4059, 2
        %vm4080 = vcmp.lt.s32.totalorder %v4059, 3
        %vm4081 = vcmp.lt.s32.totalorder %v4059, 4
        %v4082 = vsel %vm4078, %v4062, %v4065
        %v4083 = vsel %vm4081, %v4071, 2102212464
        %v4084 = vsel %vm4080, %v4068, %v4083
        %v4085 = vsel %vm4079, %v4082, %v4084
        %v4086 = vsel %vm4078, %v4065, %v4068
        %v4087 = vsel %vm4081, %v4074, 920167782
        %v4088 = vsel %vm4080, %v4071, %v4087
        %v4089 = vsel %vm4079, %v4086, %v4088
        %v4090 = vsel %vm4078, %v4068, %v4071
        %v4091 = vsel %vm4081, %v4077, 1326507024
        %v4092 = vsel %vm4080, %v4074, %v4091
        %v4093 = vsel %vm4079, %v4090, %v4092
        %v4094 = vshll.u32 %v4054, 8
        %v4095 = vmul.u32.u64.compose %v4094, %v4093
        %v4096 = vextract.low.u32 %v4095
        %v4097 = vextract.high.u32 %v4095
        %v4098 = vmul.u32.u64.compose %v4094, %v4089
        %v4099 = vextract.low.u32 %v4098
        %v4100 = vextract.high.u32 %v4098
        %v4101 = vmul.u32 %v4094, %v4085
        %v4102 = vadd.s32 %v4097, %v4099
        %vm4103 = vc.u32 %v4097, %v4099
        %v4104 = vadd.s32 %v4100, 1
        %v4105 = vsel %vm4103, %v4104, %v4100
        %v4106 = vadd.s32 %v4101, %v4105
        %v4107 = vadd.s32 %v4106, 536870912
        %v4108 = vshrl.u32 %v4107, 30
        %v4109 = vshll.u32 %v4108, 30
        %v4110 = vsub.s32 %v4106, %v4109
        %vm4111 = vcmp.lt.s32.totalorder %v4110, 0
        %v4112 = vsub.s32 0, %v4110
        %v4113 = vsel %vm4111, %v4112, %v4110
        %v4114 = vclz %v4113
        %v4115 = vsub.s32 %v4114, 2
        %vm4116 = vcmp.gt.s32.totalorder 0, %v4115
        %v4117 = vsel %vm4116, 0, %v4115
        %v4118 = vsub.s32 32, %v4117
        %v4119 = vshll.u32 %v4110, %v4117
        %v4120 = vshrl.u32 %v4102, %v4118
        %v4121 = vor.u32 %v4119, %v4120
        %v4122 = vsub.s32 4294967266, %v4117
        %v4123 = vadd.s32 %v4122, 127
        %v4124 = vshll.u32 %v4123, 23
        %v4125 = vor.u32 4788187, %v4124
        %v4126 = vand.u32 2147483647, %v4125
        %v4128 = vcvt.s32.f32 %v4121
        %v4129 = vmul.f32 %v4128, %v4126
        %v4130 = vxor.u32 %v4129, 2147483648
        %v4131 = vsel %vm4048, %v4130, %v4129
        %v4132 = vsub.s32 4, %v4108
        %v4133 = vsel %vm4048, %v4132, %v4108
        %v4134 = vsel %vm4047, %v2426, %v4131
        %v4135 = vsel %vm4047, 0, %v4133
        %v4136 = vcosq.f32.pop %v4134
        %v4137 = vsinq.f32.pop %v4134
        %vm4138 = vweird.f32 %v2426
        %v4139 = vand.u32 %v4135, 3
        %vm4140 = vcmp.lt.s32.totalorder %v4139, 2
        %vm4141 = vcmp.eq.s32.totalorder %v4139, 0
        %v4142 = vxor.u32 %v4137, 2147483648
        %v4143 = vsel %vm4141, %v4136, %v4142
        %vm4144 = vcmp.eq.s32.totalorder %v4139, 2
        %v4145 = vxor.u32 %v4136, 2147483648
        %v4146 = vsel %vm4144, %v4145, %v4137
        %v4147 = vsel %vm4140, %v4143, %v4146
        %v4148 = vsel %vm4138, nan, %v4147
        %v4149 = vand.u32 2147483647, %v2427
        %vm4150 = vcmp.le.f32.partialorder %v4149, 0.7853982
        %vm4151 = vcmp.lt.s32.totalorder %v2427, 0
        %v4152 = vand.u32 %v2427, 2139095040
        %v4153 = vshrl.u32 %v4152, 23
        %v4154 = vsub.s32 %v4153, 127
        %v4155 = vand.u32 2147483647, %v2427
        %v4156 = vand.u32 %v4155, 8388607
        %v4157 = vor.u32 %v4156, 8388608
        %v4158 = vsub.s32 0, %v4157
        %v4159 = vadd.s32 %v4154, 1
        %vm4160 = vcmp.gt.s32.totalorder %v4159, 0
        %v4161 = vsel %vm4160, %v4159, 0
        %v4162 = vshrl.u32 %v4161, 5
        %v4163 = vand.u32 %v4161, 31
        %v4164 = vsub.s32 32, %v4163
        %v4165 = vshrl.u32 683565275, %v4164
        %v4166 = vshll.u32 683565275, %v4163
        %v4167 = vshrl.u32 2475754826, %v4164
        %v4168 = vor.u32 %v4166, %v4167
        %v4169 = vshll.u32 2475754826, %v4163
        %v4170 = vshrl.u32 2131351028, %v4164
        %v4171 = vor.u32 %v4169, %v4170
        %v4172 = vshll.u32 2131351028, %v4163
        %v4173 = vshrl.u32 2102212464, %v4164
        %v4174 = vor.u32 %v4172, %v4173
        %v4175 = vshll.u32 2102212464, %v4163
        %v4176 = vshrl.u32 920167782, %v4164
        %v4177 = vor.u32 %v4175, %v4176
        %v4178 = vshll.u32 920167782, %v4163
        %v4179 = vshrl.u32 1326507024, %v4164
        %v4180 = vor.u32 %v4178, %v4179
        %vm4181 = vcmp.lt.s32.totalorder %v4162, 1
        %vm4182 = vcmp.lt.s32.totalorder %v4162, 2
        %vm4183 = vcmp.lt.s32.totalorder %v4162, 3
        %vm4184 = vcmp.lt.s32.totalorder %v4162, 4
        %v4185 = vsel %vm4181, %v4165, %v4168
        %v4186 = vsel %vm4184, %v4174, 2102212464
        %v4187 = vsel %vm4183, %v4171, %v4186
        %v4188 = vsel %vm4182, %v4185, %v4187
        %v4189 = vsel %vm4181, %v4168, %v4171
        %v4190 = vsel %vm4184, %v4177, 920167782
        %v4191 = vsel %vm4183, %v4174, %v4190
        %v4192 = vsel %vm4182, %v4189, %v4191
        %v4193 = vsel %vm4181, %v4171, %v4174
        %v4194 = vsel %vm4184, %v4180, 1326507024
        %v4195 = vsel %vm4183, %v4177, %v4194
        %v4196 = vsel %vm4182, %v4193, %v4195
        %v4197 = vshll.u32 %v4157, 8
        %v4198 = vmul.u32.u64.compose %v4197, %v4196
        %v4199 = vextract.low.u32 %v4198
        %v4200 = vextract.high.u32 %v4198
        %v4201 = vmul.u32.u64.compose %v4197, %v4192
        %v4202 = vextract.low.u32 %v4201
        %v4203 = vextract.high.u32 %v4201
        %v4204 = vmul.u32 %v4197, %v4188
        %v4205 = vadd.s32 %v4200, %v4202
        %vm4206 = vc.u32 %v4200, %v4202
        %v4207 = vadd.s32 %v4203, 1
        %v4208 = vsel %vm4206, %v4207, %v4203
        %v4209 = vadd.s32 %v4204, %v4208
        %v4210 = vadd.s32 %v4209, 536870912
        %v4211 = vshrl.u32 %v4210, 30
        %v4212 = vshll.u32 %v4211, 30
        %v4213 = vsub.s32 %v4209, %v4212
        %vm4214 = vcmp.lt.s32.totalorder %v4213, 0
        %v4215 = vsub.s32 0, %v4213
        %v4216 = vsel %vm4214, %v4215, %v4213
        %v4217 = vclz %v4216
        %v4218 = vsub.s32 %v4217, 2
        %vm4219 = vcmp.gt.s32.totalorder 0, %v4218
        %v4220 = vsel %vm4219, 0, %v4218
        %v4221 = vsub.s32 32, %v4220
        %v4222 = vshll.u32 %v4213, %v4220
        %v4223 = vshrl.u32 %v4205, %v4221
        %v4224 = vor.u32 %v4222, %v4223
        %v4225 = vsub.s32 4294967266, %v4220
        %v4226 = vadd.s32 %v4225, 127
        %v4227 = vshll.u32 %v4226, 23
        %v4228 = vor.u32 4788187, %v4227
        %v4229 = vand.u32 2147483647, %v4228
        %v4231 = vcvt.s32.f32 %v4224
        %v4232 = vmul.f32 %v4231, %v4229
        %v4233 = vxor.u32 %v4232, 2147483648
        %v4234 = vsel %vm4151, %v4233, %v4232
        %v4235 = vsub.s32 4, %v4211
        %v4236 = vsel %vm4151, %v4235, %v4211
        %v4237 = vsel %vm4150, %v2427, %v4234
        %v4238 = vsel %vm4150, 0, %v4236
        %v4239 = vcosq.f32.pop %v4237
        %v4240 = vsinq.f32.pop %v4237
        %vm4241 = vweird.f32 %v2427
        %v4242 = vand.u32 %v4238, 3
        %vm4243 = vcmp.lt.s32.totalorder %v4242, 2
        %vm4244 = vcmp.eq.s32.totalorder %v4242, 0
        %v4245 = vxor.u32 %v4240, 2147483648
        %v4246 = vsel %vm4244, %v4239, %v4245
        %vm4247 = vcmp.eq.s32.totalorder %v4242, 2
        %v4248 = vxor.u32 %v4239, 2147483648
        %v4249 = vsel %vm4247, %v4248, %v4240
        %v4250 = vsel %vm4243, %v4246, %v4249
        %v4251 = vsel %vm4241, nan, %v4250
        %v4252 = vmul.f32 %v2699, %v2565
        %v4253 = vmul.f32 %v2803, %v2567
        %v4254 = vmul.f32 %v2907, %v2569
        %v4255 = vmul.f32 %v3011, %v2571
        %v4256 = vmul.f32 %v3115, %v2573
        %v4257 = vmul.f32 %v3219, %v2575
        %v4258 = vmul.f32 %v3323, %v2577
        %v4259 = vmul.f32 %v3427, %v2579
        %4260 = vst [vmem:[%s174 + $0xe0] sm:$0xff] %v4252
        %4261 = vst [vmem:[%s174 + $0xe8] sm:$0xff] %v4253
        %4262 = vst [vmem:[%s174 + $0xf0] sm:$0xff] %v4254
        %4263 = vst [vmem:[%s174 + $0xf8] sm:$0xff] %v4255
        %4264 = vst [vmem:[%s174 + $0x140] sm:$0xff] %v4256
        %4265 = vst [vmem:[%s174 + $0x148] sm:$0xff] %v4257
        %4266 = vst [vmem:[%s174 + $0x150] sm:$0xff] %v4258
        %4267 = vst [vmem:[%s174 + $0x158] sm:$0xff] %v4259
        %v4268 = vmul.f32 %v3530, %v2565
        %v4269 = vmul.f32 %v3633, %v2567
        %v4270 = vmul.f32 %v3736, %v2569
        %v4271 = vmul.f32 %v3839, %v2571
        %v4272 = vmul.f32 %v3942, %v2573
        %v4273 = vmul.f32 %v4045, %v2575
        %v4274 = vmul.f32 %v4148, %v2577
        %v4275 = vmul.f32 %v4251, %v2579
        %4276 = vst [vmem:[%s174 + $0x1a0] sm:$0xff] %v4268
        %4277 = vst [vmem:[%s174 + $0x1a8] sm:$0xff] %v4269
        %4278 = vst [vmem:[%s174 + $0x1b0] sm:$0xff] %v4270
        %4279 = vst [vmem:[%s174 + $0x1b8] sm:$0xff] %v4271
        %4280 = vst [vmem:[%s174 + $0x200] sm:$0xff] %v4272
        %4281 = vst [vmem:[%s174 + $0x208] sm:$0xff] %v4273
        %4282 = vst [vmem:[%s174 + $0x210] sm:$0xff] %v4274
        %4283 = vst [vmem:[%s174 + $0x218] sm:$0xff] %v4275
        %v4284 = vmul.f32 %v2699, 2.0
        %v4285 = vmul.f32 %v2803, 2.0
        %v4286 = vmul.f32 %v2907, 2.0
        %v4287 = vmul.f32 %v3011, 2.0
        %v4288 = vmul.f32 %v3115, 2.0
        %v4289 = vmul.f32 %v3219, 2.0
        %v4290 = vmul.f32 %v3323, 2.0
        %v4291 = vmul.f32 %v3427, 2.0
        %v4292 = vmul.f32 %v4284, %v3530
        %v4293 = vmul.f32 %v4285, %v3633
        %v4294 = vmul.f32 %v4286, %v3736
        %v4295 = vmul.f32 %v4287, %v3839
        %v4296 = vmul.f32 %v4288, %v3942
        %v4297 = vmul.f32 %v4289, %v4045
        %v4298 = vmul.f32 %v4290, %v4148
        %v4299 = vmul.f32 %v4291, %v4251
        %v4300 = vmul.f32 %v4284, %v2699
        %v4301 = vmul.f32 %v4285, %v2803
        %v4302 = vmul.f32 %v4286, %v2907
        %v4303 = vmul.f32 %v4287, %v3011
        %v4304 = vmul.f32 %v4288, %v3115
        %v4305 = vmul.f32 %v4289, %v3219
        %v4306 = vmul.f32 %v4290, %v3323
        %v4307 = vmul.f32 %v4291, %v3427
        %v4308 = vsub.f32 1.0, %v4300
        %v4309 = vsub.f32 1.0, %v4301
        %v4310 = vsub.f32 1.0, %v4302
        %v4311 = vsub.f32 1.0, %v4303
        %v4312 = vsub.f32 1.0, %v4304
        %v4313 = vsub.f32 1.0, %v4305
        %v4314 = vsub.f32 1.0, %v4306
        %v4315 = vsub.f32 1.0, %v4307
        %v4316 = vmul.f32 %v4292, %v2565
        %v4317 = vmul.f32 %v4293, %v2567
        %v4318 = vmul.f32 %v4294, %v2569
        %v4319 = vmul.f32 %v4295, %v2571
        %v4320 = vmul.f32 %v4296, %v2573
        %v4321 = vmul.f32 %v4297, %v2575
        %v4322 = vmul.f32 %v4298, %v2577
        %v4323 = vmul.f32 %v4299, %v2579
        %4324 = vst [vmem:[%s174 + $0x260] sm:$0xff] %v4316
        %4325 = vst [vmem:[%s174 + $0x268] sm:$0xff] %v4317
        %4326 = vst [vmem:[%s174 + $0x270] sm:$0xff] %v4318
        %4327 = vst [vmem:[%s174 + $0x278] sm:$0xff] %v4319
        %4328 = vst [vmem:[%s174 + $0x2c0] sm:$0xff] %v4320
        %4329 = vst [vmem:[%s174 + $0x2c8] sm:$0xff] %v4321
        %4330 = vst [vmem:[%s174 + $0x2d0] sm:$0xff] %v4322
        %4331 = vst [vmem:[%s174 + $0x2d8] sm:$0xff] %v4323
        %v4332 = vmul.f32 %v4308, %v2565
        %v4333 = vmul.f32 %v4309, %v2567
        %v4334 = vmul.f32 %v4310, %v2569
        %v4335 = vmul.f32 %v4311, %v2571
        %v4336 = vmul.f32 %v4312, %v2573
        %v4337 = vmul.f32 %v4313, %v2575
        %v4338 = vmul.f32 %v4314, %v2577
        %v4339 = vmul.f32 %v4315, %v2579
        %4340 = vst [vmem:[%s174 + $0x320] sm:$0xff] %v4332
        %4341 = vst [vmem:[%s174 + $0x328] sm:$0xff] %v4333
        %4342 = vst [vmem:[%s174 + $0x330] sm:$0xff] %v4334
        %4343 = vst [vmem:[%s174 + $0x338] sm:$0xff] %v4335
        %4344 = vst [vmem:[%s174 + $0x380] sm:$0xff] %v4336
        %4345 = vst [vmem:[%s174 + $0x388] sm:$0xff] %v4337
        %4346 = vst [vmem:[%s174 + $0x390] sm:$0xff] %v4338
        %4347 = vst [vmem:[%s174 + $0x398] sm:$0xff] %v4339
        %s4348 = scalar_lea.vmem %s150, 32 [#allocation2]
        %v4349 = vld [vmem:[%s4348] ss:$4 sm:$0xf]
        %s4350 = scalar_lea.vmem %s150, 33 [#allocation2]
        %v4351 = vld [vmem:[%s4350] ss:$4 sm:$0xf]
        %s4352 = scalar_lea.vmem %s150, 34 [#allocation2]
        %v4353 = vld [vmem:[%s4352] ss:$4 sm:$0xf]
        %s4354 = scalar_lea.vmem %s150, 35 [#allocation2]
        %v4355 = vld [vmem:[%s4354] ss:$4 sm:$0xf]
        %v4357 = vlaneseq
        %v4358 = vshrl.u32 %v4357, 7
        %v4359 = vsub.s32 0, %v4358
        %v4360 = vrot.slane %v4349, %v4359
        %v4361 = vlaneseq
        %v4362 = vshrl.u32 %v4361, 7
        %v4363 = vsub.s32 1, %v4362
        %v4364 = vrot.slane %v4349, %v4363
        %v4365 = vlaneseq
        %v4366 = vshrl.u32 %v4365, 7
        %v4367 = vsub.s32 2, %v4366
        %v4368 = vrot.slane %v4349, %v4367
        %v4369 = vlaneseq
        %v4370 = vshrl.u32 %v4369, 7
        %v4371 = vsub.s32 3, %v4370
        %v4372 = vrot.slane %v4349, %v4371
        %v4377 = vsub.f32 %v4360, %v210
        %v4378 = vsub.f32 %v4364, %v210
        %v4379 = vsub.f32 %v4368, %v210
        %v4380 = vsub.f32 %v4372, %v210
        %v4381 = vsub.f32 %v4360, %v215
        %v4382 = vsub.f32 %v4364, %v215
        %v4383 = vsub.f32 %v4368, %v215
        %v4384 = vsub.f32 %v4372, %v215
        %v4386 = vlaneseq
        %v4387 = vshrl.u32 %v4386, 7
        %v4388 = vsub.s32 0, %v4387
        %v4389 = vrot.slane %v4351, %v4388
        %v4390 = vlaneseq
        %v4391 = vshrl.u32 %v4390, 7
        %v4392 = vsub.s32 1, %v4391
        %v4393 = vrot.slane %v4351, %v4392
        %v4394 = vlaneseq
        %v4395 = vshrl.u32 %v4394, 7
        %v4396 = vsub.s32 2, %v4395
        %v4397 = vrot.slane %v4351, %v4396
        %v4398 = vlaneseq
        %v4399 = vshrl.u32 %v4398, 7
        %v4400 = vsub.s32 3, %v4399
        %v4401 = vrot.slane %v4351, %v4400
        %v4406 = vsub.f32 %v4389, %v248
        %v4407 = vsub.f32 %v4393, %v248
        %v4408 = vsub.f32 %v4397, %v248
        %v4409 = vsub.f32 %v4401, %v248
        %v4410 = vsub.f32 %v4389, %v252
        %v4411 = vsub.f32 %v4393, %v252
        %v4412 = vsub.f32 %v4397, %v252
        %v4413 = vsub.f32 %v4401, %v252
        %v4415 = vlaneseq
        %v4416 = vshrl.u32 %v4415, 7
        %v4417 = vsub.s32 0, %v4416
        %v4418 = vrot.slane %v4353, %v4417
        %v4419 = vlaneseq
        %v4420 = vshrl.u32 %v4419, 7
        %v4421 = vsub.s32 1, %v4420
        %v4422 = vrot.slane %v4353, %v4421
        %v4423 = vlaneseq
        %v4424 = vshrl.u32 %v4423, 7
        %v4425 = vsub.s32 2, %v4424
        %v4426 = vrot.slane %v4353, %v4425
        %v4427 = vlaneseq
        %v4428 = vshrl.u32 %v4427, 7
        %v4429 = vsub.s32 3, %v4428
        %v4430 = vrot.slane %v4353, %v4429
        %v4435 = vsub.f32 %v4418, %v285
        %v4436 = vsub.f32 %v4422, %v285
        %v4437 = vsub.f32 %v4426, %v285
        %v4438 = vsub.f32 %v4430, %v285
        %v4439 = vsub.f32 %v4418, %v289
        %v4440 = vsub.f32 %v4422, %v289
        %v4441 = vsub.f32 %v4426, %v289
        %v4442 = vsub.f32 %v4430, %v289
        %v4444 = vlaneseq
        %v4445 = vshrl.u32 %v4444, 7
        %v4446 = vsub.s32 0, %v4445
        %v4447 = vrot.slane %v4355, %v4446
        %v4448 = vlaneseq
        %v4449 = vshrl.u32 %v4448, 7
        %v4450 = vsub.s32 1, %v4449
        %v4451 = vrot.slane %v4355, %v4450
        %v4452 = vlaneseq
        %v4453 = vshrl.u32 %v4452, 7
        %v4454 = vsub.s32 2, %v4453
        %v4455 = vrot.slane %v4355, %v4454
        %v4456 = vlaneseq
        %v4457 = vshrl.u32 %v4456, 7
        %v4458 = vsub.s32 3, %v4457
        %v4459 = vrot.slane %v4355, %v4458
        %v4464 = vsub.f32 %v4447, %v322
        %v4465 = vsub.f32 %v4451, %v322
        %v4466 = vsub.f32 %v4455, %v322
        %v4467 = vsub.f32 %v4459, %v322
        %v4468 = vsub.f32 %v4447, %v326
        %v4469 = vsub.f32 %v4451, %v326
        %v4470 = vsub.f32 %v4455, %v326
        %v4471 = vsub.f32 %v4459, %v326
        %v4472 = vmul.f32 %v4377, %v4377
        %v4473 = vmul.f32 %v4378, %v4378
        %v4474 = vmul.f32 %v4379, %v4379
        %v4475 = vmul.f32 %v4380, %v4380
        %v4476 = vmul.f32 %v4381, %v4381
        %v4477 = vmul.f32 %v4382, %v4382
        %v4478 = vmul.f32 %v4383, %v4383
        %v4479 = vmul.f32 %v4384, %v4384
        %v4480 = vmul.f32 %v346, %v4472
        %v4481 = vmul.f32 %v346, %v4473
        %v4482 = vmul.f32 %v346, %v4474
        %v4483 = vmul.f32 %v346, %v4475
        %v4484 = vmul.f32 %v350, %v4476
        %v4485 = vmul.f32 %v350, %v4477
        %v4486 = vmul.f32 %v350, %v4478
        %v4487 = vmul.f32 %v350, %v4479
        %v4488 = vmul.f32 %v4406, %v4406
        %v4489 = vmul.f32 %v4407, %v4407
        %v4490 = vmul.f32 %v4408, %v4408
        %v4491 = vmul.f32 %v4409, %v4409
        %v4492 = vmul.f32 %v4410, %v4410
        %v4493 = vmul.f32 %v4411, %v4411
        %v4494 = vmul.f32 %v4412, %v4412
        %v4495 = vmul.f32 %v4413, %v4413
        %v4496 = vmul.f32 %v370, %v4488
        %v4497 = vmul.f32 %v370, %v4489
        %v4498 = vmul.f32 %v370, %v4490
        %v4499 = vmul.f32 %v370, %v4491
        %v4500 = vmul.f32 %v374, %v4492
        %v4501 = vmul.f32 %v374, %v4493
        %v4502 = vmul.f32 %v374, %v4494
        %v4503 = vmul.f32 %v374, %v4495
        %v4504 = vadd.f32 %v4480, %v4496
        %v4505 = vadd.f32 %v4481, %v4497
        %v4506 = vadd.f32 %v4482, %v4498
        %v4507 = vadd.f32 %v4483, %v4499
        %v4508 = vadd.f32 %v4484, %v4500
        %v4509 = vadd.f32 %v4485, %v4501
        %v4510 = vadd.f32 %v4486, %v4502
        %v4511 = vadd.f32 %v4487, %v4503
        %v4512 = vmul.f32 %v4435, %v4435
        %v4513 = vmul.f32 %v4436, %v4436
        %v4514 = vmul.f32 %v4437, %v4437
        %v4515 = vmul.f32 %v4438, %v4438
        %v4516 = vmul.f32 %v4439, %v4439
        %v4517 = vmul.f32 %v4440, %v4440
        %v4518 = vmul.f32 %v4441, %v4441
        %v4519 = vmul.f32 %v4442, %v4442
        %v4520 = vmul.f32 %v402, %v4512
        %v4521 = vmul.f32 %v402, %v4513
        %v4522 = vmul.f32 %v402, %v4514
        %v4523 = vmul.f32 %v402, %v4515
        %v4524 = vmul.f32 %v406, %v4516
        %v4525 = vmul.f32 %v406, %v4517
        %v4526 = vmul.f32 %v406, %v4518
        %v4527 = vmul.f32 %v406, %v4519
        %v4528 = vadd.f32 %v4504, %v4520
        %v4529 = vadd.f32 %v4505, %v4521
        %v4530 = vadd.f32 %v4506, %v4522
        %v4531 = vadd.f32 %v4507, %v4523
        %v4532 = vadd.f32 %v4508, %v4524
        %v4533 = vadd.f32 %v4509, %v4525
        %v4534 = vadd.f32 %v4510, %v4526
        %v4535 = vadd.f32 %v4511, %v4527
        %v4536 = vmul.f32 %v4377, %v4406
        %v4537 = vmul.f32 %v4378, %v4407
        %v4538 = vmul.f32 %v4379, %v4408
        %v4539 = vmul.f32 %v4380, %v4409
        %v4540 = vmul.f32 %v4381, %v4410
        %v4541 = vmul.f32 %v4382, %v4411
        %v4542 = vmul.f32 %v4383, %v4412
        %v4543 = vmul.f32 %v4384, %v4413
        %v4544 = vmul.f32 %v434, %v4536
        %v4545 = vmul.f32 %v434, %v4537
        %v4546 = vmul.f32 %v434, %v4538
        %v4547 = vmul.f32 %v434, %v4539
        %v4548 = vmul.f32 %v438, %v4540
        %v4549 = vmul.f32 %v438, %v4541
        %v4550 = vmul.f32 %v438, %v4542
        %v4551 = vmul.f32 %v438, %v4543
        %v4552 = vadd.f32 %v4528, %v4544
        %v4553 = vadd.f32 %v4529, %v4545
        %v4554 = vadd.f32 %v4530, %v4546
        %v4555 = vadd.f32 %v4531, %v4547
        %v4556 = vadd.f32 %v4532, %v4548
        %v4557 = vadd.f32 %v4533, %v4549
        %v4558 = vadd.f32 %v4534, %v4550
        %v4559 = vadd.f32 %v4535, %v4551
        %v4560 = vmul.f32 %v4377, %v4435
        %v4561 = vmul.f32 %v4378, %v4436
        %v4562 = vmul.f32 %v4379, %v4437
        %v4563 = vmul.f32 %v4380, %v4438
        %v4564 = vmul.f32 %v4381, %v4439
        %v4565 = vmul.f32 %v4382, %v4440
        %v4566 = vmul.f32 %v4383, %v4441
        %v4567 = vmul.f32 %v4384, %v4442
        %v4568 = vmul.f32 %v466, %v4560
        %v4569 = vmul.f32 %v466, %v4561
        %v4570 = vmul.f32 %v466, %v4562
        %v4571 = vmul.f32 %v466, %v4563
        %v4572 = vmul.f32 %v470, %v4564
        %v4573 = vmul.f32 %v470, %v4565
        %v4574 = vmul.f32 %v470, %v4566
        %v4575 = vmul.f32 %v470, %v4567
        %v4576 = vadd.f32 %v4552, %v4568
        %v4577 = vadd.f32 %v4553, %v4569
        %v4578 = vadd.f32 %v4554, %v4570
        %v4579 = vadd.f32 %v4555, %v4571
        %v4580 = vadd.f32 %v4556, %v4572
        %v4581 = vadd.f32 %v4557, %v4573
        %v4582 = vadd.f32 %v4558, %v4574
        %v4583 = vadd.f32 %v4559, %v4575
        %v4584 = vmul.f32 %v4406, %v4435
        %v4585 = vmul.f32 %v4407, %v4436
        %v4586 = vmul.f32 %v4408, %v4437
        %v4587 = vmul.f32 %v4409, %v4438
        %v4588 = vmul.f32 %v4410, %v4439
        %v4589 = vmul.f32 %v4411, %v4440
        %v4590 = vmul.f32 %v4412, %v4441
        %v4591 = vmul.f32 %v4413, %v4442
        %v4592 = vmul.f32 %v498, %v4584
        %v4593 = vmul.f32 %v498, %v4585
        %v4594 = vmul.f32 %v498, %v4586
        %v4595 = vmul.f32 %v498, %v4587
        %v4596 = vmul.f32 %v502, %v4588
        %v4597 = vmul.f32 %v502, %v4589
        %v4598 = vmul.f32 %v502, %v4590
        %v4599 = vmul.f32 %v502, %v4591
        %v4600 = vadd.f32 %v4576, %v4592
        %v4601 = vadd.f32 %v4577, %v4593
        %v4602 = vadd.f32 %v4578, %v4594
        %v4603 = vadd.f32 %v4579, %v4595
        %v4604 = vadd.f32 %v4580, %v4596
        %v4605 = vadd.f32 %v4581, %v4597
        %v4606 = vadd.f32 %v4582, %v4598
        %v4607 = vadd.f32 %v4583, %v4599
        %v4608 = vmul.f32 %v4600, 1.442695
        %v4609 = vpow.pop %v4608
        %v4610 = vmul.f32 %v4601, 1.442695
        %v4611 = vpow.pop %v4610
        %v4612 = vmul.f32 %v4602, 1.442695
        %v4613 = vpow.pop %v4612
        %v4614 = vmul.f32 %v4603, 1.442695
        %v4615 = vpow.pop %v4614
        %v4616 = vmul.f32 %v4604, 1.442695
        %v4617 = vpow.pop %v4616
        %v4618 = vmul.f32 %v4605, 1.442695
        %v4619 = vpow.pop %v4618
        %v4620 = vmul.f32 %v4606, 1.442695
        %v4621 = vpow.pop %v4620
        %v4622 = vmul.f32 %v4607, 1.442695
        %v4623 = vpow.pop %v4622
        %v4624 = vmul.f32 %v4464, %v4609
        %v4625 = vmul.f32 %v4465, %v4611
        %v4626 = vmul.f32 %v4466, %v4613
        %v4627 = vmul.f32 %v4467, %v4615
        %v4628 = vmul.f32 %v4468, %v4617
        %v4629 = vmul.f32 %v4469, %v4619
        %v4630 = vmul.f32 %v4470, %v4621
        %v4631 = vmul.f32 %v4471, %v4623
        %4632 = vst [vmem:[%s174 + $0x40] sm:$0xff] %v4624
        %4633 = vst [vmem:[%s174 + $0x48] sm:$0xff] %v4625
        %4634 = vst [vmem:[%s174 + $0x50] sm:$0xff] %v4626
        %4635 = vst [vmem:[%s174 + $0x58] sm:$0xff] %v4627
        %4636 = vst [vmem:[%s174 + $0xa0] sm:$0xff] %v4628
        %4637 = vst [vmem:[%s174 + $0xa8] sm:$0xff] %v4629
        %4638 = vst [vmem:[%s174 + $0xb0] sm:$0xff] %v4630
        %4639 = vst [vmem:[%s174 + $0xb8] sm:$0xff] %v4631
        %v4640 = vand.u32 2147483647, %v4464
        %vm4641 = vcmp.le.f32.partialorder %v4640, 0.7853982
        %vm4642 = vcmp.lt.s32.totalorder %v4464, 0
        %v4643 = vand.u32 %v4464, 2139095040
        %v4644 = vshrl.u32 %v4643, 23
        %v4645 = vsub.s32 %v4644, 127
        %v4646 = vand.u32 2147483647, %v4464
        %v4647 = vand.u32 %v4646, 8388607
        %v4648 = vor.u32 %v4647, 8388608
        %v4649 = vsub.s32 0, %v4648
        %v4650 = vadd.s32 %v4645, 1
        %vm4651 = vcmp.gt.s32.totalorder %v4650, 0
        %v4652 = vsel %vm4651, %v4650, 0
        %v4653 = vshrl.u32 %v4652, 5
        %v4654 = vand.u32 %v4652, 31
        %v4655 = vsub.s32 32, %v4654
        %v4656 = vshrl.u32 683565275, %v4655
        %v4657 = vshll.u32 683565275, %v4654
        %v4658 = vshrl.u32 2475754826, %v4655
        %v4659 = vor.u32 %v4657, %v4658
        %v4660 = vshll.u32 2475754826, %v4654
        %v4661 = vshrl.u32 2131351028, %v4655
        %v4662 = vor.u32 %v4660, %v4661
        %v4663 = vshll.u32 2131351028, %v4654
        %v4664 = vshrl.u32 2102212464, %v4655
        %v4665 = vor.u32 %v4663, %v4664
        %v4666 = vshll.u32 2102212464, %v4654
        %v4667 = vshrl.u32 920167782, %v4655
        %v4668 = vor.u32 %v4666, %v4667
        %v4669 = vshll.u32 920167782, %v4654
        %v4670 = vshrl.u32 1326507024, %v4655
        %v4671 = vor.u32 %v4669, %v4670
        %vm4672 = vcmp.lt.s32.totalorder %v4653, 1
        %vm4673 = vcmp.lt.s32.totalorder %v4653, 2
        %vm4674 = vcmp.lt.s32.totalorder %v4653, 3
        %vm4675 = vcmp.lt.s32.totalorder %v4653, 4
        %v4676 = vsel %vm4672, %v4656, %v4659
        %v4677 = vsel %vm4675, %v4665, 2102212464
        %v4678 = vsel %vm4674, %v4662, %v4677
        %v4679 = vsel %vm4673, %v4676, %v4678
        %v4680 = vsel %vm4672, %v4659, %v4662
        %v4681 = vsel %vm4675, %v4668, 920167782
        %v4682 = vsel %vm4674, %v4665, %v4681
        %v4683 = vsel %vm4673, %v4680, %v4682
        %v4684 = vsel %vm4672, %v4662, %v4665
        %v4685 = vsel %vm4675, %v4671, 1326507024
        %v4686 = vsel %vm4674, %v4668, %v4685
        %v4687 = vsel %vm4673, %v4684, %v4686
        %v4688 = vshll.u32 %v4648, 8
        %v4689 = vmul.u32.u64.compose %v4688, %v4687
        %v4690 = vextract.low.u32 %v4689
        %v4691 = vextract.high.u32 %v4689
        %v4692 = vmul.u32.u64.compose %v4688, %v4683
        %v4693 = vextract.low.u32 %v4692
        %v4694 = vextract.high.u32 %v4692
        %v4695 = vmul.u32 %v4688, %v4679
        %v4696 = vadd.s32 %v4691, %v4693
        %vm4697 = vc.u32 %v4691, %v4693
        %v4698 = vadd.s32 %v4694, 1
        %v4699 = vsel %vm4697, %v4698, %v4694
        %v4700 = vadd.s32 %v4695, %v4699
        %v4701 = vadd.s32 %v4700, 536870912
        %v4702 = vshrl.u32 %v4701, 30
        %v4703 = vshll.u32 %v4702, 30
        %v4704 = vsub.s32 %v4700, %v4703
        %vm4705 = vcmp.lt.s32.totalorder %v4704, 0
        %v4706 = vsub.s32 0, %v4704
        %v4707 = vsel %vm4705, %v4706, %v4704
        %v4708 = vclz %v4707
        %v4709 = vsub.s32 %v4708, 2
        %vm4710 = vcmp.gt.s32.totalorder 0, %v4709
        %v4711 = vsel %vm4710, 0, %v4709
        %v4712 = vsub.s32 32, %v4711
        %v4713 = vshll.u32 %v4704, %v4711
        %v4714 = vshrl.u32 %v4696, %v4712
        %v4715 = vor.u32 %v4713, %v4714
        %v4716 = vsub.s32 4294967266, %v4711
        %v4717 = vadd.s32 %v4716, 127
        %v4718 = vshll.u32 %v4717, 23
        %v4719 = vor.u32 4788187, %v4718
        %v4720 = vand.u32 2147483647, %v4719
        %v4722 = vcvt.s32.f32 %v4715
        %v4723 = vmul.f32 %v4722, %v4720
        %v4724 = vxor.u32 %v4723, 2147483648
        %v4725 = vsel %vm4642, %v4724, %v4723
        %v4726 = vsub.s32 4, %v4702
        %v4727 = vsel %vm4642, %v4726, %v4702
        %v4728 = vsel %vm4641, %v4464, %v4725
        %v4729 = vsel %vm4641, 0, %v4727
        %v4730 = vcosq.f32.pop %v4728
        %v4731 = vsinq.f32.pop %v4728
        %vm4732 = vweird.f32 %v4464
        %v4733 = vadd.s32 %v4729, 3
        %v4734 = vand.u32 %v4733, 3
        %vm4735 = vcmp.lt.s32.totalorder %v4734, 2
        %vm4736 = vcmp.eq.s32.totalorder %v4734, 0
        %v4737 = vxor.u32 %v4731, 2147483648
        %v4738 = vsel %vm4736, %v4730, %v4737
        %vm4739 = vcmp.eq.s32.totalorder %v4734, 2
        %v4740 = vxor.u32 %v4730, 2147483648
        %v4741 = vsel %vm4739, %v4740, %v4731
        %v4742 = vsel %vm4735, %v4738, %v4741
        %v4743 = vsel %vm4732, nan, %v4742
        %v4744 = vand.u32 2147483647, %v4465
        %vm4745 = vcmp.le.f32.partialorder %v4744, 0.7853982
        %vm4746 = vcmp.lt.s32.totalorder %v4465, 0
        %v4747 = vand.u32 %v4465, 2139095040
        %v4748 = vshrl.u32 %v4747, 23
        %v4749 = vsub.s32 %v4748, 127
        %v4750 = vand.u32 2147483647, %v4465
        %v4751 = vand.u32 %v4750, 8388607
        %v4752 = vor.u32 %v4751, 8388608
        %v4753 = vsub.s32 0, %v4752
        %v4754 = vadd.s32 %v4749, 1
        %vm4755 = vcmp.gt.s32.totalorder %v4754, 0
        %v4756 = vsel %vm4755, %v4754, 0
        %v4757 = vshrl.u32 %v4756, 5
        %v4758 = vand.u32 %v4756, 31
        %v4759 = vsub.s32 32, %v4758
        %v4760 = vshrl.u32 683565275, %v4759
        %v4761 = vshll.u32 683565275, %v4758
        %v4762 = vshrl.u32 2475754826, %v4759
        %v4763 = vor.u32 %v4761, %v4762
        %v4764 = vshll.u32 2475754826, %v4758
        %v4765 = vshrl.u32 2131351028, %v4759
        %v4766 = vor.u32 %v4764, %v4765
        %v4767 = vshll.u32 2131351028, %v4758
        %v4768 = vshrl.u32 2102212464, %v4759
        %v4769 = vor.u32 %v4767, %v4768
        %v4770 = vshll.u32 2102212464, %v4758
        %v4771 = vshrl.u32 920167782, %v4759
        %v4772 = vor.u32 %v4770, %v4771
        %v4773 = vshll.u32 920167782, %v4758
        %v4774 = vshrl.u32 1326507024, %v4759
        %v4775 = vor.u32 %v4773, %v4774
        %vm4776 = vcmp.lt.s32.totalorder %v4757, 1
        %vm4777 = vcmp.lt.s32.totalorder %v4757, 2
        %vm4778 = vcmp.lt.s32.totalorder %v4757, 3
        %vm4779 = vcmp.lt.s32.totalorder %v4757, 4
        %v4780 = vsel %vm4776, %v4760, %v4763
        %v4781 = vsel %vm4779, %v4769, 2102212464
        %v4782 = vsel %vm4778, %v4766, %v4781
        %v4783 = vsel %vm4777, %v4780, %v4782
        %v4784 = vsel %vm4776, %v4763, %v4766
        %v4785 = vsel %vm4779, %v4772, 920167782
        %v4786 = vsel %vm4778, %v4769, %v4785
        %v4787 = vsel %vm4777, %v4784, %v4786
        %v4788 = vsel %vm4776, %v4766, %v4769
        %v4789 = vsel %vm4779, %v4775, 1326507024
        %v4790 = vsel %vm4778, %v4772, %v4789
        %v4791 = vsel %vm4777, %v4788, %v4790
        %v4792 = vshll.u32 %v4752, 8
        %v4793 = vmul.u32.u64.compose %v4792, %v4791
        %v4794 = vextract.low.u32 %v4793
        %v4795 = vextract.high.u32 %v4793
        %v4796 = vmul.u32.u64.compose %v4792, %v4787
        %v4797 = vextract.low.u32 %v4796
        %v4798 = vextract.high.u32 %v4796
        %v4799 = vmul.u32 %v4792, %v4783
        %v4800 = vadd.s32 %v4795, %v4797
        %vm4801 = vc.u32 %v4795, %v4797
        %v4802 = vadd.s32 %v4798, 1
        %v4803 = vsel %vm4801, %v4802, %v4798
        %v4804 = vadd.s32 %v4799, %v4803
        %v4805 = vadd.s32 %v4804, 536870912
        %v4806 = vshrl.u32 %v4805, 30
        %v4807 = vshll.u32 %v4806, 30
        %v4808 = vsub.s32 %v4804, %v4807
        %vm4809 = vcmp.lt.s32.totalorder %v4808, 0
        %v4810 = vsub.s32 0, %v4808
        %v4811 = vsel %vm4809, %v4810, %v4808
        %v4812 = vclz %v4811
        %v4813 = vsub.s32 %v4812, 2
        %vm4814 = vcmp.gt.s32.totalorder 0, %v4813
        %v4815 = vsel %vm4814, 0, %v4813
        %v4816 = vsub.s32 32, %v4815
        %v4817 = vshll.u32 %v4808, %v4815
        %v4818 = vshrl.u32 %v4800, %v4816
        %v4819 = vor.u32 %v4817, %v4818
        %v4820 = vsub.s32 4294967266, %v4815
        %v4821 = vadd.s32 %v4820, 127
        %v4822 = vshll.u32 %v4821, 23
        %v4823 = vor.u32 4788187, %v4822
        %v4824 = vand.u32 2147483647, %v4823
        %v4826 = vcvt.s32.f32 %v4819
        %v4827 = vmul.f32 %v4826, %v4824
        %v4828 = vxor.u32 %v4827, 2147483648
        %v4829 = vsel %vm4746, %v4828, %v4827
        %v4830 = vsub.s32 4, %v4806
        %v4831 = vsel %vm4746, %v4830, %v4806
        %v4832 = vsel %vm4745, %v4465, %v4829
        %v4833 = vsel %vm4745, 0, %v4831
        %v4834 = vcosq.f32.pop %v4832
        %v4835 = vsinq.f32.pop %v4832
        %vm4836 = vweird.f32 %v4465
        %v4837 = vadd.s32 %v4833, 3
        %v4838 = vand.u32 %v4837, 3
        %vm4839 = vcmp.lt.s32.totalorder %v4838, 2
        %vm4840 = vcmp.eq.s32.totalorder %v4838, 0
        %v4841 = vxor.u32 %v4835, 2147483648
        %v4842 = vsel %vm4840, %v4834, %v4841
        %vm4843 = vcmp.eq.s32.totalorder %v4838, 2
        %v4844 = vxor.u32 %v4834, 2147483648
        %v4845 = vsel %vm4843, %v4844, %v4835
        %v4846 = vsel %vm4839, %v4842, %v4845
        %v4847 = vsel %vm4836, nan, %v4846
        %v4848 = vand.u32 2147483647, %v4466
        %vm4849 = vcmp.le.f32.partialorder %v4848, 0.7853982
        %vm4850 = vcmp.lt.s32.totalorder %v4466, 0
        %v4851 = vand.u32 %v4466, 2139095040
        %v4852 = vshrl.u32 %v4851, 23
        %v4853 = vsub.s32 %v4852, 127
        %v4854 = vand.u32 2147483647, %v4466
        %v4855 = vand.u32 %v4854, 8388607
        %v4856 = vor.u32 %v4855, 8388608
        %v4857 = vsub.s32 0, %v4856
        %v4858 = vadd.s32 %v4853, 1
        %vm4859 = vcmp.gt.s32.totalorder %v4858, 0
        %v4860 = vsel %vm4859, %v4858, 0
        %v4861 = vshrl.u32 %v4860, 5
        %v4862 = vand.u32 %v4860, 31
        %v4863 = vsub.s32 32, %v4862
        %v4864 = vshrl.u32 683565275, %v4863
        %v4865 = vshll.u32 683565275, %v4862
        %v4866 = vshrl.u32 2475754826, %v4863
        %v4867 = vor.u32 %v4865, %v4866
        %v4868 = vshll.u32 2475754826, %v4862
        %v4869 = vshrl.u32 2131351028, %v4863
        %v4870 = vor.u32 %v4868, %v4869
        %v4871 = vshll.u32 2131351028, %v4862
        %v4872 = vshrl.u32 2102212464, %v4863
        %v4873 = vor.u32 %v4871, %v4872
        %v4874 = vshll.u32 2102212464, %v4862
        %v4875 = vshrl.u32 920167782, %v4863
        %v4876 = vor.u32 %v4874, %v4875
        %v4877 = vshll.u32 920167782, %v4862
        %v4878 = vshrl.u32 1326507024, %v4863
        %v4879 = vor.u32 %v4877, %v4878
        %vm4880 = vcmp.lt.s32.totalorder %v4861, 1
        %vm4881 = vcmp.lt.s32.totalorder %v4861, 2
        %vm4882 = vcmp.lt.s32.totalorder %v4861, 3
        %vm4883 = vcmp.lt.s32.totalorder %v4861, 4
        %v4884 = vsel %vm4880, %v4864, %v4867
        %v4885 = vsel %vm4883, %v4873, 2102212464
        %v4886 = vsel %vm4882, %v4870, %v4885
        %v4887 = vsel %vm4881, %v4884, %v4886
        %v4888 = vsel %vm4880, %v4867, %v4870
        %v4889 = vsel %vm4883, %v4876, 920167782
        %v4890 = vsel %vm4882, %v4873, %v4889
        %v4891 = vsel %vm4881, %v4888, %v4890
        %v4892 = vsel %vm4880, %v4870, %v4873
        %v4893 = vsel %vm4883, %v4879, 1326507024
        %v4894 = vsel %vm4882, %v4876, %v4893
        %v4895 = vsel %vm4881, %v4892, %v4894
        %v4896 = vshll.u32 %v4856, 8
        %v4897 = vmul.u32.u64.compose %v4896, %v4895
        %v4898 = vextract.low.u32 %v4897
        %v4899 = vextract.high.u32 %v4897
        %v4900 = vmul.u32.u64.compose %v4896, %v4891
        %v4901 = vextract.low.u32 %v4900
        %v4902 = vextract.high.u32 %v4900
        %v4903 = vmul.u32 %v4896, %v4887
        %v4904 = vadd.s32 %v4899, %v4901
        %vm4905 = vc.u32 %v4899, %v4901
        %v4906 = vadd.s32 %v4902, 1
        %v4907 = vsel %vm4905, %v4906, %v4902
        %v4908 = vadd.s32 %v4903, %v4907
        %v4909 = vadd.s32 %v4908, 536870912
        %v4910 = vshrl.u32 %v4909, 30
        %v4911 = vshll.u32 %v4910, 30
        %v4912 = vsub.s32 %v4908, %v4911
        %vm4913 = vcmp.lt.s32.totalorder %v4912, 0
        %v4914 = vsub.s32 0, %v4912
        %v4915 = vsel %vm4913, %v4914, %v4912
        %v4916 = vclz %v4915
        %v4917 = vsub.s32 %v4916, 2
        %vm4918 = vcmp.gt.s32.totalorder 0, %v4917
        %v4919 = vsel %vm4918, 0, %v4917
        %v4920 = vsub.s32 32, %v4919
        %v4921 = vshll.u32 %v4912, %v4919
        %v4922 = vshrl.u32 %v4904, %v4920
        %v4923 = vor.u32 %v4921, %v4922
        %v4924 = vsub.s32 4294967266, %v4919
        %v4925 = vadd.s32 %v4924, 127
        %v4926 = vshll.u32 %v4925, 23
        %v4927 = vor.u32 4788187, %v4926
        %v4928 = vand.u32 2147483647, %v4927
        %v4930 = vcvt.s32.f32 %v4923
        %v4931 = vmul.f32 %v4930, %v4928
        %v4932 = vxor.u32 %v4931, 2147483648
        %v4933 = vsel %vm4850, %v4932, %v4931
        %v4934 = vsub.s32 4, %v4910
        %v4935 = vsel %vm4850, %v4934, %v4910
        %v4936 = vsel %vm4849, %v4466, %v4933
        %v4937 = vsel %vm4849, 0, %v4935
        %v4938 = vcosq.f32.pop %v4936
        %v4939 = vsinq.f32.pop %v4936
        %vm4940 = vweird.f32 %v4466
        %v4941 = vadd.s32 %v4937, 3
        %v4942 = vand.u32 %v4941, 3
        %vm4943 = vcmp.lt.s32.totalorder %v4942, 2
        %vm4944 = vcmp.eq.s32.totalorder %v4942, 0
        %v4945 = vxor.u32 %v4939, 2147483648
        %v4946 = vsel %vm4944, %v4938, %v4945
        %vm4947 = vcmp.eq.s32.totalorder %v4942, 2
        %v4948 = vxor.u32 %v4938, 2147483648
        %v4949 = vsel %vm4947, %v4948, %v4939
        %v4950 = vsel %vm4943, %v4946, %v4949
        %v4951 = vsel %vm4940, nan, %v4950
        %v4952 = vand.u32 2147483647, %v4467
        %vm4953 = vcmp.le.f32.partialorder %v4952, 0.7853982
        %vm4954 = vcmp.lt.s32.totalorder %v4467, 0
        %v4955 = vand.u32 %v4467, 2139095040
        %v4956 = vshrl.u32 %v4955, 23
        %v4957 = vsub.s32 %v4956, 127
        %v4958 = vand.u32 2147483647, %v4467
        %v4959 = vand.u32 %v4958, 8388607
        %v4960 = vor.u32 %v4959, 8388608
        %v4961 = vsub.s32 0, %v4960
        %v4962 = vadd.s32 %v4957, 1
        %vm4963 = vcmp.gt.s32.totalorder %v4962, 0
        %v4964 = vsel %vm4963, %v4962, 0
        %v4965 = vshrl.u32 %v4964, 5
        %v4966 = vand.u32 %v4964, 31
        %v4967 = vsub.s32 32, %v4966
        %v4968 = vshrl.u32 683565275, %v4967
        %v4969 = vshll.u32 683565275, %v4966
        %v4970 = vshrl.u32 2475754826, %v4967
        %v4971 = vor.u32 %v4969, %v4970
        %v4972 = vshll.u32 2475754826, %v4966
        %v4973 = vshrl.u32 2131351028, %v4967
        %v4974 = vor.u32 %v4972, %v4973
        %v4975 = vshll.u32 2131351028, %v4966
        %v4976 = vshrl.u32 2102212464, %v4967
        %v4977 = vor.u32 %v4975, %v4976
        %v4978 = vshll.u32 2102212464, %v4966
        %v4979 = vshrl.u32 920167782, %v4967
        %v4980 = vor.u32 %v4978, %v4979
        %v4981 = vshll.u32 920167782, %v4966
        %v4982 = vshrl.u32 1326507024, %v4967
        %v4983 = vor.u32 %v4981, %v4982
        %vm4984 = vcmp.lt.s32.totalorder %v4965, 1
        %vm4985 = vcmp.lt.s32.totalorder %v4965, 2
        %vm4986 = vcmp.lt.s32.totalorder %v4965, 3
        %vm4987 = vcmp.lt.s32.totalorder %v4965, 4
        %v4988 = vsel %vm4984, %v4968, %v4971
        %v4989 = vsel %vm4987, %v4977, 2102212464
        %v4990 = vsel %vm4986, %v4974, %v4989
        %v4991 = vsel %vm4985, %v4988, %v4990
        %v4992 = vsel %vm4984, %v4971, %v4974
        %v4993 = vsel %vm4987, %v4980, 920167782
        %v4994 = vsel %vm4986, %v4977, %v4993
        %v4995 = vsel %vm4985, %v4992, %v4994
        %v4996 = vsel %vm4984, %v4974, %v4977
        %v4997 = vsel %vm4987, %v4983, 1326507024
        %v4998 = vsel %vm4986, %v4980, %v4997
        %v4999 = vsel %vm4985, %v4996, %v4998
        %v5000 = vshll.u32 %v4960, 8
        %v5001 = vmul.u32.u64.compose %v5000, %v4999
        %v5002 = vextract.low.u32 %v5001
        %v5003 = vextract.high.u32 %v5001
        %v5004 = vmul.u32.u64.compose %v5000, %v4995
        %v5005 = vextract.low.u32 %v5004
        %v5006 = vextract.high.u32 %v5004
        %v5007 = vmul.u32 %v5000, %v4991
        %v5008 = vadd.s32 %v5003, %v5005
        %vm5009 = vc.u32 %v5003, %v5005
        %v5010 = vadd.s32 %v5006, 1
        %v5011 = vsel %vm5009, %v5010, %v5006
        %v5012 = vadd.s32 %v5007, %v5011
        %v5013 = vadd.s32 %v5012, 536870912
        %v5014 = vshrl.u32 %v5013, 30
        %v5015 = vshll.u32 %v5014, 30
        %v5016 = vsub.s32 %v5012, %v5015
        %vm5017 = vcmp.lt.s32.totalorder %v5016, 0
        %v5018 = vsub.s32 0, %v5016
        %v5019 = vsel %vm5017, %v5018, %v5016
        %v5020 = vclz %v5019
        %v5021 = vsub.s32 %v5020, 2
        %vm5022 = vcmp.gt.s32.totalorder 0, %v5021
        %v5023 = vsel %vm5022, 0, %v5021
        %v5024 = vsub.s32 32, %v5023
        %v5025 = vshll.u32 %v5016, %v5023
        %v5026 = vshrl.u32 %v5008, %v5024
        %v5027 = vor.u32 %v5025, %v5026
        %v5028 = vsub.s32 4294967266, %v5023
        %v5029 = vadd.s32 %v5028, 127
        %v5030 = vshll.u32 %v5029, 23
        %v5031 = vor.u32 4788187, %v5030
        %v5032 = vand.u32 2147483647, %v5031
        %v5034 = vcvt.s32.f32 %v5027
        %v5035 = vmul.f32 %v5034, %v5032
        %v5036 = vxor.u32 %v5035, 2147483648
        %v5037 = vsel %vm4954, %v5036, %v5035
        %v5038 = vsub.s32 4, %v5014
        %v5039 = vsel %vm4954, %v5038, %v5014
        %v5040 = vsel %vm4953, %v4467, %v5037
        %v5041 = vsel %vm4953, 0, %v5039
        %v5042 = vcosq.f32.pop %v5040
        %v5043 = vsinq.f32.pop %v5040
        %vm5044 = vweird.f32 %v4467
        %v5045 = vadd.s32 %v5041, 3
        %v5046 = vand.u32 %v5045, 3
        %vm5047 = vcmp.lt.s32.totalorder %v5046, 2
        %vm5048 = vcmp.eq.s32.totalorder %v5046, 0
        %v5049 = vxor.u32 %v5043, 2147483648
        %v5050 = vsel %vm5048, %v5042, %v5049
        %vm5051 = vcmp.eq.s32.totalorder %v5046, 2
        %v5052 = vxor.u32 %v5042, 2147483648
        %v5053 = vsel %vm5051, %v5052, %v5043
        %v5054 = vsel %vm5047, %v5050, %v5053
        %v5055 = vsel %vm5044, nan, %v5054
        %v5056 = vand.u32 2147483647, %v4468
        %vm5057 = vcmp.le.f32.partialorder %v5056, 0.7853982
        %vm5058 = vcmp.lt.s32.totalorder %v4468, 0
        %v5059 = vand.u32 %v4468, 2139095040
        %v5060 = vshrl.u32 %v5059, 23
        %v5061 = vsub.s32 %v5060, 127
        %v5062 = vand.u32 2147483647, %v4468
        %v5063 = vand.u32 %v5062, 8388607
        %v5064 = vor.u32 %v5063, 8388608
        %v5065 = vsub.s32 0, %v5064
        %v5066 = vadd.s32 %v5061, 1
        %vm5067 = vcmp.gt.s32.totalorder %v5066, 0
        %v5068 = vsel %vm5067, %v5066, 0
        %v5069 = vshrl.u32 %v5068, 5
        %v5070 = vand.u32 %v5068, 31
        %v5071 = vsub.s32 32, %v5070
        %v5072 = vshrl.u32 683565275, %v5071
        %v5073 = vshll.u32 683565275, %v5070
        %v5074 = vshrl.u32 2475754826, %v5071
        %v5075 = vor.u32 %v5073, %v5074
        %v5076 = vshll.u32 2475754826, %v5070
        %v5077 = vshrl.u32 2131351028, %v5071
        %v5078 = vor.u32 %v5076, %v5077
        %v5079 = vshll.u32 2131351028, %v5070
        %v5080 = vshrl.u32 2102212464, %v5071
        %v5081 = vor.u32 %v5079, %v5080
        %v5082 = vshll.u32 2102212464, %v5070
        %v5083 = vshrl.u32 920167782, %v5071
        %v5084 = vor.u32 %v5082, %v5083
        %v5085 = vshll.u32 920167782, %v5070
        %v5086 = vshrl.u32 1326507024, %v5071
        %v5087 = vor.u32 %v5085, %v5086
        %vm5088 = vcmp.lt.s32.totalorder %v5069, 1
        %vm5089 = vcmp.lt.s32.totalorder %v5069, 2
        %vm5090 = vcmp.lt.s32.totalorder %v5069, 3
        %vm5091 = vcmp.lt.s32.totalorder %v5069, 4
        %v5092 = vsel %vm5088, %v5072, %v5075
        %v5093 = vsel %vm5091, %v5081, 2102212464
        %v5094 = vsel %vm5090, %v5078, %v5093
        %v5095 = vsel %vm5089, %v5092, %v5094
        %v5096 = vsel %vm5088, %v5075, %v5078
        %v5097 = vsel %vm5091, %v5084, 920167782
        %v5098 = vsel %vm5090, %v5081, %v5097
        %v5099 = vsel %vm5089, %v5096, %v5098
        %v5100 = vsel %vm5088, %v5078, %v5081
        %v5101 = vsel %vm5091, %v5087, 1326507024
        %v5102 = vsel %vm5090, %v5084, %v5101
        %v5103 = vsel %vm5089, %v5100, %v5102
        %v5104 = vshll.u32 %v5064, 8
        %v5105 = vmul.u32.u64.compose %v5104, %v5103
        %v5106 = vextract.low.u32 %v5105
        %v5107 = vextract.high.u32 %v5105
        %v5108 = vmul.u32.u64.compose %v5104, %v5099
        %v5109 = vextract.low.u32 %v5108
        %v5110 = vextract.high.u32 %v5108
        %v5111 = vmul.u32 %v5104, %v5095
        %v5112 = vadd.s32 %v5107, %v5109
        %vm5113 = vc.u32 %v5107, %v5109
        %v5114 = vadd.s32 %v5110, 1
        %v5115 = vsel %vm5113, %v5114, %v5110
        %v5116 = vadd.s32 %v5111, %v5115
        %v5117 = vadd.s32 %v5116, 536870912
        %v5118 = vshrl.u32 %v5117, 30
        %v5119 = vshll.u32 %v5118, 30
        %v5120 = vsub.s32 %v5116, %v5119
        %vm5121 = vcmp.lt.s32.totalorder %v5120, 0
        %v5122 = vsub.s32 0, %v5120
        %v5123 = vsel %vm5121, %v5122, %v5120
        %v5124 = vclz %v5123
        %v5125 = vsub.s32 %v5124, 2
        %vm5126 = vcmp.gt.s32.totalorder 0, %v5125
        %v5127 = vsel %vm5126, 0, %v5125
        %v5128 = vsub.s32 32, %v5127
        %v5129 = vshll.u32 %v5120, %v5127
        %v5130 = vshrl.u32 %v5112, %v5128
        %v5131 = vor.u32 %v5129, %v5130
        %v5132 = vsub.s32 4294967266, %v5127
        %v5133 = vadd.s32 %v5132, 127
        %v5134 = vshll.u32 %v5133, 23
        %v5135 = vor.u32 4788187, %v5134
        %v5136 = vand.u32 2147483647, %v5135
        %v5138 = vcvt.s32.f32 %v5131
        %v5139 = vmul.f32 %v5138, %v5136
        %v5140 = vxor.u32 %v5139, 2147483648
        %v5141 = vsel %vm5058, %v5140, %v5139
        %v5142 = vsub.s32 4, %v5118
        %v5143 = vsel %vm5058, %v5142, %v5118
        %v5144 = vsel %vm5057, %v4468, %v5141
        %v5145 = vsel %vm5057, 0, %v5143
        %v5146 = vcosq.f32.pop %v5144
        %v5147 = vsinq.f32.pop %v5144
        %vm5148 = vweird.f32 %v4468
        %v5149 = vadd.s32 %v5145, 3
        %v5150 = vand.u32 %v5149, 3
        %vm5151 = vcmp.lt.s32.totalorder %v5150, 2
        %vm5152 = vcmp.eq.s32.totalorder %v5150, 0
        %v5153 = vxor.u32 %v5147, 2147483648
        %v5154 = vsel %vm5152, %v5146, %v5153
        %vm5155 = vcmp.eq.s32.totalorder %v5150, 2
        %v5156 = vxor.u32 %v5146, 2147483648
        %v5157 = vsel %vm5155, %v5156, %v5147
        %v5158 = vsel %vm5151, %v5154, %v5157
        %v5159 = vsel %vm5148, nan, %v5158
        %v5160 = vand.u32 2147483647, %v4469
        %vm5161 = vcmp.le.f32.partialorder %v5160, 0.7853982
        %vm5162 = vcmp.lt.s32.totalorder %v4469, 0
        %v5163 = vand.u32 %v4469, 2139095040
        %v5164 = vshrl.u32 %v5163, 23
        %v5165 = vsub.s32 %v5164, 127
        %v5166 = vand.u32 2147483647, %v4469
        %v5167 = vand.u32 %v5166, 8388607
        %v5168 = vor.u32 %v5167, 8388608
        %v5169 = vsub.s32 0, %v5168
        %v5170 = vadd.s32 %v5165, 1
        %vm5171 = vcmp.gt.s32.totalorder %v5170, 0
        %v5172 = vsel %vm5171, %v5170, 0
        %v5173 = vshrl.u32 %v5172, 5
        %v5174 = vand.u32 %v5172, 31
        %v5175 = vsub.s32 32, %v5174
        %v5176 = vshrl.u32 683565275, %v5175
        %v5177 = vshll.u32 683565275, %v5174
        %v5178 = vshrl.u32 2475754826, %v5175
        %v5179 = vor.u32 %v5177, %v5178
        %v5180 = vshll.u32 2475754826, %v5174
        %v5181 = vshrl.u32 2131351028, %v5175
        %v5182 = vor.u32 %v5180, %v5181
        %v5183 = vshll.u32 2131351028, %v5174
        %v5184 = vshrl.u32 2102212464, %v5175
        %v5185 = vor.u32 %v5183, %v5184
        %v5186 = vshll.u32 2102212464, %v5174
        %v5187 = vshrl.u32 920167782, %v5175
        %v5188 = vor.u32 %v5186, %v5187
        %v5189 = vshll.u32 920167782, %v5174
        %v5190 = vshrl.u32 1326507024, %v5175
        %v5191 = vor.u32 %v5189, %v5190
        %vm5192 = vcmp.lt.s32.totalorder %v5173, 1
        %vm5193 = vcmp.lt.s32.totalorder %v5173, 2
        %vm5194 = vcmp.lt.s32.totalorder %v5173, 3
        %vm5195 = vcmp.lt.s32.totalorder %v5173, 4
        %v5196 = vsel %vm5192, %v5176, %v5179
        %v5197 = vsel %vm5195, %v5185, 2102212464
        %v5198 = vsel %vm5194, %v5182, %v5197
        %v5199 = vsel %vm5193, %v5196, %v5198
        %v5200 = vsel %vm5192, %v5179, %v5182
        %v5201 = vsel %vm5195, %v5188, 920167782
        %v5202 = vsel %vm5194, %v5185, %v5201
        %v5203 = vsel %vm5193, %v5200, %v5202
        %v5204 = vsel %vm5192, %v5182, %v5185
        %v5205 = vsel %vm5195, %v5191, 1326507024
        %v5206 = vsel %vm5194, %v5188, %v5205
        %v5207 = vsel %vm5193, %v5204, %v5206
        %v5208 = vshll.u32 %v5168, 8
        %v5209 = vmul.u32.u64.compose %v5208, %v5207
        %v5210 = vextract.low.u32 %v5209
        %v5211 = vextract.high.u32 %v5209
        %v5212 = vmul.u32.u64.compose %v5208, %v5203
        %v5213 = vextract.low.u32 %v5212
        %v5214 = vextract.high.u32 %v5212
        %v5215 = vmul.u32 %v5208, %v5199
        %v5216 = vadd.s32 %v5211, %v5213
        %vm5217 = vc.u32 %v5211, %v5213
        %v5218 = vadd.s32 %v5214, 1
        %v5219 = vsel %vm5217, %v5218, %v5214
        %v5220 = vadd.s32 %v5215, %v5219
        %v5221 = vadd.s32 %v5220, 536870912
        %v5222 = vshrl.u32 %v5221, 30
        %v5223 = vshll.u32 %v5222, 30
        %v5224 = vsub.s32 %v5220, %v5223
        %vm5225 = vcmp.lt.s32.totalorder %v5224, 0
        %v5226 = vsub.s32 0, %v5224
        %v5227 = vsel %vm5225, %v5226, %v5224
        %v5228 = vclz %v5227
        %v5229 = vsub.s32 %v5228, 2
        %vm5230 = vcmp.gt.s32.totalorder 0, %v5229
        %v5231 = vsel %vm5230, 0, %v5229
        %v5232 = vsub.s32 32, %v5231
        %v5233 = vshll.u32 %v5224, %v5231
        %v5234 = vshrl.u32 %v5216, %v5232
        %v5235 = vor.u32 %v5233, %v5234
        %v5236 = vsub.s32 4294967266, %v5231
        %v5237 = vadd.s32 %v5236, 127
        %v5238 = vshll.u32 %v5237, 23
        %v5239 = vor.u32 4788187, %v5238
        %v5240 = vand.u32 2147483647, %v5239
        %v5242 = vcvt.s32.f32 %v5235
        %v5243 = vmul.f32 %v5242, %v5240
        %v5244 = vxor.u32 %v5243, 2147483648
        %v5245 = vsel %vm5162, %v5244, %v5243
        %v5246 = vsub.s32 4, %v5222
        %v5247 = vsel %vm5162, %v5246, %v5222
        %v5248 = vsel %vm5161, %v4469, %v5245
        %v5249 = vsel %vm5161, 0, %v5247
        %v5250 = vcosq.f32.pop %v5248
        %v5251 = vsinq.f32.pop %v5248
        %vm5252 = vweird.f32 %v4469
        %v5253 = vadd.s32 %v5249, 3
        %v5254 = vand.u32 %v5253, 3
        %vm5255 = vcmp.lt.s32.totalorder %v5254, 2
        %vm5256 = vcmp.eq.s32.totalorder %v5254, 0
        %v5257 = vxor.u32 %v5251, 2147483648
        %v5258 = vsel %vm5256, %v5250, %v5257
        %vm5259 = vcmp.eq.s32.totalorder %v5254, 2
        %v5260 = vxor.u32 %v5250, 2147483648
        %v5261 = vsel %vm5259, %v5260, %v5251
        %v5262 = vsel %vm5255, %v5258, %v5261
        %v5263 = vsel %vm5252, nan, %v5262
        %v5264 = vand.u32 2147483647, %v4470
        %vm5265 = vcmp.le.f32.partialorder %v5264, 0.7853982
        %vm5266 = vcmp.lt.s32.totalorder %v4470, 0
        %v5267 = vand.u32 %v4470, 2139095040
        %v5268 = vshrl.u32 %v5267, 23
        %v5269 = vsub.s32 %v5268, 127
        %v5270 = vand.u32 2147483647, %v4470
        %v5271 = vand.u32 %v5270, 8388607
        %v5272 = vor.u32 %v5271, 8388608
        %v5273 = vsub.s32 0, %v5272
        %v5274 = vadd.s32 %v5269, 1
        %vm5275 = vcmp.gt.s32.totalorder %v5274, 0
        %v5276 = vsel %vm5275, %v5274, 0
        %v5277 = vshrl.u32 %v5276, 5
        %v5278 = vand.u32 %v5276, 31
        %v5279 = vsub.s32 32, %v5278
        %v5280 = vshrl.u32 683565275, %v5279
        %v5281 = vshll.u32 683565275, %v5278
        %v5282 = vshrl.u32 2475754826, %v5279
        %v5283 = vor.u32 %v5281, %v5282
        %v5284 = vshll.u32 2475754826, %v5278
        %v5285 = vshrl.u32 2131351028, %v5279
        %v5286 = vor.u32 %v5284, %v5285
        %v5287 = vshll.u32 2131351028, %v5278
        %v5288 = vshrl.u32 2102212464, %v5279
        %v5289 = vor.u32 %v5287, %v5288
        %v5290 = vshll.u32 2102212464, %v5278
        %v5291 = vshrl.u32 920167782, %v5279
        %v5292 = vor.u32 %v5290, %v5291
        %v5293 = vshll.u32 920167782, %v5278
        %v5294 = vshrl.u32 1326507024, %v5279
        %v5295 = vor.u32 %v5293, %v5294
        %vm5296 = vcmp.lt.s32.totalorder %v5277, 1
        %vm5297 = vcmp.lt.s32.totalorder %v5277, 2
        %vm5298 = vcmp.lt.s32.totalorder %v5277, 3
        %vm5299 = vcmp.lt.s32.totalorder %v5277, 4
        %v5300 = vsel %vm5296, %v5280, %v5283
        %v5301 = vsel %vm5299, %v5289, 2102212464
        %v5302 = vsel %vm5298, %v5286, %v5301
        %v5303 = vsel %vm5297, %v5300, %v5302
        %v5304 = vsel %vm5296, %v5283, %v5286
        %v5305 = vsel %vm5299, %v5292, 920167782
        %v5306 = vsel %vm5298, %v5289, %v5305
        %v5307 = vsel %vm5297, %v5304, %v5306
        %v5308 = vsel %vm5296, %v5286, %v5289
        %v5309 = vsel %vm5299, %v5295, 1326507024
        %v5310 = vsel %vm5298, %v5292, %v5309
        %v5311 = vsel %vm5297, %v5308, %v5310
        %v5312 = vshll.u32 %v5272, 8
        %v5313 = vmul.u32.u64.compose %v5312, %v5311
        %v5314 = vextract.low.u32 %v5313
        %v5315 = vextract.high.u32 %v5313
        %v5316 = vmul.u32.u64.compose %v5312, %v5307
        %v5317 = vextract.low.u32 %v5316
        %v5318 = vextract.high.u32 %v5316
        %v5319 = vmul.u32 %v5312, %v5303
        %v5320 = vadd.s32 %v5315, %v5317
        %vm5321 = vc.u32 %v5315, %v5317
        %v5322 = vadd.s32 %v5318, 1
        %v5323 = vsel %vm5321, %v5322, %v5318
        %v5324 = vadd.s32 %v5319, %v5323
        %v5325 = vadd.s32 %v5324, 536870912
        %v5326 = vshrl.u32 %v5325, 30
        %v5327 = vshll.u32 %v5326, 30
        %v5328 = vsub.s32 %v5324, %v5327
        %vm5329 = vcmp.lt.s32.totalorder %v5328, 0
        %v5330 = vsub.s32 0, %v5328
        %v5331 = vsel %vm5329, %v5330, %v5328
        %v5332 = vclz %v5331
        %v5333 = vsub.s32 %v5332, 2
        %vm5334 = vcmp.gt.s32.totalorder 0, %v5333
        %v5335 = vsel %vm5334, 0, %v5333
        %v5336 = vsub.s32 32, %v5335
        %v5337 = vshll.u32 %v5328, %v5335
        %v5338 = vshrl.u32 %v5320, %v5336
        %v5339 = vor.u32 %v5337, %v5338
        %v5340 = vsub.s32 4294967266, %v5335
        %v5341 = vadd.s32 %v5340, 127
        %v5342 = vshll.u32 %v5341, 23
        %v5343 = vor.u32 4788187, %v5342
        %v5344 = vand.u32 2147483647, %v5343
        %v5346 = vcvt.s32.f32 %v5339
        %v5347 = vmul.f32 %v5346, %v5344
        %v5348 = vxor.u32 %v5347, 2147483648
        %v5349 = vsel %vm5266, %v5348, %v5347
        %v5350 = vsub.s32 4, %v5326
        %v5351 = vsel %vm5266, %v5350, %v5326
        %v5352 = vsel %vm5265, %v4470, %v5349
        %v5353 = vsel %vm5265, 0, %v5351
        %v5354 = vcosq.f32.pop %v5352
        %v5355 = vsinq.f32.pop %v5352
        %vm5356 = vweird.f32 %v4470
        %v5357 = vadd.s32 %v5353, 3
        %v5358 = vand.u32 %v5357, 3
        %vm5359 = vcmp.lt.s32.totalorder %v5358, 2
        %vm5360 = vcmp.eq.s32.totalorder %v5358, 0
        %v5361 = vxor.u32 %v5355, 2147483648
        %v5362 = vsel %vm5360, %v5354, %v5361
        %vm5363 = vcmp.eq.s32.totalorder %v5358, 2
        %v5364 = vxor.u32 %v5354, 2147483648
        %v5365 = vsel %vm5363, %v5364, %v5355
        %v5366 = vsel %vm5359, %v5362, %v5365
        %v5367 = vsel %vm5356, nan, %v5366
        %v5368 = vand.u32 2147483647, %v4471
        %vm5369 = vcmp.le.f32.partialorder %v5368, 0.7853982
        %vm5370 = vcmp.lt.s32.totalorder %v4471, 0
        %v5371 = vand.u32 %v4471, 2139095040
        %v5372 = vshrl.u32 %v5371, 23
        %v5373 = vsub.s32 %v5372, 127
        %v5374 = vand.u32 2147483647, %v4471
        %v5375 = vand.u32 %v5374, 8388607
        %v5376 = vor.u32 %v5375, 8388608
        %v5377 = vsub.s32 0, %v5376
        %v5378 = vadd.s32 %v5373, 1
        %vm5379 = vcmp.gt.s32.totalorder %v5378, 0
        %v5380 = vsel %vm5379, %v5378, 0
        %v5381 = vshrl.u32 %v5380, 5
        %v5382 = vand.u32 %v5380, 31
        %v5383 = vsub.s32 32, %v5382
        %v5384 = vshrl.u32 683565275, %v5383
        %v5385 = vshll.u32 683565275, %v5382
        %v5386 = vshrl.u32 2475754826, %v5383
        %v5387 = vor.u32 %v5385, %v5386
        %v5388 = vshll.u32 2475754826, %v5382
        %v5389 = vshrl.u32 2131351028, %v5383
        %v5390 = vor.u32 %v5388, %v5389
        %v5391 = vshll.u32 2131351028, %v5382
        %v5392 = vshrl.u32 2102212464, %v5383
        %v5393 = vor.u32 %v5391, %v5392
        %v5394 = vshll.u32 2102212464, %v5382
        %v5395 = vshrl.u32 920167782, %v5383
        %v5396 = vor.u32 %v5394, %v5395
        %v5397 = vshll.u32 920167782, %v5382
        %v5398 = vshrl.u32 1326507024, %v5383
        %v5399 = vor.u32 %v5397, %v5398
        %vm5400 = vcmp.lt.s32.totalorder %v5381, 1
        %vm5401 = vcmp.lt.s32.totalorder %v5381, 2
        %vm5402 = vcmp.lt.s32.totalorder %v5381, 3
        %vm5403 = vcmp.lt.s32.totalorder %v5381, 4
        %v5404 = vsel %vm5400, %v5384, %v5387
        %v5405 = vsel %vm5403, %v5393, 2102212464
        %v5406 = vsel %vm5402, %v5390, %v5405
        %v5407 = vsel %vm5401, %v5404, %v5406
        %v5408 = vsel %vm5400, %v5387, %v5390
        %v5409 = vsel %vm5403, %v5396, 920167782
        %v5410 = vsel %vm5402, %v5393, %v5409
        %v5411 = vsel %vm5401, %v5408, %v5410
        %v5412 = vsel %vm5400, %v5390, %v5393
        %v5413 = vsel %vm5403, %v5399, 1326507024
        %v5414 = vsel %vm5402, %v5396, %v5413
        %v5415 = vsel %vm5401, %v5412, %v5414
        %v5416 = vshll.u32 %v5376, 8
        %v5417 = vmul.u32.u64.compose %v5416, %v5415
        %v5418 = vextract.low.u32 %v5417
        %v5419 = vextract.high.u32 %v5417
        %v5420 = vmul.u32.u64.compose %v5416, %v5411
        %v5421 = vextract.low.u32 %v5420
        %v5422 = vextract.high.u32 %v5420
        %v5423 = vmul.u32 %v5416, %v5407
        %v5424 = vadd.s32 %v5419, %v5421
        %vm5425 = vc.u32 %v5419, %v5421
        %v5426 = vadd.s32 %v5422, 1
        %v5427 = vsel %vm5425, %v5426, %v5422
        %v5428 = vadd.s32 %v5423, %v5427
        %v5429 = vadd.s32 %v5428, 536870912
        %v5430 = vshrl.u32 %v5429, 30
        %v5431 = vshll.u32 %v5430, 30
        %v5432 = vsub.s32 %v5428, %v5431
        %vm5433 = vcmp.lt.s32.totalorder %v5432, 0
        %v5434 = vsub.s32 0, %v5432
        %v5435 = vsel %vm5433, %v5434, %v5432
        %v5436 = vclz %v5435
        %v5437 = vsub.s32 %v5436, 2
        %vm5438 = vcmp.gt.s32.totalorder 0, %v5437
        %v5439 = vsel %vm5438, 0, %v5437
        %v5440 = vsub.s32 32, %v5439
        %v5441 = vshll.u32 %v5432, %v5439
        %v5442 = vshrl.u32 %v5424, %v5440
        %v5443 = vor.u32 %v5441, %v5442
        %v5444 = vsub.s32 4294967266, %v5439
        %v5445 = vadd.s32 %v5444, 127
        %v5446 = vshll.u32 %v5445, 23
        %v5447 = vor.u32 4788187, %v5446
        %v5448 = vand.u32 2147483647, %v5447
        %v5450 = vcvt.s32.f32 %v5443
        %v5451 = vmul.f32 %v5450, %v5448
        %v5452 = vxor.u32 %v5451, 2147483648
        %v5453 = vsel %vm5370, %v5452, %v5451
        %v5454 = vsub.s32 4, %v5430
        %v5455 = vsel %vm5370, %v5454, %v5430
        %v5456 = vsel %vm5369, %v4471, %v5453
        %v5457 = vsel %vm5369, 0, %v5455
        %v5458 = vcosq.f32.pop %v5456
        %v5459 = vsinq.f32.pop %v5456
        %vm5460 = vweird.f32 %v4471
        %v5461 = vadd.s32 %v5457, 3
        %v5462 = vand.u32 %v5461, 3
        %vm5463 = vcmp.lt.s32.totalorder %v5462, 2
        %vm5464 = vcmp.eq.s32.totalorder %v5462, 0
        %v5465 = vxor.u32 %v5459, 2147483648
        %v5466 = vsel %vm5464, %v5458, %v5465
        %vm5467 = vcmp.eq.s32.totalorder %v5462, 2
        %v5468 = vxor.u32 %v5458, 2147483648
        %v5469 = vsel %vm5467, %v5468, %v5459
        %v5470 = vsel %vm5463, %v5466, %v5469
        %v5471 = vsel %vm5460, nan, %v5470
        %v5472 = vand.u32 2147483647, %v4464
        %vm5473 = vcmp.le.f32.partialorder %v5472, 0.7853982
        %vm5474 = vcmp.lt.s32.totalorder %v4464, 0
        %v5475 = vand.u32 %v4464, 2139095040
        %v5476 = vshrl.u32 %v5475, 23
        %v5477 = vsub.s32 %v5476, 127
        %v5478 = vand.u32 2147483647, %v4464
        %v5479 = vand.u32 %v5478, 8388607
        %v5480 = vor.u32 %v5479, 8388608
        %v5481 = vsub.s32 0, %v5480
        %v5482 = vadd.s32 %v5477, 1
        %vm5483 = vcmp.gt.s32.totalorder %v5482, 0
        %v5484 = vsel %vm5483, %v5482, 0
        %v5485 = vshrl.u32 %v5484, 5
        %v5486 = vand.u32 %v5484, 31
        %v5487 = vsub.s32 32, %v5486
        %v5488 = vshrl.u32 683565275, %v5487
        %v5489 = vshll.u32 683565275, %v5486
        %v5490 = vshrl.u32 2475754826, %v5487
        %v5491 = vor.u32 %v5489, %v5490
        %v5492 = vshll.u32 2475754826, %v5486
        %v5493 = vshrl.u32 2131351028, %v5487
        %v5494 = vor.u32 %v5492, %v5493
        %v5495 = vshll.u32 2131351028, %v5486
        %v5496 = vshrl.u32 2102212464, %v5487
        %v5497 = vor.u32 %v5495, %v5496
        %v5498 = vshll.u32 2102212464, %v5486
        %v5499 = vshrl.u32 920167782, %v5487
        %v5500 = vor.u32 %v5498, %v5499
        %v5501 = vshll.u32 920167782, %v5486
        %v5502 = vshrl.u32 1326507024, %v5487
        %v5503 = vor.u32 %v5501, %v5502
        %vm5504 = vcmp.lt.s32.totalorder %v5485, 1
        %vm5505 = vcmp.lt.s32.totalorder %v5485, 2
        %vm5506 = vcmp.lt.s32.totalorder %v5485, 3
        %vm5507 = vcmp.lt.s32.totalorder %v5485, 4
        %v5508 = vsel %vm5504, %v5488, %v5491
        %v5509 = vsel %vm5507, %v5497, 2102212464
        %v5510 = vsel %vm5506, %v5494, %v5509
        %v5511 = vsel %vm5505, %v5508, %v5510
        %v5512 = vsel %vm5504, %v5491, %v5494
        %v5513 = vsel %vm5507, %v5500, 920167782
        %v5514 = vsel %vm5506, %v5497, %v5513
        %v5515 = vsel %vm5505, %v5512, %v5514
        %v5516 = vsel %vm5504, %v5494, %v5497
        %v5517 = vsel %vm5507, %v5503, 1326507024
        %v5518 = vsel %vm5506, %v5500, %v5517
        %v5519 = vsel %vm5505, %v5516, %v5518
        %v5520 = vshll.u32 %v5480, 8
        %v5521 = vmul.u32.u64.compose %v5520, %v5519
        %v5522 = vextract.low.u32 %v5521
        %v5523 = vextract.high.u32 %v5521
        %v5524 = vmul.u32.u64.compose %v5520, %v5515
        %v5525 = vextract.low.u32 %v5524
        %v5526 = vextract.high.u32 %v5524
        %v5527 = vmul.u32 %v5520, %v5511
        %v5528 = vadd.s32 %v5523, %v5525
        %vm5529 = vc.u32 %v5523, %v5525
        %v5530 = vadd.s32 %v5526, 1
        %v5531 = vsel %vm5529, %v5530, %v5526
        %v5532 = vadd.s32 %v5527, %v5531
        %v5533 = vadd.s32 %v5532, 536870912
        %v5534 = vshrl.u32 %v5533, 30
        %v5535 = vshll.u32 %v5534, 30
        %v5536 = vsub.s32 %v5532, %v5535
        %vm5537 = vcmp.lt.s32.totalorder %v5536, 0
        %v5538 = vsub.s32 0, %v5536
        %v5539 = vsel %vm5537, %v5538, %v5536
        %v5540 = vclz %v5539
        %v5541 = vsub.s32 %v5540, 2
        %vm5542 = vcmp.gt.s32.totalorder 0, %v5541
        %v5543 = vsel %vm5542, 0, %v5541
        %v5544 = vsub.s32 32, %v5543
        %v5545 = vshll.u32 %v5536, %v5543
        %v5546 = vshrl.u32 %v5528, %v5544
        %v5547 = vor.u32 %v5545, %v5546
        %v5548 = vsub.s32 4294967266, %v5543
        %v5549 = vadd.s32 %v5548, 127
        %v5550 = vshll.u32 %v5549, 23
        %v5551 = vor.u32 4788187, %v5550
        %v5552 = vand.u32 2147483647, %v5551
        %v5554 = vcvt.s32.f32 %v5547
        %v5555 = vmul.f32 %v5554, %v5552
        %v5556 = vxor.u32 %v5555, 2147483648
        %v5557 = vsel %vm5474, %v5556, %v5555
        %v5558 = vsub.s32 4, %v5534
        %v5559 = vsel %vm5474, %v5558, %v5534
        %v5560 = vsel %vm5473, %v4464, %v5557
        %v5561 = vsel %vm5473, 0, %v5559
        %v5562 = vcosq.f32.pop %v5560
        %v5563 = vsinq.f32.pop %v5560
        %vm5564 = vweird.f32 %v4464
        %v5565 = vand.u32 %v5561, 3
        %vm5566 = vcmp.lt.s32.totalorder %v5565, 2
        %vm5567 = vcmp.eq.s32.totalorder %v5565, 0
        %v5568 = vxor.u32 %v5563, 2147483648
        %v5569 = vsel %vm5567, %v5562, %v5568
        %vm5570 = vcmp.eq.s32.totalorder %v5565, 2
        %v5571 = vxor.u32 %v5562, 2147483648
        %v5572 = vsel %vm5570, %v5571, %v5563
        %v5573 = vsel %vm5566, %v5569, %v5572
        %v5574 = vsel %vm5564, nan, %v5573
        %v5575 = vand.u32 2147483647, %v4465
        %vm5576 = vcmp.le.f32.partialorder %v5575, 0.7853982
        %vm5577 = vcmp.lt.s32.totalorder %v4465, 0
        %v5578 = vand.u32 %v4465, 2139095040
        %v5579 = vshrl.u32 %v5578, 23
        %v5580 = vsub.s32 %v5579, 127
        %v5581 = vand.u32 2147483647, %v4465
        %v5582 = vand.u32 %v5581, 8388607
        %v5583 = vor.u32 %v5582, 8388608
        %v5584 = vsub.s32 0, %v5583
        %v5585 = vadd.s32 %v5580, 1
        %vm5586 = vcmp.gt.s32.totalorder %v5585, 0
        %v5587 = vsel %vm5586, %v5585, 0
        %v5588 = vshrl.u32 %v5587, 5
        %v5589 = vand.u32 %v5587, 31
        %v5590 = vsub.s32 32, %v5589
        %v5591 = vshrl.u32 683565275, %v5590
        %v5592 = vshll.u32 683565275, %v5589
        %v5593 = vshrl.u32 2475754826, %v5590
        %v5594 = vor.u32 %v5592, %v5593
        %v5595 = vshll.u32 2475754826, %v5589
        %v5596 = vshrl.u32 2131351028, %v5590
        %v5597 = vor.u32 %v5595, %v5596
        %v5598 = vshll.u32 2131351028, %v5589
        %v5599 = vshrl.u32 2102212464, %v5590
        %v5600 = vor.u32 %v5598, %v5599
        %v5601 = vshll.u32 2102212464, %v5589
        %v5602 = vshrl.u32 920167782, %v5590
        %v5603 = vor.u32 %v5601, %v5602
        %v5604 = vshll.u32 920167782, %v5589
        %v5605 = vshrl.u32 1326507024, %v5590
        %v5606 = vor.u32 %v5604, %v5605
        %vm5607 = vcmp.lt.s32.totalorder %v5588, 1
        %vm5608 = vcmp.lt.s32.totalorder %v5588, 2
        %vm5609 = vcmp.lt.s32.totalorder %v5588, 3
        %vm5610 = vcmp.lt.s32.totalorder %v5588, 4
        %v5611 = vsel %vm5607, %v5591, %v5594
        %v5612 = vsel %vm5610, %v5600, 2102212464
        %v5613 = vsel %vm5609, %v5597, %v5612
        %v5614 = vsel %vm5608, %v5611, %v5613
        %v5615 = vsel %vm5607, %v5594, %v5597
        %v5616 = vsel %vm5610, %v5603, 920167782
        %v5617 = vsel %vm5609, %v5600, %v5616
        %v5618 = vsel %vm5608, %v5615, %v5617
        %v5619 = vsel %vm5607, %v5597, %v5600
        %v5620 = vsel %vm5610, %v5606, 1326507024
        %v5621 = vsel %vm5609, %v5603, %v5620
        %v5622 = vsel %vm5608, %v5619, %v5621
        %v5623 = vshll.u32 %v5583, 8
        %v5624 = vmul.u32.u64.compose %v5623, %v5622
        %v5625 = vextract.low.u32 %v5624
        %v5626 = vextract.high.u32 %v5624
        %v5627 = vmul.u32.u64.compose %v5623, %v5618
        %v5628 = vextract.low.u32 %v5627
        %v5629 = vextract.high.u32 %v5627
        %v5630 = vmul.u32 %v5623, %v5614
        %v5631 = vadd.s32 %v5626, %v5628
        %vm5632 = vc.u32 %v5626, %v5628
        %v5633 = vadd.s32 %v5629, 1
        %v5634 = vsel %vm5632, %v5633, %v5629
        %v5635 = vadd.s32 %v5630, %v5634
        %v5636 = vadd.s32 %v5635, 536870912
        %v5637 = vshrl.u32 %v5636, 30
        %v5638 = vshll.u32 %v5637, 30
        %v5639 = vsub.s32 %v5635, %v5638
        %vm5640 = vcmp.lt.s32.totalorder %v5639, 0
        %v5641 = vsub.s32 0, %v5639
        %v5642 = vsel %vm5640, %v5641, %v5639
        %v5643 = vclz %v5642
        %v5644 = vsub.s32 %v5643, 2
        %vm5645 = vcmp.gt.s32.totalorder 0, %v5644
        %v5646 = vsel %vm5645, 0, %v5644
        %v5647 = vsub.s32 32, %v5646
        %v5648 = vshll.u32 %v5639, %v5646
        %v5649 = vshrl.u32 %v5631, %v5647
        %v5650 = vor.u32 %v5648, %v5649
        %v5651 = vsub.s32 4294967266, %v5646
        %v5652 = vadd.s32 %v5651, 127
        %v5653 = vshll.u32 %v5652, 23
        %v5654 = vor.u32 4788187, %v5653
        %v5655 = vand.u32 2147483647, %v5654
        %v5657 = vcvt.s32.f32 %v5650
        %v5658 = vmul.f32 %v5657, %v5655
        %v5659 = vxor.u32 %v5658, 2147483648
        %v5660 = vsel %vm5577, %v5659, %v5658
        %v5661 = vsub.s32 4, %v5637
        %v5662 = vsel %vm5577, %v5661, %v5637
        %v5663 = vsel %vm5576, %v4465, %v5660
        %v5664 = vsel %vm5576, 0, %v5662
        %v5665 = vcosq.f32.pop %v5663
        %v5666 = vsinq.f32.pop %v5663
        %vm5667 = vweird.f32 %v4465
        %v5668 = vand.u32 %v5664, 3
        %vm5669 = vcmp.lt.s32.totalorder %v5668, 2
        %vm5670 = vcmp.eq.s32.totalorder %v5668, 0
        %v5671 = vxor.u32 %v5666, 2147483648
        %v5672 = vsel %vm5670, %v5665, %v5671
        %vm5673 = vcmp.eq.s32.totalorder %v5668, 2
        %v5674 = vxor.u32 %v5665, 2147483648
        %v5675 = vsel %vm5673, %v5674, %v5666
        %v5676 = vsel %vm5669, %v5672, %v5675
        %v5677 = vsel %vm5667, nan, %v5676
        %v5678 = vand.u32 2147483647, %v4466
        %vm5679 = vcmp.le.f32.partialorder %v5678, 0.7853982
        %vm5680 = vcmp.lt.s32.totalorder %v4466, 0
        %v5681 = vand.u32 %v4466, 2139095040
        %v5682 = vshrl.u32 %v5681, 23
        %v5683 = vsub.s32 %v5682, 127
        %v5684 = vand.u32 2147483647, %v4466
        %v5685 = vand.u32 %v5684, 8388607
        %v5686 = vor.u32 %v5685, 8388608
        %v5687 = vsub.s32 0, %v5686
        %v5688 = vadd.s32 %v5683, 1
        %vm5689 = vcmp.gt.s32.totalorder %v5688, 0
        %v5690 = vsel %vm5689, %v5688, 0
        %v5691 = vshrl.u32 %v5690, 5
        %v5692 = vand.u32 %v5690, 31
        %v5693 = vsub.s32 32, %v5692
        %v5694 = vshrl.u32 683565275, %v5693
        %v5695 = vshll.u32 683565275, %v5692
        %v5696 = vshrl.u32 2475754826, %v5693
        %v5697 = vor.u32 %v5695, %v5696
        %v5698 = vshll.u32 2475754826, %v5692
        %v5699 = vshrl.u32 2131351028, %v5693
        %v5700 = vor.u32 %v5698, %v5699
        %v5701 = vshll.u32 2131351028, %v5692
        %v5702 = vshrl.u32 2102212464, %v5693
        %v5703 = vor.u32 %v5701, %v5702
        %v5704 = vshll.u32 2102212464, %v5692
        %v5705 = vshrl.u32 920167782, %v5693
        %v5706 = vor.u32 %v5704, %v5705
        %v5707 = vshll.u32 920167782, %v5692
        %v5708 = vshrl.u32 1326507024, %v5693
        %v5709 = vor.u32 %v5707, %v5708
        %vm5710 = vcmp.lt.s32.totalorder %v5691, 1
        %vm5711 = vcmp.lt.s32.totalorder %v5691, 2
        %vm5712 = vcmp.lt.s32.totalorder %v5691, 3
        %vm5713 = vcmp.lt.s32.totalorder %v5691, 4
        %v5714 = vsel %vm5710, %v5694, %v5697
        %v5715 = vsel %vm5713, %v5703, 2102212464
        %v5716 = vsel %vm5712, %v5700, %v5715
        %v5717 = vsel %vm5711, %v5714, %v5716
        %v5718 = vsel %vm5710, %v5697, %v5700
        %v5719 = vsel %vm5713, %v5706, 920167782
        %v5720 = vsel %vm5712, %v5703, %v5719
        %v5721 = vsel %vm5711, %v5718, %v5720
        %v5722 = vsel %vm5710, %v5700, %v5703
        %v5723 = vsel %vm5713, %v5709, 1326507024
        %v5724 = vsel %vm5712, %v5706, %v5723
        %v5725 = vsel %vm5711, %v5722, %v5724
        %v5726 = vshll.u32 %v5686, 8
        %v5727 = vmul.u32.u64.compose %v5726, %v5725
        %v5728 = vextract.low.u32 %v5727
        %v5729 = vextract.high.u32 %v5727
        %v5730 = vmul.u32.u64.compose %v5726, %v5721
        %v5731 = vextract.low.u32 %v5730
        %v5732 = vextract.high.u32 %v5730
        %v5733 = vmul.u32 %v5726, %v5717
        %v5734 = vadd.s32 %v5729, %v5731
        %vm5735 = vc.u32 %v5729, %v5731
        %v5736 = vadd.s32 %v5732, 1
        %v5737 = vsel %vm5735, %v5736, %v5732
        %v5738 = vadd.s32 %v5733, %v5737
        %v5739 = vadd.s32 %v5738, 536870912
        %v5740 = vshrl.u32 %v5739, 30
        %v5741 = vshll.u32 %v5740, 30
        %v5742 = vsub.s32 %v5738, %v5741
        %vm5743 = vcmp.lt.s32.totalorder %v5742, 0
        %v5744 = vsub.s32 0, %v5742
        %v5745 = vsel %vm5743, %v5744, %v5742
        %v5746 = vclz %v5745
        %v5747 = vsub.s32 %v5746, 2
        %vm5748 = vcmp.gt.s32.totalorder 0, %v5747
        %v5749 = vsel %vm5748, 0, %v5747
        %v5750 = vsub.s32 32, %v5749
        %v5751 = vshll.u32 %v5742, %v5749
        %v5752 = vshrl.u32 %v5734, %v5750
        %v5753 = vor.u32 %v5751, %v5752
        %v5754 = vsub.s32 4294967266, %v5749
        %v5755 = vadd.s32 %v5754, 127
        %v5756 = vshll.u32 %v5755, 23
        %v5757 = vor.u32 4788187, %v5756
        %v5758 = vand.u32 2147483647, %v5757
        %v5760 = vcvt.s32.f32 %v5753
        %v5761 = vmul.f32 %v5760, %v5758
        %v5762 = vxor.u32 %v5761, 2147483648
        %v5763 = vsel %vm5680, %v5762, %v5761
        %v5764 = vsub.s32 4, %v5740
        %v5765 = vsel %vm5680, %v5764, %v5740
        %v5766 = vsel %vm5679, %v4466, %v5763
        %v5767 = vsel %vm5679, 0, %v5765
        %v5768 = vcosq.f32.pop %v5766
        %v5769 = vsinq.f32.pop %v5766
        %vm5770 = vweird.f32 %v4466
        %v5771 = vand.u32 %v5767, 3
        %vm5772 = vcmp.lt.s32.totalorder %v5771, 2
        %vm5773 = vcmp.eq.s32.totalorder %v5771, 0
        %v5774 = vxor.u32 %v5769, 2147483648
        %v5775 = vsel %vm5773, %v5768, %v5774
        %vm5776 = vcmp.eq.s32.totalorder %v5771, 2
        %v5777 = vxor.u32 %v5768, 2147483648
        %v5778 = vsel %vm5776, %v5777, %v5769
        %v5779 = vsel %vm5772, %v5775, %v5778
        %v5780 = vsel %vm5770, nan, %v5779
        %v5781 = vand.u32 2147483647, %v4467
        %vm5782 = vcmp.le.f32.partialorder %v5781, 0.7853982
        %vm5783 = vcmp.lt.s32.totalorder %v4467, 0
        %v5784 = vand.u32 %v4467, 2139095040
        %v5785 = vshrl.u32 %v5784, 23
        %v5786 = vsub.s32 %v5785, 127
        %v5787 = vand.u32 2147483647, %v4467
        %v5788 = vand.u32 %v5787, 8388607
        %v5789 = vor.u32 %v5788, 8388608
        %v5790 = vsub.s32 0, %v5789
        %v5791 = vadd.s32 %v5786, 1
        %vm5792 = vcmp.gt.s32.totalorder %v5791, 0
        %v5793 = vsel %vm5792, %v5791, 0
        %v5794 = vshrl.u32 %v5793, 5
        %v5795 = vand.u32 %v5793, 31
        %v5796 = vsub.s32 32, %v5795
        %v5797 = vshrl.u32 683565275, %v5796
        %v5798 = vshll.u32 683565275, %v5795
        %v5799 = vshrl.u32 2475754826, %v5796
        %v5800 = vor.u32 %v5798, %v5799
        %v5801 = vshll.u32 2475754826, %v5795
        %v5802 = vshrl.u32 2131351028, %v5796
        %v5803 = vor.u32 %v5801, %v5802
        %v5804 = vshll.u32 2131351028, %v5795
        %v5805 = vshrl.u32 2102212464, %v5796
        %v5806 = vor.u32 %v5804, %v5805
        %v5807 = vshll.u32 2102212464, %v5795
        %v5808 = vshrl.u32 920167782, %v5796
        %v5809 = vor.u32 %v5807, %v5808
        %v5810 = vshll.u32 920167782, %v5795
        %v5811 = vshrl.u32 1326507024, %v5796
        %v5812 = vor.u32 %v5810, %v5811
        %vm5813 = vcmp.lt.s32.totalorder %v5794, 1
        %vm5814 = vcmp.lt.s32.totalorder %v5794, 2
        %vm5815 = vcmp.lt.s32.totalorder %v5794, 3
        %vm5816 = vcmp.lt.s32.totalorder %v5794, 4
        %v5817 = vsel %vm5813, %v5797, %v5800
        %v5818 = vsel %vm5816, %v5806, 2102212464
        %v5819 = vsel %vm5815, %v5803, %v5818
        %v5820 = vsel %vm5814, %v5817, %v5819
        %v5821 = vsel %vm5813, %v5800, %v5803
        %v5822 = vsel %vm5816, %v5809, 920167782
        %v5823 = vsel %vm5815, %v5806, %v5822
        %v5824 = vsel %vm5814, %v5821, %v5823
        %v5825 = vsel %vm5813, %v5803, %v5806
        %v5826 = vsel %vm5816, %v5812, 1326507024
        %v5827 = vsel %vm5815, %v5809, %v5826
        %v5828 = vsel %vm5814, %v5825, %v5827
        %v5829 = vshll.u32 %v5789, 8
        %v5830 = vmul.u32.u64.compose %v5829, %v5828
        %v5831 = vextract.low.u32 %v5830
        %v5832 = vextract.high.u32 %v5830
        %v5833 = vmul.u32.u64.compose %v5829, %v5824
        %v5834 = vextract.low.u32 %v5833
        %v5835 = vextract.high.u32 %v5833
        %v5836 = vmul.u32 %v5829, %v5820
        %v5837 = vadd.s32 %v5832, %v5834
        %vm5838 = vc.u32 %v5832, %v5834
        %v5839 = vadd.s32 %v5835, 1
        %v5840 = vsel %vm5838, %v5839, %v5835
        %v5841 = vadd.s32 %v5836, %v5840
        %v5842 = vadd.s32 %v5841, 536870912
        %v5843 = vshrl.u32 %v5842, 30
        %v5844 = vshll.u32 %v5843, 30
        %v5845 = vsub.s32 %v5841, %v5844
        %vm5846 = vcmp.lt.s32.totalorder %v5845, 0
        %v5847 = vsub.s32 0, %v5845
        %v5848 = vsel %vm5846, %v5847, %v5845
        %v5849 = vclz %v5848
        %v5850 = vsub.s32 %v5849, 2
        %vm5851 = vcmp.gt.s32.totalorder 0, %v5850
        %v5852 = vsel %vm5851, 0, %v5850
        %v5853 = vsub.s32 32, %v5852
        %v5854 = vshll.u32 %v5845, %v5852
        %v5855 = vshrl.u32 %v5837, %v5853
        %v5856 = vor.u32 %v5854, %v5855
        %v5857 = vsub.s32 4294967266, %v5852
        %v5858 = vadd.s32 %v5857, 127
        %v5859 = vshll.u32 %v5858, 23
        %v5860 = vor.u32 4788187, %v5859
        %v5861 = vand.u32 2147483647, %v5860
        %v5863 = vcvt.s32.f32 %v5856
        %v5864 = vmul.f32 %v5863, %v5861
        %v5865 = vxor.u32 %v5864, 2147483648
        %v5866 = vsel %vm5783, %v5865, %v5864
        %v5867 = vsub.s32 4, %v5843
        %v5868 = vsel %vm5783, %v5867, %v5843
        %v5869 = vsel %vm5782, %v4467, %v5866
        %v5870 = vsel %vm5782, 0, %v5868
        %v5871 = vcosq.f32.pop %v5869
        %v5872 = vsinq.f32.pop %v5869
        %vm5873 = vweird.f32 %v4467
        %v5874 = vand.u32 %v5870, 3
        %vm5875 = vcmp.lt.s32.totalorder %v5874, 2
        %vm5876 = vcmp.eq.s32.totalorder %v5874, 0
        %v5877 = vxor.u32 %v5872, 2147483648
        %v5878 = vsel %vm5876, %v5871, %v5877
        %vm5879 = vcmp.eq.s32.totalorder %v5874, 2
        %v5880 = vxor.u32 %v5871, 2147483648
        %v5881 = vsel %vm5879, %v5880, %v5872
        %v5882 = vsel %vm5875, %v5878, %v5881
        %v5883 = vsel %vm5873, nan, %v5882
        %v5884 = vand.u32 2147483647, %v4468
        %vm5885 = vcmp.le.f32.partialorder %v5884, 0.7853982
        %vm5886 = vcmp.lt.s32.totalorder %v4468, 0
        %v5887 = vand.u32 %v4468, 2139095040
        %v5888 = vshrl.u32 %v5887, 23
        %v5889 = vsub.s32 %v5888, 127
        %v5890 = vand.u32 2147483647, %v4468
        %v5891 = vand.u32 %v5890, 8388607
        %v5892 = vor.u32 %v5891, 8388608
        %v5893 = vsub.s32 0, %v5892
        %v5894 = vadd.s32 %v5889, 1
        %vm5895 = vcmp.gt.s32.totalorder %v5894, 0
        %v5896 = vsel %vm5895, %v5894, 0
        %v5897 = vshrl.u32 %v5896, 5
        %v5898 = vand.u32 %v5896, 31
        %v5899 = vsub.s32 32, %v5898
        %v5900 = vshrl.u32 683565275, %v5899
        %v5901 = vshll.u32 683565275, %v5898
        %v5902 = vshrl.u32 2475754826, %v5899
        %v5903 = vor.u32 %v5901, %v5902
        %v5904 = vshll.u32 2475754826, %v5898
        %v5905 = vshrl.u32 2131351028, %v5899
        %v5906 = vor.u32 %v5904, %v5905
        %v5907 = vshll.u32 2131351028, %v5898
        %v5908 = vshrl.u32 2102212464, %v5899
        %v5909 = vor.u32 %v5907, %v5908
        %v5910 = vshll.u32 2102212464, %v5898
        %v5911 = vshrl.u32 920167782, %v5899
        %v5912 = vor.u32 %v5910, %v5911
        %v5913 = vshll.u32 920167782, %v5898
        %v5914 = vshrl.u32 1326507024, %v5899
        %v5915 = vor.u32 %v5913, %v5914
        %vm5916 = vcmp.lt.s32.totalorder %v5897, 1
        %vm5917 = vcmp.lt.s32.totalorder %v5897, 2
        %vm5918 = vcmp.lt.s32.totalorder %v5897, 3
        %vm5919 = vcmp.lt.s32.totalorder %v5897, 4
        %v5920 = vsel %vm5916, %v5900, %v5903
        %v5921 = vsel %vm5919, %v5909, 2102212464
        %v5922 = vsel %vm5918, %v5906, %v5921
        %v5923 = vsel %vm5917, %v5920, %v5922
        %v5924 = vsel %vm5916, %v5903, %v5906
        %v5925 = vsel %vm5919, %v5912, 920167782
        %v5926 = vsel %vm5918, %v5909, %v5925
        %v5927 = vsel %vm5917, %v5924, %v5926
        %v5928 = vsel %vm5916, %v5906, %v5909
        %v5929 = vsel %vm5919, %v5915, 1326507024
        %v5930 = vsel %vm5918, %v5912, %v5929
        %v5931 = vsel %vm5917, %v5928, %v5930
        %v5932 = vshll.u32 %v5892, 8
        %v5933 = vmul.u32.u64.compose %v5932, %v5931
        %v5934 = vextract.low.u32 %v5933
        %v5935 = vextract.high.u32 %v5933
        %v5936 = vmul.u32.u64.compose %v5932, %v5927
        %v5937 = vextract.low.u32 %v5936
        %v5938 = vextract.high.u32 %v5936
        %v5939 = vmul.u32 %v5932, %v5923
        %v5940 = vadd.s32 %v5935, %v5937
        %vm5941 = vc.u32 %v5935, %v5937
        %v5942 = vadd.s32 %v5938, 1
        %v5943 = vsel %vm5941, %v5942, %v5938
        %v5944 = vadd.s32 %v5939, %v5943
        %v5945 = vadd.s32 %v5944, 536870912
        %v5946 = vshrl.u32 %v5945, 30
        %v5947 = vshll.u32 %v5946, 30
        %v5948 = vsub.s32 %v5944, %v5947
        %vm5949 = vcmp.lt.s32.totalorder %v5948, 0
        %v5950 = vsub.s32 0, %v5948
        %v5951 = vsel %vm5949, %v5950, %v5948
        %v5952 = vclz %v5951
        %v5953 = vsub.s32 %v5952, 2
        %vm5954 = vcmp.gt.s32.totalorder 0, %v5953
        %v5955 = vsel %vm5954, 0, %v5953
        %v5956 = vsub.s32 32, %v5955
        %v5957 = vshll.u32 %v5948, %v5955
        %v5958 = vshrl.u32 %v5940, %v5956
        %v5959 = vor.u32 %v5957, %v5958
        %v5960 = vsub.s32 4294967266, %v5955
        %v5961 = vadd.s32 %v5960, 127
        %v5962 = vshll.u32 %v5961, 23
        %v5963 = vor.u32 4788187, %v5962
        %v5964 = vand.u32 2147483647, %v5963
        %v5966 = vcvt.s32.f32 %v5959
        %v5967 = vmul.f32 %v5966, %v5964
        %v5968 = vxor.u32 %v5967, 2147483648
        %v5969 = vsel %vm5886, %v5968, %v5967
        %v5970 = vsub.s32 4, %v5946
        %v5971 = vsel %vm5886, %v5970, %v5946
        %v5972 = vsel %vm5885, %v4468, %v5969
        %v5973 = vsel %vm5885, 0, %v5971
        %v5974 = vcosq.f32.pop %v5972
        %v5975 = vsinq.f32.pop %v5972
        %vm5976 = vweird.f32 %v4468
        %v5977 = vand.u32 %v5973, 3
        %vm5978 = vcmp.lt.s32.totalorder %v5977, 2
        %vm5979 = vcmp.eq.s32.totalorder %v5977, 0
        %v5980 = vxor.u32 %v5975, 2147483648
        %v5981 = vsel %vm5979, %v5974, %v5980
        %vm5982 = vcmp.eq.s32.totalorder %v5977, 2
        %v5983 = vxor.u32 %v5974, 2147483648
        %v5984 = vsel %vm5982, %v5983, %v5975
        %v5985 = vsel %vm5978, %v5981, %v5984
        %v5986 = vsel %vm5976, nan, %v5985
        %v5987 = vand.u32 2147483647, %v4469
        %vm5988 = vcmp.le.f32.partialorder %v5987, 0.7853982
        %vm5989 = vcmp.lt.s32.totalorder %v4469, 0
        %v5990 = vand.u32 %v4469, 2139095040
        %v5991 = vshrl.u32 %v5990, 23
        %v5992 = vsub.s32 %v5991, 127
        %v5993 = vand.u32 2147483647, %v4469
        %v5994 = vand.u32 %v5993, 8388607
        %v5995 = vor.u32 %v5994, 8388608
        %v5996 = vsub.s32 0, %v5995
        %v5997 = vadd.s32 %v5992, 1
        %vm5998 = vcmp.gt.s32.totalorder %v5997, 0
        %v5999 = vsel %vm5998, %v5997, 0
        %v6000 = vshrl.u32 %v5999, 5
        %v6001 = vand.u32 %v5999, 31
        %v6002 = vsub.s32 32, %v6001
        %v6003 = vshrl.u32 683565275, %v6002
        %v6004 = vshll.u32 683565275, %v6001
        %v6005 = vshrl.u32 2475754826, %v6002
        %v6006 = vor.u32 %v6004, %v6005
        %v6007 = vshll.u32 2475754826, %v6001
        %v6008 = vshrl.u32 2131351028, %v6002
        %v6009 = vor.u32 %v6007, %v6008
        %v6010 = vshll.u32 2131351028, %v6001
        %v6011 = vshrl.u32 2102212464, %v6002
        %v6012 = vor.u32 %v6010, %v6011
        %v6013 = vshll.u32 2102212464, %v6001
        %v6014 = vshrl.u32 920167782, %v6002
        %v6015 = vor.u32 %v6013, %v6014
        %v6016 = vshll.u32 920167782, %v6001
        %v6017 = vshrl.u32 1326507024, %v6002
        %v6018 = vor.u32 %v6016, %v6017
        %vm6019 = vcmp.lt.s32.totalorder %v6000, 1
        %vm6020 = vcmp.lt.s32.totalorder %v6000, 2
        %vm6021 = vcmp.lt.s32.totalorder %v6000, 3
        %vm6022 = vcmp.lt.s32.totalorder %v6000, 4
        %v6023 = vsel %vm6019, %v6003, %v6006
        %v6024 = vsel %vm6022, %v6012, 2102212464
        %v6025 = vsel %vm6021, %v6009, %v6024
        %v6026 = vsel %vm6020, %v6023, %v6025
        %v6027 = vsel %vm6019, %v6006, %v6009
        %v6028 = vsel %vm6022, %v6015, 920167782
        %v6029 = vsel %vm6021, %v6012, %v6028
        %v6030 = vsel %vm6020, %v6027, %v6029
        %v6031 = vsel %vm6019, %v6009, %v6012
        %v6032 = vsel %vm6022, %v6018, 1326507024
        %v6033 = vsel %vm6021, %v6015, %v6032
        %v6034 = vsel %vm6020, %v6031, %v6033
        %v6035 = vshll.u32 %v5995, 8
        %v6036 = vmul.u32.u64.compose %v6035, %v6034
        %v6037 = vextract.low.u32 %v6036
        %v6038 = vextract.high.u32 %v6036
        %v6039 = vmul.u32.u64.compose %v6035, %v6030
        %v6040 = vextract.low.u32 %v6039
        %v6041 = vextract.high.u32 %v6039
        %v6042 = vmul.u32 %v6035, %v6026
        %v6043 = vadd.s32 %v6038, %v6040
        %vm6044 = vc.u32 %v6038, %v6040
        %v6045 = vadd.s32 %v6041, 1
        %v6046 = vsel %vm6044, %v6045, %v6041
        %v6047 = vadd.s32 %v6042, %v6046
        %v6048 = vadd.s32 %v6047, 536870912
        %v6049 = vshrl.u32 %v6048, 30
        %v6050 = vshll.u32 %v6049, 30
        %v6051 = vsub.s32 %v6047, %v6050
        %vm6052 = vcmp.lt.s32.totalorder %v6051, 0
        %v6053 = vsub.s32 0, %v6051
        %v6054 = vsel %vm6052, %v6053, %v6051
        %v6055 = vclz %v6054
        %v6056 = vsub.s32 %v6055, 2
        %vm6057 = vcmp.gt.s32.totalorder 0, %v6056
        %v6058 = vsel %vm6057, 0, %v6056
        %v6059 = vsub.s32 32, %v6058
        %v6060 = vshll.u32 %v6051, %v6058
        %v6061 = vshrl.u32 %v6043, %v6059
        %v6062 = vor.u32 %v6060, %v6061
        %v6063 = vsub.s32 4294967266, %v6058
        %v6064 = vadd.s32 %v6063, 127
        %v6065 = vshll.u32 %v6064, 23
        %v6066 = vor.u32 4788187, %v6065
        %v6067 = vand.u32 2147483647, %v6066
        %v6069 = vcvt.s32.f32 %v6062
        %v6070 = vmul.f32 %v6069, %v6067
        %v6071 = vxor.u32 %v6070, 2147483648
        %v6072 = vsel %vm5989, %v6071, %v6070
        %v6073 = vsub.s32 4, %v6049
        %v6074 = vsel %vm5989, %v6073, %v6049
        %v6075 = vsel %vm5988, %v4469, %v6072
        %v6076 = vsel %vm5988, 0, %v6074
        %v6077 = vcosq.f32.pop %v6075
        %v6078 = vsinq.f32.pop %v6075
        %vm6079 = vweird.f32 %v4469
        %v6080 = vand.u32 %v6076, 3
        %vm6081 = vcmp.lt.s32.totalorder %v6080, 2
        %vm6082 = vcmp.eq.s32.totalorder %v6080, 0
        %v6083 = vxor.u32 %v6078, 2147483648
        %v6084 = vsel %vm6082, %v6077, %v6083
        %vm6085 = vcmp.eq.s32.totalorder %v6080, 2
        %v6086 = vxor.u32 %v6077, 2147483648
        %v6087 = vsel %vm6085, %v6086, %v6078
        %v6088 = vsel %vm6081, %v6084, %v6087
        %v6089 = vsel %vm6079, nan, %v6088
        %v6090 = vand.u32 2147483647, %v4470
        %vm6091 = vcmp.le.f32.partialorder %v6090, 0.7853982
        %vm6092 = vcmp.lt.s32.totalorder %v4470, 0
        %v6093 = vand.u32 %v4470, 2139095040
        %v6094 = vshrl.u32 %v6093, 23
        %v6095 = vsub.s32 %v6094, 127
        %v6096 = vand.u32 2147483647, %v4470
        %v6097 = vand.u32 %v6096, 8388607
        %v6098 = vor.u32 %v6097, 8388608
        %v6099 = vsub.s32 0, %v6098
        %v6100 = vadd.s32 %v6095, 1
        %vm6101 = vcmp.gt.s32.totalorder %v6100, 0
        %v6102 = vsel %vm6101, %v6100, 0
        %v6103 = vshrl.u32 %v6102, 5
        %v6104 = vand.u32 %v6102, 31
        %v6105 = vsub.s32 32, %v6104
        %v6106 = vshrl.u32 683565275, %v6105
        %v6107 = vshll.u32 683565275, %v6104
        %v6108 = vshrl.u32 2475754826, %v6105
        %v6109 = vor.u32 %v6107, %v6108
        %v6110 = vshll.u32 2475754826, %v6104
        %v6111 = vshrl.u32 2131351028, %v6105
        %v6112 = vor.u32 %v6110, %v6111
        %v6113 = vshll.u32 2131351028, %v6104
        %v6114 = vshrl.u32 2102212464, %v6105
        %v6115 = vor.u32 %v6113, %v6114
        %v6116 = vshll.u32 2102212464, %v6104
        %v6117 = vshrl.u32 920167782, %v6105
        %v6118 = vor.u32 %v6116, %v6117
        %v6119 = vshll.u32 920167782, %v6104
        %v6120 = vshrl.u32 1326507024, %v6105
        %v6121 = vor.u32 %v6119, %v6120
        %vm6122 = vcmp.lt.s32.totalorder %v6103, 1
        %vm6123 = vcmp.lt.s32.totalorder %v6103, 2
        %vm6124 = vcmp.lt.s32.totalorder %v6103, 3
        %vm6125 = vcmp.lt.s32.totalorder %v6103, 4
        %v6126 = vsel %vm6122, %v6106, %v6109
        %v6127 = vsel %vm6125, %v6115, 2102212464
        %v6128 = vsel %vm6124, %v6112, %v6127
        %v6129 = vsel %vm6123, %v6126, %v6128
        %v6130 = vsel %vm6122, %v6109, %v6112
        %v6131 = vsel %vm6125, %v6118, 920167782
        %v6132 = vsel %vm6124, %v6115, %v6131
        %v6133 = vsel %vm6123, %v6130, %v6132
        %v6134 = vsel %vm6122, %v6112, %v6115
        %v6135 = vsel %vm6125, %v6121, 1326507024
        %v6136 = vsel %vm6124, %v6118, %v6135
        %v6137 = vsel %vm6123, %v6134, %v6136
        %v6138 = vshll.u32 %v6098, 8
        %v6139 = vmul.u32.u64.compose %v6138, %v6137
        %v6140 = vextract.low.u32 %v6139
        %v6141 = vextract.high.u32 %v6139
        %v6142 = vmul.u32.u64.compose %v6138, %v6133
        %v6143 = vextract.low.u32 %v6142
        %v6144 = vextract.high.u32 %v6142
        %v6145 = vmul.u32 %v6138, %v6129
        %v6146 = vadd.s32 %v6141, %v6143
        %vm6147 = vc.u32 %v6141, %v6143
        %v6148 = vadd.s32 %v6144, 1
        %v6149 = vsel %vm6147, %v6148, %v6144
        %v6150 = vadd.s32 %v6145, %v6149
        %v6151 = vadd.s32 %v6150, 536870912
        %v6152 = vshrl.u32 %v6151, 30
        %v6153 = vshll.u32 %v6152, 30
        %v6154 = vsub.s32 %v6150, %v6153
        %vm6155 = vcmp.lt.s32.totalorder %v6154, 0
        %v6156 = vsub.s32 0, %v6154
        %v6157 = vsel %vm6155, %v6156, %v6154
        %v6158 = vclz %v6157
        %v6159 = vsub.s32 %v6158, 2
        %vm6160 = vcmp.gt.s32.totalorder 0, %v6159
        %v6161 = vsel %vm6160, 0, %v6159
        %v6162 = vsub.s32 32, %v6161
        %v6163 = vshll.u32 %v6154, %v6161
        %v6164 = vshrl.u32 %v6146, %v6162
        %v6165 = vor.u32 %v6163, %v6164
        %v6166 = vsub.s32 4294967266, %v6161
        %v6167 = vadd.s32 %v6166, 127
        %v6168 = vshll.u32 %v6167, 23
        %v6169 = vor.u32 4788187, %v6168
        %v6170 = vand.u32 2147483647, %v6169
        %v6172 = vcvt.s32.f32 %v6165
        %v6173 = vmul.f32 %v6172, %v6170
        %v6174 = vxor.u32 %v6173, 2147483648
        %v6175 = vsel %vm6092, %v6174, %v6173
        %v6176 = vsub.s32 4, %v6152
        %v6177 = vsel %vm6092, %v6176, %v6152
        %v6178 = vsel %vm6091, %v4470, %v6175
        %v6179 = vsel %vm6091, 0, %v6177
        %v6180 = vcosq.f32.pop %v6178
        %v6181 = vsinq.f32.pop %v6178
        %vm6182 = vweird.f32 %v4470
        %v6183 = vand.u32 %v6179, 3
        %vm6184 = vcmp.lt.s32.totalorder %v6183, 2
        %vm6185 = vcmp.eq.s32.totalorder %v6183, 0
        %v6186 = vxor.u32 %v6181, 2147483648
        %v6187 = vsel %vm6185, %v6180, %v6186
        %vm6188 = vcmp.eq.s32.totalorder %v6183, 2
        %v6189 = vxor.u32 %v6180, 2147483648
        %v6190 = vsel %vm6188, %v6189, %v6181
        %v6191 = vsel %vm6184, %v6187, %v6190
        %v6192 = vsel %vm6182, nan, %v6191
        %v6193 = vand.u32 2147483647, %v4471
        %vm6194 = vcmp.le.f32.partialorder %v6193, 0.7853982
        %vm6195 = vcmp.lt.s32.totalorder %v4471, 0
        %v6196 = vand.u32 %v4471, 2139095040
        %v6197 = vshrl.u32 %v6196, 23
        %v6198 = vsub.s32 %v6197, 127
        %v6199 = vand.u32 2147483647, %v4471
        %v6200 = vand.u32 %v6199, 8388607
        %v6201 = vor.u32 %v6200, 8388608
        %v6202 = vsub.s32 0, %v6201
        %v6203 = vadd.s32 %v6198, 1
        %vm6204 = vcmp.gt.s32.totalorder %v6203, 0
        %v6205 = vsel %vm6204, %v6203, 0
        %v6206 = vshrl.u32 %v6205, 5
        %v6207 = vand.u32 %v6205, 31
        %v6208 = vsub.s32 32, %v6207
        %v6209 = vshrl.u32 683565275, %v6208
        %v6210 = vshll.u32 683565275, %v6207
        %v6211 = vshrl.u32 2475754826, %v6208
        %v6212 = vor.u32 %v6210, %v6211
        %v6213 = vshll.u32 2475754826, %v6207
        %v6214 = vshrl.u32 2131351028, %v6208
        %v6215 = vor.u32 %v6213, %v6214
        %v6216 = vshll.u32 2131351028, %v6207
        %v6217 = vshrl.u32 2102212464, %v6208
        %v6218 = vor.u32 %v6216, %v6217
        %v6219 = vshll.u32 2102212464, %v6207
        %v6220 = vshrl.u32 920167782, %v6208
        %v6221 = vor.u32 %v6219, %v6220
        %v6222 = vshll.u32 920167782, %v6207
        %v6223 = vshrl.u32 1326507024, %v6208
        %v6224 = vor.u32 %v6222, %v6223
        %vm6225 = vcmp.lt.s32.totalorder %v6206, 1
        %vm6226 = vcmp.lt.s32.totalorder %v6206, 2
        %vm6227 = vcmp.lt.s32.totalorder %v6206, 3
        %vm6228 = vcmp.lt.s32.totalorder %v6206, 4
        %v6229 = vsel %vm6225, %v6209, %v6212
        %v6230 = vsel %vm6228, %v6218, 2102212464
        %v6231 = vsel %vm6227, %v6215, %v6230
        %v6232 = vsel %vm6226, %v6229, %v6231
        %v6233 = vsel %vm6225, %v6212, %v6215
        %v6234 = vsel %vm6228, %v6221, 920167782
        %v6235 = vsel %vm6227, %v6218, %v6234
        %v6236 = vsel %vm6226, %v6233, %v6235
        %v6237 = vsel %vm6225, %v6215, %v6218
        %v6238 = vsel %vm6228, %v6224, 1326507024
        %v6239 = vsel %vm6227, %v6221, %v6238
        %v6240 = vsel %vm6226, %v6237, %v6239
        %v6241 = vshll.u32 %v6201, 8
        %v6242 = vmul.u32.u64.compose %v6241, %v6240
        %v6243 = vextract.low.u32 %v6242
        %v6244 = vextract.high.u32 %v6242
        %v6245 = vmul.u32.u64.compose %v6241, %v6236
        %v6246 = vextract.low.u32 %v6245
        %v6247 = vextract.high.u32 %v6245
        %v6248 = vmul.u32 %v6241, %v6232
        %v6249 = vadd.s32 %v6244, %v6246
        %vm6250 = vc.u32 %v6244, %v6246
        %v6251 = vadd.s32 %v6247, 1
        %v6252 = vsel %vm6250, %v6251, %v6247
        %v6253 = vadd.s32 %v6248, %v6252
        %v6254 = vadd.s32 %v6253, 536870912
        %v6255 = vshrl.u32 %v6254, 30
        %v6256 = vshll.u32 %v6255, 30
        %v6257 = vsub.s32 %v6253, %v6256
        %vm6258 = vcmp.lt.s32.totalorder %v6257, 0
        %v6259 = vsub.s32 0, %v6257
        %v6260 = vsel %vm6258, %v6259, %v6257
        %v6261 = vclz %v6260
        %v6262 = vsub.s32 %v6261, 2
        %vm6263 = vcmp.gt.s32.totalorder 0, %v6262
        %v6264 = vsel %vm6263, 0, %v6262
        %v6265 = vsub.s32 32, %v6264
        %v6266 = vshll.u32 %v6257, %v6264
        %v6267 = vshrl.u32 %v6249, %v6265
        %v6268 = vor.u32 %v6266, %v6267
        %v6269 = vsub.s32 4294967266, %v6264
        %v6270 = vadd.s32 %v6269, 127
        %v6271 = vshll.u32 %v6270, 23
        %v6272 = vor.u32 4788187, %v6271
        %v6273 = vand.u32 2147483647, %v6272
        %v6275 = vcvt.s32.f32 %v6268
        %v6276 = vmul.f32 %v6275, %v6273
        %v6277 = vxor.u32 %v6276, 2147483648
        %v6278 = vsel %vm6195, %v6277, %v6276
        %v6279 = vsub.s32 4, %v6255
        %v6280 = vsel %vm6195, %v6279, %v6255
        %v6281 = vsel %vm6194, %v4471, %v6278
        %v6282 = vsel %vm6194, 0, %v6280
        %v6283 = vcosq.f32.pop %v6281
        %v6284 = vsinq.f32.pop %v6281
        %vm6285 = vweird.f32 %v4471
        %v6286 = vand.u32 %v6282, 3
        %vm6287 = vcmp.lt.s32.totalorder %v6286, 2
        %vm6288 = vcmp.eq.s32.totalorder %v6286, 0
        %v6289 = vxor.u32 %v6284, 2147483648
        %v6290 = vsel %vm6288, %v6283, %v6289
        %vm6291 = vcmp.eq.s32.totalorder %v6286, 2
        %v6292 = vxor.u32 %v6283, 2147483648
        %v6293 = vsel %vm6291, %v6292, %v6284
        %v6294 = vsel %vm6287, %v6290, %v6293
        %v6295 = vsel %vm6285, nan, %v6294
        %v6296 = vmul.f32 %v4743, %v4609
        %v6297 = vmul.f32 %v4847, %v4611
        %v6298 = vmul.f32 %v4951, %v4613
        %v6299 = vmul.f32 %v5055, %v4615
        %v6300 = vmul.f32 %v5159, %v4617
        %v6301 = vmul.f32 %v5263, %v4619
        %v6302 = vmul.f32 %v5367, %v4621
        %v6303 = vmul.f32 %v5471, %v4623
        %6304 = vst [vmem:[%s174 + $0x100] sm:$0xff] %v6296
        %6305 = vst [vmem:[%s174 + $0x108] sm:$0xff] %v6297
        %6306 = vst [vmem:[%s174 + $0x110] sm:$0xff] %v6298
        %6307 = vst [vmem:[%s174 + $0x118] sm:$0xff] %v6299
        %6308 = vst [vmem:[%s174 + $0x160] sm:$0xff] %v6300
        %6309 = vst [vmem:[%s174 + $0x168] sm:$0xff] %v6301
        %6310 = vst [vmem:[%s174 + $0x170] sm:$0xff] %v6302
        %6311 = vst [vmem:[%s174 + $0x178] sm:$0xff] %v6303
        %v6312 = vmul.f32 %v5574, %v4609
        %v6313 = vmul.f32 %v5677, %v4611
        %v6314 = vmul.f32 %v5780, %v4613
        %v6315 = vmul.f32 %v5883, %v4615
        %v6316 = vmul.f32 %v5986, %v4617
        %v6317 = vmul.f32 %v6089, %v4619
        %v6318 = vmul.f32 %v6192, %v4621
        %v6319 = vmul.f32 %v6295, %v4623
        %6320 = vst [vmem:[%s174 + $0x1c0] sm:$0xff] %v6312
        %6321 = vst [vmem:[%s174 + $0x1c8] sm:$0xff] %v6313
        %6322 = vst [vmem:[%s174 + $0x1d0] sm:$0xff] %v6314
        %6323 = vst [vmem:[%s174 + $0x1d8] sm:$0xff] %v6315
        %6324 = vst [vmem:[%s174 + $0x220] sm:$0xff] %v6316
        %6325 = vst [vmem:[%s174 + $0x228] sm:$0xff] %v6317
        %6326 = vst [vmem:[%s174 + $0x230] sm:$0xff] %v6318
        %6327 = vst [vmem:[%s174 + $0x238] sm:$0xff] %v6319
        %v6328 = vmul.f32 %v4743, 2.0
        %v6329 = vmul.f32 %v4847, 2.0
        %v6330 = vmul.f32 %v4951, 2.0
        %v6331 = vmul.f32 %v5055, 2.0
        %v6332 = vmul.f32 %v5159, 2.0
        %v6333 = vmul.f32 %v5263, 2.0
        %v6334 = vmul.f32 %v5367, 2.0
        %v6335 = vmul.f32 %v5471, 2.0
        %v6336 = vmul.f32 %v6328, %v5574
        %v6337 = vmul.f32 %v6329, %v5677
        %v6338 = vmul.f32 %v6330, %v5780
        %v6339 = vmul.f32 %v6331, %v5883
        %v6340 = vmul.f32 %v6332, %v5986
        %v6341 = vmul.f32 %v6333, %v6089
        %v6342 = vmul.f32 %v6334, %v6192
        %v6343 = vmul.f32 %v6335, %v6295
        %v6344 = vmul.f32 %v6328, %v4743
        %v6345 = vmul.f32 %v6329, %v4847
        %v6346 = vmul.f32 %v6330, %v4951
        %v6347 = vmul.f32 %v6331, %v5055
        %v6348 = vmul.f32 %v6332, %v5159
        %v6349 = vmul.f32 %v6333, %v5263
        %v6350 = vmul.f32 %v6334, %v5367
        %v6351 = vmul.f32 %v6335, %v5471
        %v6352 = vsub.f32 1.0, %v6344
        %v6353 = vsub.f32 1.0, %v6345
        %v6354 = vsub.f32 1.0, %v6346
        %v6355 = vsub.f32 1.0, %v6347
        %v6356 = vsub.f32 1.0, %v6348
        %v6357 = vsub.f32 1.0, %v6349
        %v6358 = vsub.f32 1.0, %v6350
        %v6359 = vsub.f32 1.0, %v6351
        %v6360 = vmul.f32 %v6336, %v4609
        %v6361 = vmul.f32 %v6337, %v4611
        %v6362 = vmul.f32 %v6338, %v4613
        %v6363 = vmul.f32 %v6339, %v4615
        %v6364 = vmul.f32 %v6340, %v4617
        %v6365 = vmul.f32 %v6341, %v4619
        %v6366 = vmul.f32 %v6342, %v4621
        %v6367 = vmul.f32 %v6343, %v4623
        %6368 = vst [vmem:[%s174 + $0x280] sm:$0xff] %v6360
        %6369 = vst [vmem:[%s174 + $0x288] sm:$0xff] %v6361
        %6370 = vst [vmem:[%s174 + $0x290] sm:$0xff] %v6362
        %6371 = vst [vmem:[%s174 + $0x298] sm:$0xff] %v6363
        %6372 = vst [vmem:[%s174 + $0x2e0] sm:$0xff] %v6364
        %6373 = vst [vmem:[%s174 + $0x2e8] sm:$0xff] %v6365
        %6374 = vst [vmem:[%s174 + $0x2f0] sm:$0xff] %v6366
        %6375 = vst [vmem:[%s174 + $0x2f8] sm:$0xff] %v6367
        %v6376 = vmul.f32 %v6352, %v4609
        %v6377 = vmul.f32 %v6353, %v4611
        %v6378 = vmul.f32 %v6354, %v4613
        %v6379 = vmul.f32 %v6355, %v4615
        %v6380 = vmul.f32 %v6356, %v4617
        %v6381 = vmul.f32 %v6357, %v4619
        %v6382 = vmul.f32 %v6358, %v4621
        %v6383 = vmul.f32 %v6359, %v4623
        %6384 = vst [vmem:[%s174 + $0x340] sm:$0xff] %v6376
        %6385 = vst [vmem:[%s174 + $0x348] sm:$0xff] %v6377
        %6386 = vst [vmem:[%s174 + $0x350] sm:$0xff] %v6378
        %6387 = vst [vmem:[%s174 + $0x358] sm:$0xff] %v6379
        %6388 = vst [vmem:[%s174 + $0x3a0] sm:$0xff] %v6380
        %6389 = vst [vmem:[%s174 + $0x3a8] sm:$0xff] %v6381
        %6390 = vst [vmem:[%s174 + $0x3b0] sm:$0xff] %v6382
        %6391 = vst [vmem:[%s174 + $0x3b8] sm:$0xff] %v6383
        %s6392 = sand.u32 %s75, 1
        %s6393 = scalar_lea.sflag [#allocation4], %s6392
        %s6394 = sand.u32 %s75, 1
        %s6395 = smul.addr %s6394, 960
        %s6396 = scalar_lea.vmem [#allocation7], %s6395
        // Predicated region
        $region37: #{tpu_custom_call.1} parent=27 // pred_check
          %p6397 = pneg %p85
        $region38: #{tpu_custom_call.1} parent=27 // pred_check_branch
          %6399 = sbr.rel (%p6397) target = $region40
        $region39: #{tpu_custom_call.1} parent=27 // pred_region
          %s6400 = smul.u32 12, %s20
          %s6402 = ssub.s32 15360, 15360
          %6403 = vsyncadd %s6393, %s6402
          %s6404 = smul.addr %s6400, 128
          %s6405 = scalar_lea.hbm %s2, %s6404
          %s6406 = sshll.u32 %s6396, 4
          %s6407 = int_to_ptr.vmem [resolvable:$true] %s6406
          %6412 = dma.vmem_to_hbm [thread:$0]  %s6407, 15360, %s6405, %s6393, 1536, 3072, 96
        $region40: #{tpu_custom_call.1} parent=27 // pred_fallthru
          _
      $region28: #{tpu_custom_call.1} parent=5 // pred_fallthru
        _
      %p6413 = scmp.le.s32.totalorder 2, %s15
      // Predicated region
      $region41: #{tpu_custom_call.1} parent=5 // pred_check
        %p6414 = pneg %p6413
      $region42: #{tpu_custom_call.1} parent=5 // pred_check_branch
        %6416 = sbr.rel (%p6414) target = $region44
      $region43: #{tpu_custom_call.1} parent=5 // pred_region
        %s6417 = ssub.s32 %s15, 2
        // Predicated region
        $region45: #{tpu_custom_call.1} parent=43 // pred_check
          %p6418 = pneg %p91
        $region46: #{tpu_custom_call.1} parent=43 // pred_check_branch
          %6420 = sbr.rel (%p6418) target = $region48
        $region47: #{tpu_custom_call.1} parent=43 // pred_region
          %s6421 = sand.u32 %s76, 1
          %s6422 = scalar_lea.sflag [#allocation4], %s6421
          %s6423 = sand.u32 %s76, 1
          %s6424 = smul.addr %s6423, 960
          %s6425 = scalar_lea.vmem [#allocation7], %s6424
          %6426 = dma.done %s6422, 15360
        $region48: #{tpu_custom_call.1} parent=43 // pred_fallthru
          _
      $region44: #{tpu_custom_call.1} parent=5 // pred_fallthru
        _
    $region6: #{tpu_custom_call.1} parent=1 // loop_footer
      %s19 = sadd.s32 1, %s15
    $region7: #{tpu_custom_call.1} parent=1 // loop_footer_branch
      %14 = sbr.rel target = $region3
    $region8: #{tpu_custom_call.1} parent=1 // loop_exit
      _
    %6427 = vsyncpa [#allocation3], 1
    %s6428 = scalar_lea.sflag [#allocation3], 1
    %6429 = vsyncpa %s6428, 1
    %6430 = vsyncpa [#allocation6], 1
    %6431 = vsyncpa [#allocation4], 1
    %s6432 = scalar_lea.sflag [#allocation4], 1
    %6433 = vsyncpa %s6432, 1

</llo_original>
